<compile_context>
chip_gen: v7x
topology: tpu7x:2x2x1
jax: 0.10.0
libtpu: 0.0.40
codegen_flags: <defaults>
</compile_context>

<pallas_src>
import jax
import jax.numpy as jnp
from jax.experimental import pallas as pl
from jax.experimental.pallas import tpu as pltpu

EPS = 1e-5          # PyTorch BatchNorm2d default eps
LANE = 128          # TPU lane width

_PHASES = ((0, 0), (0, 1), (1, 0), (1, 1))


def _round_up(x, m):
    return (x + m - 1) // m * m


def _vmem_budget():
    """Generation-aware VMEM limit (v5e/v6e: 128 MiB physical, v7x: 64 MiB)."""
    cap = 64 * 1024 * 1024
    try:
        cap = int(pltpu.get_tpu_info().vmem_capacity_bytes)
    except Exception:
        pass
    return min((cap * 3) // 4, 96 * 1024 * 1024)


def _pick_row_tile(m, cap=1024):
    for t in range(min(cap, m), 0, -1):
        if m % t == 0 and (t % 8 == 0 or t == m):
            return t
    return m


def _pick_batch_tile(n, per_image_bytes, budget, rows_per_image, max_rows=2048):
    bt = 1
    for cand in range(1, n + 1):
        if n % cand:
            continue
        if cand * per_image_bytes <= budget and cand * rows_per_image <= max_rows:
            bt = cand
    return bt


# ------------------------------ Pallas kernels ------------------------------ #

def _fused_block_kernel(xs_ref, wd_ref, wu_ref, y_ref, st_ref,
                        h_ref, ad_ref, au_ref):
    """LeakyReLU + Conv2d(k4,s2,p1) + ReLU + ConvTranspose2d(k4,s2,p1), fully
    fused per (batch-tile, cout-tile); BN sum / sum-of-squares in the epilogue.
    The mid activation h never leaves VMEM."""
    bt = xs_ref.shape[0]
    ho = xs_ref.shape[1] - 1
    wo = xs_ref.shape[2] - 1
    c4p = xs_ref.shape[3]
    cmid_p = h_ref.shape[3]
    nt = y_ref.shape[3]
    m = bt * ho * wo

    # LeakyReLU(0.2), hoisted out of the tap loop, directly in bf16.
    xa = xs_ref[...]
    xa = jnp.where(xa > 0, xa, xa * 0.2)

    # Down conv: assemble the 4 taps along K in VMEM -> one MXU matmul, K = 4*c4p.
    for t, (dh, dw) in enumerate(_PHASES):
        ad_ref[:, t * c4p:(t + 1) * c4p] = (
            xa[:, dh:dh + ho, dw:dw + wo, :].reshape(m, c4p))
    hacc = jnp.dot(ad_ref[...], wd_ref[...], preferred_element_type=jnp.float32)

    # ReLU hoisted; keep h in a zero-halo VMEM scratch (replaces the HBM round
    # trip + XLA pad of the previous two-kernel version).
    h_ref[...] = jnp.zeros_like(h_ref)
    h_ref[:, 1:1 + ho, 1:1 + wo, :] = (
        jnp.maximum(hacc, 0.0).astype(h_ref.dtype).reshape(bt, ho, wo, cmid_p))

    # Up conv: 4 output phases; per phase the 4 taps are fused along K = 4*cmid_p.
    s_sum = jnp.zeros((1, nt), jnp.float32)
    s_sq = jnp.zeros((1, nt), jnp.float32)
    for p, (rh, rw) in enumerate(_PHASES):
        for t, (dh, dw) in enumerate(_PHASES):
            au_ref[:, t * cmid_p:(t + 1) * cmid_p] = (
                h_ref[:, rh + dh:rh + dh + ho, rw + dw:rw + dw + wo, :]
                .reshape(m, cmid_p))
        acc = jnp.dot(au_ref[...], wu_ref[p], preferred_element_type=jnp.float32)
        y_ref[:, p] = acc.reshape(bt, ho * wo, nt).astype(y_ref.dtype)
        s_sum += jnp.sum(acc, axis=0, keepdims=True)
        s_sq += jnp.sum(acc * acc, axis=0, keepdims=True)
    st_ref[0] = jnp.concatenate([s_sum, s_sq], axis=0)


def _bn_apply_kernel(y_ref, sc_ref, sh_ref, o_ref):
    """BatchNorm pass 2: per-channel y*scale + shift, lane-dense row tiles."""
    o_ref[...] = y_ref[...].astype(jnp.float32) * sc_ref[...] + sh_ref[...]


# --------------------------- weight preprocessing --------------------------- #

def prepare_params(params):
    """One-time (hoisted) weight preprocessing: phase-decomposed, tap-K-fused,
    channel-padded bf16 weight tensors for the fused Pallas kernel."""
    w_down = params["down_w"]                   # (cmid, cin, 4, 4)  Conv2d (O,I,kh,kw)
    w_up = params["up_w"]                       # (cmid, cout, 4, 4) ConvT  (I,O,kh,kw)
    cmid, cin = w_down.shape[0], w_down.shape[1]
    cout = w_up.shape[1]
    c4p = _round_up(4 * cin, LANE)
    cmid_p = _round_up(cmid, LANE)
    cout_p = _round_up(cout, LANE)

    # Down conv: kh = 2*dh + ph, kw = 2*dw + pw; taps fused along K with rows
    # ordered (tap=(dh,dw), ph, pw, cin) to match the in-kernel K assembly.
    w = w_down.reshape(cmid, cin, 2, 2, 2, 2)   # (O, I, dh, ph, dw, pw)
    w = jnp.transpose(w, (2, 4, 3, 5, 1, 0))    # (dh, dw, ph, pw, I, O)
    w = w.reshape(4, 4 * cin, cmid)
    w = jnp.pad(w, ((0, 0), (0, c4p - 4 * cin), (0, cmid_p - cmid)))
    wd = w.reshape(4 * c4p, cmid_p).astype(jnp.bfloat16)

    # Transposed conv: output phase (rh, rw), tap (dh, dw) uses kernel element
    # (3 - 2*dh - rh, 3 - 2*dw - rw); per phase the 4 taps are fused along K.
    taps = []
    for rh, rw in _PHASES:
        for dh, dw in _PHASES:
            taps.append(w_up[:, :, 3 - 2 * dh - rh, 3 - 2 * dw - rw])
    w = jnp.stack(taps, axis=0)                 # (16, cmid, cout)
    w = jnp.pad(w, ((0, 0), (0, cmid_p - cmid), (0, cout_p - cout)))
    wu = w.reshape(4, 4 * cmid_p, cout_p).astype(jnp.bfloat16)

    return {"wd": wd, "wu": wu,
            "gamma": params["bn_gamma"], "beta": params["bn_beta"]}


# ------------------------------ forward wrapper ------------------------------ #

def unet_innermost_block(x_nchw, prep):
    """forward(x) = cat([x, BN(ConvT(ReLU(Conv(LeakyReLU(x)))))], channel)."""
    wd, wu = prep["wd"], prep["wu"]
    gamma, beta = prep["gamma"], prep["beta"]

    n, cin, hh, ww = x_nchw.shape
    assert hh % 2 == 0 and ww % 2 == 0
    ho, wo = hh // 2, ww // 2
    c4p = wd.shape[0] // 4
    cmid_p = wd.shape[1]
    cout_p = wu.shape[2]
    cout = gamma.shape[0]
    # Lane tile of the up-conv output: 256 when possible (fills the 256-wide MXU
    # on v6e/v7x), otherwise 128 (already full width on v5e).
    nt = 256 if cout_p % 256 == 0 else LANE
    n_co = cout_p // nt
    vmem_limit = _vmem_budget()

    x = jnp.transpose(x_nchw, (0, 2, 3, 1))                        # NHWC, f32

    # space-to-depth of the zero-padded input (bf16, channel-padded to lane mult)
    xp = jnp.pad(x, ((0, 0), (1, 1), (1, 1), (0, 0)))
    xs = xp.reshape(n, ho + 1, 2, wo + 1, 2, cin)
    xs = jnp.transpose(xs, (0, 1, 3, 2, 4, 5)).reshape(n, ho + 1, wo + 1, 4 * cin)
    xs = jnp.pad(xs, ((0, 0), (0, 0), (0, 0), (0, c4p - 4 * cin))).astype(jnp.bfloat16)

    # Batch tile: raise matmul M (= bt*ho*wo) while staying inside the VMEM budget.
    per_img = ((ho + 1) * (wo + 1) * c4p * 2 * 2          # xs in (double-buffered)
               + 4 * ho * wo * nt * 2 * 2                 # y out (double-buffered)
               + (ho + 2) * (wo + 2) * cmid_p * 2         # h halo scratch
               + ho * wo * (4 * c4p + 4 * cmid_p) * 2     # K-assembly scratches
               + ho * wo * (cmid_p + nt) * 4 * 2)         # f32 accumulator slack
    w_bytes = 2 * (wd.size + wu.size)
    bt = _pick_batch_tile(n, per_img,
                          max(vmem_limit - 2 * w_bytes, vmem_limit // 4),
                          rows_per_image=ho * wo)
    nb = n // bt

    # ------ fused: LeakyReLU + Conv + ReLU + ConvT (+ BN statistics) ------ #
    # Grid: cout-tile OUTER so both weight blocks stay VMEM-resident while the
    # small activation blocks stream over the inner batch axis.
    # (When n_co > 1 the down conv is recomputed per cout tile; fine at
    # innermost-block channel counts.)
    yph, stats = pl.pallas_call(
        _fused_block_kernel,
        out_shape=(jax.ShapeDtypeStruct((n, 4, ho * wo, cout_p), jnp.bfloat16),
                   jax.ShapeDtypeStruct((nb, 2, cout_p), jnp.float32)),
        grid=(n_co, nb),
        in_specs=[
            pl.BlockSpec((bt, ho + 1, wo + 1, c4p), lambda j, i: (i, 0, 0, 0)),
            pl.BlockSpec((4 * c4p, cmid_p), lambda j, i: (0, 0)),
            pl.BlockSpec((4, 4 * cmid_p, nt), lambda j, i: (0, 0, j)),
        ],
        out_specs=(pl.BlockSpec((bt, 4, ho * wo, nt), lambda j, i: (i, 0, 0, j)),
                   pl.BlockSpec((1, 2, nt), lambda j, i: (i, 0, j))),
        scratch_shapes=[
            pltpu.VMEM((bt, ho + 2, wo + 2, cmid_p), jnp.bfloat16),  # h, zero halo
            pltpu.VMEM((bt * ho * wo, 4 * c4p), jnp.bfloat16),       # down K assembly
            pltpu.VMEM((bt * ho * wo, 4 * cmid_p), jnp.bfloat16),    # up K assembly
        ],
        compiler_params=pltpu.CompilerParams(
            dimension_semantics=("parallel", "parallel"),
            vmem_limit_bytes=vmem_limit),
        cost_estimate=pl.CostEstimate(
            flops=2 * n * ho * wo * (n_co * 4 * c4p * cmid_p
                                     + 16 * cmid_p * cout_p),
            transcendentals=0,
            bytes_accessed=2 * (n_co * xs.size + wd.size + wu.size
                                + n * 4 * ho * wo * cout_p) + 4 * nb * 2 * cout_p),
    )(xs, wd, wu)

    # ------- BatchNorm (train-mode batch stats): finalize, tiled apply -------- #
    # NOTE: var = E[y^2] - E[y]^2 in one f32 pass; acceptable at this tolerance,
    # switch to a compensated / two-pass finalize if tolerance tightens.
    m_rows = n * hh * ww
    s = jnp.sum(stats, axis=0)                                     # (2, cout_p)
    mean = s[0] / m_rows
    var = jnp.maximum(s[1] / m_rows - mean * mean, 0.0)
    gamma_p = jnp.pad(gamma, (0, cout_p - cout))
    beta_p = jnp.pad(beta, (0, cout_p - cout))
    scale = (gamma_p * jax.lax.rsqrt(var + EPS)).reshape(1, cout_p)
    shift = (beta_p - mean * scale[0]).reshape(1, cout_p)

    y_flat = yph.reshape(m_rows, cout_p)
    tile = _pick_row_tile(m_rows, cap=1024)
    y_norm = pl.pallas_call(
        _bn_apply_kernel,
        out_shape=jax.ShapeDtypeStruct((m_rows, cout_p), jnp.float32),
        grid=(m_rows // tile,),
        in_specs=[
            pl.BlockSpec((tile, cout_p), lambda i: (i, 0)),
            pl.BlockSpec((1, cout_p), lambda i: (0, 0)),
            pl.BlockSpec((1, cout_p), lambda i: (0, 0)),
        ],
        out_specs=pl.BlockSpec((tile, cout_p), lambda i: (i, 0)),
        compiler_params=pltpu.CompilerParams(
            dimension_semantics=("parallel",),
            vmem_limit_bytes=vmem_limit),
        cost_estimate=pl.CostEstimate(
            flops=2 * m_rows * cout_p, transcendentals=0,
            bytes_accessed=(2 + 4 + 4) * m_rows * cout_p),
    )(y_flat, scale, shift)

    # --- interleave output phases + skip-connection concat (layout only) --- #
    y_norm = y_norm.reshape(n, 2, 2, ho, wo, cout_p)
    y_norm = jnp.transpose(y_norm, (0, 3, 1, 4, 2, 5)).reshape(n, hh, ww, cout_p)
    out = jnp.concatenate([x, y_norm[..., :cout]], axis=-1)
    return jnp.transpose(out, (0, 3, 1, 2))                        # NHWC -> NCHW


# ------------------------------ f32 reference ------------------------------- #

def _reference(x, params):
    """Pure-JAX f32 reference of the PyTorch forward (training-mode BatchNorm)."""
    xa = jnp.where(x >= 0, x, 0.2 * x)
    h = jax.lax.conv_general_dilated(
        xa, params["down_w"], window_strides=(2, 2), padding=((1, 1), (1, 1)),
        dimension_numbers=("NCHW", "OIHW", "NCHW"),
        precision=jax.lax.Precision.HIGHEST)
    ha = jnp.maximum(h, 0.0)
    w_t = jnp.transpose(params["up_w"], (1, 0, 2, 3))[:, :, ::-1, ::-1]
    y = jax.lax.conv_general_dilated(
        ha, w_t, window_strides=(1, 1), padding=((2, 2), (2, 2)),
        lhs_dilation=(2, 2), dimension_numbers=("NCHW", "OIHW", "NCHW"),
        precision=jax.lax.Precision.HIGHEST)
    mean = y.mean(axis=(0, 2, 3), keepdims=True)
    var = jnp.mean((y - mean) ** 2, axis=(0, 2, 3), keepdims=True)
    yn = (y - mean) * jax.lax.rsqrt(var + EPS)
    yn = yn * params["bn_gamma"].reshape(1, -1, 1, 1) + params["bn_beta"].reshape(1, -1, 1, 1)
    return jnp.concatenate([x, yn], axis=1)


# ---------------------------------- main ------------------------------------ #

if __name__ == "__main__":
    key = jax.random.PRNGKey(0)
    n, outer_nc, inner_nc, hh, ww = 2, 4, 8, 16, 16
    k_x, k_d, k_u, k_g, k_b = jax.random.split(key, 5)

    x = jax.random.normal(k_x, (n, outer_nc, hh, ww), jnp.float32)
    params = {
        # Conv2d(outer_nc -> inner_nc, k=4), no bias (BatchNorm)
        "down_w": 0.05 * jax.random.normal(k_d, (inner_nc, outer_nc, 4, 4), jnp.float32),
        # ConvTranspose2d(inner_nc -> outer_nc, k=4), no bias (BatchNorm)
        "up_w": 0.05 * jax.random.normal(k_u, (inner_nc, outer_nc, 4, 4), jnp.float32),
        # BatchNorm2d(outer_nc) affine params
        "bn_gamma": 1.0 + 0.1 * jax.random.normal(k_g, (outer_nc,), jnp.float32),
        "bn_beta": 0.1 * jax.random.normal(k_b, (outer_nc,), jnp.float32),
    }

    prep = prepare_params(params)                 # hoisted, one-time weight prep
    fwd = jax.jit(unet_innermost_block)
    out = jax.block_until_ready(fwd(x, prep))

    assert out.shape == (n, 2 * outer_nc, hh, ww), out.shape
    assert bool(jnp.all(jnp.isfinite(out)))
    ref = _reference(x, params)
    max_err = float(jnp.max(jnp.abs(out - ref)))
    assert max_err < 0.15, f"max abs error vs f32 reference: {max_err}"
    print("KERNEL_OK")
</pallas_src>

<mosaic_0001>
module attributes {stable_mosaic.version = 11 : i64} {
  func.func @_bn_apply_kernel(%arg0: i32, %arg1: memref<512x128xbf16, #tpu.memory_space<vmem>>, %arg2: memref<1x128xf32, #tpu.memory_space<vmem>>, %arg3: memref<1x128xf32, #tpu.memory_space<vmem>>, %arg4: memref<512x128xf32, #tpu.memory_space<vmem>>) attributes {dimension_semantics = [#tpu.dimension_semantics<parallel>], iteration_bounds = array<i64: 1>, scalar_prefetch = 0 : i64, scratch_operands = 0 : i64, tpu.core_type = #tpu.core_type<tc>, window_params = [{transform_indices = @transform_0, window_bounds = array<i64: 512, 128>}, {pipeline_mode = #tpu.pipeline_mode<synchronous>, transform_indices = @transform_1, window_bounds = array<i64: 1, 128>}, {pipeline_mode = #tpu.pipeline_mode<synchronous>, transform_indices = @transform_2, window_bounds = array<i64: 1, 128>}, {transform_indices = @transform_3, window_bounds = array<i64: 512, 128>}]} {
    %c0 = arith.constant 0 : index
    %c0_0 = arith.constant 0 : index
    %0 = vector.load %arg1[%c0, %c0_0] : memref<512x128xbf16, #tpu.memory_space<vmem>>, vector<512x128xbf16>
    %1 = arith.extf %0 : vector<512x128xbf16> to vector<512x128xf32>
    %c0_1 = arith.constant 0 : index
    %c0_2 = arith.constant 0 : index
    %2 = vector.load %arg2[%c0_1, %c0_2] : memref<1x128xf32, #tpu.memory_space<vmem>>, vector<1x128xf32>
    %3 = vector.broadcast %2 : vector<1x128xf32> to vector<512x128xf32>
    %4 = arith.mulf %1, %3 : vector<512x128xf32>
    %c0_3 = arith.constant 0 : index
    %c0_4 = arith.constant 0 : index
    %5 = vector.load %arg3[%c0_3, %c0_4] : memref<1x128xf32, #tpu.memory_space<vmem>>, vector<1x128xf32>
    %6 = vector.broadcast %5 : vector<1x128xf32> to vector<512x128xf32>
    %7 = arith.addf %4, %6 : vector<512x128xf32>
    %c0_5 = arith.constant 0 : index
    %c0_6 = arith.constant 0 : index
    %8 = vector.load %arg4[%c0_5, %c0_6] : memref<512x128xf32, #tpu.memory_space<vmem>>, vector<512x128xf32>
    tpu.vector_store %arg4[%c0_5, %c0_6], %7 {strides = array<i32>} : memref<512x128xf32, #tpu.memory_space<vmem>>, vector<512x128xf32>,
    return
  }
  func.func @transform_0(%arg0: i32) -> (i32, i32) {
    %c0_i32 = arith.constant 0 : i32
    %c0_i32_0 = arith.constant 0 : i32
    return %arg0, %c0_i32 : i32, i32
  }
  func.func @transform_1(%arg0: i32) -> (i32, i32) {
    %c0_i32 = arith.constant 0 : i32
    %c0_i32_0 = arith.constant 0 : i32
    %c0_i32_1 = arith.constant 0 : i32
    return %c0_i32, %c0_i32_0 : i32, i32
  }
  func.func @transform_2(%arg0: i32) -> (i32, i32) {
    %c0_i32 = arith.constant 0 : i32
    %c0_i32_0 = arith.constant 0 : i32
    %c0_i32_1 = arith.constant 0 : i32
    return %c0_i32, %c0_i32_0 : i32, i32
  }
  func.func @transform_3(%arg0: i32) -> (i32, i32) {
    %c0_i32 = arith.constant 0 : i32
    %c0_i32_0 = arith.constant 0 : i32
    return %arg0, %c0_i32 : i32, i32
  }
}

module attributes {stable_mosaic.version = 11 : i64} {
  func.func @_fused_block_kernel(%arg0: i32, %arg1: i32, %arg2: memref<2x9x9x128xbf16, #tpu.memory_space<vmem>>, %arg3: memref<512x128xbf16, #tpu.memory_space<vmem>>, %arg4: memref<4x512x128xbf16, #tpu.memory_space<vmem>>, %arg5: memref<2x4x64x128xbf16, #tpu.memory_space<vmem>>, %arg6: memref<1x2x128xf32, #tpu.memory_space<vmem>>, %arg7: memref<2x10x10x128xbf16, #tpu.memory_space<vmem>>, %arg8: memref<128x512xbf16, #tpu.memory_space<vmem>>, %arg9: memref<128x512xbf16, #tpu.memory_space<vmem>>) attributes {dimension_semantics = [#tpu.dimension_semantics<parallel>, #tpu.dimension_semantics<parallel>], iteration_bounds = array<i64: 1, 1>, scalar_prefetch = 0 : i64, scratch_operands = 3 : i64, tpu.core_type = #tpu.core_type<tc>, window_params = [{transform_indices = @transform_0, window_bounds = array<i64: 2, 9, 9, 128>}, {pipeline_mode = #tpu.pipeline_mode<synchronous>, transform_indices = @transform_1, window_bounds = array<i64: 512, 128>}, {transform_indices = @transform_2, window_bounds = array<i64: 4, 512, 128>}, {transform_indices = @transform_3, window_bounds = array<i64: 2, 4, 64, 128>}, {transform_indices = @transform_4, window_bounds = array<i64: 1, 2, 128>}]} {
    %c0 = arith.constant 0 : index
    %c0_0 = arith.constant 0 : index
    %c0_1 = arith.constant 0 : index
    %c0_2 = arith.constant 0 : index
    %0 = vector.load %arg2[%c0, %c0_0, %c0_1, %c0_2] : memref<2x9x9x128xbf16, #tpu.memory_space<vmem>>, vector<2x9x9x128xbf16>
    %cst = arith.constant 0.000000e+00 : bf16
    %1 = vector.broadcast %cst : bf16 to vector<2x9x9x128xbf16>
    %2 = arith.cmpf ogt, %0, %1 : vector<2x9x9x128xbf16>
    %cst_3 = arith.constant 2.001950e-01 : bf16
    %3 = vector.broadcast %cst_3 : bf16 to vector<2x9x9x128xbf16>
    %4 = arith.mulf %0, %3 : vector<2x9x9x128xbf16>
    %5 = arith.select %2, %0, %4 : vector<2x9x9x128xi1>, vector<2x9x9x128xbf16>
    %6 = vector.extract_strided_slice %5 {offsets = [0, 0, 0, 0], sizes = [2, 8, 8, 128], strides = [1, 1, 1, 1]} : vector<2x9x9x128xbf16> to vector<2x8x8x128xbf16>
    %7 = vector.shape_cast %6 : vector<2x8x8x128xbf16> to vector<128x128xbf16>
    %c0_4 = arith.constant 0 : index
    %c0_5 = arith.constant 0 : index
    %8 = vector.load %arg8[%c0_4, %c0_5] : memref<128x512xbf16, #tpu.memory_space<vmem>>, vector<128x128xbf16>
    tpu.vector_store %arg8[%c0_4, %c0_5], %7 {strides = array<i32>} : memref<128x512xbf16, #tpu.memory_space<vmem>>, vector<128x128xbf16>,
    %9 = vector.extract_strided_slice %5 {offsets = [0, 0, 1, 0], sizes = [2, 8, 8, 128], strides = [1, 1, 1, 1]} : vector<2x9x9x128xbf16> to vector<2x8x8x128xbf16>
    %10 = vector.shape_cast %9 : vector<2x8x8x128xbf16> to vector<128x128xbf16>
    %c0_6 = arith.constant 0 : index
    %c128 = arith.constant 128 : index
    %11 = vector.load %arg8[%c0_6, %c128] : memref<128x512xbf16, #tpu.memory_space<vmem>>, vector<128x128xbf16>
    tpu.vector_store %arg8[%c0_6, %c128], %10 {strides = array<i32>} : memref<128x512xbf16, #tpu.memory_space<vmem>>, vector<128x128xbf16>,
    %12 = vector.extract_strided_slice %5 {offsets = [0, 1, 0, 0], sizes = [2, 8, 8, 128], strides = [1, 1, 1, 1]} : vector<2x9x9x128xbf16> to vector<2x8x8x128xbf16>
    %13 = vector.shape_cast %12 : vector<2x8x8x128xbf16> to vector<128x128xbf16>
    %c0_7 = arith.constant 0 : index
    %c256 = arith.constant 256 : index
    %14 = vector.load %arg8[%c0_7, %c256] : memref<128x512xbf16, #tpu.memory_space<vmem>>, vector<128x128xbf16>
    tpu.vector_store %arg8[%c0_7, %c256], %13 {strides = array<i32>} : memref<128x512xbf16, #tpu.memory_space<vmem>>, vector<128x128xbf16>,
    %15 = vector.extract_strided_slice %5 {offsets = [0, 1, 1, 0], sizes = [2, 8, 8, 128], strides = [1, 1, 1, 1]} : vector<2x9x9x128xbf16> to vector<2x8x8x128xbf16>
    %16 = vector.shape_cast %15 : vector<2x8x8x128xbf16> to vector<128x128xbf16>
    %c0_8 = arith.constant 0 : index
    %c384 = arith.constant 384 : index
    %17 = vector.load %arg8[%c0_8, %c384] : memref<128x512xbf16, #tpu.memory_space<vmem>>, vector<128x128xbf16>
    tpu.vector_store %arg8[%c0_8, %c384], %16 {strides = array<i32>} : memref<128x512xbf16, #tpu.memory_space<vmem>>, vector<128x128xbf16>,
    %c0_9 = arith.constant 0 : index
    %c0_10 = arith.constant 0 : index
    %18 = vector.load %arg8[%c0_9, %c0_10] : memref<128x512xbf16, #tpu.memory_space<vmem>>, vector<128x512xbf16>
    %c0_11 = arith.constant 0 : index
    %c0_12 = arith.constant 0 : index
    %19 = vector.load %arg3[%c0_11, %c0_12] : memref<512x128xbf16, #tpu.memory_space<vmem>>, vector<512x128xbf16>
    %cst_13 = arith.constant dense<0.000000e+00> : vector<128x128xf32>
    %20 = tpu.matmul %18, %19, %cst_13 {dimension_numbers = #tpu.dot_dimension_numbers<[1], [0], [0], [1], [0, 0, 1, 1], [], []>} : vector<128x512xbf16>, vector<512x128xbf16>, vector<128x128xf32> -> vector<128x128xf32>
    %cst_14 = arith.constant 0.000000e+00 : bf16
    %21 = vector.broadcast %cst_14 : bf16 to vector<2x10x10x128xbf16>
    %c0_15 = arith.constant 0 : index
    %c0_16 = arith.constant 0 : index
    %c0_17 = arith.constant 0 : index
    %c0_18 = arith.constant 0 : index
    %22 = vector.load %arg7[%c0_15, %c0_16, %c0_17, %c0_18] : memref<2x10x10x128xbf16, #tpu.memory_space<vmem>>, vector<2x10x10x128xbf16>
    tpu.vector_store %arg7[%c0_15, %c0_16, %c0_17, %c0_18], %21 {strides = array<i32>} : memref<2x10x10x128xbf16, #tpu.memory_space<vmem>>, vector<2x10x10x128xbf16>,
    %cst_19 = arith.constant 0.000000e+00 : f32
    %23 = vector.broadcast %cst_19 : f32 to vector<128x128xf32>
    %24 = arith.maximumf %20, %23 : vector<128x128xf32>
    %25 = arith.truncf %24 : vector<128x128xf32> to vector<128x128xbf16>
    %26 = vector.shape_cast %25 : vector<128x128xbf16> to vector<2x8x8x128xbf16>
    %c0_20 = arith.constant 0 : index
    %c1 = arith.constant 1 : index
    %c1_21 = arith.constant 1 : index
    %c0_22 = arith.constant 0 : index
    %27 = vector.load %arg7[%c0_20, %c1, %c1_21, %c0_22] : memref<2x10x10x128xbf16, #tpu.memory_space<vmem>>, vector<2x8x8x128xbf16>
    tpu.vector_store %arg7[%c0_20, %c1, %c1_21, %c0_22], %26 {strides = array<i32>} : memref<2x10x10x128xbf16, #tpu.memory_space<vmem>>, vector<2x8x8x128xbf16>,
    %cst_23 = arith.constant 0.000000e+00 : f32
    %28 = vector.broadcast %cst_23 : f32 to vector<1x128xf32>
    %cst_24 = arith.constant 0.000000e+00 : f32
    %29 = vector.broadcast %cst_24 : f32 to vector<1x128xf32>
    %c0_25 = arith.constant 0 : index
    %c0_26 = arith.constant 0 : index
    %c0_27 = arith.constant 0 : index
    %c0_28 = arith.constant 0 : index
    %30 = vector.load %arg7[%c0_25, %c0_26, %c0_27, %c0_28] : memref<2x10x10x128xbf16, #tpu.memory_space<vmem>>, vector<2x8x8x128xbf16>
    %31 = vector.shape_cast %30 : vector<2x8x8x128xbf16> to vector<128x128xbf16>
    %c0_29 = arith.constant 0 : index
    %c0_30 = arith.constant 0 : index
    %32 = vector.load %arg9[%c0_29, %c0_30] : memref<128x512xbf16, #tpu.memory_space<vmem>>, vector<128x128xbf16>
    tpu.vector_store %arg9[%c0_29, %c0_30], %31 {strides = array<i32>} : memref<128x512xbf16, #tpu.memory_space<vmem>>, vector<128x128xbf16>,
    %c0_31 = arith.constant 0 : index
    %c0_32 = arith.constant 0 : index
    %c1_33 = arith.constant 1 : index
    %c0_34 = arith.constant 0 : index
    %33 = vector.load %arg7[%c0_31, %c0_32, %c1_33, %c0_34] : memref<2x10x10x128xbf16, #tpu.memory_space<vmem>>, vector<2x8x8x128xbf16>
    %34 = vector.shape_cast %33 : vector<2x8x8x128xbf16> to vector<128x128xbf16>
    %c0_35 = arith.constant 0 : index
    %c128_36 = arith.constant 128 : index
    %35 = vector.load %arg9[%c0_35, %c128_36] : memref<128x512xbf16, #tpu.memory_space<vmem>>, vector<128x128xbf16>
    tpu.vector_store %arg9[%c0_35, %c128_36], %34 {strides = array<i32>} : memref<128x512xbf16, #tpu.memory_space<vmem>>, vector<128x128xbf16>,
    %c0_37 = arith.constant 0 : index
    %c1_38 = arith.constant 1 : index
    %c0_39 = arith.constant 0 : index
    %c0_40 = arith.constant 0 : index
    %36 = vector.load %arg7[%c0_37, %c1_38, %c0_39, %c0_40] : memref<2x10x10x128xbf16, #tpu.memory_space<vmem>>, vector<2x8x8x128xbf16>
    %37 = vector.shape_cast %36 : vector<2x8x8x128xbf16> to vector<128x128xbf16>
    %c0_41 = arith.constant 0 : index
    %c256_42 = arith.constant 256 : index
    %38 = vector.load %arg9[%c0_41, %c256_42] : memref<128x512xbf16, #tpu.memory_space<vmem>>, vector<128x128xbf16>
    tpu.vector_store %arg9[%c0_41, %c256_42], %37 {strides = array<i32>} : memref<128x512xbf16, #tpu.memory_space<vmem>>, vector<128x128xbf16>,
    %c0_43 = arith.constant 0 : index
    %c1_44 = arith.constant 1 : index
    %c1_45 = arith.constant 1 : index
    %c0_46 = arith.constant 0 : index
    %39 = vector.load %arg7[%c0_43, %c1_44, %c1_45, %c0_46] : memref<2x10x10x128xbf16, #tpu.memory_space<vmem>>, vector<2x8x8x128xbf16>
    %40 = vector.shape_cast %39 : vector<2x8x8x128xbf16> to vector<128x128xbf16>
    %c0_47 = arith.constant 0 : index
    %c384_48 = arith.constant 384 : index
    %41 = vector.load %arg9[%c0_47, %c384_48] : memref<128x512xbf16, #tpu.memory_space<vmem>>, vector<128x128xbf16>
    tpu.vector_store %arg9[%c0_47, %c384_48], %40 {strides = array<i32>} : memref<128x512xbf16, #tpu.memory_space<vmem>>, vector<128x128xbf16>,
    %c0_49 = arith.constant 0 : index
    %c0_50 = arith.constant 0 : index
    %42 = vector.load %arg9[%c0_49, %c0_50] : memref<128x512xbf16, #tpu.memory_space<vmem>>, vector<128x512xbf16>
    %c0_51 = arith.constant 0 : index
    %c0_52 = arith.constant 0 : index
    %c0_53 = arith.constant 0 : index
    %43 = vector.load %arg4[%c0_51, %c0_52, %c0_53] : memref<4x512x128xbf16, #tpu.memory_space<vmem>>, vector<1x512x128xbf16>
    %44 = vector.shape_cast %43 : vector<1x512x128xbf16> to vector<512x128xbf16>
    %cst_54 = arith.constant dense<0.000000e+00> : vector<128x128xf32>
    %45 = tpu.matmul %42, %44, %cst_54 {dimension_numbers = #tpu.dot_dimension_numbers<[1], [0], [0], [1], [0, 0, 1, 1], [], []>} : vector<128x512xbf16>, vector<512x128xbf16>, vector<128x128xf32> -> vector<128x128xf32>
    %46 = vector.shape_cast %45 : vector<128x128xf32> to vector<2x64x128xf32>
    %47 = arith.truncf %46 : vector<2x64x128xf32> to vector<2x64x128xbf16>
    %c0_55 = arith.constant 0 : index
    %c0_56 = arith.constant 0 : index
    %c0_57 = arith.constant 0 : index
    %c0_58 = arith.constant 0 : index
    %48 = vector.load %arg5[%c0_55, %c0_56, %c0_57, %c0_58] : memref<2x4x64x128xbf16, #tpu.memory_space<vmem>>, vector<2x1x64x128xbf16>
    %49 = vector.shape_cast %48 : vector<2x1x64x128xbf16> to vector<2x64x128xbf16>
    %50 = vector.shape_cast %47 : vector<2x64x128xbf16> to vector<2x1x64x128xbf16>
    tpu.vector_store %arg5[%c0_55, %c0_56, %c0_57, %c0_58], %50 {strides = array<i32>} : memref<2x4x64x128xbf16, #tpu.memory_space<vmem>>, vector<2x1x64x128xbf16>,
    %cst_59 = arith.constant dense<0.000000e+00> : vector<128xf32>
    %51 = vector.multi_reduction <add>, %45, %cst_59 [0] : vector<128x128xf32> to vector<128xf32>
    %52 = vector.shape_cast %51 : vector<128xf32> to vector<1x128xf32>
    %53 = arith.addf %28, %52 : vector<1x128xf32>
    %54 = arith.mulf %45, %45 : vector<128x128xf32>
    %cst_60 = arith.constant dense<0.000000e+00> : vector<128xf32>
    %55 = vector.multi_reduction <add>, %54, %cst_60 [0] : vector<128x128xf32> to vector<128xf32>
    %56 = vector.shape_cast %55 : vector<128xf32> to vector<1x128xf32>
    %57 = arith.addf %29, %56 : vector<1x128xf32>
    %c0_61 = arith.constant 0 : index
    %c0_62 = arith.constant 0 : index
    %c1_63 = arith.constant 1 : index
    %c0_64 = arith.constant 0 : index
    %58 = vector.load %arg7[%c0_61, %c0_62, %c1_63, %c0_64] : memref<2x10x10x128xbf16, #tpu.memory_space<vmem>>, vector<2x8x8x128xbf16>
    %59 = vector.shape_cast %58 : vector<2x8x8x128xbf16> to vector<128x128xbf16>
    %c0_65 = arith.constant 0 : index
    %c0_66 = arith.constant 0 : index
    %60 = vector.load %arg9[%c0_65, %c0_66] : memref<128x512xbf16, #tpu.memory_space<vmem>>, vector<128x128xbf16>
    tpu.vector_store %arg9[%c0_65, %c0_66], %59 {strides = array<i32>} : memref<128x512xbf16, #tpu.memory_space<vmem>>, vector<128x128xbf16>,
    %c0_67 = arith.constant 0 : index
    %c0_68 = arith.constant 0 : index
    %c2 = arith.constant 2 : index
    %c0_69 = arith.constant 0 : index
    %61 = vector.load %arg7[%c0_67, %c0_68, %c2, %c0_69] : memref<2x10x10x128xbf16, #tpu.memory_space<vmem>>, vector<2x8x8x128xbf16>
    %62 = vector.shape_cast %61 : vector<2x8x8x128xbf16> to vector<128x128xbf16>
    %c0_70 = arith.constant 0 : index
    %c128_71 = arith.constant 128 : index
    %63 = vector.load %arg9[%c0_70, %c128_71] : memref<128x512xbf16, #tpu.memory_space<vmem>>, vector<128x128xbf16>
    tpu.vector_store %arg9[%c0_70, %c128_71], %62 {strides = array<i32>} : memref<128x512xbf16, #tpu.memory_space<vmem>>, vector<128x128xbf16>,
    %c0_72 = arith.constant 0 : index
    %c1_73 = arith.constant 1 : index
    %c1_74 = arith.constant 1 : index
    %c0_75 = arith.constant 0 : index
    %64 = vector.load %arg7[%c0_72, %c1_73, %c1_74, %c0_75] : memref<2x10x10x128xbf16, #tpu.memory_space<vmem>>, vector<2x8x8x128xbf16>
    %65 = vector.shape_cast %64 : vector<2x8x8x128xbf16> to vector<128x128xbf16>
    %c0_76 = arith.constant 0 : index
    %c256_77 = arith.constant 256 : index
    %66 = vector.load %arg9[%c0_76, %c256_77] : memref<128x512xbf16, #tpu.memory_space<vmem>>, vector<128x128xbf16>
    tpu.vector_store %arg9[%c0_76, %c256_77], %65 {strides = array<i32>} : memref<128x512xbf16, #tpu.memory_space<vmem>>, vector<128x128xbf16>,
    %c0_78 = arith.constant 0 : index
    %c1_79 = arith.constant 1 : index
    %c2_80 = arith.constant 2 : index
    %c0_81 = arith.constant 0 : index
    %67 = vector.load %arg7[%c0_78, %c1_79, %c2_80, %c0_81] : memref<2x10x10x128xbf16, #tpu.memory_space<vmem>>, vector<2x8x8x128xbf16>
    %68 = vector.shape_cast %67 : vector<2x8x8x128xbf16> to vector<128x128xbf16>
    %c0_82 = arith.constant 0 : index
    %c384_83 = arith.constant 384 : index
    %69 = vector.load %arg9[%c0_82, %c384_83] : memref<128x512xbf16, #tpu.memory_space<vmem>>, vector<128x128xbf16>
    tpu.vector_store %arg9[%c0_82, %c384_83], %68 {strides = array<i32>} : memref<128x512xbf16, #tpu.memory_space<vmem>>, vector<128x128xbf16>,
    %c0_84 = arith.constant 0 : index
    %c0_85 = arith.constant 0 : index
    %70 = vector.load %arg9[%c0_84, %c0_85] : memref<128x512xbf16, #tpu.memory_space<vmem>>, vector<128x512xbf16>
    %c1_86 = arith.constant 1 : index
    %c0_87 = arith.constant 0 : index
    %c0_88 = arith.constant 0 : index
    %71 = vector.load %arg4[%c1_86, %c0_87, %c0_88] : memref<4x512x128xbf16, #tpu.memory_space<vmem>>, vector<1x512x128xbf16>
    %72 = vector.shape_cast %71 : vector<1x512x128xbf16> to vector<512x128xbf16>
    %cst_89 = arith.constant dense<0.000000e+00> : vector<128x128xf32>
    %73 = tpu.matmul %70, %72, %cst_89 {dimension_numbers = #tpu.dot_dimension_numbers<[1], [0], [0], [1], [0, 0, 1, 1], [], []>} : vector<128x512xbf16>, vector<512x128xbf16>, vector<128x128xf32> -> vector<128x128xf32>
    %74 = vector.shape_cast %73 : vector<128x128xf32> to vector<2x64x128xf32>
    %75 = arith.truncf %74 : vector<2x64x128xf32> to vector<2x64x128xbf16>
    %c0_90 = arith.constant 0 : index
    %c1_91 = arith.constant 1 : index
    %c0_92 = arith.constant 0 : index
    %c0_93 = arith.constant 0 : index
    %76 = vector.load %arg5[%c0_90, %c1_91, %c0_92, %c0_93] : memref<2x4x64x128xbf16, #tpu.memory_space<vmem>>, vector<2x1x64x128xbf16>
    %77 = vector.shape_cast %76 : vector<2x1x64x128xbf16> to vector<2x64x128xbf16>
    %78 = vector.shape_cast %75 : vector<2x64x128xbf16> to vector<2x1x64x128xbf16>
    tpu.vector_store %arg5[%c0_90, %c1_91, %c0_92, %c0_93], %78 {strides = array<i32>} : memref<2x4x64x128xbf16, #tpu.memory_space<vmem>>, vector<2x1x64x128xbf16>,
    %cst_94 = arith.constant dense<0.000000e+00> : vector<128xf32>
    %79 = vector.multi_reduction <add>, %73, %cst_94 [0] : vector<128x128xf32> to vector<128xf32>
    %80 = vector.shape_cast %79 : vector<128xf32> to vector<1x128xf32>
    %81 = arith.addf %53, %80 : vector<1x128xf32>
    %82 = arith.mulf %73, %73 : vector<128x128xf32>
    %cst_95 = arith.constant dense<0.000000e+00> : vector<128xf32>
    %83 = vector.multi_reduction <add>, %82, %cst_95 [0] : vector<128x128xf32> to vector<128xf32>
    %84 = vector.shape_cast %83 : vector<128xf32> to vector<1x128xf32>
    %85 = arith.addf %57, %84 : vector<1x128xf32>
    %c0_96 = arith.constant 0 : index
    %c1_97 = arith.constant 1 : index
    %c0_98 = arith.constant 0 : index
    %c0_99 = arith.constant 0 : index
    %86 = vector.load %arg7[%c0_96, %c1_97, %c0_98, %c0_99] : memref<2x10x10x128xbf16, #tpu.memory_space<vmem>>, vector<2x8x8x128xbf16>
    %87 = vector.shape_cast %86 : vector<2x8x8x128xbf16> to vector<128x128xbf16>
    %c0_100 = arith.constant 0 : index
    %c0_101 = arith.constant 0 : index
    %88 = vector.load %arg9[%c0_100, %c0_101] : memref<128x512xbf16, #tpu.memory_space<vmem>>, vector<128x128xbf16>
    tpu.vector_store %arg9[%c0_100, %c0_101], %87 {strides = array<i32>} : memref<128x512xbf16, #tpu.memory_space<vmem>>, vector<128x128xbf16>,
    %c0_102 = arith.constant 0 : index
    %c1_103 = arith.constant 1 : index
    %c1_104 = arith.constant 1 : index
    %c0_105 = arith.constant 0 : index
    %89 = vector.load %arg7[%c0_102, %c1_103, %c1_104, %c0_105] : memref<2x10x10x128xbf16, #tpu.memory_space<vmem>>, vector<2x8x8x128xbf16>
    %90 = vector.shape_cast %89 : vector<2x8x8x128xbf16> to vector<128x128xbf16>
    %c0_106 = arith.constant 0 : index
    %c128_107 = arith.constant 128 : index
    %91 = vector.load %arg9[%c0_106, %c128_107] : memref<128x512xbf16, #tpu.memory_space<vmem>>, vector<128x128xbf16>
    tpu.vector_store %arg9[%c0_106, %c128_107], %90 {strides = array<i32>} : memref<128x512xbf16, #tpu.memory_space<vmem>>, vector<128x128xbf16>,
    %c0_108 = arith.constant 0 : index
    %c2_109 = arith.constant 2 : index
    %c0_110 = arith.constant 0 : index
    %c0_111 = arith.constant 0 : index
    %92 = vector.load %arg7[%c0_108, %c2_109, %c0_110, %c0_111] : memref<2x10x10x128xbf16, #tpu.memory_space<vmem>>, vector<2x8x8x128xbf16>
    %93 = vector.shape_cast %92 : vector<2x8x8x128xbf16> to vector<128x128xbf16>
    %c0_112 = arith.constant 0 : index
    %c256_113 = arith.constant 256 : index
    %94 = vector.load %arg9[%c0_112, %c256_113] : memref<128x512xbf16, #tpu.memory_space<vmem>>, vector<128x128xbf16>
    tpu.vector_store %arg9[%c0_112, %c256_113], %93 {strides = array<i32>} : memref<128x512xbf16, #tpu.memory_space<vmem>>, vector<128x128xbf16>,
    %c0_114 = arith.constant 0 : index
    %c2_115 = arith.constant 2 : index
    %c1_116 = arith.constant 1 : index
    %c0_117 = arith.constant 0 : index
    %95 = vector.load %arg7[%c0_114, %c2_115, %c1_116, %c0_117] : memref<2x10x10x128xbf16, #tpu.memory_space<vmem>>, vector<2x8x8x128xbf16>
    %96 = vector.shape_cast %95 : vector<2x8x8x128xbf16> to vector<128x128xbf16>
    %c0_118 = arith.constant 0 : index
    %c384_119 = arith.constant 384 : index
    %97 = vector.load %arg9[%c0_118, %c384_119] : memref<128x512xbf16, #tpu.memory_space<vmem>>, vector<128x128xbf16>
    tpu.vector_store %arg9[%c0_118, %c384_119], %96 {strides = array<i32>} : memref<128x512xbf16, #tpu.memory_space<vmem>>, vector<128x128xbf16>,
    %c0_120 = arith.constant 0 : index
    %c0_121 = arith.constant 0 : index
    %98 = vector.load %arg9[%c0_120, %c0_121] : memref<128x512xbf16, #tpu.memory_space<vmem>>, vector<128x512xbf16>
    %c2_122 = arith.constant 2 : index
    %c0_123 = arith.constant 0 : index
    %c0_124 = arith.constant 0 : index
    %99 = vector.load %arg4[%c2_122, %c0_123, %c0_124] : memref<4x512x128xbf16, #tpu.memory_space<vmem>>, vector<1x512x128xbf16>
    %100 = vector.shape_cast %99 : vector<1x512x128xbf16> to vector<512x128xbf16>
    %cst_125 = arith.constant dense<0.000000e+00> : vector<128x128xf32>
    %101 = tpu.matmul %98, %100, %cst_125 {dimension_numbers = #tpu.dot_dimension_numbers<[1], [0], [0], [1], [0, 0, 1, 1], [], []>} : vector<128x512xbf16>, vector<512x128xbf16>, vector<128x128xf32> -> vector<128x128xf32>
    %102 = vector.shape_cast %101 : vector<128x128xf32> to vector<2x64x128xf32>
    %103 = arith.truncf %102 : vector<2x64x128xf32> to vector<2x64x128xbf16>
    %c0_126 = arith.constant 0 : index
    %c2_127 = arith.constant 2 : index
    %c0_128 = arith.constant 0 : index
    %c0_129 = arith.constant 0 : index
    %104 = vector.load %arg5[%c0_126, %c2_127, %c0_128, %c0_129] : memref<2x4x64x128xbf16, #tpu.memory_space<vmem>>, vector<2x1x64x128xbf16>
    %105 = vector.shape_cast %104 : vector<2x1x64x128xbf16> to vector<2x64x128xbf16>
    %106 = vector.shape_cast %103 : vector<2x64x128xbf16> to vector<2x1x64x128xbf16>
    tpu.vector_store %arg5[%c0_126, %c2_127, %c0_128, %c0_129], %106 {strides = array<i32>} : memref<2x4x64x128xbf16, #tpu.memory_space<vmem>>, vector<2x1x64x128xbf16>,
    %cst_130 = arith.constant dense<0.000000e+00> : vector<128xf32>
    %107 = vector.multi_reduction <add>, %101, %cst_130 [0] : vector<128x128xf32> to vector<128xf32>
    %108 = vector.shape_cast %107 : vector<128xf32> to vector<1x128xf32>
    %109 = arith.addf %81, %108 : vector<1x128xf32>
    %110 = arith.mulf %101, %101 : vector<128x128xf32>
    %cst_131 = arith.constant dense<0.000000e+00> : vector<128xf32>
    %111 = vector.multi_reduction <add>, %110, %cst_131 [0] : vector<128x128xf32> to vector<128xf32>
    %112 = vector.shape_cast %111 : vector<128xf32> to vector<1x128xf32>
    %113 = arith.addf %85, %112 : vector<1x128xf32>
    %c0_132 = arith.constant 0 : index
    %c1_133 = arith.constant 1 : index
    %c1_134 = arith.constant 1 : index
    %c0_135 = arith.constant 0 : index
    %114 = vector.load %arg7[%c0_132, %c1_133, %c1_134, %c0_135] : memref<2x10x10x128xbf16, #tpu.memory_space<vmem>>, vector<2x8x8x128xbf16>
    %115 = vector.shape_cast %114 : vector<2x8x8x128xbf16> to vector<128x128xbf16>
    %c0_136 = arith.constant 0 : index
    %c0_137 = arith.constant 0 : index
    %116 = vector.load %arg9[%c0_136, %c0_137] : memref<128x512xbf16, #tpu.memory_space<vmem>>, vector<128x128xbf16>
    tpu.vector_store %arg9[%c0_136, %c0_137], %115 {strides = array<i32>} : memref<128x512xbf16, #tpu.memory_space<vmem>>, vector<128x128xbf16>,
    %c0_138 = arith.constant 0 : index
    %c1_139 = arith.constant 1 : index
    %c2_140 = arith.constant 2 : index
    %c0_141 = arith.constant 0 : index
    %117 = vector.load %arg7[%c0_138, %c1_139, %c2_140, %c0_141] : memref<2x10x10x128xbf16, #tpu.memory_space<vmem>>, vector<2x8x8x128xbf16>
    %118 = vector.shape_cast %117 : vector<2x8x8x128xbf16> to vector<128x128xbf16>
    %c0_142 = arith.constant 0 : index
    %c128_143 = arith.constant 128 : index
    %119 = vector.load %arg9[%c0_142, %c128_143] : memref<128x512xbf16, #tpu.memory_space<vmem>>, vector<128x128xbf16>
    tpu.vector_store %arg9[%c0_142, %c128_143], %118 {strides = array<i32>} : memref<128x512xbf16, #tpu.memory_space<vmem>>, vector<128x128xbf16>,
    %c0_144 = arith.constant 0 : index
    %c2_145 = arith.constant 2 : index
    %c1_146 = arith.constant 1 : index
    %c0_147 = arith.constant 0 : index
    %120 = vector.load %arg7[%c0_144, %c2_145, %c1_146, %c0_147] : memref<2x10x10x128xbf16, #tpu.memory_space<vmem>>, vector<2x8x8x128xbf16>
    %121 = vector.shape_cast %120 : vector<2x8x8x128xbf16> to vector<128x128xbf16>
    %c0_148 = arith.constant 0 : index
    %c256_149 = arith.constant 256 : index
    %122 = vector.load %arg9[%c0_148, %c256_149] : memref<128x512xbf16, #tpu.memory_space<vmem>>, vector<128x128xbf16>
    tpu.vector_store %arg9[%c0_148, %c256_149], %121 {strides = array<i32>} : memref<128x512xbf16, #tpu.memory_space<vmem>>, vector<128x128xbf16>,
    %c0_150 = arith.constant 0 : index
    %c2_151 = arith.constant 2 : index
    %c2_152 = arith.constant 2 : index
    %c0_153 = arith.constant 0 : index
    %123 = vector.load %arg7[%c0_150, %c2_151, %c2_152, %c0_153] : memref<2x10x10x128xbf16, #tpu.memory_space<vmem>>, vector<2x8x8x128xbf16>
    %124 = vector.shape_cast %123 : vector<2x8x8x128xbf16> to vector<128x128xbf16>
    %c0_154 = arith.constant 0 : index
    %c384_155 = arith.constant 384 : index
    %125 = vector.load %arg9[%c0_154, %c384_155] : memref<128x512xbf16, #tpu.memory_space<vmem>>, vector<128x128xbf16>
    tpu.vector_store %arg9[%c0_154, %c384_155], %124 {strides = array<i32>} : memref<128x512xbf16, #tpu.memory_space<vmem>>, vector<128x128xbf16>,
    %c0_156 = arith.constant 0 : index
    %c0_157 = arith.constant 0 : index
    %126 = vector.load %arg9[%c0_156, %c0_157] : memref<128x512xbf16, #tpu.memory_space<vmem>>, vector<128x512xbf16>
    %c3 = arith.constant 3 : index
    %c0_158 = arith.constant 0 : index
    %c0_159 = arith.constant 0 : index
    %127 = vector.load %arg4[%c3, %c0_158, %c0_159] : memref<4x512x128xbf16, #tpu.memory_space<vmem>>, vector<1x512x128xbf16>
    %128 = vector.shape_cast %127 : vector<1x512x128xbf16> to vector<512x128xbf16>
    %cst_160 = arith.constant dense<0.000000e+00> : vector<128x128xf32>
    %129 = tpu.matmul %126, %128, %cst_160 {dimension_numbers = #tpu.dot_dimension_numbers<[1], [0], [0], [1], [0, 0, 1, 1], [], []>} : vector<128x512xbf16>, vector<512x128xbf16>, vector<128x128xf32> -> vector<128x128xf32>
    %130 = vector.shape_cast %129 : vector<128x128xf32> to vector<2x64x128xf32>
    %131 = arith.truncf %130 : vector<2x64x128xf32> to vector<2x64x128xbf16>
    %c0_161 = arith.constant 0 : index
    %c3_162 = arith.constant 3 : index
    %c0_163 = arith.constant 0 : index
    %c0_164 = arith.constant 0 : index
    %132 = vector.load %arg5[%c0_161, %c3_162, %c0_163, %c0_164] : memref<2x4x64x128xbf16, #tpu.memory_space<vmem>>, vector<2x1x64x128xbf16>
    %133 = vector.shape_cast %132 : vector<2x1x64x128xbf16> to vector<2x64x128xbf16>
    %134 = vector.shape_cast %131 : vector<2x64x128xbf16> to vector<2x1x64x128xbf16>
    tpu.vector_store %arg5[%c0_161, %c3_162, %c0_163, %c0_164], %134 {strides = array<i32>} : memref<2x4x64x128xbf16, #tpu.memory_space<vmem>>, vector<2x1x64x128xbf16>,
    %cst_165 = arith.constant dense<0.000000e+00> : vector<128xf32>
    %135 = vector.multi_reduction <add>, %129, %cst_165 [0] : vector<128x128xf32> to vector<128xf32>
    %136 = vector.shape_cast %135 : vector<128xf32> to vector<1x128xf32>
    %137 = arith.addf %109, %136 : vector<1x128xf32>
    %138 = arith.mulf %129, %129 : vector<128x128xf32>
    %cst_166 = arith.constant dense<0.000000e+00> : vector<128xf32>
    %139 = vector.multi_reduction <add>, %138, %cst_166 [0] : vector<128x128xf32> to vector<128xf32>
    %140 = vector.shape_cast %139 : vector<128xf32> to vector<1x128xf32>
    %141 = arith.addf %113, %140 : vector<1x128xf32>
    %142 = tpu.concatenate %137, %141 in 0 : vector<1x128xf32>, vector<1x128xf32> -> vector<2x128xf32>
    %c0_167 = arith.constant 0 : index
    %c0_168 = arith.constant 0 : index
    %c0_169 = arith.constant 0 : index
    %143 = vector.load %arg6[%c0_167, %c0_168, %c0_169] : memref<1x2x128xf32, #tpu.memory_space<vmem>>, vector<1x2x128xf32>
    %144 = vector.shape_cast %143 : vector<1x2x128xf32> to vector<2x128xf32>
    %145 = vector.shape_cast %142 : vector<2x128xf32> to vector<1x2x128xf32>
    tpu.vector_store %arg6[%c0_167, %c0_168, %c0_169], %145 {strides = array<i32>} : memref<1x2x128xf32, #tpu.memory_space<vmem>>, vector<1x2x128xf32>,
    return
  }
  func.func @transform_0(%arg0: i32, %arg1: i32) -> (i32, i32, i32, i32) {
    %c0_i32 = arith.constant 0 : i32
    %c0_i32_0 = arith.constant 0 : i32
    %c0_i32_1 = arith.constant 0 : i32
    %c0_i32_2 = arith.constant 0 : i32
    return %arg1, %c0_i32, %c0_i32_0, %c0_i32_1 : i32, i32, i32, i32
  }
  func.func @transform_1(%arg0: i32, %arg1: i32) -> (i32, i32) {
    %c0_i32 = arith.constant 0 : i32
    %c0_i32_0 = arith.constant 0 : i32
    %c0_i32_1 = arith.constant 0 : i32
    return %c0_i32, %c0_i32_0 : i32, i32
  }
  func.func @transform_2(%arg0: i32, %arg1: i32) -> (i32, i32, i32) {
    %c0_i32 = arith.constant 0 : i32
    %c0_i32_0 = arith.constant 0 : i32
    %c0_i32_1 = arith.constant 0 : i32
    return %c0_i32, %c0_i32_0, %arg0 : i32, i32, i32
  }
  func.func @transform_3(%arg0: i32, %arg1: i32) -> (i32, i32, i32, i32) {
    %c0_i32 = arith.constant 0 : i32
    %c0_i32_0 = arith.constant 0 : i32
    %c0_i32_1 = arith.constant 0 : i32
    return %arg1, %c0_i32, %c0_i32_0, %arg0 : i32, i32, i32, i32
  }
  func.func @transform_4(%arg0: i32, %arg1: i32) -> (i32, i32, i32) {
    %c0_i32 = arith.constant 0 : i32
    %c0_i32_0 = arith.constant 0 : i32
    return %arg1, %c0_i32, %arg0 : i32, i32, i32
  }
}

</mosaic_0001>

<llo_original>
// kernel: unet_innermost_block.3
$region0: #{unet_innermost_block.3}
  #allocation0 [shape = 'u32[]', space=smem, size = 0x4, offset = 0x4, fixed_abs, tag = 'smem constant byte address 0x4 - core index']
  #allocation1 [shape = 'u32[144,128]{1,0:T(1,128)}', space=vmem, size = 0x12000, scoped, tag = 'internal scratch']
  %s0 = inlined_call_operand.vmem [shape: bf16[512,128], index: 0, kind: input, shape index: {}]
  %s1 = inlined_call_operand.vmem [shape: f32[1,128], index: 1, kind: input, shape index: {}]
  %s2 = inlined_call_operand.vmem [shape: f32[1,128], index: 2, kind: input, shape index: {}]
  %s3 = inlined_call_operand.vmem [shape: f32[512,128], index: 3, kind: output, shape index: {}]
  %s4 = sld [smem:[#allocation0]]
  $region22: #{unet_innermost_block.3} parent=0
    _
  %s6 = ssub.s32 1, %s4
  %s7 = scalar_select 0, %s6, %s4
  // Predicated region
  $region2: #{unet_innermost_block.3} parent=0 // pred_check
    _
  $region3: #{unet_innermost_block.3} parent=0 // pred_check_branch
    %9 = sbr.rel (0) target = $region5
  $region4: #{unet_innermost_block.3} parent=0 // pred_region
    _
  $region5: #{unet_innermost_block.3} parent=0 // pred_fallthru
    _
  // Predicated region
  $region6: #{unet_innermost_block.3} parent=0 // pred_check
    _
  $region7: #{unet_innermost_block.3} parent=0 // pred_check_branch
    %11 = sbr.rel (0) target = $region9
  $region8: #{unet_innermost_block.3} parent=0 // pred_region
    _
  $region9: #{unet_innermost_block.3} parent=0 // pred_fallthru
    _
  // Predicated region
  $region10: #{unet_innermost_block.3} parent=0 // pred_check
    _
  $region11: #{unet_innermost_block.3} parent=0 // pred_check_branch
    %13 = sbr.rel (0) target = $region13
  $region12: #{unet_innermost_block.3} parent=0 // pred_region
    _
  $region13: #{unet_innermost_block.3} parent=0 // pred_fallthru
    _
  %v14 = vld [vmem:[%s0] sm:$0xf]
  %v15 = vld [vmem:[%s0 + $0x4] sm:$0xf]
  %v16 = vld [vmem:[%s0 + $0x8] sm:$0xf]
  %v17 = vld [vmem:[%s0 + $0xc] sm:$0xf]
  %v18 = vld [vmem:[%s0 + $0x10] sm:$0xf]
  %v19 = vld [vmem:[%s0 + $0x14] sm:$0xf]
  %v20 = vld [vmem:[%s0 + $0x18] sm:$0xf]
  %v21 = vld [vmem:[%s0 + $0x1c] sm:$0xf]
  %v22 = vld [vmem:[%s0 + $0x20] sm:$0xf]
  %v23 = vld [vmem:[%s0 + $0x24] sm:$0xf]
  %v24 = vld [vmem:[%s0 + $0x28] sm:$0xf]
  %v25 = vld [vmem:[%s0 + $0x2c] sm:$0xf]
  %v26 = vld [vmem:[%s0 + $0x30] sm:$0xf]
  %v27 = vld [vmem:[%s0 + $0x34] sm:$0xf]
  %v28 = vld [vmem:[%s0 + $0x38] sm:$0xf]
  %v29 = vld [vmem:[%s0 + $0x3c] sm:$0xf]
  %v30 = vld [vmem:[%s0 + $0x40] sm:$0xf]
  %v31 = vld [vmem:[%s0 + $0x44] sm:$0xf]
  %v32 = vld [vmem:[%s0 + $0x48] sm:$0xf]
  %v33 = vld [vmem:[%s0 + $0x4c] sm:$0xf]
  %v34 = vld [vmem:[%s0 + $0x50] sm:$0xf]
  %v35 = vld [vmem:[%s0 + $0x54] sm:$0xf]
  %v36 = vld [vmem:[%s0 + $0x58] sm:$0xf]
  %v37 = vld [vmem:[%s0 + $0x5c] sm:$0xf]
  %v38 = vld [vmem:[%s0 + $0x60] sm:$0xf]
  %v39 = vld [vmem:[%s0 + $0x64] sm:$0xf]
  %v40 = vld [vmem:[%s0 + $0x68] sm:$0xf]
  %v41 = vld [vmem:[%s0 + $0x6c] sm:$0xf]
  %v42 = vld [vmem:[%s0 + $0x70] sm:$0xf]
  %v43 = vld [vmem:[%s0 + $0x74] sm:$0xf]
  %v44 = vld [vmem:[%s0 + $0x78] sm:$0xf]
  %v45 = vld [vmem:[%s0 + $0x7c] sm:$0xf]
  %v46 = vld [vmem:[%s0 + $0x80] sm:$0xf]
  %v47 = vld [vmem:[%s0 + $0x84] sm:$0xf]
  %v48 = vld [vmem:[%s0 + $0x88] sm:$0xf]
  %v49 = vld [vmem:[%s0 + $0x8c] sm:$0xf]
  %v50 = vld [vmem:[%s0 + $0x90] sm:$0xf]
  %v51 = vld [vmem:[%s0 + $0x94] sm:$0xf]
  %v52 = vld [vmem:[%s0 + $0x98] sm:$0xf]
  %v53 = vld [vmem:[%s0 + $0x9c] sm:$0xf]
  %v54 = vld [vmem:[%s0 + $0xa0] sm:$0xf]
  %v55 = vld [vmem:[%s0 + $0xa4] sm:$0xf]
  %v56 = vld [vmem:[%s0 + $0xa8] sm:$0xf]
  %v57 = vld [vmem:[%s0 + $0xac] sm:$0xf]
  %v58 = vld [vmem:[%s0 + $0xb0] sm:$0xf]
  %v59 = vld [vmem:[%s0 + $0xb4] sm:$0xf]
  %v60 = vld [vmem:[%s0 + $0xb8] sm:$0xf]
  %v61 = vld [vmem:[%s0 + $0xbc] sm:$0xf]
  %v62 = vld [vmem:[%s0 + $0xc0] sm:$0xf]
  %v63 = vld [vmem:[%s0 + $0xc4] sm:$0xf]
  %v64 = vld [vmem:[%s0 + $0xc8] sm:$0xf]
  %v65 = vld [vmem:[%s0 + $0xcc] sm:$0xf]
  %v66 = vld [vmem:[%s0 + $0xd0] sm:$0xf]
  %v67 = vld [vmem:[%s0 + $0xd4] sm:$0xf]
  %v68 = vld [vmem:[%s0 + $0xd8] sm:$0xf]
  %v69 = vld [vmem:[%s0 + $0xdc] sm:$0xf]
  %v70 = vld [vmem:[%s0 + $0xe0] sm:$0xf]
  %v71 = vld [vmem:[%s0 + $0xe4] sm:$0xf]
  %v72 = vld [vmem:[%s0 + $0xe8] sm:$0xf]
  %v73 = vld [vmem:[%s0 + $0xec] sm:$0xf]
  %v74 = vld [vmem:[%s0 + $0xf0] sm:$0xf]
  %v75 = vld [vmem:[%s0 + $0xf4] sm:$0xf]
  %v76 = vld [vmem:[%s0 + $0xf8] sm:$0xf]
  %v77 = vld [vmem:[%s0 + $0xfc] sm:$0xf]
  %v78 = vunpack.c.l.bf16 %v14
  %v79 = vunpack.c.l.bf16 %v15
  %v80 = vunpack.c.l.bf16 %v16
  %v81 = vunpack.c.l.bf16 %v17
  %v82 = vunpack.c.l.bf16 %v18
  %v83 = vunpack.c.l.bf16 %v19
  %v84 = vunpack.c.l.bf16 %v20
  %v85 = vunpack.c.l.bf16 %v21
  %v86 = vunpack.c.l.bf16 %v22
  %v87 = vunpack.c.l.bf16 %v23
  %v88 = vunpack.c.l.bf16 %v24
  %v89 = vunpack.c.l.bf16 %v25
  %v90 = vunpack.c.l.bf16 %v26
  %v91 = vunpack.c.l.bf16 %v27
  %v92 = vunpack.c.l.bf16 %v28
  %v93 = vunpack.c.l.bf16 %v29
  %v94 = vunpack.c.l.bf16 %v30
  %v95 = vunpack.c.l.bf16 %v31
  %v96 = vunpack.c.l.bf16 %v32
  %v97 = vunpack.c.l.bf16 %v33
  %v98 = vunpack.c.l.bf16 %v34
  %v99 = vunpack.c.l.bf16 %v35
  %v100 = vunpack.c.l.bf16 %v36
  %v101 = vunpack.c.l.bf16 %v37
  %v102 = vunpack.c.l.bf16 %v38
  %v103 = vunpack.c.l.bf16 %v39
  %v104 = vunpack.c.l.bf16 %v40
  %v105 = vunpack.c.l.bf16 %v41
  %v106 = vunpack.c.l.bf16 %v42
  %v107 = vunpack.c.l.bf16 %v43
  %v108 = vunpack.c.l.bf16 %v44
  %v109 = vunpack.c.l.bf16 %v45
  %v110 = vunpack.c.l.bf16 %v46
  %v111 = vunpack.c.l.bf16 %v47
  %v112 = vunpack.c.l.bf16 %v48
  %v113 = vunpack.c.l.bf16 %v49
  %v114 = vunpack.c.l.bf16 %v50
  %v115 = vunpack.c.l.bf16 %v51
  %v116 = vunpack.c.l.bf16 %v52
  %v117 = vunpack.c.l.bf16 %v53
  %v118 = vunpack.c.l.bf16 %v54
  %v119 = vunpack.c.l.bf16 %v55
  %v120 = vunpack.c.l.bf16 %v56
  %v121 = vunpack.c.l.bf16 %v57
  %v122 = vunpack.c.l.bf16 %v58
  %v123 = vunpack.c.l.bf16 %v59
  %v124 = vunpack.c.l.bf16 %v60
  %v125 = vunpack.c.l.bf16 %v61
  %v126 = vunpack.c.l.bf16 %v62
  %v127 = vunpack.c.l.bf16 %v63
  %v128 = vunpack.c.l.bf16 %v64
  %v129 = vunpack.c.l.bf16 %v65
  %v130 = vunpack.c.l.bf16 %v66
  %v131 = vunpack.c.l.bf16 %v67
  %v132 = vunpack.c.l.bf16 %v68
  %v133 = vunpack.c.l.bf16 %v69
  %v134 = vunpack.c.l.bf16 %v70
  %v135 = vunpack.c.l.bf16 %v71
  %v136 = vunpack.c.l.bf16 %v72
  %v137 = vunpack.c.l.bf16 %v73
  %v138 = vunpack.c.l.bf16 %v74
  %v139 = vunpack.c.l.bf16 %v75
  %v140 = vunpack.c.l.bf16 %v76
  %v141 = vunpack.c.l.bf16 %v77
  %v142 = vld [vmem:[%s1] sm:$0x1]
  %v144 = vlaneseq
  %v145 = vshrl.u32 %v144, 7
  %v146 = vsub.s32 0, %v145
  %v147 = vrot.slane %v142, %v146
  %v149 = vmul.f32 %v78, %v147
  %v150 = vmul.f32 %v79, %v147
  %v151 = vmul.f32 %v80, %v147
  %v152 = vmul.f32 %v81, %v147
  %v153 = vmul.f32 %v82, %v147
  %v154 = vmul.f32 %v83, %v147
  %v155 = vmul.f32 %v84, %v147
  %v156 = vmul.f32 %v85, %v147
  %v157 = vmul.f32 %v86, %v147
  %v158 = vmul.f32 %v87, %v147
  %v159 = vmul.f32 %v88, %v147
  %v160 = vmul.f32 %v89, %v147
  %v161 = vmul.f32 %v90, %v147
  %v162 = vmul.f32 %v91, %v147
  %v163 = vmul.f32 %v92, %v147
  %v164 = vmul.f32 %v93, %v147
  %v165 = vmul.f32 %v94, %v147
  %v166 = vmul.f32 %v95, %v147
  %v167 = vmul.f32 %v96, %v147
  %v168 = vmul.f32 %v97, %v147
  %v169 = vmul.f32 %v98, %v147
  %v170 = vmul.f32 %v99, %v147
  %v171 = vmul.f32 %v100, %v147
  %v172 = vmul.f32 %v101, %v147
  %v173 = vmul.f32 %v102, %v147
  %v174 = vmul.f32 %v103, %v147
  %v175 = vmul.f32 %v104, %v147
  %v176 = vmul.f32 %v105, %v147
  %v177 = vmul.f32 %v106, %v147
  %v178 = vmul.f32 %v107, %v147
  %v179 = vmul.f32 %v108, %v147
  %v180 = vmul.f32 %v109, %v147
  %v181 = vmul.f32 %v110, %v147
  %v182 = vmul.f32 %v111, %v147
  %v183 = vmul.f32 %v112, %v147
  %v184 = vmul.f32 %v113, %v147
  %v185 = vmul.f32 %v114, %v147
  %v186 = vmul.f32 %v115, %v147
  %v187 = vmul.f32 %v116, %v147
  %v188 = vmul.f32 %v117, %v147
  %v189 = vmul.f32 %v118, %v147
  %v190 = vmul.f32 %v119, %v147
  %v191 = vmul.f32 %v120, %v147
  %v192 = vmul.f32 %v121, %v147
  %v193 = vmul.f32 %v122, %v147
  %v194 = vmul.f32 %v123, %v147
  %v195 = vmul.f32 %v124, %v147
  %v196 = vmul.f32 %v125, %v147
  %v197 = vmul.f32 %v126, %v147
  %v198 = vmul.f32 %v127, %v147
  %v199 = vmul.f32 %v128, %v147
  %v200 = vmul.f32 %v129, %v147
  %v201 = vmul.f32 %v130, %v147
  %v202 = vmul.f32 %v131, %v147
  %v203 = vmul.f32 %v132, %v147
  %v204 = vmul.f32 %v133, %v147
  %v205 = vmul.f32 %v134, %v147
  %v206 = vmul.f32 %v135, %v147
  %v207 = vmul.f32 %v136, %v147
  %v208 = vmul.f32 %v137, %v147
  %v209 = vmul.f32 %v138, %v147
  %v210 = vmul.f32 %v139, %v147
  %v211 = vmul.f32 %v140, %v147
  %v212 = vmul.f32 %v141, %v147
  %v213 = vld [vmem:[%s2] sm:$0x1]
  %v215 = vlaneseq
  %v216 = vshrl.u32 %v215, 7
  %v217 = vsub.s32 0, %v216
  %v218 = vrot.slane %v213, %v217
  %v220 = vadd.f32 %v149, %v218
  %v221 = vadd.f32 %v150, %v218
  %v222 = vadd.f32 %v151, %v218
  %v223 = vadd.f32 %v152, %v218
  %v224 = vadd.f32 %v153, %v218
  %v225 = vadd.f32 %v154, %v218
  %v226 = vadd.f32 %v155, %v218
  %v227 = vadd.f32 %v156, %v218
  %v228 = vadd.f32 %v157, %v218
  %v229 = vadd.f32 %v158, %v218
  %v230 = vadd.f32 %v159, %v218
  %v231 = vadd.f32 %v160, %v218
  %v232 = vadd.f32 %v161, %v218
  %v233 = vadd.f32 %v162, %v218
  %v234 = vadd.f32 %v163, %v218
  %v235 = vadd.f32 %v164, %v218
  %v236 = vadd.f32 %v165, %v218
  %v237 = vadd.f32 %v166, %v218
  %v238 = vadd.f32 %v167, %v218
  %v239 = vadd.f32 %v168, %v218
  %v240 = vadd.f32 %v169, %v218
  %v241 = vadd.f32 %v170, %v218
  %v242 = vadd.f32 %v171, %v218
  %v243 = vadd.f32 %v172, %v218
  %v244 = vadd.f32 %v173, %v218
  %v245 = vadd.f32 %v174, %v218
  %v246 = vadd.f32 %v175, %v218
  %v247 = vadd.f32 %v176, %v218
  %v248 = vadd.f32 %v177, %v218
  %v249 = vadd.f32 %v178, %v218
  %v250 = vadd.f32 %v179, %v218
  %v251 = vadd.f32 %v180, %v218
  %v252 = vadd.f32 %v181, %v218
  %v253 = vadd.f32 %v182, %v218
  %v254 = vadd.f32 %v183, %v218
  %v255 = vadd.f32 %v184, %v218
  %v256 = vadd.f32 %v185, %v218
  %v257 = vadd.f32 %v186, %v218
  %v258 = vadd.f32 %v187, %v218
  %v259 = vadd.f32 %v188, %v218
  %v260 = vadd.f32 %v189, %v218
  %v261 = vadd.f32 %v190, %v218
  %v262 = vadd.f32 %v191, %v218
  %v263 = vadd.f32 %v192, %v218
  %v264 = vadd.f32 %v193, %v218
  %v265 = vadd.f32 %v194, %v218
  %v266 = vadd.f32 %v195, %v218
  %v267 = vadd.f32 %v196, %v218
  %v268 = vadd.f32 %v197, %v218
  %v269 = vadd.f32 %v198, %v218
  %v270 = vadd.f32 %v199, %v218
  %v271 = vadd.f32 %v200, %v218
  %v272 = vadd.f32 %v201, %v218
  %v273 = vadd.f32 %v202, %v218
  %v274 = vadd.f32 %v203, %v218
  %v275 = vadd.f32 %v204, %v218
  %v276 = vadd.f32 %v205, %v218
  %v277 = vadd.f32 %v206, %v218
  %v278 = vadd.f32 %v207, %v218
  %v279 = vadd.f32 %v208, %v218
  %v280 = vadd.f32 %v209, %v218
  %v281 = vadd.f32 %v210, %v218
  %v282 = vadd.f32 %v211, %v218
  %v283 = vadd.f32 %v212, %v218
  %284 = vst [vmem:[%s3] sm:$0xff] %v220
  %285 = vst [vmem:[%s3 + $0x8] sm:$0xff] %v221
  %286 = vst [vmem:[%s3 + $0x10] sm:$0xff] %v222
  %287 = vst [vmem:[%s3 + $0x18] sm:$0xff] %v223
  %288 = vst [vmem:[%s3 + $0x20] sm:$0xff] %v224
  %289 = vst [vmem:[%s3 + $0x28] sm:$0xff] %v225
  %290 = vst [vmem:[%s3 + $0x30] sm:$0xff] %v226
  %291 = vst [vmem:[%s3 + $0x38] sm:$0xff] %v227
  %292 = vst [vmem:[%s3 + $0x40] sm:$0xff] %v228
  %293 = vst [vmem:[%s3 + $0x48] sm:$0xff] %v229
  %294 = vst [vmem:[%s3 + $0x50] sm:$0xff] %v230
  %295 = vst [vmem:[%s3 + $0x58] sm:$0xff] %v231
  %296 = vst [vmem:[%s3 + $0x60] sm:$0xff] %v232
  %297 = vst [vmem:[%s3 + $0x68] sm:$0xff] %v233
  %298 = vst [vmem:[%s3 + $0x70] sm:$0xff] %v234
  %299 = vst [vmem:[%s3 + $0x78] sm:$0xff] %v235
  %300 = vst [vmem:[%s3 + $0x80] sm:$0xff] %v236
  %301 = vst [vmem:[%s3 + $0x88] sm:$0xff] %v237
  %302 = vst [vmem:[%s3 + $0x90] sm:$0xff] %v238
  %303 = vst [vmem:[%s3 + $0x98] sm:$0xff] %v239
  %304 = vst [vmem:[%s3 + $0xa0] sm:$0xff] %v240
  %305 = vst [vmem:[%s3 + $0xa8] sm:$0xff] %v241
  %306 = vst [vmem:[%s3 + $0xb0] sm:$0xff] %v242
  %307 = vst [vmem:[%s3 + $0xb8] sm:$0xff] %v243
  %308 = vst [vmem:[%s3 + $0xc0] sm:$0xff] %v244
  %309 = vst [vmem:[%s3 + $0xc8] sm:$0xff] %v245
  %310 = vst [vmem:[%s3 + $0xd0] sm:$0xff] %v246
  %311 = vst [vmem:[%s3 + $0xd8] sm:$0xff] %v247
  %312 = vst [vmem:[%s3 + $0xe0] sm:$0xff] %v248
  %313 = vst [vmem:[%s3 + $0xe8] sm:$0xff] %v249
  %314 = vst [vmem:[%s3 + $0xf0] sm:$0xff] %v250
  %315 = vst [vmem:[%s3 + $0xf8] sm:$0xff] %v251
  %316 = vst [vmem:[%s3 + $0x100] sm:$0xff] %v252
  %317 = vst [vmem:[%s3 + $0x108] sm:$0xff] %v253
  %318 = vst [vmem:[%s3 + $0x110] sm:$0xff] %v254
  %319 = vst [vmem:[%s3 + $0x118] sm:$0xff] %v255
  %320 = vst [vmem:[%s3 + $0x120] sm:$0xff] %v256
  %321 = vst [vmem:[%s3 + $0x128] sm:$0xff] %v257
  %322 = vst [vmem:[%s3 + $0x130] sm:$0xff] %v258
  %323 = vst [vmem:[%s3 + $0x138] sm:$0xff] %v259
  %324 = vst [vmem:[%s3 + $0x140] sm:$0xff] %v260
  %325 = vst [vmem:[%s3 + $0x148] sm:$0xff] %v261
  %326 = vst [vmem:[%s3 + $0x150] sm:$0xff] %v262
  %327 = vst [vmem:[%s3 + $0x158] sm:$0xff] %v263
  %328 = vst [vmem:[%s3 + $0x160] sm:$0xff] %v264
  %329 = vst [vmem:[%s3 + $0x168] sm:$0xff] %v265
  %330 = vst [vmem:[%s3 + $0x170] sm:$0xff] %v266
  %331 = vst [vmem:[%s3 + $0x178] sm:$0xff] %v267
  %332 = vst [vmem:[%s3 + $0x180] sm:$0xff] %v268
  %333 = vst [vmem:[%s3 + $0x188] sm:$0xff] %v269
  %334 = vst [vmem:[%s3 + $0x190] sm:$0xff] %v270
  %335 = vst [vmem:[%s3 + $0x198] sm:$0xff] %v271
  %336 = vst [vmem:[%s3 + $0x1a0] sm:$0xff] %v272
  %337 = vst [vmem:[%s3 + $0x1a8] sm:$0xff] %v273
  %338 = vst [vmem:[%s3 + $0x1b0] sm:$0xff] %v274
  %339 = vst [vmem:[%s3 + $0x1b8] sm:$0xff] %v275
  %340 = vst [vmem:[%s3 + $0x1c0] sm:$0xff] %v276
  %341 = vst [vmem:[%s3 + $0x1c8] sm:$0xff] %v277
  %342 = vst [vmem:[%s3 + $0x1d0] sm:$0xff] %v278
  %343 = vst [vmem:[%s3 + $0x1d8] sm:$0xff] %v279
  %344 = vst [vmem:[%s3 + $0x1e0] sm:$0xff] %v280
  %345 = vst [vmem:[%s3 + $0x1e8] sm:$0xff] %v281
  %346 = vst [vmem:[%s3 + $0x1f0] sm:$0xff] %v282
  %347 = vst [vmem:[%s3 + $0x1f8] sm:$0xff] %v283
  // Predicated region
  $region14: #{unet_innermost_block.3} parent=0 // pred_check
    _
  $region15: #{unet_innermost_block.3} parent=0 // pred_check_branch
    %349 = sbr.rel (0) target = $region17
  $region16: #{unet_innermost_block.3} parent=0 // pred_region
    _
  $region17: #{unet_innermost_block.3} parent=0 // pred_fallthru
    _
  // Predicated region
  $region18: #{unet_innermost_block.3} parent=0 // pred_check
    _
  $region19: #{unet_innermost_block.3} parent=0 // pred_check_branch
    %351 = sbr.rel (0) target = $region21
  $region20: #{unet_innermost_block.3} parent=0 // pred_region
    _
  $region21: #{unet_innermost_block.3} parent=0 // pred_fallthru
    _

// kernel: unet_innermost_block.2
$region0: #{unet_innermost_block.2}
  #allocation0 [shape = 'u32[]', space=smem, size = 0x4, offset = 0x4, fixed_abs, tag = 'smem constant byte address 0x4 - core index']
  #allocation1 [shape = 'u32[144,128]{1,0:T(1,128)}', space=vmem, size = 0x12000, scoped, tag = 'internal scratch']
  #allocation2 [shape = 'bf16[2,10,10,128]{3,2,1,0:T(8,128)(2,1)}', space=vmem, size = 0x14000, scoped, tag = 'scratch operand']
  #allocation3 [shape = 'bf16[128,512]{1,0:T(16,128)(2,1)}', space=vmem, size = 0x20000, scoped, tag = 'scratch operand']
  #allocation4 [shape = 'bf16[128,512]{1,0:T(16,128)(2,1)}', space=vmem, size = 0x20000, scoped, tag = 'scratch operand']
  %s0 = inlined_call_operand.vmem [shape: bf16[2,9,9,128], index: 0, kind: input, shape index: {}]
  %s1 = inlined_call_operand.vmem [shape: bf16[512,128], index: 1, kind: input, shape index: {}]
  %s2 = inlined_call_operand.vmem [shape: bf16[4,512,128], index: 2, kind: input, shape index: {}]
  %s3 = inlined_call_operand.vmem [shape: bf16[2,4,64,128], index: 3, kind: output, shape index: {0}]
  %s4 = inlined_call_operand.vmem [shape: f32[1,2,128], index: 4, kind: output, shape index: {1}]
  %5 = xla_tuple %s3, %s4
  %s6 = sld [smem:[#allocation0]]
  $region30: #{unet_innermost_block.2} parent=0
    _
  %s8 = ssub.s32 1, %s6
  %s9 = scalar_select 0, %s8, %s6
  // Predicated region
  $region2: #{unet_innermost_block.2} parent=0 // pred_check
    _
  $region3: #{unet_innermost_block.2} parent=0 // pred_check_branch
    %11 = sbr.rel (0) target = $region5
  $region4: #{unet_innermost_block.2} parent=0 // pred_region
    _
  $region5: #{unet_innermost_block.2} parent=0 // pred_fallthru
    _
  // Predicated region
  $region6: #{unet_innermost_block.2} parent=0 // pred_check
    _
  $region7: #{unet_innermost_block.2} parent=0 // pred_check_branch
    %13 = sbr.rel (0) target = $region9
  $region8: #{unet_innermost_block.2} parent=0 // pred_region
    _
  $region9: #{unet_innermost_block.2} parent=0 // pred_fallthru
    _
  // Predicated region
  $region10: #{unet_innermost_block.2} parent=0 // pred_check
    _
  $region11: #{unet_innermost_block.2} parent=0 // pred_check_branch
    %15 = sbr.rel (0) target = $region13
  $region12: #{unet_innermost_block.2} parent=0 // pred_region
    _
  $region13: #{unet_innermost_block.2} parent=0 // pred_fallthru
    _
  %v18 = vld [vmem:[%s0] sm:$0xf]
  %v19 = vld [vmem:[%s0 + $0x4] sm:$0x1]
  %v20 = vld [vmem:[%s0 + $0x8] sm:$0xf]
  %v21 = vld [vmem:[%s0 + $0xc] sm:$0x1]
  %v22 = vld [vmem:[%s0 + $0x10] sm:$0xf]
  %v23 = vld [vmem:[%s0 + $0x14] sm:$0x1]
  %v24 = vld [vmem:[%s0 + $0x18] sm:$0xf]
  %v25 = vld [vmem:[%s0 + $0x1c] sm:$0x1]
  %v26 = vld [vmem:[%s0 + $0x20] sm:$0xf]
  %v27 = vld [vmem:[%s0 + $0x24] sm:$0x1]
  %v28 = vld [vmem:[%s0 + $0x28] sm:$0xf]
  %v29 = vld [vmem:[%s0 + $0x2c] sm:$0x1]
  %v30 = vld [vmem:[%s0 + $0x30] sm:$0xf]
  %v31 = vld [vmem:[%s0 + $0x34] sm:$0x1]
  %v32 = vld [vmem:[%s0 + $0x38] sm:$0xf]
  %v33 = vld [vmem:[%s0 + $0x3c] sm:$0x1]
  %v34 = vld [vmem:[%s0 + $0x40] sm:$0xf]
  %v35 = vld [vmem:[%s0 + $0x44] sm:$0x1]
  %v36 = vld [vmem:[%s0 + $0x48] sm:$0xf]
  %v37 = vld [vmem:[%s0 + $0x4c] sm:$0x1]
  %v38 = vld [vmem:[%s0 + $0x50] sm:$0xf]
  %v39 = vld [vmem:[%s0 + $0x54] sm:$0x1]
  %v40 = vld [vmem:[%s0 + $0x58] sm:$0xf]
  %v41 = vld [vmem:[%s0 + $0x5c] sm:$0x1]
  %v42 = vld [vmem:[%s0 + $0x60] sm:$0xf]
  %v43 = vld [vmem:[%s0 + $0x64] sm:$0x1]
  %v44 = vld [vmem:[%s0 + $0x68] sm:$0xf]
  %v45 = vld [vmem:[%s0 + $0x6c] sm:$0x1]
  %v46 = vld [vmem:[%s0 + $0x70] sm:$0xf]
  %v47 = vld [vmem:[%s0 + $0x74] sm:$0x1]
  %v48 = vld [vmem:[%s0 + $0x78] sm:$0xf]
  %v49 = vld [vmem:[%s0 + $0x7c] sm:$0x1]
  %v50 = vld [vmem:[%s0 + $0x80] sm:$0xf]
  %v51 = vld [vmem:[%s0 + $0x84] sm:$0x1]
  %v52 = vld [vmem:[%s0 + $0x88] sm:$0xf]
  %v53 = vld [vmem:[%s0 + $0x8c] sm:$0x1]
  %vm54 = vcmp.gt.bf16.partialorder %v18, 0
  %vm55 = vcmp.gt.bf16.partialorder %v19, 0
  %vm56 = vcmp.gt.bf16.partialorder %v20, 0
  %vm57 = vcmp.gt.bf16.partialorder %v21, 0
  %vm58 = vcmp.gt.bf16.partialorder %v22, 0
  %vm59 = vcmp.gt.bf16.partialorder %v23, 0
  %vm60 = vcmp.gt.bf16.partialorder %v24, 0
  %vm61 = vcmp.gt.bf16.partialorder %v25, 0
  %vm62 = vcmp.gt.bf16.partialorder %v26, 0
  %vm63 = vcmp.gt.bf16.partialorder %v27, 0
  %vm64 = vcmp.gt.bf16.partialorder %v28, 0
  %vm65 = vcmp.gt.bf16.partialorder %v29, 0
  %vm66 = vcmp.gt.bf16.partialorder %v30, 0
  %vm67 = vcmp.gt.bf16.partialorder %v31, 0
  %vm68 = vcmp.gt.bf16.partialorder %v32, 0
  %vm69 = vcmp.gt.bf16.partialorder %v33, 0
  %vm70 = vcmp.gt.bf16.partialorder %v34, 0
  %vm71 = vcmp.gt.bf16.partialorder %v35, 0
  %vm72 = vcmp.gt.bf16.partialorder %v36, 0
  %vm73 = vcmp.gt.bf16.partialorder %v37, 0
  %vm74 = vcmp.gt.bf16.partialorder %v38, 0
  %vm75 = vcmp.gt.bf16.partialorder %v39, 0
  %vm76 = vcmp.gt.bf16.partialorder %v40, 0
  %vm77 = vcmp.gt.bf16.partialorder %v41, 0
  %vm78 = vcmp.gt.bf16.partialorder %v42, 0
  %vm79 = vcmp.gt.bf16.partialorder %v43, 0
  %vm80 = vcmp.gt.bf16.partialorder %v44, 0
  %vm81 = vcmp.gt.bf16.partialorder %v45, 0
  %vm82 = vcmp.gt.bf16.partialorder %v46, 0
  %vm83 = vcmp.gt.bf16.partialorder %v47, 0
  %vm84 = vcmp.gt.bf16.partialorder %v48, 0
  %vm85 = vcmp.gt.bf16.partialorder %v49, 0
  %vm86 = vcmp.gt.bf16.partialorder %v50, 0
  %vm87 = vcmp.gt.bf16.partialorder %v51, 0
  %vm88 = vcmp.gt.bf16.partialorder %v52, 0
  %vm89 = vcmp.gt.bf16.partialorder %v53, 0
  %v90 = vmul.bf16 %v18, 1045249613
  %v91 = vmul.bf16 %v19, 1045249613
  %v92 = vmul.bf16 %v20, 1045249613
  %v93 = vmul.bf16 %v21, 1045249613
  %v94 = vmul.bf16 %v22, 1045249613
  %v95 = vmul.bf16 %v23, 1045249613
  %v96 = vmul.bf16 %v24, 1045249613
  %v97 = vmul.bf16 %v25, 1045249613
  %v98 = vmul.bf16 %v26, 1045249613
  %v99 = vmul.bf16 %v27, 1045249613
  %v100 = vmul.bf16 %v28, 1045249613
  %v101 = vmul.bf16 %v29, 1045249613
  %v102 = vmul.bf16 %v30, 1045249613
  %v103 = vmul.bf16 %v31, 1045249613
  %v104 = vmul.bf16 %v32, 1045249613
  %v105 = vmul.bf16 %v33, 1045249613
  %v106 = vmul.bf16 %v34, 1045249613
  %v107 = vmul.bf16 %v35, 1045249613
  %v108 = vmul.bf16 %v36, 1045249613
  %v109 = vmul.bf16 %v37, 1045249613
  %v110 = vmul.bf16 %v38, 1045249613
  %v111 = vmul.bf16 %v39, 1045249613
  %v112 = vmul.bf16 %v40, 1045249613
  %v113 = vmul.bf16 %v41, 1045249613
  %v114 = vmul.bf16 %v42, 1045249613
  %v115 = vmul.bf16 %v43, 1045249613
  %v116 = vmul.bf16 %v44, 1045249613
  %v117 = vmul.bf16 %v45, 1045249613
  %v118 = vmul.bf16 %v46, 1045249613
  %v119 = vmul.bf16 %v47, 1045249613
  %v120 = vmul.bf16 %v48, 1045249613
  %v121 = vmul.bf16 %v49, 1045249613
  %v122 = vmul.bf16 %v50, 1045249613
  %v123 = vmul.bf16 %v51, 1045249613
  %v124 = vmul.bf16 %v52, 1045249613
  %v125 = vmul.bf16 %v53, 1045249613
  %v126 = vsel %vm54, %v18, %v90
  %v127 = vsel %vm55, %v19, %v91
  %v128 = vsel %vm56, %v20, %v92
  %v129 = vsel %vm57, %v21, %v93
  %v130 = vsel %vm58, %v22, %v94
  %v131 = vsel %vm59, %v23, %v95
  %v132 = vsel %vm60, %v24, %v96
  %v133 = vsel %vm61, %v25, %v97
  %v134 = vsel %vm62, %v26, %v98
  %v135 = vsel %vm63, %v27, %v99
  %v136 = vsel %vm64, %v28, %v100
  %v137 = vsel %vm65, %v29, %v101
  %v138 = vsel %vm66, %v30, %v102
  %v139 = vsel %vm67, %v31, %v103
  %v140 = vsel %vm68, %v32, %v104
  %v141 = vsel %vm69, %v33, %v105
  %v142 = vsel %vm70, %v34, %v106
  %v143 = vsel %vm71, %v35, %v107
  %v144 = vsel %vm72, %v36, %v108
  %v145 = vsel %vm73, %v37, %v109
  %v146 = vsel %vm74, %v38, %v110
  %v147 = vsel %vm75, %v39, %v111
  %v148 = vsel %vm76, %v40, %v112
  %v149 = vsel %vm77, %v41, %v113
  %v150 = vsel %vm78, %v42, %v114
  %v151 = vsel %vm79, %v43, %v115
  %v152 = vsel %vm80, %v44, %v116
  %v153 = vsel %vm81, %v45, %v117
  %v154 = vsel %vm82, %v46, %v118
  %v155 = vsel %vm83, %v47, %v119
  %v156 = vsel %vm84, %v48, %v120
  %v157 = vsel %vm85, %v49, %v121
  %v158 = vsel %vm86, %v50, %v122
  %v159 = vsel %vm87, %v51, %v123
  %v160 = vsel %vm88, %v52, %v124
  %v161 = vsel %vm89, %v53, %v125
  %v178 = vunpack.c.l.b16 %v126
  %v179 = vunpack.c.l.b16 %v128
  %v180 = vunpack.c.l.b16 %v130
  %v181 = vunpack.c.l.b16 %v132
  %v182 = vunpack.c.l.b16 %v134
  %v183 = vunpack.c.l.b16 %v136
  %v184 = vunpack.c.l.b16 %v138
  %v185 = vunpack.c.l.b16 %v140
  %v186 = vunpack.c.l.b16 %v144
  %v187 = vunpack.c.l.b16 %v146
  %v188 = vunpack.c.l.b16 %v148
  %v189 = vunpack.c.l.b16 %v150
  %v190 = vunpack.c.l.b16 %v152
  %v191 = vunpack.c.l.b16 %v154
  %v192 = vunpack.c.l.b16 %v156
  %v193 = vunpack.c.l.b16 %v158
  %v194 = vpack.c.b16 %v179, %v178
  %v195 = vpack.c.b16 %v181, %v180
  %v196 = vpack.c.b16 %v183, %v182
  %v197 = vpack.c.b16 %v185, %v184
  %v198 = vpack.c.b16 %v187, %v186
  %v199 = vpack.c.b16 %v189, %v188
  %v200 = vpack.c.b16 %v191, %v190
  %v201 = vpack.c.b16 %v193, %v192
  %210 = vst [vmem:[#allocation3] sm:$0xff] %v194
  %211 = vst [vmem:[#allocation3 + $0x20] sm:$0xff] %v195
  %212 = vst [vmem:[#allocation3 + $0x40] sm:$0xff] %v196
  %213 = vst [vmem:[#allocation3 + $0x60] sm:$0xff] %v197
  %214 = vst [vmem:[#allocation3 + $0x80] sm:$0xff] %v198
  %215 = vst [vmem:[#allocation3 + $0xa0] sm:$0xff] %v199
  %216 = vst [vmem:[#allocation3 + $0xc0] sm:$0xff] %v200
  %217 = vst [vmem:[#allocation3 + $0xe0] sm:$0xff] %v201
  %vm218 = vsmask.f32 3328
  %vm219 = vsmask.f32 7440
  %vm220 = vmor %vm218, %vm219
  %v222 = vshrl.u32 %v126, 16
  %v224 = vrot.slane %v222, 4
  %v225 = vshll.u32 %v126, 16
  %v227 = vrot.slane %v225, 5
  %v228 = vor.u32 %v224, %v227
  %v229 = vrot.slane %v228, 4
  %v231 = vshll.u32 %v127, 16
  %v233 = vrot.slane %v231, 5
  %v234 = vsel %vm220, %v229, %v233
  %v236 = vshrl.u32 %v128, 16
  %v238 = vrot.slane %v236, 4
  %v239 = vshll.u32 %v128, 16
  %v241 = vrot.slane %v239, 5
  %v242 = vor.u32 %v238, %v241
  %v243 = vrot.slane %v242, 4
  %v245 = vshll.u32 %v129, 16
  %v247 = vrot.slane %v245, 5
  %v248 = vsel %vm220, %v243, %v247
  %v250 = vshrl.u32 %v130, 16
  %v252 = vrot.slane %v250, 4
  %v253 = vshll.u32 %v130, 16
  %v255 = vrot.slane %v253, 5
  %v256 = vor.u32 %v252, %v255
  %v257 = vrot.slane %v256, 4
  %v259 = vshll.u32 %v131, 16
  %v261 = vrot.slane %v259, 5
  %v262 = vsel %vm220, %v257, %v261
  %v264 = vshrl.u32 %v132, 16
  %v266 = vrot.slane %v264, 4
  %v267 = vshll.u32 %v132, 16
  %v269 = vrot.slane %v267, 5
  %v270 = vor.u32 %v266, %v269
  %v271 = vrot.slane %v270, 4
  %v273 = vshll.u32 %v133, 16
  %v275 = vrot.slane %v273, 5
  %v276 = vsel %vm220, %v271, %v275
  %v278 = vshrl.u32 %v134, 16
  %v280 = vrot.slane %v278, 4
  %v281 = vshll.u32 %v134, 16
  %v283 = vrot.slane %v281, 5
  %v284 = vor.u32 %v280, %v283
  %v285 = vrot.slane %v284, 4
  %v287 = vshll.u32 %v135, 16
  %v289 = vrot.slane %v287, 5
  %v290 = vsel %vm220, %v285, %v289
  %v292 = vshrl.u32 %v136, 16
  %v294 = vrot.slane %v292, 4
  %v295 = vshll.u32 %v136, 16
  %v297 = vrot.slane %v295, 5
  %v298 = vor.u32 %v294, %v297
  %v299 = vrot.slane %v298, 4
  %v301 = vshll.u32 %v137, 16
  %v303 = vrot.slane %v301, 5
  %v304 = vsel %vm220, %v299, %v303
  %v306 = vshrl.u32 %v138, 16
  %v308 = vrot.slane %v306, 4
  %v309 = vshll.u32 %v138, 16
  %v311 = vrot.slane %v309, 5
  %v312 = vor.u32 %v308, %v311
  %v313 = vrot.slane %v312, 4
  %v315 = vshll.u32 %v139, 16
  %v317 = vrot.slane %v315, 5
  %v318 = vsel %vm220, %v313, %v317
  %v320 = vshrl.u32 %v140, 16
  %v322 = vrot.slane %v320, 4
  %v323 = vshll.u32 %v140, 16
  %v325 = vrot.slane %v323, 5
  %v326 = vor.u32 %v322, %v325
  %v327 = vrot.slane %v326, 4
  %v329 = vshll.u32 %v141, 16
  %v331 = vrot.slane %v329, 5
  %v332 = vsel %vm220, %v327, %v331
  %v334 = vshrl.u32 %v144, 16
  %v336 = vrot.slane %v334, 4
  %v337 = vshll.u32 %v144, 16
  %v339 = vrot.slane %v337, 5
  %v340 = vor.u32 %v336, %v339
  %v341 = vrot.slane %v340, 4
  %v343 = vshll.u32 %v145, 16
  %v345 = vrot.slane %v343, 5
  %v346 = vsel %vm220, %v341, %v345
  %v348 = vshrl.u32 %v146, 16
  %v350 = vrot.slane %v348, 4
  %v351 = vshll.u32 %v146, 16
  %v353 = vrot.slane %v351, 5
  %v354 = vor.u32 %v350, %v353
  %v355 = vrot.slane %v354, 4
  %v357 = vshll.u32 %v147, 16
  %v359 = vrot.slane %v357, 5
  %v360 = vsel %vm220, %v355, %v359
  %v362 = vshrl.u32 %v148, 16
  %v364 = vrot.slane %v362, 4
  %v365 = vshll.u32 %v148, 16
  %v367 = vrot.slane %v365, 5
  %v368 = vor.u32 %v364, %v367
  %v369 = vrot.slane %v368, 4
  %v371 = vshll.u32 %v149, 16
  %v373 = vrot.slane %v371, 5
  %v374 = vsel %vm220, %v369, %v373
  %v376 = vshrl.u32 %v150, 16
  %v378 = vrot.slane %v376, 4
  %v379 = vshll.u32 %v150, 16
  %v381 = vrot.slane %v379, 5
  %v382 = vor.u32 %v378, %v381
  %v383 = vrot.slane %v382, 4
  %v385 = vshll.u32 %v151, 16
  %v387 = vrot.slane %v385, 5
  %v388 = vsel %vm220, %v383, %v387
  %v390 = vshrl.u32 %v152, 16
  %v392 = vrot.slane %v390, 4
  %v393 = vshll.u32 %v152, 16
  %v395 = vrot.slane %v393, 5
  %v396 = vor.u32 %v392, %v395
  %v397 = vrot.slane %v396, 4
  %v399 = vshll.u32 %v153, 16
  %v401 = vrot.slane %v399, 5
  %v402 = vsel %vm220, %v397, %v401
  %v404 = vshrl.u32 %v154, 16
  %v406 = vrot.slane %v404, 4
  %v407 = vshll.u32 %v154, 16
  %v409 = vrot.slane %v407, 5
  %v410 = vor.u32 %v406, %v409
  %v411 = vrot.slane %v410, 4
  %v413 = vshll.u32 %v155, 16
  %v415 = vrot.slane %v413, 5
  %v416 = vsel %vm220, %v411, %v415
  %v418 = vshrl.u32 %v156, 16
  %v420 = vrot.slane %v418, 4
  %v421 = vshll.u32 %v156, 16
  %v423 = vrot.slane %v421, 5
  %v424 = vor.u32 %v420, %v423
  %v425 = vrot.slane %v424, 4
  %v427 = vshll.u32 %v157, 16
  %v429 = vrot.slane %v427, 5
  %v430 = vsel %vm220, %v425, %v429
  %v432 = vshrl.u32 %v158, 16
  %v434 = vrot.slane %v432, 4
  %v435 = vshll.u32 %v158, 16
  %v437 = vrot.slane %v435, 5
  %v438 = vor.u32 %v434, %v437
  %v439 = vrot.slane %v438, 4
  %v441 = vshll.u32 %v159, 16
  %v443 = vrot.slane %v441, 5
  %v444 = vsel %vm220, %v439, %v443
  %v445 = vunpack.c.l.b16 %v234
  %v446 = vunpack.c.l.b16 %v248
  %v447 = vunpack.c.l.b16 %v262
  %v448 = vunpack.c.l.b16 %v276
  %v449 = vunpack.c.l.b16 %v290
  %v450 = vunpack.c.l.b16 %v304
  %v451 = vunpack.c.l.b16 %v318
  %v452 = vunpack.c.l.b16 %v332
  %v453 = vunpack.c.l.b16 %v346
  %v454 = vunpack.c.l.b16 %v360
  %v455 = vunpack.c.l.b16 %v374
  %v456 = vunpack.c.l.b16 %v388
  %v457 = vunpack.c.l.b16 %v402
  %v458 = vunpack.c.l.b16 %v416
  %v459 = vunpack.c.l.b16 %v430
  %v460 = vunpack.c.l.b16 %v444
  %v461 = vpack.c.b16 %v446, %v445
  %v462 = vpack.c.b16 %v448, %v447
  %v463 = vpack.c.b16 %v450, %v449
  %v464 = vpack.c.b16 %v452, %v451
  %v465 = vpack.c.b16 %v454, %v453
  %v466 = vpack.c.b16 %v456, %v455
  %v467 = vpack.c.b16 %v458, %v457
  %v468 = vpack.c.b16 %v460, %v459
  %477 = vst [vmem:[#allocation3 + $0x8] sm:$0xff] %v461
  %478 = vst [vmem:[#allocation3 + $0x28] sm:$0xff] %v462
  %479 = vst [vmem:[#allocation3 + $0x48] sm:$0xff] %v463
  %480 = vst [vmem:[#allocation3 + $0x68] sm:$0xff] %v464
  %481 = vst [vmem:[#allocation3 + $0x88] sm:$0xff] %v465
  %482 = vst [vmem:[#allocation3 + $0xa8] sm:$0xff] %v466
  %483 = vst [vmem:[#allocation3 + $0xc8] sm:$0xff] %v467
  %484 = vst [vmem:[#allocation3 + $0xe8] sm:$0xff] %v468
  %v487 = vunpack.c.l.b16 %v142
  %v488 = vunpack.c.l.b16 %v160
  %v489 = vpack.c.b16 %v180, %v179
  %v490 = vpack.c.b16 %v182, %v181
  %v491 = vpack.c.b16 %v184, %v183
  %v492 = vpack.c.b16 %v487, %v185
  %v493 = vpack.c.b16 %v188, %v187
  %v494 = vpack.c.b16 %v190, %v189
  %v495 = vpack.c.b16 %v192, %v191
  %v496 = vpack.c.b16 %v488, %v193
  %505 = vst [vmem:[#allocation3 + $0x10] sm:$0xff] %v489
  %506 = vst [vmem:[#allocation3 + $0x30] sm:$0xff] %v490
  %507 = vst [vmem:[#allocation3 + $0x50] sm:$0xff] %v491
  %508 = vst [vmem:[#allocation3 + $0x70] sm:$0xff] %v492
  %509 = vst [vmem:[#allocation3 + $0x90] sm:$0xff] %v493
  %510 = vst [vmem:[#allocation3 + $0xb0] sm:$0xff] %v494
  %511 = vst [vmem:[#allocation3 + $0xd0] sm:$0xff] %v495
  %512 = vst [vmem:[#allocation3 + $0xf0] sm:$0xff] %v496
  %v514 = vshrl.u32 %v142, 16
  %v516 = vrot.slane %v514, 4
  %v517 = vshll.u32 %v142, 16
  %v519 = vrot.slane %v517, 5
  %v520 = vor.u32 %v516, %v519
  %v521 = vrot.slane %v520, 4
  %v523 = vshll.u32 %v143, 16
  %v525 = vrot.slane %v523, 5
  %v526 = vsel %vm220, %v521, %v525
  %v528 = vshrl.u32 %v160, 16
  %v530 = vrot.slane %v528, 4
  %v531 = vshll.u32 %v160, 16
  %v533 = vrot.slane %v531, 5
  %v534 = vor.u32 %v530, %v533
  %v535 = vrot.slane %v534, 4
  %v537 = vshll.u32 %v161, 16
  %v539 = vrot.slane %v537, 5
  %v540 = vsel %vm220, %v535, %v539
  %v541 = vunpack.c.l.b16 %v526
  %v542 = vunpack.c.l.b16 %v540
  %v543 = vpack.c.b16 %v447, %v446
  %v544 = vpack.c.b16 %v449, %v448
  %v545 = vpack.c.b16 %v451, %v450
  %v546 = vpack.c.b16 %v541, %v452
  %v547 = vpack.c.b16 %v455, %v454
  %v548 = vpack.c.b16 %v457, %v456
  %v549 = vpack.c.b16 %v459, %v458
  %v550 = vpack.c.b16 %v542, %v460
  %559 = vst [vmem:[#allocation3 + $0x18] sm:$0xff] %v543
  %560 = vst [vmem:[#allocation3 + $0x38] sm:$0xff] %v544
  %561 = vst [vmem:[#allocation3 + $0x58] sm:$0xff] %v545
  %562 = vst [vmem:[#allocation3 + $0x78] sm:$0xff] %v546
  %563 = vst [vmem:[#allocation3 + $0x98] sm:$0xff] %v547
  %564 = vst [vmem:[#allocation3 + $0xb8] sm:$0xff] %v548
  %565 = vst [vmem:[#allocation3 + $0xd8] sm:$0xff] %v549
  %566 = vst [vmem:[#allocation3 + $0xf8] sm:$0xff] %v550
  %v567 = vld [vmem:[#allocation3] sm:$0xff]
  %v568 = vld [vmem:[#allocation3 + $0x8] sm:$0xff]
  %v569 = vld [vmem:[#allocation3 + $0x10] sm:$0xff]
  %v570 = vld [vmem:[#allocation3 + $0x18] sm:$0xff]
  %v571 = vld [vmem:[#allocation3 + $0x20] sm:$0xff]
  %v572 = vld [vmem:[#allocation3 + $0x28] sm:$0xff]
  %v573 = vld [vmem:[#allocation3 + $0x30] sm:$0xff]
  %v574 = vld [vmem:[#allocation3 + $0x38] sm:$0xff]
  %v575 = vld [vmem:[#allocation3 + $0x40] sm:$0xff]
  %v576 = vld [vmem:[#allocation3 + $0x48] sm:$0xff]
  %v577 = vld [vmem:[#allocation3 + $0x50] sm:$0xff]
  %v578 = vld [vmem:[#allocation3 + $0x58] sm:$0xff]
  %v579 = vld [vmem:[#allocation3 + $0x60] sm:$0xff]
  %v580 = vld [vmem:[#allocation3 + $0x68] sm:$0xff]
  %v581 = vld [vmem:[#allocation3 + $0x70] sm:$0xff]
  %v582 = vld [vmem:[#allocation3 + $0x78] sm:$0xff]
  %v583 = vld [vmem:[#allocation3 + $0x80] sm:$0xff]
  %v584 = vld [vmem:[#allocation3 + $0x88] sm:$0xff]
  %v585 = vld [vmem:[#allocation3 + $0x90] sm:$0xff]
  %v586 = vld [vmem:[#allocation3 + $0x98] sm:$0xff]
  %v587 = vld [vmem:[#allocation3 + $0xa0] sm:$0xff]
  %v588 = vld [vmem:[#allocation3 + $0xa8] sm:$0xff]
  %v589 = vld [vmem:[#allocation3 + $0xb0] sm:$0xff]
  %v590 = vld [vmem:[#allocation3 + $0xb8] sm:$0xff]
  %v591 = vld [vmem:[#allocation3 + $0xc0] sm:$0xff]
  %v592 = vld [vmem:[#allocation3 + $0xc8] sm:$0xff]
  %v593 = vld [vmem:[#allocation3 + $0xd0] sm:$0xff]
  %v594 = vld [vmem:[#allocation3 + $0xd8] sm:$0xff]
  %v595 = vld [vmem:[#allocation3 + $0xe0] sm:$0xff]
  %v596 = vld [vmem:[#allocation3 + $0xe8] sm:$0xff]
  %v597 = vld [vmem:[#allocation3 + $0xf0] sm:$0xff]
  %v598 = vld [vmem:[#allocation3 + $0xf8] sm:$0xff]
  %v599 = vld [vmem:[%s1] sm:$0xf]
  %v600 = vld [vmem:[%s1 + $0x4] sm:$0xf]
  %v601 = vld [vmem:[%s1 + $0x8] sm:$0xf]
  %v602 = vld [vmem:[%s1 + $0xc] sm:$0xf]
  %v603 = vld [vmem:[%s1 + $0x10] sm:$0xf]
  %v604 = vld [vmem:[%s1 + $0x14] sm:$0xf]
  %v605 = vld [vmem:[%s1 + $0x18] sm:$0xf]
  %v606 = vld [vmem:[%s1 + $0x1c] sm:$0xf]
  %v607 = vld [vmem:[%s1 + $0x20] sm:$0xf]
  %v608 = vld [vmem:[%s1 + $0x24] sm:$0xf]
  %v609 = vld [vmem:[%s1 + $0x28] sm:$0xf]
  %v610 = vld [vmem:[%s1 + $0x2c] sm:$0xf]
  %v611 = vld [vmem:[%s1 + $0x30] sm:$0xf]
  %v612 = vld [vmem:[%s1 + $0x34] sm:$0xf]
  %v613 = vld [vmem:[%s1 + $0x38] sm:$0xf]
  %v614 = vld [vmem:[%s1 + $0x3c] sm:$0xf]
  %v615 = vld [vmem:[%s1 + $0x40] sm:$0xf]
  %v616 = vld [vmem:[%s1 + $0x44] sm:$0xf]
  %v617 = vld [vmem:[%s1 + $0x48] sm:$0xf]
  %v618 = vld [vmem:[%s1 + $0x4c] sm:$0xf]
  %v619 = vld [vmem:[%s1 + $0x50] sm:$0xf]
  %v620 = vld [vmem:[%s1 + $0x54] sm:$0xf]
  %v621 = vld [vmem:[%s1 + $0x58] sm:$0xf]
  %v622 = vld [vmem:[%s1 + $0x5c] sm:$0xf]
  %v623 = vld [vmem:[%s1 + $0x60] sm:$0xf]
  %v624 = vld [vmem:[%s1 + $0x64] sm:$0xf]
  %v625 = vld [vmem:[%s1 + $0x68] sm:$0xf]
  %v626 = vld [vmem:[%s1 + $0x6c] sm:$0xf]
  %v627 = vld [vmem:[%s1 + $0x70] sm:$0xf]
  %v628 = vld [vmem:[%s1 + $0x74] sm:$0xf]
  %v629 = vld [vmem:[%s1 + $0x78] sm:$0xf]
  %v630 = vld [vmem:[%s1 + $0x7c] sm:$0xf]
  %v631 = vld [vmem:[%s1 + $0x80] sm:$0xf]
  %v632 = vld [vmem:[%s1 + $0x84] sm:$0xf]
  %v633 = vld [vmem:[%s1 + $0x88] sm:$0xf]
  %v634 = vld [vmem:[%s1 + $0x8c] sm:$0xf]
  %v635 = vld [vmem:[%s1 + $0x90] sm:$0xf]
  %v636 = vld [vmem:[%s1 + $0x94] sm:$0xf]
  %v637 = vld [vmem:[%s1 + $0x98] sm:$0xf]
  %v638 = vld [vmem:[%s1 + $0x9c] sm:$0xf]
  %v639 = vld [vmem:[%s1 + $0xa0] sm:$0xf]
  %v640 = vld [vmem:[%s1 + $0xa4] sm:$0xf]
  %v641 = vld [vmem:[%s1 + $0xa8] sm:$0xf]
  %v642 = vld [vmem:[%s1 + $0xac] sm:$0xf]
  %v643 = vld [vmem:[%s1 + $0xb0] sm:$0xf]
  %v644 = vld [vmem:[%s1 + $0xb4] sm:$0xf]
  %v645 = vld [vmem:[%s1 + $0xb8] sm:$0xf]
  %v646 = vld [vmem:[%s1 + $0xbc] sm:$0xf]
  %v647 = vld [vmem:[%s1 + $0xc0] sm:$0xf]
  %v648 = vld [vmem:[%s1 + $0xc4] sm:$0xf]
  %v649 = vld [vmem:[%s1 + $0xc8] sm:$0xf]
  %v650 = vld [vmem:[%s1 + $0xcc] sm:$0xf]
  %v651 = vld [vmem:[%s1 + $0xd0] sm:$0xf]
  %v652 = vld [vmem:[%s1 + $0xd4] sm:$0xf]
  %v653 = vld [vmem:[%s1 + $0xd8] sm:$0xf]
  %v654 = vld [vmem:[%s1 + $0xdc] sm:$0xf]
  %v655 = vld [vmem:[%s1 + $0xe0] sm:$0xf]
  %v656 = vld [vmem:[%s1 + $0xe4] sm:$0xf]
  %v657 = vld [vmem:[%s1 + $0xe8] sm:$0xf]
  %v658 = vld [vmem:[%s1 + $0xec] sm:$0xf]
  %v659 = vld [vmem:[%s1 + $0xf0] sm:$0xf]
  %v660 = vld [vmem:[%s1 + $0xf4] sm:$0xf]
  %v661 = vld [vmem:[%s1 + $0xf8] sm:$0xf]
  %v662 = vld [vmem:[%s1 + $0xfc] sm:$0xf]
  %v727 = vunpack.c.l.b16 %v599
  %v728 = vunpack.c.l.b16 %v600
  %v729 = vunpack.c.l.b16 %v601
  %v730 = vunpack.c.l.b16 %v602
  %v731 = vunpack.c.l.b16 %v603
  %v732 = vunpack.c.l.b16 %v604
  %v733 = vunpack.c.l.b16 %v605
  %v734 = vunpack.c.l.b16 %v606
  %v735 = vunpack.c.l.b16 %v607
  %v736 = vunpack.c.l.b16 %v608
  %v737 = vunpack.c.l.b16 %v609
  %v738 = vunpack.c.l.b16 %v610
  %v739 = vunpack.c.l.b16 %v611
  %v740 = vunpack.c.l.b16 %v612
  %v741 = vunpack.c.l.b16 %v613
  %v742 = vunpack.c.l.b16 %v614
  %v743 = vunpack.c.l.b16 %v615
  %v744 = vunpack.c.l.b16 %v616
  %v745 = vunpack.c.l.b16 %v617
  %v746 = vunpack.c.l.b16 %v618
  %v747 = vunpack.c.l.b16 %v619
  %v748 = vunpack.c.l.b16 %v620
  %v749 = vunpack.c.l.b16 %v621
  %v750 = vunpack.c.l.b16 %v622
  %v751 = vunpack.c.l.b16 %v623
  %v752 = vunpack.c.l.b16 %v624
  %v753 = vunpack.c.l.b16 %v625
  %v754 = vunpack.c.l.b16 %v626
  %v755 = vunpack.c.l.b16 %v627
  %v756 = vunpack.c.l.b16 %v628
  %v757 = vunpack.c.l.b16 %v629
  %v758 = vunpack.c.l.b16 %v630
  %v759 = vunpack.c.l.b16 %v631
  %v760 = vunpack.c.l.b16 %v632
  %v761 = vunpack.c.l.b16 %v633
  %v762 = vunpack.c.l.b16 %v634
  %v763 = vunpack.c.l.b16 %v635
  %v764 = vunpack.c.l.b16 %v636
  %v765 = vunpack.c.l.b16 %v637
  %v766 = vunpack.c.l.b16 %v638
  %v767 = vunpack.c.l.b16 %v639
  %v768 = vunpack.c.l.b16 %v640
  %v769 = vunpack.c.l.b16 %v641
  %v770 = vunpack.c.l.b16 %v642
  %v771 = vunpack.c.l.b16 %v643
  %v772 = vunpack.c.l.b16 %v644
  %v773 = vunpack.c.l.b16 %v645
  %v774 = vunpack.c.l.b16 %v646
  %v775 = vunpack.c.l.b16 %v647
  %v776 = vunpack.c.l.b16 %v648
  %v777 = vunpack.c.l.b16 %v649
  %v778 = vunpack.c.l.b16 %v650
  %v779 = vunpack.c.l.b16 %v651
  %v780 = vunpack.c.l.b16 %v652
  %v781 = vunpack.c.l.b16 %v653
  %v782 = vunpack.c.l.b16 %v654
  %v783 = vunpack.c.l.b16 %v655
  %v784 = vunpack.c.l.b16 %v656
  %v785 = vunpack.c.l.b16 %v657
  %v786 = vunpack.c.l.b16 %v658
  %v787 = vunpack.c.l.b16 %v659
  %v788 = vunpack.c.l.b16 %v660
  %v789 = vunpack.c.l.b16 %v661
  %v790 = vunpack.c.l.b16 %v662
  %v791 = vpack.c.b16 %v728, %v727
  %v792 = vpack.c.b16 %v730, %v729
  %v793 = vpack.c.b16 %v732, %v731
  %v794 = vpack.c.b16 %v734, %v733
  %v795 = vpack.c.b16 %v736, %v735
  %v796 = vpack.c.b16 %v738, %v737
  %v797 = vpack.c.b16 %v740, %v739
  %v798 = vpack.c.b16 %v742, %v741
  %v799 = vpack.c.b16 %v744, %v743
  %v800 = vpack.c.b16 %v746, %v745
  %v801 = vpack.c.b16 %v748, %v747
  %v802 = vpack.c.b16 %v750, %v749
  %v803 = vpack.c.b16 %v752, %v751
  %v804 = vpack.c.b16 %v754, %v753
  %v805 = vpack.c.b16 %v756, %v755
  %v806 = vpack.c.b16 %v758, %v757
  %v807 = vpack.c.b16 %v760, %v759
  %v808 = vpack.c.b16 %v762, %v761
  %v809 = vpack.c.b16 %v764, %v763
  %v810 = vpack.c.b16 %v766, %v765
  %v811 = vpack.c.b16 %v768, %v767
  %v812 = vpack.c.b16 %v770, %v769
  %v813 = vpack.c.b16 %v772, %v771
  %v814 = vpack.c.b16 %v774, %v773
  %v815 = vpack.c.b16 %v776, %v775
  %v816 = vpack.c.b16 %v778, %v777
  %v817 = vpack.c.b16 %v780, %v779
  %v818 = vpack.c.b16 %v782, %v781
  %v819 = vpack.c.b16 %v784, %v783
  %v820 = vpack.c.b16 %v786, %v785
  %v821 = vpack.c.b16 %v788, %v787
  %v822 = vpack.c.b16 %v790, %v789
  %855 = vmatprep.subr.bf16.mxu0 0
  %856 = vmatpush1.bf16.msra.mxu0 %v791
  %857 = vmatprep.subr.bf16.mxu0 0
  %858 = vmatpush1.bf16.msra.mxu0 %v792
  %859 = vmatprep.subr.bf16.mxu0 0
  %860 = vmatpush1.bf16.msra.mxu0 %v793
  %861 = vmatprep.subr.bf16.mxu0 0
  %862 = vmatpush1.bf16.msra.mxu0 %v794
  %863 = vmatprep.subr.bf16.mxu0 0
  %864 = vmatpush1.bf16.msra.mxu0 %v795
  %865 = vmatprep.subr.bf16.mxu0 0
  %866 = vmatpush1.bf16.msra.mxu0 %v796
  %867 = vmatprep.subr.bf16.mxu0 0
  %868 = vmatpush1.bf16.msra.mxu0 %v797
  %869 = vmatprep.subr.bf16.mxu0 0
  %870 = vmatpush1.bf16.msra.mxu0 %v798
  %871 = vmatprep.subr.bf16.mxu0 0
  %872 = vmatpush1.bf16.msra.mxu0 %v799
  %873 = vmatprep.subr.bf16.mxu0 0
  %874 = vmatpush1.bf16.msra.mxu0 %v800
  %875 = vmatprep.subr.bf16.mxu0 0
  %876 = vmatpush1.bf16.msra.mxu0 %v801
  %877 = vmatprep.subr.bf16.mxu0 0
  %878 = vmatpush1.bf16.msra.mxu0 %v802
  %879 = vmatprep.subr.bf16.mxu0 0
  %880 = vmatpush1.bf16.msra.mxu0 %v803
  %881 = vmatprep.subr.bf16.mxu0 0
  %882 = vmatpush1.bf16.msra.mxu0 %v804
  %883 = vmatprep.subr.bf16.mxu0 0
  %884 = vmatpush1.bf16.msra.mxu0 %v805
  %885 = vmatprep.subr.bf16.mxu0 0
  %886 = vmatpush1.bf16.msra.mxu0 %v806
  %887 = vmatprep.mubr.bf16.mxu0 %v568
  %888 = vmatmul.mubr.bf16.gmra.mrb[0].mxu0 %v567
  %v889 = vpop.f32.mrb[0].mxu0
  %v890 = vadd.f32 0.0, %v889
  %v891 = vpop.f32.mrb[0].mxu0
  %v892 = vpop.f32.mrb[0].mxu0
  %v893 = vadd.f32 0.0, %v892
  %v894 = vpop.f32.mrb[0].mxu0
  %895 = vmatprep.mubr.bf16.mxu0 %v572
  %896 = vmatmul.mubr.bf16.gmra.mrb[0].mxu0 %v571
  %v897 = vpop.f32.mrb[0].mxu0
  %v898 = vadd.f32 0.0, %v897
  %v899 = vpop.f32.mrb[0].mxu0
  %v900 = vpop.f32.mrb[0].mxu0
  %v901 = vadd.f32 0.0, %v900
  %v902 = vpop.f32.mrb[0].mxu0
  %903 = vmatprep.mubr.bf16.mxu0 %v576
  %904 = vmatmul.mubr.bf16.gmra.mrb[0].mxu0 %v575
  %v905 = vpop.f32.mrb[0].mxu0
  %v906 = vadd.f32 0.0, %v905
  %v907 = vpop.f32.mrb[0].mxu0
  %v908 = vpop.f32.mrb[0].mxu0
  %v909 = vadd.f32 0.0, %v908
  %v910 = vpop.f32.mrb[0].mxu0
  %911 = vmatprep.mubr.bf16.mxu0 %v580
  %912 = vmatmul.mubr.bf16.gmra.mrb[0].mxu0 %v579
  %v913 = vpop.f32.mrb[0].mxu0
  %v914 = vadd.f32 0.0, %v913
  %v915 = vpop.f32.mrb[0].mxu0
  %v916 = vpop.f32.mrb[0].mxu0
  %v917 = vadd.f32 0.0, %v916
  %v918 = vpop.f32.mrb[0].mxu0
  %919 = vmatprep.mubr.bf16.mxu0 %v584
  %920 = vmatmul.mubr.bf16.gmra.mrb[0].mxu0 %v583
  %v921 = vpop.f32.mrb[0].mxu0
  %v922 = vadd.f32 0.0, %v921
  %v923 = vpop.f32.mrb[0].mxu0
  %v924 = vpop.f32.mrb[0].mxu0
  %v925 = vadd.f32 0.0, %v924
  %v926 = vpop.f32.mrb[0].mxu0
  %927 = vmatprep.mubr.bf16.mxu0 %v588
  %928 = vmatmul.mubr.bf16.gmra.mrb[0].mxu0 %v587
  %v929 = vpop.f32.mrb[0].mxu0
  %v930 = vadd.f32 0.0, %v929
  %v931 = vpop.f32.mrb[0].mxu0
  %v932 = vpop.f32.mrb[0].mxu0
  %v933 = vadd.f32 0.0, %v932
  %v934 = vpop.f32.mrb[0].mxu0
  %935 = vmatprep.mubr.bf16.mxu0 %v592
  %936 = vmatmul.mubr.bf16.gmra.mrb[0].mxu0 %v591
  %v937 = vpop.f32.mrb[0].mxu0
  %v938 = vadd.f32 0.0, %v937
  %v939 = vpop.f32.mrb[0].mxu0
  %v940 = vpop.f32.mrb[0].mxu0
  %v941 = vadd.f32 0.0, %v940
  %v942 = vpop.f32.mrb[0].mxu0
  %943 = vmatprep.mubr.bf16.mxu0 %v596
  %944 = vmatmul.mubr.bf16.gmra.mrb[0].mxu0 %v595
  %v945 = vpop.f32.mrb[0].mxu0
  %v946 = vadd.f32 0.0, %v945
  %v947 = vpop.f32.mrb[0].mxu0
  %v948 = vpop.f32.mrb[0].mxu0
  %v949 = vadd.f32 0.0, %v948
  %v950 = vpop.f32.mrb[0].mxu0
  %951 = vdwg.mxu0
  %952 = vmatprep.subr.bf16.mxu0 0
  %953 = vmatpush1.bf16.msra.mxu0 %v807
  %954 = vmatprep.subr.bf16.mxu0 0
  %955 = vmatpush1.bf16.msra.mxu0 %v808
  %956 = vmatprep.subr.bf16.mxu0 0
  %957 = vmatpush1.bf16.msra.mxu0 %v809
  %958 = vmatprep.subr.bf16.mxu0 0
  %959 = vmatpush1.bf16.msra.mxu0 %v810
  %960 = vmatprep.subr.bf16.mxu0 0
  %961 = vmatpush1.bf16.msra.mxu0 %v811
  %962 = vmatprep.subr.bf16.mxu0 0
  %963 = vmatpush1.bf16.msra.mxu0 %v812
  %964 = vmatprep.subr.bf16.mxu0 0
  %965 = vmatpush1.bf16.msra.mxu0 %v813
  %966 = vmatprep.subr.bf16.mxu0 0
  %967 = vmatpush1.bf16.msra.mxu0 %v814
  %968 = vmatprep.subr.bf16.mxu0 0
  %969 = vmatpush1.bf16.msra.mxu0 %v815
  %970 = vmatprep.subr.bf16.mxu0 0
  %971 = vmatpush1.bf16.msra.mxu0 %v816
  %972 = vmatprep.subr.bf16.mxu0 0
  %973 = vmatpush1.bf16.msra.mxu0 %v817
  %974 = vmatprep.subr.bf16.mxu0 0
  %975 = vmatpush1.bf16.msra.mxu0 %v818
  %976 = vmatprep.subr.bf16.mxu0 0
  %977 = vmatpush1.bf16.msra.mxu0 %v819
  %978 = vmatprep.subr.bf16.mxu0 0
  %979 = vmatpush1.bf16.msra.mxu0 %v820
  %980 = vmatprep.subr.bf16.mxu0 0
  %981 = vmatpush1.bf16.msra.mxu0 %v821
  %982 = vmatprep.subr.bf16.mxu0 0
  %983 = vmatpush1.bf16.msra.mxu0 %v822
  %984 = vmatprep.mubr.bf16.mxu0 %v570
  %985 = vmatmul.mubr.bf16.gmra.mrb[0].mxu0 %v569
  %v986 = vpop.f32.mrb[0].mxu0
  %v987 = vadd.f32 %v890, %v986
  %v988 = vpop.f32.mrb[0].mxu0
  %v989 = vpop.f32.mrb[0].mxu0
  %v990 = vadd.f32 %v893, %v989
  %v991 = vpop.f32.mrb[0].mxu0
  %992 = vmatprep.mubr.bf16.mxu0 %v574
  %993 = vmatmul.mubr.bf16.gmra.mrb[0].mxu0 %v573
  %v994 = vpop.f32.mrb[0].mxu0
  %v995 = vadd.f32 %v898, %v994
  %v996 = vpop.f32.mrb[0].mxu0
  %v997 = vpop.f32.mrb[0].mxu0
  %v998 = vadd.f32 %v901, %v997
  %v999 = vpop.f32.mrb[0].mxu0
  %1000 = vmatprep.mubr.bf16.mxu0 %v578
  %1001 = vmatmul.mubr.bf16.gmra.mrb[0].mxu0 %v577
  %v1002 = vpop.f32.mrb[0].mxu0
  %v1003 = vadd.f32 %v906, %v1002
  %v1004 = vpop.f32.mrb[0].mxu0
  %v1005 = vpop.f32.mrb[0].mxu0
  %v1006 = vadd.f32 %v909, %v1005
  %v1007 = vpop.f32.mrb[0].mxu0
  %1008 = vmatprep.mubr.bf16.mxu0 %v582
  %1009 = vmatmul.mubr.bf16.gmra.mrb[0].mxu0 %v581
  %v1010 = vpop.f32.mrb[0].mxu0
  %v1011 = vadd.f32 %v914, %v1010
  %v1012 = vpop.f32.mrb[0].mxu0
  %v1013 = vpop.f32.mrb[0].mxu0
  %v1014 = vadd.f32 %v917, %v1013
  %v1015 = vpop.f32.mrb[0].mxu0
  %1016 = vmatprep.mubr.bf16.mxu0 %v586
  %1017 = vmatmul.mubr.bf16.gmra.mrb[0].mxu0 %v585
  %v1018 = vpop.f32.mrb[0].mxu0
  %v1019 = vadd.f32 %v922, %v1018
  %v1020 = vpop.f32.mrb[0].mxu0
  %v1021 = vpop.f32.mrb[0].mxu0
  %v1022 = vadd.f32 %v925, %v1021
  %v1023 = vpop.f32.mrb[0].mxu0
  %1024 = vmatprep.mubr.bf16.mxu0 %v590
  %1025 = vmatmul.mubr.bf16.gmra.mrb[0].mxu0 %v589
  %v1026 = vpop.f32.mrb[0].mxu0
  %v1027 = vadd.f32 %v930, %v1026
  %v1028 = vpop.f32.mrb[0].mxu0
  %v1029 = vpop.f32.mrb[0].mxu0
  %v1030 = vadd.f32 %v933, %v1029
  %v1031 = vpop.f32.mrb[0].mxu0
  %1032 = vmatprep.mubr.bf16.mxu0 %v594
  %1033 = vmatmul.mubr.bf16.gmra.mrb[0].mxu0 %v593
  %v1034 = vpop.f32.mrb[0].mxu0
  %v1035 = vadd.f32 %v938, %v1034
  %v1036 = vpop.f32.mrb[0].mxu0
  %v1037 = vpop.f32.mrb[0].mxu0
  %v1038 = vadd.f32 %v941, %v1037
  %v1039 = vpop.f32.mrb[0].mxu0
  %1040 = vmatprep.mubr.bf16.mxu0 %v598
  %1041 = vmatmul.mubr.bf16.gmra.mrb[0].mxu0 %v597
  %v1042 = vpop.f32.mrb[0].mxu0
  %v1043 = vadd.f32 %v946, %v1042
  %v1044 = vpop.f32.mrb[0].mxu0
  %v1045 = vpop.f32.mrb[0].mxu0
  %v1046 = vadd.f32 %v949, %v1045
  %v1047 = vpop.f32.mrb[0].mxu0
  %1048 = vdwg.mxu0
  %1049 = vst [vmem:[#allocation2] sm:$0xf] 0
  %1050 = vst [vmem:[#allocation2 + $0x4] sm:$0x1] 0
  %1051 = vst [vmem:[#allocation2 + $0x8] sm:$0xf] 0
  %1052 = vst [vmem:[#allocation2 + $0xc] sm:$0x1] 0
  %1053 = vst [vmem:[#allocation2 + $0x10] sm:$0xf] 0
  %1054 = vst [vmem:[#allocation2 + $0x14] sm:$0x1] 0
  %1055 = vst [vmem:[#allocation2 + $0x18] sm:$0xf] 0
  %1056 = vst [vmem:[#allocation2 + $0x1c] sm:$0x1] 0
  %1057 = vst [vmem:[#allocation2 + $0x20] sm:$0xf] 0
  %1058 = vst [vmem:[#allocation2 + $0x24] sm:$0x1] 0
  %1059 = vst [vmem:[#allocation2 + $0x28] sm:$0xf] 0
  %1060 = vst [vmem:[#allocation2 + $0x2c] sm:$0x1] 0
  %1061 = vst [vmem:[#allocation2 + $0x30] sm:$0xf] 0
  %1062 = vst [vmem:[#allocation2 + $0x34] sm:$0x1] 0
  %1063 = vst [vmem:[#allocation2 + $0x38] sm:$0xf] 0
  %1064 = vst [vmem:[#allocation2 + $0x3c] sm:$0x1] 0
  %1065 = vst [vmem:[#allocation2 + $0x40] sm:$0xf] 0
  %1066 = vst [vmem:[#allocation2 + $0x44] sm:$0x1] 0
  %1067 = vst [vmem:[#allocation2 + $0x48] sm:$0xf] 0
  %1068 = vst [vmem:[#allocation2 + $0x4c] sm:$0x1] 0
  %1069 = vst [vmem:[#allocation2 + $0x50] sm:$0xf] 0
  %1070 = vst [vmem:[#allocation2 + $0x54] sm:$0x1] 0
  %1071 = vst [vmem:[#allocation2 + $0x58] sm:$0xf] 0
  %1072 = vst [vmem:[#allocation2 + $0x5c] sm:$0x1] 0
  %1073 = vst [vmem:[#allocation2 + $0x60] sm:$0xf] 0
  %1074 = vst [vmem:[#allocation2 + $0x64] sm:$0x1] 0
  %1075 = vst [vmem:[#allocation2 + $0x68] sm:$0xf] 0
  %1076 = vst [vmem:[#allocation2 + $0x6c] sm:$0x1] 0
  %1077 = vst [vmem:[#allocation2 + $0x70] sm:$0xf] 0
  %1078 = vst [vmem:[#allocation2 + $0x74] sm:$0x1] 0
  %1079 = vst [vmem:[#allocation2 + $0x78] sm:$0xf] 0
  %1080 = vst [vmem:[#allocation2 + $0x7c] sm:$0x1] 0
  %1081 = vst [vmem:[#allocation2 + $0x80] sm:$0xf] 0
  %1082 = vst [vmem:[#allocation2 + $0x84] sm:$0x1] 0
  %1083 = vst [vmem:[#allocation2 + $0x88] sm:$0xf] 0
  %1084 = vst [vmem:[#allocation2 + $0x8c] sm:$0x1] 0
  %1085 = vst [vmem:[#allocation2 + $0x90] sm:$0xf] 0
  %1086 = vst [vmem:[#allocation2 + $0x94] sm:$0x1] 0
  %1087 = vst [vmem:[#allocation2 + $0x98] sm:$0xf] 0
  %1088 = vst [vmem:[#allocation2 + $0x9c] sm:$0x1] 0
  %v1089 = vmax.f32 %v987, 0.0
  %v1090 = vmax.f32 %v990, 0.0
  %v1091 = vmax.f32 %v995, 0.0
  %v1092 = vmax.f32 %v998, 0.0
  %v1093 = vmax.f32 %v1003, 0.0
  %v1094 = vmax.f32 %v1006, 0.0
  %v1095 = vmax.f32 %v1011, 0.0
  %v1096 = vmax.f32 %v1014, 0.0
  %v1097 = vmax.f32 %v1019, 0.0
  %v1098 = vmax.f32 %v1022, 0.0
  %v1099 = vmax.f32 %v1027, 0.0
  %v1100 = vmax.f32 %v1030, 0.0
  %v1101 = vmax.f32 %v1035, 0.0
  %v1102 = vmax.f32 %v1038, 0.0
  %v1103 = vmax.f32 %v1043, 0.0
  %v1104 = vmax.f32 %v1046, 0.0
  %v1105 = vpack.c.bf16 %v1090, %v1089
  %v1106 = vpack.c.bf16 %v1092, %v1091
  %v1107 = vpack.c.bf16 %v1094, %v1093
  %v1108 = vpack.c.bf16 %v1096, %v1095
  %v1109 = vpack.c.bf16 %v1098, %v1097
  %v1110 = vpack.c.bf16 %v1100, %v1099
  %v1111 = vpack.c.bf16 %v1102, %v1101
  %v1112 = vpack.c.bf16 %v1104, %v1103
  %v1121 = vunpack.c.l.b16 %v1105
  %v1122 = vunpack.c.h.b16 %v1105
  %v1123 = vunpack.c.l.b16 %v1106
  %v1124 = vunpack.c.h.b16 %v1106
  %v1125 = vunpack.c.l.b16 %v1107
  %v1126 = vunpack.c.h.b16 %v1107
  %v1127 = vunpack.c.l.b16 %v1108
  %v1128 = vunpack.c.h.b16 %v1108
  %v1129 = vunpack.c.l.b16 %v1109
  %v1130 = vunpack.c.h.b16 %v1109
  %v1131 = vunpack.c.l.b16 %v1110
  %v1132 = vunpack.c.h.b16 %v1110
  %v1133 = vunpack.c.l.b16 %v1111
  %v1134 = vunpack.c.h.b16 %v1111
  %v1135 = vunpack.c.l.b16 %v1112
  %v1136 = vunpack.c.h.b16 %v1112
  %v1137 = vpack.c.b16 %v1121, %v1121
  %v1138 = vpack.c.b16 %v1122, %v1122
  %v1139 = vpack.c.b16 %v1123, %v1123
  %v1140 = vpack.c.b16 %v1124, %v1124
  %v1141 = vpack.c.b16 %v1125, %v1125
  %v1142 = vpack.c.b16 %v1126, %v1126
  %v1143 = vpack.c.b16 %v1127, %v1127
  %v1144 = vpack.c.b16 %v1128, %v1128
  %v1145 = vpack.c.b16 %v1129, %v1129
  %v1146 = vpack.c.b16 %v1130, %v1130
  %v1147 = vpack.c.b16 %v1131, %v1131
  %v1148 = vpack.c.b16 %v1132, %v1132
  %v1149 = vpack.c.b16 %v1133, %v1133
  %v1150 = vpack.c.b16 %v1134, %v1134
  %v1151 = vpack.c.b16 %v1135, %v1135
  %v1152 = vpack.c.b16 %v1136, %v1136
  %v1154 = vshrl.u32 %v1137, 16
  %v1156 = vrot.slane %v1154, 7
  %v1157 = vshll.u32 %v1137, 16
  %v1159 = vor.u32 %v1156, %v1157
  %v1160 = vrot.slane %v1156, 4
  %v1162 = vshrl.u32 %v1138, 16
  %v1164 = vrot.slane %v1162, 7
  %v1165 = vshll.u32 %v1138, 16
  %v1167 = vor.u32 %v1164, %v1165
  %v1168 = vrot.slane %v1164, 4
  %v1170 = vshrl.u32 %v1139, 16
  %v1172 = vrot.slane %v1170, 7
  %v1173 = vshll.u32 %v1139, 16
  %v1175 = vor.u32 %v1172, %v1173
  %v1176 = vrot.slane %v1172, 4
  %v1178 = vshrl.u32 %v1140, 16
  %v1180 = vrot.slane %v1178, 7
  %v1181 = vshll.u32 %v1140, 16
  %v1183 = vor.u32 %v1180, %v1181
  %v1184 = vrot.slane %v1180, 4
  %v1186 = vshrl.u32 %v1141, 16
  %v1188 = vrot.slane %v1186, 7
  %v1189 = vshll.u32 %v1141, 16
  %v1191 = vor.u32 %v1188, %v1189
  %v1192 = vrot.slane %v1188, 4
  %v1194 = vshrl.u32 %v1142, 16
  %v1196 = vrot.slane %v1194, 7
  %v1197 = vshll.u32 %v1142, 16
  %v1199 = vor.u32 %v1196, %v1197
  %v1200 = vrot.slane %v1196, 4
  %v1202 = vshrl.u32 %v1143, 16
  %v1204 = vrot.slane %v1202, 7
  %v1205 = vshll.u32 %v1143, 16
  %v1207 = vor.u32 %v1204, %v1205
  %v1208 = vrot.slane %v1204, 4
  %v1210 = vshrl.u32 %v1144, 16
  %v1212 = vrot.slane %v1210, 7
  %v1213 = vshll.u32 %v1144, 16
  %v1215 = vor.u32 %v1212, %v1213
  %v1216 = vrot.slane %v1212, 4
  %v1218 = vshrl.u32 %v1145, 16
  %v1220 = vrot.slane %v1218, 7
  %v1221 = vshll.u32 %v1145, 16
  %v1223 = vor.u32 %v1220, %v1221
  %v1224 = vrot.slane %v1220, 4
  %v1226 = vshrl.u32 %v1146, 16
  %v1228 = vrot.slane %v1226, 7
  %v1229 = vshll.u32 %v1146, 16
  %v1231 = vor.u32 %v1228, %v1229
  %v1232 = vrot.slane %v1228, 4
  %v1234 = vshrl.u32 %v1147, 16
  %v1236 = vrot.slane %v1234, 7
  %v1237 = vshll.u32 %v1147, 16
  %v1239 = vor.u32 %v1236, %v1237
  %v1240 = vrot.slane %v1236, 4
  %v1242 = vshrl.u32 %v1148, 16
  %v1244 = vrot.slane %v1242, 7
  %v1245 = vshll.u32 %v1148, 16
  %v1247 = vor.u32 %v1244, %v1245
  %v1248 = vrot.slane %v1244, 4
  %v1250 = vshrl.u32 %v1149, 16
  %v1252 = vrot.slane %v1250, 7
  %v1253 = vshll.u32 %v1149, 16
  %v1255 = vor.u32 %v1252, %v1253
  %v1256 = vrot.slane %v1252, 4
  %v1258 = vshrl.u32 %v1150, 16
  %v1260 = vrot.slane %v1258, 7
  %v1261 = vshll.u32 %v1150, 16
  %v1263 = vor.u32 %v1260, %v1261
  %v1264 = vrot.slane %v1260, 4
  %v1266 = vshrl.u32 %v1151, 16
  %v1268 = vrot.slane %v1266, 7
  %v1269 = vshll.u32 %v1151, 16
  %v1271 = vor.u32 %v1268, %v1269
  %v1272 = vrot.slane %v1268, 4
  %v1274 = vshrl.u32 %v1152, 16
  %v1276 = vrot.slane %v1274, 7
  %v1277 = vshll.u32 %v1152, 16
  %v1279 = vor.u32 %v1276, %v1277
  %v1280 = vrot.slane %v1276, 4
  %s1313 = scalar_lea.vmem [#allocation2], 8
  %vm1314 = vcmask 1043456
  %vm1315 = vsmask.f32 7938
  %vm1316 = vmand %vm1314, %vm1315
  %v1317 = vld [vmem:[%s1313] sm:$0xf]
  %v1318 = vsel %vm1316, %v1159, %v1317
  %1319 = vst [vmem:[%s1313] sm:$0xf] %v1318
  %vm1320 = vcmask 1040384
  %vm1321 = vsmask.f32 256
  %vm1322 = vmand %vm1320, %vm1321
  %v1323 = vld [vmem:[%s1313 + $0x4] sm:$0x1]
  %v1324 = vsel %vm1322, %v1160, %v1323
  %1325 = vst [vmem:[%s1313 + $0x4] sm:$0x1] %v1324
  %v1326 = vld [vmem:[%s1313 + $0x8] sm:$0xf]
  %v1327 = vsel %vm1316, %v1167, %v1326
  %1328 = vst [vmem:[%s1313 + $0x8] sm:$0xf] %v1327
  %v1329 = vld [vmem:[%s1313 + $0xc] sm:$0x1]
  %v1330 = vsel %vm1322, %v1168, %v1329
  %1331 = vst [vmem:[%s1313 + $0xc] sm:$0x1] %v1330
  %v1332 = vld [vmem:[%s1313 + $0x10] sm:$0xf]
  %v1333 = vsel %vm1316, %v1175, %v1332
  %1334 = vst [vmem:[%s1313 + $0x10] sm:$0xf] %v1333
  %v1335 = vld [vmem:[%s1313 + $0x14] sm:$0x1]
  %v1336 = vsel %vm1322, %v1176, %v1335
  %1337 = vst [vmem:[%s1313 + $0x14] sm:$0x1] %v1336
  %v1338 = vld [vmem:[%s1313 + $0x18] sm:$0xf]
  %v1339 = vsel %vm1316, %v1183, %v1338
  %1340 = vst [vmem:[%s1313 + $0x18] sm:$0xf] %v1339
  %v1341 = vld [vmem:[%s1313 + $0x1c] sm:$0x1]
  %v1342 = vsel %vm1322, %v1184, %v1341
  %1343 = vst [vmem:[%s1313 + $0x1c] sm:$0x1] %v1342
  %v1344 = vld [vmem:[%s1313 + $0x20] sm:$0xf]
  %v1345 = vsel %vm1316, %v1191, %v1344
  %1346 = vst [vmem:[%s1313 + $0x20] sm:$0xf] %v1345
  %v1347 = vld [vmem:[%s1313 + $0x24] sm:$0x1]
  %v1348 = vsel %vm1322, %v1192, %v1347
  %1349 = vst [vmem:[%s1313 + $0x24] sm:$0x1] %v1348
  %v1350 = vld [vmem:[%s1313 + $0x28] sm:$0xf]
  %v1351 = vsel %vm1316, %v1199, %v1350
  %1352 = vst [vmem:[%s1313 + $0x28] sm:$0xf] %v1351
  %v1353 = vld [vmem:[%s1313 + $0x2c] sm:$0x1]
  %v1354 = vsel %vm1322, %v1200, %v1353
  %1355 = vst [vmem:[%s1313 + $0x2c] sm:$0x1] %v1354
  %v1356 = vld [vmem:[%s1313 + $0x30] sm:$0xf]
  %v1357 = vsel %vm1316, %v1207, %v1356
  %1358 = vst [vmem:[%s1313 + $0x30] sm:$0xf] %v1357
  %v1359 = vld [vmem:[%s1313 + $0x34] sm:$0x1]
  %v1360 = vsel %vm1322, %v1208, %v1359
  %1361 = vst [vmem:[%s1313 + $0x34] sm:$0x1] %v1360
  %v1362 = vld [vmem:[%s1313 + $0x38] sm:$0xf]
  %v1363 = vsel %vm1316, %v1215, %v1362
  %1364 = vst [vmem:[%s1313 + $0x38] sm:$0xf] %v1363
  %v1365 = vld [vmem:[%s1313 + $0x3c] sm:$0x1]
  %v1366 = vsel %vm1322, %v1216, %v1365
  %1367 = vst [vmem:[%s1313 + $0x3c] sm:$0x1] %v1366
  %v1368 = vld [vmem:[%s1313 + $0x50] sm:$0xf]
  %v1369 = vsel %vm1316, %v1223, %v1368
  %1370 = vst [vmem:[%s1313 + $0x50] sm:$0xf] %v1369
  %v1371 = vld [vmem:[%s1313 + $0x54] sm:$0x1]
  %v1372 = vsel %vm1322, %v1224, %v1371
  %1373 = vst [vmem:[%s1313 + $0x54] sm:$0x1] %v1372
  %v1374 = vld [vmem:[%s1313 + $0x58] sm:$0xf]
  %v1375 = vsel %vm1316, %v1231, %v1374
  %1376 = vst [vmem:[%s1313 + $0x58] sm:$0xf] %v1375
  %v1377 = vld [vmem:[%s1313 + $0x5c] sm:$0x1]
  %v1378 = vsel %vm1322, %v1232, %v1377
  %1379 = vst [vmem:[%s1313 + $0x5c] sm:$0x1] %v1378
  %v1380 = vld [vmem:[%s1313 + $0x60] sm:$0xf]
  %v1381 = vsel %vm1316, %v1239, %v1380
  %1382 = vst [vmem:[%s1313 + $0x60] sm:$0xf] %v1381
  %v1383 = vld [vmem:[%s1313 + $0x64] sm:$0x1]
  %v1384 = vsel %vm1322, %v1240, %v1383
  %1385 = vst [vmem:[%s1313 + $0x64] sm:$0x1] %v1384
  %v1386 = vld [vmem:[%s1313 + $0x68] sm:$0xf]
  %v1387 = vsel %vm1316, %v1247, %v1386
  %1388 = vst [vmem:[%s1313 + $0x68] sm:$0xf] %v1387
  %v1389 = vld [vmem:[%s1313 + $0x6c] sm:$0x1]
  %v1390 = vsel %vm1322, %v1248, %v1389
  %1391 = vst [vmem:[%s1313 + $0x6c] sm:$0x1] %v1390
  %v1392 = vld [vmem:[%s1313 + $0x70] sm:$0xf]
  %v1393 = vsel %vm1316, %v1255, %v1392
  %1394 = vst [vmem:[%s1313 + $0x70] sm:$0xf] %v1393
  %v1395 = vld [vmem:[%s1313 + $0x74] sm:$0x1]
  %v1396 = vsel %vm1322, %v1256, %v1395
  %1397 = vst [vmem:[%s1313 + $0x74] sm:$0x1] %v1396
  %v1398 = vld [vmem:[%s1313 + $0x78] sm:$0xf]
  %v1399 = vsel %vm1316, %v1263, %v1398
  %1400 = vst [vmem:[%s1313 + $0x78] sm:$0xf] %v1399
  %v1401 = vld [vmem:[%s1313 + $0x7c] sm:$0x1]
  %v1402 = vsel %vm1322, %v1264, %v1401
  %1403 = vst [vmem:[%s1313 + $0x7c] sm:$0x1] %v1402
  %v1404 = vld [vmem:[%s1313 + $0x80] sm:$0xf]
  %v1405 = vsel %vm1316, %v1271, %v1404
  %1406 = vst [vmem:[%s1313 + $0x80] sm:$0xf] %v1405
  %v1407 = vld [vmem:[%s1313 + $0x84] sm:$0x1]
  %v1408 = vsel %vm1322, %v1272, %v1407
  %1409 = vst [vmem:[%s1313 + $0x84] sm:$0x1] %v1408
  %v1410 = vld [vmem:[%s1313 + $0x88] sm:$0xf]
  %v1411 = vsel %vm1316, %v1279, %v1410
  %1412 = vst [vmem:[%s1313 + $0x88] sm:$0xf] %v1411
  %v1413 = vld [vmem:[%s1313 + $0x8c] sm:$0x1]
  %v1414 = vsel %vm1322, %v1280, %v1413
  %1415 = vst [vmem:[%s1313 + $0x8c] sm:$0x1] %v1414
  %v1416 = vld [vmem:[#allocation2] sm:$0xf]
  %v1417 = vld [vmem:[#allocation2 + $0x8] sm:$0xf]
  %v1418 = vld [vmem:[#allocation2 + $0x10] sm:$0xf]
  %v1419 = vld [vmem:[#allocation2 + $0x18] sm:$0xf]
  %v1420 = vld [vmem:[#allocation2 + $0x20] sm:$0xf]
  %v1421 = vld [vmem:[#allocation2 + $0x28] sm:$0xf]
  %v1422 = vld [vmem:[#allocation2 + $0x30] sm:$0xf]
  %v1423 = vld [vmem:[#allocation2 + $0x38] sm:$0xf]
  %v1424 = vld [vmem:[#allocation2 + $0x50] sm:$0xf]
  %v1425 = vld [vmem:[#allocation2 + $0x58] sm:$0xf]
  %v1426 = vld [vmem:[#allocation2 + $0x60] sm:$0xf]
  %v1427 = vld [vmem:[#allocation2 + $0x68] sm:$0xf]
  %v1428 = vld [vmem:[#allocation2 + $0x70] sm:$0xf]
  %v1429 = vld [vmem:[#allocation2 + $0x78] sm:$0xf]
  %v1430 = vld [vmem:[#allocation2 + $0x80] sm:$0xf]
  %v1431 = vld [vmem:[#allocation2 + $0x88] sm:$0xf]
  %v1448 = vunpack.c.l.b16 %v1416
  %v1449 = vunpack.c.l.b16 %v1417
  %v1450 = vunpack.c.l.b16 %v1418
  %v1451 = vunpack.c.l.b16 %v1419
  %v1452 = vunpack.c.l.b16 %v1420
  %v1453 = vunpack.c.l.b16 %v1421
  %v1454 = vunpack.c.l.b16 %v1422
  %v1455 = vunpack.c.l.b16 %v1423
  %v1456 = vunpack.c.l.b16 %v1424
  %v1457 = vunpack.c.l.b16 %v1425
  %v1458 = vunpack.c.l.b16 %v1426
  %v1459 = vunpack.c.l.b16 %v1427
  %v1460 = vunpack.c.l.b16 %v1428
  %v1461 = vunpack.c.l.b16 %v1429
  %v1462 = vunpack.c.l.b16 %v1430
  %v1463 = vunpack.c.l.b16 %v1431
  %v1464 = vpack.c.b16 %v1449, %v1448
  %v1465 = vpack.c.b16 %v1451, %v1450
  %v1466 = vpack.c.b16 %v1453, %v1452
  %v1467 = vpack.c.b16 %v1455, %v1454
  %v1468 = vpack.c.b16 %v1457, %v1456
  %v1469 = vpack.c.b16 %v1459, %v1458
  %v1470 = vpack.c.b16 %v1461, %v1460
  %v1471 = vpack.c.b16 %v1463, %v1462
  %1480 = vst [vmem:[#allocation4] sm:$0xff] %v1464
  %1481 = vst [vmem:[#allocation4 + $0x20] sm:$0xff] %v1465
  %1482 = vst [vmem:[#allocation4 + $0x40] sm:$0xff] %v1466
  %1483 = vst [vmem:[#allocation4 + $0x60] sm:$0xff] %v1467
  %1484 = vst [vmem:[#allocation4 + $0x80] sm:$0xff] %v1468
  %1485 = vst [vmem:[#allocation4 + $0xa0] sm:$0xff] %v1469
  %1486 = vst [vmem:[#allocation4 + $0xc0] sm:$0xff] %v1470
  %1487 = vst [vmem:[#allocation4 + $0xe0] sm:$0xff] %v1471
  %v1488 = vld [vmem:[#allocation2] sm:$0xf]
  %v1489 = vld [vmem:[#allocation2 + $0x4] sm:$0x1]
  %v1490 = vld [vmem:[#allocation2 + $0x8] sm:$0xf]
  %v1491 = vld [vmem:[#allocation2 + $0xc] sm:$0x1]
  %v1492 = vld [vmem:[#allocation2 + $0x10] sm:$0xf]
  %v1493 = vld [vmem:[#allocation2 + $0x14] sm:$0x1]
  %v1494 = vld [vmem:[#allocation2 + $0x18] sm:$0xf]
  %v1495 = vld [vmem:[#allocation2 + $0x1c] sm:$0x1]
  %v1496 = vld [vmem:[#allocation2 + $0x20] sm:$0xf]
  %v1497 = vld [vmem:[#allocation2 + $0x24] sm:$0x1]
  %v1498 = vld [vmem:[#allocation2 + $0x28] sm:$0xf]
  %v1499 = vld [vmem:[#allocation2 + $0x2c] sm:$0x1]
  %v1500 = vld [vmem:[#allocation2 + $0x30] sm:$0xf]
  %v1501 = vld [vmem:[#allocation2 + $0x34] sm:$0x1]
  %v1502 = vld [vmem:[#allocation2 + $0x38] sm:$0xf]
  %v1503 = vld [vmem:[#allocation2 + $0x3c] sm:$0x1]
  %v1504 = vld [vmem:[#allocation2 + $0x50] sm:$0xf]
  %v1505 = vld [vmem:[#allocation2 + $0x54] sm:$0x1]
  %v1506 = vld [vmem:[#allocation2 + $0x58] sm:$0xf]
  %v1507 = vld [vmem:[#allocation2 + $0x5c] sm:$0x1]
  %v1508 = vld [vmem:[#allocation2 + $0x60] sm:$0xf]
  %v1509 = vld [vmem:[#allocation2 + $0x64] sm:$0x1]
  %v1510 = vld [vmem:[#allocation2 + $0x68] sm:$0xf]
  %v1511 = vld [vmem:[#allocation2 + $0x6c] sm:$0x1]
  %v1512 = vld [vmem:[#allocation2 + $0x70] sm:$0xf]
  %v1513 = vld [vmem:[#allocation2 + $0x74] sm:$0x1]
  %v1514 = vld [vmem:[#allocation2 + $0x78] sm:$0xf]
  %v1515 = vld [vmem:[#allocation2 + $0x7c] sm:$0x1]
  %v1516 = vld [vmem:[#allocation2 + $0x80] sm:$0xf]
  %v1517 = vld [vmem:[#allocation2 + $0x84] sm:$0x1]
  %v1518 = vld [vmem:[#allocation2 + $0x88] sm:$0xf]
  %v1519 = vld [vmem:[#allocation2 + $0x8c] sm:$0x1]
  %v1521 = vshrl.u32 %v1488, 16
  %v1523 = vrot.slane %v1521, 4
  %v1524 = vshll.u32 %v1488, 16
  %v1526 = vrot.slane %v1524, 5
  %v1527 = vor.u32 %v1523, %v1526
  %v1528 = vrot.slane %v1527, 4
  %v1530 = vshll.u32 %v1489, 16
  %v1532 = vrot.slane %v1530, 5
  %v1533 = vsel %vm220, %v1528, %v1532
  %v1535 = vshrl.u32 %v1490, 16
  %v1537 = vrot.slane %v1535, 4
  %v1538 = vshll.u32 %v1490, 16
  %v1540 = vrot.slane %v1538, 5
  %v1541 = vor.u32 %v1537, %v1540
  %v1542 = vrot.slane %v1541, 4
  %v1544 = vshll.u32 %v1491, 16
  %v1546 = vrot.slane %v1544, 5
  %v1547 = vsel %vm220, %v1542, %v1546
  %v1549 = vshrl.u32 %v1492, 16
  %v1551 = vrot.slane %v1549, 4
  %v1552 = vshll.u32 %v1492, 16
  %v1554 = vrot.slane %v1552, 5
  %v1555 = vor.u32 %v1551, %v1554
  %v1556 = vrot.slane %v1555, 4
  %v1558 = vshll.u32 %v1493, 16
  %v1560 = vrot.slane %v1558, 5
  %v1561 = vsel %vm220, %v1556, %v1560
  %v1563 = vshrl.u32 %v1494, 16
  %v1565 = vrot.slane %v1563, 4
  %v1566 = vshll.u32 %v1494, 16
  %v1568 = vrot.slane %v1566, 5
  %v1569 = vor.u32 %v1565, %v1568
  %v1570 = vrot.slane %v1569, 4
  %v1572 = vshll.u32 %v1495, 16
  %v1574 = vrot.slane %v1572, 5
  %v1575 = vsel %vm220, %v1570, %v1574
  %v1577 = vshrl.u32 %v1496, 16
  %v1579 = vrot.slane %v1577, 4
  %v1580 = vshll.u32 %v1496, 16
  %v1582 = vrot.slane %v1580, 5
  %v1583 = vor.u32 %v1579, %v1582
  %v1584 = vrot.slane %v1583, 4
  %v1586 = vshll.u32 %v1497, 16
  %v1588 = vrot.slane %v1586, 5
  %v1589 = vsel %vm220, %v1584, %v1588
  %v1591 = vshrl.u32 %v1498, 16
  %v1593 = vrot.slane %v1591, 4
  %v1594 = vshll.u32 %v1498, 16
  %v1596 = vrot.slane %v1594, 5
  %v1597 = vor.u32 %v1593, %v1596
  %v1598 = vrot.slane %v1597, 4
  %v1600 = vshll.u32 %v1499, 16
  %v1602 = vrot.slane %v1600, 5
  %v1603 = vsel %vm220, %v1598, %v1602
  %v1605 = vshrl.u32 %v1500, 16
  %v1607 = vrot.slane %v1605, 4
  %v1608 = vshll.u32 %v1500, 16
  %v1610 = vrot.slane %v1608, 5
  %v1611 = vor.u32 %v1607, %v1610
  %v1612 = vrot.slane %v1611, 4
  %v1614 = vshll.u32 %v1501, 16
  %v1616 = vrot.slane %v1614, 5
  %v1617 = vsel %vm220, %v1612, %v1616
  %v1619 = vshrl.u32 %v1502, 16
  %v1621 = vrot.slane %v1619, 4
  %v1622 = vshll.u32 %v1502, 16
  %v1624 = vrot.slane %v1622, 5
  %v1625 = vor.u32 %v1621, %v1624
  %v1626 = vrot.slane %v1625, 4
  %v1628 = vshll.u32 %v1503, 16
  %v1630 = vrot.slane %v1628, 5
  %v1631 = vsel %vm220, %v1626, %v1630
  %v1633 = vshrl.u32 %v1504, 16
  %v1635 = vrot.slane %v1633, 4
  %v1636 = vshll.u32 %v1504, 16
  %v1638 = vrot.slane %v1636, 5
  %v1639 = vor.u32 %v1635, %v1638
  %v1640 = vrot.slane %v1639, 4
  %v1642 = vshll.u32 %v1505, 16
  %v1644 = vrot.slane %v1642, 5
  %v1645 = vsel %vm220, %v1640, %v1644
  %v1647 = vshrl.u32 %v1506, 16
  %v1649 = vrot.slane %v1647, 4
  %v1650 = vshll.u32 %v1506, 16
  %v1652 = vrot.slane %v1650, 5
  %v1653 = vor.u32 %v1649, %v1652
  %v1654 = vrot.slane %v1653, 4
  %v1656 = vshll.u32 %v1507, 16
  %v1658 = vrot.slane %v1656, 5
  %v1659 = vsel %vm220, %v1654, %v1658
  %v1661 = vshrl.u32 %v1508, 16
  %v1663 = vrot.slane %v1661, 4
  %v1664 = vshll.u32 %v1508, 16
  %v1666 = vrot.slane %v1664, 5
  %v1667 = vor.u32 %v1663, %v1666
  %v1668 = vrot.slane %v1667, 4
  %v1670 = vshll.u32 %v1509, 16
  %v1672 = vrot.slane %v1670, 5
  %v1673 = vsel %vm220, %v1668, %v1672
  %v1675 = vshrl.u32 %v1510, 16
  %v1677 = vrot.slane %v1675, 4
  %v1678 = vshll.u32 %v1510, 16
  %v1680 = vrot.slane %v1678, 5
  %v1681 = vor.u32 %v1677, %v1680
  %v1682 = vrot.slane %v1681, 4
  %v1684 = vshll.u32 %v1511, 16
  %v1686 = vrot.slane %v1684, 5
  %v1687 = vsel %vm220, %v1682, %v1686
  %v1689 = vshrl.u32 %v1512, 16
  %v1691 = vrot.slane %v1689, 4
  %v1692 = vshll.u32 %v1512, 16
  %v1694 = vrot.slane %v1692, 5
  %v1695 = vor.u32 %v1691, %v1694
  %v1696 = vrot.slane %v1695, 4
  %v1698 = vshll.u32 %v1513, 16
  %v1700 = vrot.slane %v1698, 5
  %v1701 = vsel %vm220, %v1696, %v1700
  %v1703 = vshrl.u32 %v1514, 16
  %v1705 = vrot.slane %v1703, 4
  %v1706 = vshll.u32 %v1514, 16
  %v1708 = vrot.slane %v1706, 5
  %v1709 = vor.u32 %v1705, %v1708
  %v1710 = vrot.slane %v1709, 4
  %v1712 = vshll.u32 %v1515, 16
  %v1714 = vrot.slane %v1712, 5
  %v1715 = vsel %vm220, %v1710, %v1714
  %v1717 = vshrl.u32 %v1516, 16
  %v1719 = vrot.slane %v1717, 4
  %v1720 = vshll.u32 %v1516, 16
  %v1722 = vrot.slane %v1720, 5
  %v1723 = vor.u32 %v1719, %v1722
  %v1724 = vrot.slane %v1723, 4
  %v1726 = vshll.u32 %v1517, 16
  %v1728 = vrot.slane %v1726, 5
  %v1729 = vsel %vm220, %v1724, %v1728
  %v1731 = vshrl.u32 %v1518, 16
  %v1733 = vrot.slane %v1731, 4
  %v1734 = vshll.u32 %v1518, 16
  %v1736 = vrot.slane %v1734, 5
  %v1737 = vor.u32 %v1733, %v1736
  %v1738 = vrot.slane %v1737, 4
  %v1740 = vshll.u32 %v1519, 16
  %v1742 = vrot.slane %v1740, 5
  %v1743 = vsel %vm220, %v1738, %v1742
  %v1744 = vunpack.c.l.b16 %v1533
  %v1745 = vunpack.c.l.b16 %v1547
  %v1746 = vunpack.c.l.b16 %v1561
  %v1747 = vunpack.c.l.b16 %v1575
  %v1748 = vunpack.c.l.b16 %v1589
  %v1749 = vunpack.c.l.b16 %v1603
  %v1750 = vunpack.c.l.b16 %v1617
  %v1751 = vunpack.c.l.b16 %v1631
  %v1752 = vunpack.c.l.b16 %v1645
  %v1753 = vunpack.c.l.b16 %v1659
  %v1754 = vunpack.c.l.b16 %v1673
  %v1755 = vunpack.c.l.b16 %v1687
  %v1756 = vunpack.c.l.b16 %v1701
  %v1757 = vunpack.c.l.b16 %v1715
  %v1758 = vunpack.c.l.b16 %v1729
  %v1759 = vunpack.c.l.b16 %v1743
  %v1760 = vpack.c.b16 %v1745, %v1744
  %v1761 = vpack.c.b16 %v1747, %v1746
  %v1762 = vpack.c.b16 %v1749, %v1748
  %v1763 = vpack.c.b16 %v1751, %v1750
  %v1764 = vpack.c.b16 %v1753, %v1752
  %v1765 = vpack.c.b16 %v1755, %v1754
  %v1766 = vpack.c.b16 %v1757, %v1756
  %v1767 = vpack.c.b16 %v1759, %v1758
  %1776 = vst [vmem:[#allocation4 + $0x8] sm:$0xff] %v1760
  %1777 = vst [vmem:[#allocation4 + $0x28] sm:$0xff] %v1761
  %1778 = vst [vmem:[#allocation4 + $0x48] sm:$0xff] %v1762
  %1779 = vst [vmem:[#allocation4 + $0x68] sm:$0xff] %v1763
  %1780 = vst [vmem:[#allocation4 + $0x88] sm:$0xff] %v1764
  %1781 = vst [vmem:[#allocation4 + $0xa8] sm:$0xff] %v1765
  %1782 = vst [vmem:[#allocation4 + $0xc8] sm:$0xff] %v1766
  %1783 = vst [vmem:[#allocation4 + $0xe8] sm:$0xff] %v1767
  %v1784 = vld [vmem:[%s1313] sm:$0xf]
  %v1785 = vld [vmem:[%s1313 + $0x8] sm:$0xf]
  %v1786 = vld [vmem:[%s1313 + $0x10] sm:$0xf]
  %v1787 = vld [vmem:[%s1313 + $0x18] sm:$0xf]
  %v1788 = vld [vmem:[%s1313 + $0x20] sm:$0xf]
  %v1789 = vld [vmem:[%s1313 + $0x28] sm:$0xf]
  %v1790 = vld [vmem:[%s1313 + $0x30] sm:$0xf]
  %v1791 = vld [vmem:[%s1313 + $0x38] sm:$0xf]
  %v1792 = vld [vmem:[%s1313 + $0x50] sm:$0xf]
  %v1793 = vld [vmem:[%s1313 + $0x58] sm:$0xf]
  %v1794 = vld [vmem:[%s1313 + $0x60] sm:$0xf]
  %v1795 = vld [vmem:[%s1313 + $0x68] sm:$0xf]
  %v1796 = vld [vmem:[%s1313 + $0x70] sm:$0xf]
  %v1797 = vld [vmem:[%s1313 + $0x78] sm:$0xf]
  %v1798 = vld [vmem:[%s1313 + $0x80] sm:$0xf]
  %v1799 = vld [vmem:[%s1313 + $0x88] sm:$0xf]
  %v1816 = vunpack.c.l.b16 %v1784
  %v1817 = vunpack.c.l.b16 %v1785
  %v1818 = vunpack.c.l.b16 %v1786
  %v1819 = vunpack.c.l.b16 %v1787
  %v1820 = vunpack.c.l.b16 %v1788
  %v1821 = vunpack.c.l.b16 %v1789
  %v1822 = vunpack.c.l.b16 %v1790
  %v1823 = vunpack.c.l.b16 %v1791
  %v1824 = vunpack.c.l.b16 %v1792
  %v1825 = vunpack.c.l.b16 %v1793
  %v1826 = vunpack.c.l.b16 %v1794
  %v1827 = vunpack.c.l.b16 %v1795
  %v1828 = vunpack.c.l.b16 %v1796
  %v1829 = vunpack.c.l.b16 %v1797
  %v1830 = vunpack.c.l.b16 %v1798
  %v1831 = vunpack.c.l.b16 %v1799
  %v1832 = vpack.c.b16 %v1817, %v1816
  %v1833 = vpack.c.b16 %v1819, %v1818
  %v1834 = vpack.c.b16 %v1821, %v1820
  %v1835 = vpack.c.b16 %v1823, %v1822
  %v1836 = vpack.c.b16 %v1825, %v1824
  %v1837 = vpack.c.b16 %v1827, %v1826
  %v1838 = vpack.c.b16 %v1829, %v1828
  %v1839 = vpack.c.b16 %v1831, %v1830
  %1848 = vst [vmem:[#allocation4 + $0x10] sm:$0xff] %v1832
  %1849 = vst [vmem:[#allocation4 + $0x30] sm:$0xff] %v1833
  %1850 = vst [vmem:[#allocation4 + $0x50] sm:$0xff] %v1834
  %1851 = vst [vmem:[#allocation4 + $0x70] sm:$0xff] %v1835
  %1852 = vst [vmem:[#allocation4 + $0x90] sm:$0xff] %v1836
  %1853 = vst [vmem:[#allocation4 + $0xb0] sm:$0xff] %v1837
  %1854 = vst [vmem:[#allocation4 + $0xd0] sm:$0xff] %v1838
  %1855 = vst [vmem:[#allocation4 + $0xf0] sm:$0xff] %v1839
  %v1856 = vld [vmem:[%s1313] sm:$0xf]
  %v1857 = vld [vmem:[%s1313 + $0x4] sm:$0x1]
  %v1858 = vld [vmem:[%s1313 + $0x8] sm:$0xf]
  %v1859 = vld [vmem:[%s1313 + $0xc] sm:$0x1]
  %v1860 = vld [vmem:[%s1313 + $0x10] sm:$0xf]
  %v1861 = vld [vmem:[%s1313 + $0x14] sm:$0x1]
  %v1862 = vld [vmem:[%s1313 + $0x18] sm:$0xf]
  %v1863 = vld [vmem:[%s1313 + $0x1c] sm:$0x1]
  %v1864 = vld [vmem:[%s1313 + $0x20] sm:$0xf]
  %v1865 = vld [vmem:[%s1313 + $0x24] sm:$0x1]
  %v1866 = vld [vmem:[%s1313 + $0x28] sm:$0xf]
  %v1867 = vld [vmem:[%s1313 + $0x2c] sm:$0x1]
  %v1868 = vld [vmem:[%s1313 + $0x30] sm:$0xf]
  %v1869 = vld [vmem:[%s1313 + $0x34] sm:$0x1]
  %v1870 = vld [vmem:[%s1313 + $0x38] sm:$0xf]
  %v1871 = vld [vmem:[%s1313 + $0x3c] sm:$0x1]
  %v1872 = vld [vmem:[%s1313 + $0x50] sm:$0xf]
  %v1873 = vld [vmem:[%s1313 + $0x54] sm:$0x1]
  %v1874 = vld [vmem:[%s1313 + $0x58] sm:$0xf]
  %v1875 = vld [vmem:[%s1313 + $0x5c] sm:$0x1]
  %v1876 = vld [vmem:[%s1313 + $0x60] sm:$0xf]
  %v1877 = vld [vmem:[%s1313 + $0x64] sm:$0x1]
  %v1878 = vld [vmem:[%s1313 + $0x68] sm:$0xf]
  %v1879 = vld [vmem:[%s1313 + $0x6c] sm:$0x1]
  %v1880 = vld [vmem:[%s1313 + $0x70] sm:$0xf]
  %v1881 = vld [vmem:[%s1313 + $0x74] sm:$0x1]
  %v1882 = vld [vmem:[%s1313 + $0x78] sm:$0xf]
  %v1883 = vld [vmem:[%s1313 + $0x7c] sm:$0x1]
  %v1884 = vld [vmem:[%s1313 + $0x80] sm:$0xf]
  %v1885 = vld [vmem:[%s1313 + $0x84] sm:$0x1]
  %v1886 = vld [vmem:[%s1313 + $0x88] sm:$0xf]
  %v1887 = vld [vmem:[%s1313 + $0x8c] sm:$0x1]
  %v1889 = vshrl.u32 %v1856, 16
  %v1891 = vrot.slane %v1889, 4
  %v1892 = vshll.u32 %v1856, 16
  %v1894 = vrot.slane %v1892, 5
  %v1895 = vor.u32 %v1891, %v1894
  %v1896 = vrot.slane %v1895, 4
  %v1898 = vshll.u32 %v1857, 16
  %v1900 = vrot.slane %v1898, 5
  %v1901 = vsel %vm220, %v1896, %v1900
  %v1903 = vshrl.u32 %v1858, 16
  %v1905 = vrot.slane %v1903, 4
  %v1906 = vshll.u32 %v1858, 16
  %v1908 = vrot.slane %v1906, 5
  %v1909 = vor.u32 %v1905, %v1908
  %v1910 = vrot.slane %v1909, 4
  %v1912 = vshll.u32 %v1859, 16
  %v1914 = vrot.slane %v1912, 5
  %v1915 = vsel %vm220, %v1910, %v1914
  %v1917 = vshrl.u32 %v1860, 16
  %v1919 = vrot.slane %v1917, 4
  %v1920 = vshll.u32 %v1860, 16
  %v1922 = vrot.slane %v1920, 5
  %v1923 = vor.u32 %v1919, %v1922
  %v1924 = vrot.slane %v1923, 4
  %v1926 = vshll.u32 %v1861, 16
  %v1928 = vrot.slane %v1926, 5
  %v1929 = vsel %vm220, %v1924, %v1928
  %v1931 = vshrl.u32 %v1862, 16
  %v1933 = vrot.slane %v1931, 4
  %v1934 = vshll.u32 %v1862, 16
  %v1936 = vrot.slane %v1934, 5
  %v1937 = vor.u32 %v1933, %v1936
  %v1938 = vrot.slane %v1937, 4
  %v1940 = vshll.u32 %v1863, 16
  %v1942 = vrot.slane %v1940, 5
  %v1943 = vsel %vm220, %v1938, %v1942
  %v1945 = vshrl.u32 %v1864, 16
  %v1947 = vrot.slane %v1945, 4
  %v1948 = vshll.u32 %v1864, 16
  %v1950 = vrot.slane %v1948, 5
  %v1951 = vor.u32 %v1947, %v1950
  %v1952 = vrot.slane %v1951, 4
  %v1954 = vshll.u32 %v1865, 16
  %v1956 = vrot.slane %v1954, 5
  %v1957 = vsel %vm220, %v1952, %v1956
  %v1959 = vshrl.u32 %v1866, 16
  %v1961 = vrot.slane %v1959, 4
  %v1962 = vshll.u32 %v1866, 16
  %v1964 = vrot.slane %v1962, 5
  %v1965 = vor.u32 %v1961, %v1964
  %v1966 = vrot.slane %v1965, 4
  %v1968 = vshll.u32 %v1867, 16
  %v1970 = vrot.slane %v1968, 5
  %v1971 = vsel %vm220, %v1966, %v1970
  %v1973 = vshrl.u32 %v1868, 16
  %v1975 = vrot.slane %v1973, 4
  %v1976 = vshll.u32 %v1868, 16
  %v1978 = vrot.slane %v1976, 5
  %v1979 = vor.u32 %v1975, %v1978
  %v1980 = vrot.slane %v1979, 4
  %v1982 = vshll.u32 %v1869, 16
  %v1984 = vrot.slane %v1982, 5
  %v1985 = vsel %vm220, %v1980, %v1984
  %v1987 = vshrl.u32 %v1870, 16
  %v1989 = vrot.slane %v1987, 4
  %v1990 = vshll.u32 %v1870, 16
  %v1992 = vrot.slane %v1990, 5
  %v1993 = vor.u32 %v1989, %v1992
  %v1994 = vrot.slane %v1993, 4
  %v1996 = vshll.u32 %v1871, 16
  %v1998 = vrot.slane %v1996, 5
  %v1999 = vsel %vm220, %v1994, %v1998
  %v2001 = vshrl.u32 %v1872, 16
  %v2003 = vrot.slane %v2001, 4
  %v2004 = vshll.u32 %v1872, 16
  %v2006 = vrot.slane %v2004, 5
  %v2007 = vor.u32 %v2003, %v2006
  %v2008 = vrot.slane %v2007, 4
  %v2010 = vshll.u32 %v1873, 16
  %v2012 = vrot.slane %v2010, 5
  %v2013 = vsel %vm220, %v2008, %v2012
  %v2015 = vshrl.u32 %v1874, 16
  %v2017 = vrot.slane %v2015, 4
  %v2018 = vshll.u32 %v1874, 16
  %v2020 = vrot.slane %v2018, 5
  %v2021 = vor.u32 %v2017, %v2020
  %v2022 = vrot.slane %v2021, 4
  %v2024 = vshll.u32 %v1875, 16
  %v2026 = vrot.slane %v2024, 5
  %v2027 = vsel %vm220, %v2022, %v2026
  %v2029 = vshrl.u32 %v1876, 16
  %v2031 = vrot.slane %v2029, 4
  %v2032 = vshll.u32 %v1876, 16
  %v2034 = vrot.slane %v2032, 5
  %v2035 = vor.u32 %v2031, %v2034
  %v2036 = vrot.slane %v2035, 4
  %v2038 = vshll.u32 %v1877, 16
  %v2040 = vrot.slane %v2038, 5
  %v2041 = vsel %vm220, %v2036, %v2040
  %v2043 = vshrl.u32 %v1878, 16
  %v2045 = vrot.slane %v2043, 4
  %v2046 = vshll.u32 %v1878, 16
  %v2048 = vrot.slane %v2046, 5
  %v2049 = vor.u32 %v2045, %v2048
  %v2050 = vrot.slane %v2049, 4
  %v2052 = vshll.u32 %v1879, 16
  %v2054 = vrot.slane %v2052, 5
  %v2055 = vsel %vm220, %v2050, %v2054
  %v2057 = vshrl.u32 %v1880, 16
  %v2059 = vrot.slane %v2057, 4
  %v2060 = vshll.u32 %v1880, 16
  %v2062 = vrot.slane %v2060, 5
  %v2063 = vor.u32 %v2059, %v2062
  %v2064 = vrot.slane %v2063, 4
  %v2066 = vshll.u32 %v1881, 16
  %v2068 = vrot.slane %v2066, 5
  %v2069 = vsel %vm220, %v2064, %v2068
  %v2071 = vshrl.u32 %v1882, 16
  %v2073 = vrot.slane %v2071, 4
  %v2074 = vshll.u32 %v1882, 16
  %v2076 = vrot.slane %v2074, 5
  %v2077 = vor.u32 %v2073, %v2076
  %v2078 = vrot.slane %v2077, 4
  %v2080 = vshll.u32 %v1883, 16
  %v2082 = vrot.slane %v2080, 5
  %v2083 = vsel %vm220, %v2078, %v2082
  %v2085 = vshrl.u32 %v1884, 16
  %v2087 = vrot.slane %v2085, 4
  %v2088 = vshll.u32 %v1884, 16
  %v2090 = vrot.slane %v2088, 5
  %v2091 = vor.u32 %v2087, %v2090
  %v2092 = vrot.slane %v2091, 4
  %v2094 = vshll.u32 %v1885, 16
  %v2096 = vrot.slane %v2094, 5
  %v2097 = vsel %vm220, %v2092, %v2096
  %v2099 = vshrl.u32 %v1886, 16
  %v2101 = vrot.slane %v2099, 4
  %v2102 = vshll.u32 %v1886, 16
  %v2104 = vrot.slane %v2102, 5
  %v2105 = vor.u32 %v2101, %v2104
  %v2106 = vrot.slane %v2105, 4
  %v2108 = vshll.u32 %v1887, 16
  %v2110 = vrot.slane %v2108, 5
  %v2111 = vsel %vm220, %v2106, %v2110
  %v2112 = vunpack.c.l.b16 %v1901
  %v2113 = vunpack.c.l.b16 %v1915
  %v2114 = vunpack.c.l.b16 %v1929
  %v2115 = vunpack.c.l.b16 %v1943
  %v2116 = vunpack.c.l.b16 %v1957
  %v2117 = vunpack.c.l.b16 %v1971
  %v2118 = vunpack.c.l.b16 %v1985
  %v2119 = vunpack.c.l.b16 %v1999
  %v2120 = vunpack.c.l.b16 %v2013
  %v2121 = vunpack.c.l.b16 %v2027
  %v2122 = vunpack.c.l.b16 %v2041
  %v2123 = vunpack.c.l.b16 %v2055
  %v2124 = vunpack.c.l.b16 %v2069
  %v2125 = vunpack.c.l.b16 %v2083
  %v2126 = vunpack.c.l.b16 %v2097
  %v2127 = vunpack.c.l.b16 %v2111
  %v2128 = vpack.c.b16 %v2113, %v2112
  %v2129 = vpack.c.b16 %v2115, %v2114
  %v2130 = vpack.c.b16 %v2117, %v2116
  %v2131 = vpack.c.b16 %v2119, %v2118
  %v2132 = vpack.c.b16 %v2121, %v2120
  %v2133 = vpack.c.b16 %v2123, %v2122
  %v2134 = vpack.c.b16 %v2125, %v2124
  %v2135 = vpack.c.b16 %v2127, %v2126
  %2144 = vst [vmem:[#allocation4 + $0x18] sm:$0xff] %v2128
  %2145 = vst [vmem:[#allocation4 + $0x38] sm:$0xff] %v2129
  %2146 = vst [vmem:[#allocation4 + $0x58] sm:$0xff] %v2130
  %2147 = vst [vmem:[#allocation4 + $0x78] sm:$0xff] %v2131
  %2148 = vst [vmem:[#allocation4 + $0x98] sm:$0xff] %v2132
  %2149 = vst [vmem:[#allocation4 + $0xb8] sm:$0xff] %v2133
  %2150 = vst [vmem:[#allocation4 + $0xd8] sm:$0xff] %v2134
  %2151 = vst [vmem:[#allocation4 + $0xf8] sm:$0xff] %v2135
  %v2152 = vld [vmem:[#allocation4] sm:$0xff]
  %v2153 = vld [vmem:[#allocation4 + $0x8] sm:$0xff]
  %v2154 = vld [vmem:[#allocation4 + $0x10] sm:$0xff]
  %v2155 = vld [vmem:[#allocation4 + $0x18] sm:$0xff]
  %v2156 = vld [vmem:[#allocation4 + $0x20] sm:$0xff]
  %v2157 = vld [vmem:[#allocation4 + $0x28] sm:$0xff]
  %v2158 = vld [vmem:[#allocation4 + $0x30] sm:$0xff]
  %v2159 = vld [vmem:[#allocation4 + $0x38] sm:$0xff]
  %v2160 = vld [vmem:[#allocation4 + $0x40] sm:$0xff]
  %v2161 = vld [vmem:[#allocation4 + $0x48] sm:$0xff]
  %v2162 = vld [vmem:[#allocation4 + $0x50] sm:$0xff]
  %v2163 = vld [vmem:[#allocation4 + $0x58] sm:$0xff]
  %v2164 = vld [vmem:[#allocation4 + $0x60] sm:$0xff]
  %v2165 = vld [vmem:[#allocation4 + $0x68] sm:$0xff]
  %v2166 = vld [vmem:[#allocation4 + $0x70] sm:$0xff]
  %v2167 = vld [vmem:[#allocation4 + $0x78] sm:$0xff]
  %v2168 = vld [vmem:[#allocation4 + $0x80] sm:$0xff]
  %v2169 = vld [vmem:[#allocation4 + $0x88] sm:$0xff]
  %v2170 = vld [vmem:[#allocation4 + $0x90] sm:$0xff]
  %v2171 = vld [vmem:[#allocation4 + $0x98] sm:$0xff]
  %v2172 = vld [vmem:[#allocation4 + $0xa0] sm:$0xff]
  %v2173 = vld [vmem:[#allocation4 + $0xa8] sm:$0xff]
  %v2174 = vld [vmem:[#allocation4 + $0xb0] sm:$0xff]
  %v2175 = vld [vmem:[#allocation4 + $0xb8] sm:$0xff]
  %v2176 = vld [vmem:[#allocation4 + $0xc0] sm:$0xff]
  %v2177 = vld [vmem:[#allocation4 + $0xc8] sm:$0xff]
  %v2178 = vld [vmem:[#allocation4 + $0xd0] sm:$0xff]
  %v2179 = vld [vmem:[#allocation4 + $0xd8] sm:$0xff]
  %v2180 = vld [vmem:[#allocation4 + $0xe0] sm:$0xff]
  %v2181 = vld [vmem:[#allocation4 + $0xe8] sm:$0xff]
  %v2182 = vld [vmem:[#allocation4 + $0xf0] sm:$0xff]
  %v2183 = vld [vmem:[#allocation4 + $0xf8] sm:$0xff]
  %v2184 = vld [vmem:[%s2] sm:$0xf]
  %v2185 = vld [vmem:[%s2 + $0x4] sm:$0xf]
  %v2186 = vld [vmem:[%s2 + $0x8] sm:$0xf]
  %v2187 = vld [vmem:[%s2 + $0xc] sm:$0xf]
  %v2188 = vld [vmem:[%s2 + $0x10] sm:$0xf]
  %v2189 = vld [vmem:[%s2 + $0x14] sm:$0xf]
  %v2190 = vld [vmem:[%s2 + $0x18] sm:$0xf]
  %v2191 = vld [vmem:[%s2 + $0x1c] sm:$0xf]
  %v2192 = vld [vmem:[%s2 + $0x20] sm:$0xf]
  %v2193 = vld [vmem:[%s2 + $0x24] sm:$0xf]
  %v2194 = vld [vmem:[%s2 + $0x28] sm:$0xf]
  %v2195 = vld [vmem:[%s2 + $0x2c] sm:$0xf]
  %v2196 = vld [vmem:[%s2 + $0x30] sm:$0xf]
  %v2197 = vld [vmem:[%s2 + $0x34] sm:$0xf]
  %v2198 = vld [vmem:[%s2 + $0x38] sm:$0xf]
  %v2199 = vld [vmem:[%s2 + $0x3c] sm:$0xf]
  %v2200 = vld [vmem:[%s2 + $0x40] sm:$0xf]
  %v2201 = vld [vmem:[%s2 + $0x44] sm:$0xf]
  %v2202 = vld [vmem:[%s2 + $0x48] sm:$0xf]
  %v2203 = vld [vmem:[%s2 + $0x4c] sm:$0xf]
  %v2204 = vld [vmem:[%s2 + $0x50] sm:$0xf]
  %v2205 = vld [vmem:[%s2 + $0x54] sm:$0xf]
  %v2206 = vld [vmem:[%s2 + $0x58] sm:$0xf]
  %v2207 = vld [vmem:[%s2 + $0x5c] sm:$0xf]
  %v2208 = vld [vmem:[%s2 + $0x60] sm:$0xf]
  %v2209 = vld [vmem:[%s2 + $0x64] sm:$0xf]
  %v2210 = vld [vmem:[%s2 + $0x68] sm:$0xf]
  %v2211 = vld [vmem:[%s2 + $0x6c] sm:$0xf]
  %v2212 = vld [vmem:[%s2 + $0x70] sm:$0xf]
  %v2213 = vld [vmem:[%s2 + $0x74] sm:$0xf]
  %v2214 = vld [vmem:[%s2 + $0x78] sm:$0xf]
  %v2215 = vld [vmem:[%s2 + $0x7c] sm:$0xf]
  %v2216 = vld [vmem:[%s2 + $0x80] sm:$0xf]
  %v2217 = vld [vmem:[%s2 + $0x84] sm:$0xf]
  %v2218 = vld [vmem:[%s2 + $0x88] sm:$0xf]
  %v2219 = vld [vmem:[%s2 + $0x8c] sm:$0xf]
  %v2220 = vld [vmem:[%s2 + $0x90] sm:$0xf]
  %v2221 = vld [vmem:[%s2 + $0x94] sm:$0xf]
  %v2222 = vld [vmem:[%s2 + $0x98] sm:$0xf]
  %v2223 = vld [vmem:[%s2 + $0x9c] sm:$0xf]
  %v2224 = vld [vmem:[%s2 + $0xa0] sm:$0xf]
  %v2225 = vld [vmem:[%s2 + $0xa4] sm:$0xf]
  %v2226 = vld [vmem:[%s2 + $0xa8] sm:$0xf]
  %v2227 = vld [vmem:[%s2 + $0xac] sm:$0xf]
  %v2228 = vld [vmem:[%s2 + $0xb0] sm:$0xf]
  %v2229 = vld [vmem:[%s2 + $0xb4] sm:$0xf]
  %v2230 = vld [vmem:[%s2 + $0xb8] sm:$0xf]
  %v2231 = vld [vmem:[%s2 + $0xbc] sm:$0xf]
  %v2232 = vld [vmem:[%s2 + $0xc0] sm:$0xf]
  %v2233 = vld [vmem:[%s2 + $0xc4] sm:$0xf]
  %v2234 = vld [vmem:[%s2 + $0xc8] sm:$0xf]
  %v2235 = vld [vmem:[%s2 + $0xcc] sm:$0xf]
  %v2236 = vld [vmem:[%s2 + $0xd0] sm:$0xf]
  %v2237 = vld [vmem:[%s2 + $0xd4] sm:$0xf]
  %v2238 = vld [vmem:[%s2 + $0xd8] sm:$0xf]
  %v2239 = vld [vmem:[%s2 + $0xdc] sm:$0xf]
  %v2240 = vld [vmem:[%s2 + $0xe0] sm:$0xf]
  %v2241 = vld [vmem:[%s2 + $0xe4] sm:$0xf]
  %v2242 = vld [vmem:[%s2 + $0xe8] sm:$0xf]
  %v2243 = vld [vmem:[%s2 + $0xec] sm:$0xf]
  %v2244 = vld [vmem:[%s2 + $0xf0] sm:$0xf]
  %v2245 = vld [vmem:[%s2 + $0xf4] sm:$0xf]
  %v2246 = vld [vmem:[%s2 + $0xf8] sm:$0xf]
  %v2247 = vld [vmem:[%s2 + $0xfc] sm:$0xf]
  %v2312 = vunpack.c.l.b16 %v2184
  %v2313 = vunpack.c.l.b16 %v2185
  %v2314 = vunpack.c.l.b16 %v2186
  %v2315 = vunpack.c.l.b16 %v2187
  %v2316 = vunpack.c.l.b16 %v2188
  %v2317 = vunpack.c.l.b16 %v2189
  %v2318 = vunpack.c.l.b16 %v2190
  %v2319 = vunpack.c.l.b16 %v2191
  %v2320 = vunpack.c.l.b16 %v2192
  %v2321 = vunpack.c.l.b16 %v2193
  %v2322 = vunpack.c.l.b16 %v2194
  %v2323 = vunpack.c.l.b16 %v2195
  %v2324 = vunpack.c.l.b16 %v2196
  %v2325 = vunpack.c.l.b16 %v2197
  %v2326 = vunpack.c.l.b16 %v2198
  %v2327 = vunpack.c.l.b16 %v2199
  %v2328 = vunpack.c.l.b16 %v2200
  %v2329 = vunpack.c.l.b16 %v2201
  %v2330 = vunpack.c.l.b16 %v2202
  %v2331 = vunpack.c.l.b16 %v2203
  %v2332 = vunpack.c.l.b16 %v2204
  %v2333 = vunpack.c.l.b16 %v2205
  %v2334 = vunpack.c.l.b16 %v2206
  %v2335 = vunpack.c.l.b16 %v2207
  %v2336 = vunpack.c.l.b16 %v2208
  %v2337 = vunpack.c.l.b16 %v2209
  %v2338 = vunpack.c.l.b16 %v2210
  %v2339 = vunpack.c.l.b16 %v2211
  %v2340 = vunpack.c.l.b16 %v2212
  %v2341 = vunpack.c.l.b16 %v2213
  %v2342 = vunpack.c.l.b16 %v2214
  %v2343 = vunpack.c.l.b16 %v2215
  %v2344 = vunpack.c.l.b16 %v2216
  %v2345 = vunpack.c.l.b16 %v2217
  %v2346 = vunpack.c.l.b16 %v2218
  %v2347 = vunpack.c.l.b16 %v2219
  %v2348 = vunpack.c.l.b16 %v2220
  %v2349 = vunpack.c.l.b16 %v2221
  %v2350 = vunpack.c.l.b16 %v2222
  %v2351 = vunpack.c.l.b16 %v2223
  %v2352 = vunpack.c.l.b16 %v2224
  %v2353 = vunpack.c.l.b16 %v2225
  %v2354 = vunpack.c.l.b16 %v2226
  %v2355 = vunpack.c.l.b16 %v2227
  %v2356 = vunpack.c.l.b16 %v2228
  %v2357 = vunpack.c.l.b16 %v2229
  %v2358 = vunpack.c.l.b16 %v2230
  %v2359 = vunpack.c.l.b16 %v2231
  %v2360 = vunpack.c.l.b16 %v2232
  %v2361 = vunpack.c.l.b16 %v2233
  %v2362 = vunpack.c.l.b16 %v2234
  %v2363 = vunpack.c.l.b16 %v2235
  %v2364 = vunpack.c.l.b16 %v2236
  %v2365 = vunpack.c.l.b16 %v2237
  %v2366 = vunpack.c.l.b16 %v2238
  %v2367 = vunpack.c.l.b16 %v2239
  %v2368 = vunpack.c.l.b16 %v2240
  %v2369 = vunpack.c.l.b16 %v2241
  %v2370 = vunpack.c.l.b16 %v2242
  %v2371 = vunpack.c.l.b16 %v2243
  %v2372 = vunpack.c.l.b16 %v2244
  %v2373 = vunpack.c.l.b16 %v2245
  %v2374 = vunpack.c.l.b16 %v2246
  %v2375 = vunpack.c.l.b16 %v2247
  %v2376 = vpack.c.b16 %v2313, %v2312
  %v2377 = vpack.c.b16 %v2315, %v2314
  %v2378 = vpack.c.b16 %v2317, %v2316
  %v2379 = vpack.c.b16 %v2319, %v2318
  %v2380 = vpack.c.b16 %v2321, %v2320
  %v2381 = vpack.c.b16 %v2323, %v2322
  %v2382 = vpack.c.b16 %v2325, %v2324
  %v2383 = vpack.c.b16 %v2327, %v2326
  %v2384 = vpack.c.b16 %v2329, %v2328
  %v2385 = vpack.c.b16 %v2331, %v2330
  %v2386 = vpack.c.b16 %v2333, %v2332
  %v2387 = vpack.c.b16 %v2335, %v2334
  %v2388 = vpack.c.b16 %v2337, %v2336
  %v2389 = vpack.c.b16 %v2339, %v2338
  %v2390 = vpack.c.b16 %v2341, %v2340
  %v2391 = vpack.c.b16 %v2343, %v2342
  %v2392 = vpack.c.b16 %v2345, %v2344
  %v2393 = vpack.c.b16 %v2347, %v2346
  %v2394 = vpack.c.b16 %v2349, %v2348
  %v2395 = vpack.c.b16 %v2351, %v2350
  %v2396 = vpack.c.b16 %v2353, %v2352
  %v2397 = vpack.c.b16 %v2355, %v2354
  %v2398 = vpack.c.b16 %v2357, %v2356
  %v2399 = vpack.c.b16 %v2359, %v2358
  %v2400 = vpack.c.b16 %v2361, %v2360
  %v2401 = vpack.c.b16 %v2363, %v2362
  %v2402 = vpack.c.b16 %v2365, %v2364
  %v2403 = vpack.c.b16 %v2367, %v2366
  %v2404 = vpack.c.b16 %v2369, %v2368
  %v2405 = vpack.c.b16 %v2371, %v2370
  %v2406 = vpack.c.b16 %v2373, %v2372
  %v2407 = vpack.c.b16 %v2375, %v2374
  %2440 = vmatprep.subr.bf16.mxu0 0
  %2441 = vmatpush1.bf16.msra.mxu0 %v2376
  %2442 = vmatprep.subr.bf16.mxu0 0
  %2443 = vmatpush1.bf16.msra.mxu0 %v2377
  %2444 = vmatprep.subr.bf16.mxu0 0
  %2445 = vmatpush1.bf16.msra.mxu0 %v2378
  %2446 = vmatprep.subr.bf16.mxu0 0
  %2447 = vmatpush1.bf16.msra.mxu0 %v2379
  %2448 = vmatprep.subr.bf16.mxu0 0
  %2449 = vmatpush1.bf16.msra.mxu0 %v2380
  %2450 = vmatprep.subr.bf16.mxu0 0
  %2451 = vmatpush1.bf16.msra.mxu0 %v2381
  %2452 = vmatprep.subr.bf16.mxu0 0
  %2453 = vmatpush1.bf16.msra.mxu0 %v2382
  %2454 = vmatprep.subr.bf16.mxu0 0
  %2455 = vmatpush1.bf16.msra.mxu0 %v2383
  %2456 = vmatprep.subr.bf16.mxu0 0
  %2457 = vmatpush1.bf16.msra.mxu0 %v2384
  %2458 = vmatprep.subr.bf16.mxu0 0
  %2459 = vmatpush1.bf16.msra.mxu0 %v2385
  %2460 = vmatprep.subr.bf16.mxu0 0
  %2461 = vmatpush1.bf16.msra.mxu0 %v2386
  %2462 = vmatprep.subr.bf16.mxu0 0
  %2463 = vmatpush1.bf16.msra.mxu0 %v2387
  %2464 = vmatprep.subr.bf16.mxu0 0
  %2465 = vmatpush1.bf16.msra.mxu0 %v2388
  %2466 = vmatprep.subr.bf16.mxu0 0
  %2467 = vmatpush1.bf16.msra.mxu0 %v2389
  %2468 = vmatprep.subr.bf16.mxu0 0
  %2469 = vmatpush1.bf16.msra.mxu0 %v2390
  %2470 = vmatprep.subr.bf16.mxu0 0
  %2471 = vmatpush1.bf16.msra.mxu0 %v2391
  %2472 = vmatprep.mubr.bf16.mxu0 %v2153
  %2473 = vmatmul.mubr.bf16.gmra.mrb[0].mxu0 %v2152
  %v2474 = vpop.f32.mrb[0].mxu0
  %v2475 = vadd.f32 0.0, %v2474
  %v2476 = vpop.f32.mrb[0].mxu0
  %v2477 = vpop.f32.mrb[0].mxu0
  %v2478 = vadd.f32 0.0, %v2477
  %v2479 = vpop.f32.mrb[0].mxu0
  %2480 = vmatprep.mubr.bf16.mxu0 %v2157
  %2481 = vmatmul.mubr.bf16.gmra.mrb[0].mxu0 %v2156
  %v2482 = vpop.f32.mrb[0].mxu0
  %v2483 = vadd.f32 0.0, %v2482
  %v2484 = vpop.f32.mrb[0].mxu0
  %v2485 = vpop.f32.mrb[0].mxu0
  %v2486 = vadd.f32 0.0, %v2485
  %v2487 = vpop.f32.mrb[0].mxu0
  %2488 = vmatprep.mubr.bf16.mxu0 %v2161
  %2489 = vmatmul.mubr.bf16.gmra.mrb[0].mxu0 %v2160
  %v2490 = vpop.f32.mrb[0].mxu0
  %v2491 = vadd.f32 0.0, %v2490
  %v2492 = vpop.f32.mrb[0].mxu0
  %v2493 = vpop.f32.mrb[0].mxu0
  %v2494 = vadd.f32 0.0, %v2493
  %v2495 = vpop.f32.mrb[0].mxu0
  %2496 = vmatprep.mubr.bf16.mxu0 %v2165
  %2497 = vmatmul.mubr.bf16.gmra.mrb[0].mxu0 %v2164
  %v2498 = vpop.f32.mrb[0].mxu0
  %v2499 = vadd.f32 0.0, %v2498
  %v2500 = vpop.f32.mrb[0].mxu0
  %v2501 = vpop.f32.mrb[0].mxu0
  %v2502 = vadd.f32 0.0, %v2501
  %v2503 = vpop.f32.mrb[0].mxu0
  %2504 = vmatprep.mubr.bf16.mxu0 %v2169
  %2505 = vmatmul.mubr.bf16.gmra.mrb[0].mxu0 %v2168
  %v2506 = vpop.f32.mrb[0].mxu0
  %v2507 = vadd.f32 0.0, %v2506
  %v2508 = vpop.f32.mrb[0].mxu0
  %v2509 = vpop.f32.mrb[0].mxu0
  %v2510 = vadd.f32 0.0, %v2509
  %v2511 = vpop.f32.mrb[0].mxu0
  %2512 = vmatprep.mubr.bf16.mxu0 %v2173
  %2513 = vmatmul.mubr.bf16.gmra.mrb[0].mxu0 %v2172
  %v2514 = vpop.f32.mrb[0].mxu0
  %v2515 = vadd.f32 0.0, %v2514
  %v2516 = vpop.f32.mrb[0].mxu0
  %v2517 = vpop.f32.mrb[0].mxu0
  %v2518 = vadd.f32 0.0, %v2517
  %v2519 = vpop.f32.mrb[0].mxu0
  %2520 = vmatprep.mubr.bf16.mxu0 %v2177
  %2521 = vmatmul.mubr.bf16.gmra.mrb[0].mxu0 %v2176
  %v2522 = vpop.f32.mrb[0].mxu0
  %v2523 = vadd.f32 0.0, %v2522
  %v2524 = vpop.f32.mrb[0].mxu0
  %v2525 = vpop.f32.mrb[0].mxu0
  %v2526 = vadd.f32 0.0, %v2525
  %v2527 = vpop.f32.mrb[0].mxu0
  %2528 = vmatprep.mubr.bf16.mxu0 %v2181
  %2529 = vmatmul.mubr.bf16.gmra.mrb[0].mxu0 %v2180
  %v2530 = vpop.f32.mrb[0].mxu0
  %v2531 = vadd.f32 0.0, %v2530
  %v2532 = vpop.f32.mrb[0].mxu0
  %v2533 = vpop.f32.mrb[0].mxu0
  %v2534 = vadd.f32 0.0, %v2533
  %v2535 = vpop.f32.mrb[0].mxu0
  %2536 = vdwg.mxu0
  %2537 = vmatprep.subr.bf16.mxu0 0
  %2538 = vmatpush1.bf16.msra.mxu0 %v2392
  %2539 = vmatprep.subr.bf16.mxu0 0
  %2540 = vmatpush1.bf16.msra.mxu0 %v2393
  %2541 = vmatprep.subr.bf16.mxu0 0
  %2542 = vmatpush1.bf16.msra.mxu0 %v2394
  %2543 = vmatprep.subr.bf16.mxu0 0
  %2544 = vmatpush1.bf16.msra.mxu0 %v2395
  %2545 = vmatprep.subr.bf16.mxu0 0
  %2546 = vmatpush1.bf16.msra.mxu0 %v2396
  %2547 = vmatprep.subr.bf16.mxu0 0
  %2548 = vmatpush1.bf16.msra.mxu0 %v2397
  %2549 = vmatprep.subr.bf16.mxu0 0
  %2550 = vmatpush1.bf16.msra.mxu0 %v2398
  %2551 = vmatprep.subr.bf16.mxu0 0
  %2552 = vmatpush1.bf16.msra.mxu0 %v2399
  %2553 = vmatprep.subr.bf16.mxu0 0
  %2554 = vmatpush1.bf16.msra.mxu0 %v2400
  %2555 = vmatprep.subr.bf16.mxu0 0
  %2556 = vmatpush1.bf16.msra.mxu0 %v2401
  %2557 = vmatprep.subr.bf16.mxu0 0
  %2558 = vmatpush1.bf16.msra.mxu0 %v2402
  %2559 = vmatprep.subr.bf16.mxu0 0
  %2560 = vmatpush1.bf16.msra.mxu0 %v2403
  %2561 = vmatprep.subr.bf16.mxu0 0
  %2562 = vmatpush1.bf16.msra.mxu0 %v2404
  %2563 = vmatprep.subr.bf16.mxu0 0
  %2564 = vmatpush1.bf16.msra.mxu0 %v2405
  %2565 = vmatprep.subr.bf16.mxu0 0
  %2566 = vmatpush1.bf16.msra.mxu0 %v2406
  %2567 = vmatprep.subr.bf16.mxu0 0
  %2568 = vmatpush1.bf16.msra.mxu0 %v2407
  %2569 = vmatprep.mubr.bf16.mxu0 %v2155
  %2570 = vmatmul.mubr.bf16.gmra.mrb[0].mxu0 %v2154
  %v2571 = vpop.f32.mrb[0].mxu0
  %v2572 = vadd.f32 %v2475, %v2571
  %v2573 = vpop.f32.mrb[0].mxu0
  %v2574 = vpop.f32.mrb[0].mxu0
  %v2575 = vadd.f32 %v2478, %v2574
  %v2576 = vpop.f32.mrb[0].mxu0
  %2577 = vmatprep.mubr.bf16.mxu0 %v2159
  %2578 = vmatmul.mubr.bf16.gmra.mrb[0].mxu0 %v2158
  %v2579 = vpop.f32.mrb[0].mxu0
  %v2580 = vadd.f32 %v2483, %v2579
  %v2581 = vpop.f32.mrb[0].mxu0
  %v2582 = vpop.f32.mrb[0].mxu0
  %v2583 = vadd.f32 %v2486, %v2582
  %v2584 = vpop.f32.mrb[0].mxu0
  %2585 = vmatprep.mubr.bf16.mxu0 %v2163
  %2586 = vmatmul.mubr.bf16.gmra.mrb[0].mxu0 %v2162
  %v2587 = vpop.f32.mrb[0].mxu0
  %v2588 = vadd.f32 %v2491, %v2587
  %v2589 = vpop.f32.mrb[0].mxu0
  %v2590 = vpop.f32.mrb[0].mxu0
  %v2591 = vadd.f32 %v2494, %v2590
  %v2592 = vpop.f32.mrb[0].mxu0
  %2593 = vmatprep.mubr.bf16.mxu0 %v2167
  %2594 = vmatmul.mubr.bf16.gmra.mrb[0].mxu0 %v2166
  %v2595 = vpop.f32.mrb[0].mxu0
  %v2596 = vadd.f32 %v2499, %v2595
  %v2597 = vpop.f32.mrb[0].mxu0
  %v2598 = vpop.f32.mrb[0].mxu0
  %v2599 = vadd.f32 %v2502, %v2598
  %v2600 = vpop.f32.mrb[0].mxu0
  %2601 = vmatprep.mubr.bf16.mxu0 %v2171
  %2602 = vmatmul.mubr.bf16.gmra.mrb[0].mxu0 %v2170
  %v2603 = vpop.f32.mrb[0].mxu0
  %v2604 = vadd.f32 %v2507, %v2603
  %v2605 = vpop.f32.mrb[0].mxu0
  %v2606 = vpop.f32.mrb[0].mxu0
  %v2607 = vadd.f32 %v2510, %v2606
  %v2608 = vpop.f32.mrb[0].mxu0
  %2609 = vmatprep.mubr.bf16.mxu0 %v2175
  %2610 = vmatmul.mubr.bf16.gmra.mrb[0].mxu0 %v2174
  %v2611 = vpop.f32.mrb[0].mxu0
  %v2612 = vadd.f32 %v2515, %v2611
  %v2613 = vpop.f32.mrb[0].mxu0
  %v2614 = vpop.f32.mrb[0].mxu0
  %v2615 = vadd.f32 %v2518, %v2614
  %v2616 = vpop.f32.mrb[0].mxu0
  %2617 = vmatprep.mubr.bf16.mxu0 %v2179
  %2618 = vmatmul.mubr.bf16.gmra.mrb[0].mxu0 %v2178
  %v2619 = vpop.f32.mrb[0].mxu0
  %v2620 = vadd.f32 %v2523, %v2619
  %v2621 = vpop.f32.mrb[0].mxu0
  %v2622 = vpop.f32.mrb[0].mxu0
  %v2623 = vadd.f32 %v2526, %v2622
  %v2624 = vpop.f32.mrb[0].mxu0
  %2625 = vmatprep.mubr.bf16.mxu0 %v2183
  %2626 = vmatmul.mubr.bf16.gmra.mrb[0].mxu0 %v2182
  %v2627 = vpop.f32.mrb[0].mxu0
  %v2628 = vadd.f32 %v2531, %v2627
  %v2629 = vpop.f32.mrb[0].mxu0
  %v2630 = vpop.f32.mrb[0].mxu0
  %v2631 = vadd.f32 %v2534, %v2630
  %v2632 = vpop.f32.mrb[0].mxu0
  %2633 = vdwg.mxu0
  %v2634 = vpack.c.bf16 %v2575, %v2572
  %v2635 = vpack.c.bf16 %v2583, %v2580
  %v2636 = vpack.c.bf16 %v2591, %v2588
  %v2637 = vpack.c.bf16 %v2599, %v2596
  %v2638 = vpack.c.bf16 %v2607, %v2604
  %v2639 = vpack.c.bf16 %v2615, %v2612
  %v2640 = vpack.c.bf16 %v2623, %v2620
  %v2641 = vpack.c.bf16 %v2631, %v2628
  %v2650 = vunpack.c.l.b16 %v2634
  %v2651 = vunpack.c.h.b16 %v2634
  %v2652 = vunpack.c.l.b16 %v2635
  %v2653 = vunpack.c.h.b16 %v2635
  %v2654 = vunpack.c.l.b16 %v2636
  %v2655 = vunpack.c.h.b16 %v2636
  %v2656 = vunpack.c.l.b16 %v2637
  %v2657 = vunpack.c.h.b16 %v2637
  %v2658 = vunpack.c.l.b16 %v2638
  %v2659 = vunpack.c.h.b16 %v2638
  %v2660 = vunpack.c.l.b16 %v2639
  %v2661 = vunpack.c.h.b16 %v2639
  %v2662 = vunpack.c.l.b16 %v2640
  %v2663 = vunpack.c.h.b16 %v2640
  %v2664 = vunpack.c.l.b16 %v2641
  %v2665 = vunpack.c.h.b16 %v2641
  %v2666 = vpack.c.b16 %v2650, %v2650
  %v2667 = vpack.c.b16 %v2651, %v2651
  %v2668 = vpack.c.b16 %v2652, %v2652
  %v2669 = vpack.c.b16 %v2653, %v2653
  %v2670 = vpack.c.b16 %v2654, %v2654
  %v2671 = vpack.c.b16 %v2655, %v2655
  %v2672 = vpack.c.b16 %v2656, %v2656
  %v2673 = vpack.c.b16 %v2657, %v2657
  %v2674 = vpack.c.b16 %v2658, %v2658
  %v2675 = vpack.c.b16 %v2659, %v2659
  %v2676 = vpack.c.b16 %v2660, %v2660
  %v2677 = vpack.c.b16 %v2661, %v2661
  %v2678 = vpack.c.b16 %v2662, %v2662
  %v2679 = vpack.c.b16 %v2663, %v2663
  %v2680 = vpack.c.b16 %v2664, %v2664
  %v2681 = vpack.c.b16 %v2665, %v2665
  %2698 = vst [vmem:[%s3] sm:$0xf] %v2666
  %2699 = vst [vmem:[%s3 + $0x4] sm:$0xf] %v2667
  %2700 = vst [vmem:[%s3 + $0x8] sm:$0xf] %v2668
  %2701 = vst [vmem:[%s3 + $0xc] sm:$0xf] %v2669
  %2702 = vst [vmem:[%s3 + $0x10] sm:$0xf] %v2670
  %2703 = vst [vmem:[%s3 + $0x14] sm:$0xf] %v2671
  %2704 = vst [vmem:[%s3 + $0x18] sm:$0xf] %v2672
  %2705 = vst [vmem:[%s3 + $0x1c] sm:$0xf] %v2673
  %2706 = vst [vmem:[%s3 + $0x80] sm:$0xf] %v2674
  %2707 = vst [vmem:[%s3 + $0x84] sm:$0xf] %v2675
  %2708 = vst [vmem:[%s3 + $0x88] sm:$0xf] %v2676
  %2709 = vst [vmem:[%s3 + $0x8c] sm:$0xf] %v2677
  %2710 = vst [vmem:[%s3 + $0x90] sm:$0xf] %v2678
  %2711 = vst [vmem:[%s3 + $0x94] sm:$0xf] %v2679
  %2712 = vst [vmem:[%s3 + $0x98] sm:$0xf] %v2680
  %2713 = vst [vmem:[%s3 + $0x9c] sm:$0xf] %v2681
  %v2714 = vadd.f32 %v2572, %v2575
  %v2715 = vadd.f32 %v2714, %v2580
  %v2716 = vadd.f32 %v2715, %v2583
  %v2717 = vadd.f32 %v2716, %v2588
  %v2718 = vadd.f32 %v2717, %v2591
  %v2719 = vadd.f32 %v2718, %v2596
  %v2720 = vadd.f32 %v2719, %v2599
  %v2721 = vadd.f32 %v2720, %v2604
  %v2722 = vadd.f32 %v2721, %v2607
  %v2723 = vadd.f32 %v2722, %v2612
  %v2724 = vadd.f32 %v2723, %v2615
  %v2725 = vadd.f32 %v2724, %v2620
  %v2726 = vadd.f32 %v2725, %v2623
  %v2727 = vadd.f32 %v2726, %v2628
  %v2728 = vadd.f32 %v2727, %v2631
  %v2729 = vrot.slane %v2728, 4
  %v2730 = vadd.f32 %v2728, %v2729
  %v2731 = vrot.slane %v2730, 2
  %v2732 = vadd.f32 %v2730, %v2731
  %v2733 = vrot.slane %v2732, 1
  %v2734 = vadd.f32 %v2732, %v2733
  %v2735 = vadd.f32 %v2734, 0.0
  %v2736 = vmul.f32 %v2572, %v2572
  %v2737 = vmul.f32 %v2575, %v2575
  %v2738 = vmul.f32 %v2580, %v2580
  %v2739 = vmul.f32 %v2583, %v2583
  %v2740 = vmul.f32 %v2588, %v2588
  %v2741 = vmul.f32 %v2591, %v2591
  %v2742 = vmul.f32 %v2596, %v2596
  %v2743 = vmul.f32 %v2599, %v2599
  %v2744 = vmul.f32 %v2604, %v2604
  %v2745 = vmul.f32 %v2607, %v2607
  %v2746 = vmul.f32 %v2612, %v2612
  %v2747 = vmul.f32 %v2615, %v2615
  %v2748 = vmul.f32 %v2620, %v2620
  %v2749 = vmul.f32 %v2623, %v2623
  %v2750 = vmul.f32 %v2628, %v2628
  %v2751 = vmul.f32 %v2631, %v2631
  %v2752 = vadd.f32 %v2736, %v2737
  %v2753 = vadd.f32 %v2752, %v2738
  %v2754 = vadd.f32 %v2753, %v2739
  %v2755 = vadd.f32 %v2754, %v2740
  %v2756 = vadd.f32 %v2755, %v2741
  %v2757 = vadd.f32 %v2756, %v2742
  %v2758 = vadd.f32 %v2757, %v2743
  %v2759 = vadd.f32 %v2758, %v2744
  %v2760 = vadd.f32 %v2759, %v2745
  %v2761 = vadd.f32 %v2760, %v2746
  %v2762 = vadd.f32 %v2761, %v2747
  %v2763 = vadd.f32 %v2762, %v2748
  %v2764 = vadd.f32 %v2763, %v2749
  %v2765 = vadd.f32 %v2764, %v2750
  %v2766 = vadd.f32 %v2765, %v2751
  %v2767 = vrot.slane %v2766, 4
  %v2768 = vadd.f32 %v2766, %v2767
  %v2769 = vrot.slane %v2768, 2
  %v2770 = vadd.f32 %v2768, %v2769
  %v2771 = vrot.slane %v2770, 1
  %v2772 = vadd.f32 %v2770, %v2771
  %v2773 = vadd.f32 %v2772, 0.0
  %v2774 = vld [vmem:[#allocation2] sm:$0xf]
  %v2775 = vld [vmem:[#allocation2 + $0x4] sm:$0x1]
  %v2776 = vld [vmem:[#allocation2 + $0x8] sm:$0xf]
  %v2777 = vld [vmem:[#allocation2 + $0xc] sm:$0x1]
  %v2778 = vld [vmem:[#allocation2 + $0x10] sm:$0xf]
  %v2779 = vld [vmem:[#allocation2 + $0x14] sm:$0x1]
  %v2780 = vld [vmem:[#allocation2 + $0x18] sm:$0xf]
  %v2781 = vld [vmem:[#allocation2 + $0x1c] sm:$0x1]
  %v2782 = vld [vmem:[#allocation2 + $0x20] sm:$0xf]
  %v2783 = vld [vmem:[#allocation2 + $0x24] sm:$0x1]
  %v2784 = vld [vmem:[#allocation2 + $0x28] sm:$0xf]
  %v2785 = vld [vmem:[#allocation2 + $0x2c] sm:$0x1]
  %v2786 = vld [vmem:[#allocation2 + $0x30] sm:$0xf]
  %v2787 = vld [vmem:[#allocation2 + $0x34] sm:$0x1]
  %v2788 = vld [vmem:[#allocation2 + $0x38] sm:$0xf]
  %v2789 = vld [vmem:[#allocation2 + $0x3c] sm:$0x1]
  %v2790 = vld [vmem:[#allocation2 + $0x50] sm:$0xf]
  %v2791 = vld [vmem:[#allocation2 + $0x54] sm:$0x1]
  %v2792 = vld [vmem:[#allocation2 + $0x58] sm:$0xf]
  %v2793 = vld [vmem:[#allocation2 + $0x5c] sm:$0x1]
  %v2794 = vld [vmem:[#allocation2 + $0x60] sm:$0xf]
  %v2795 = vld [vmem:[#allocation2 + $0x64] sm:$0x1]
  %v2796 = vld [vmem:[#allocation2 + $0x68] sm:$0xf]
  %v2797 = vld [vmem:[#allocation2 + $0x6c] sm:$0x1]
  %v2798 = vld [vmem:[#allocation2 + $0x70] sm:$0xf]
  %v2799 = vld [vmem:[#allocation2 + $0x74] sm:$0x1]
  %v2800 = vld [vmem:[#allocation2 + $0x78] sm:$0xf]
  %v2801 = vld [vmem:[#allocation2 + $0x7c] sm:$0x1]
  %v2802 = vld [vmem:[#allocation2 + $0x80] sm:$0xf]
  %v2803 = vld [vmem:[#allocation2 + $0x84] sm:$0x1]
  %v2804 = vld [vmem:[#allocation2 + $0x88] sm:$0xf]
  %v2805 = vld [vmem:[#allocation2 + $0x8c] sm:$0x1]
  %v2807 = vshrl.u32 %v2774, 16
  %v2809 = vrot.slane %v2807, 4
  %v2810 = vshll.u32 %v2774, 16
  %v2812 = vrot.slane %v2810, 5
  %v2813 = vor.u32 %v2809, %v2812
  %v2814 = vrot.slane %v2813, 4
  %v2816 = vshll.u32 %v2775, 16
  %v2818 = vrot.slane %v2816, 5
  %v2819 = vsel %vm220, %v2814, %v2818
  %v2821 = vshrl.u32 %v2776, 16
  %v2823 = vrot.slane %v2821, 4
  %v2824 = vshll.u32 %v2776, 16
  %v2826 = vrot.slane %v2824, 5
  %v2827 = vor.u32 %v2823, %v2826
  %v2828 = vrot.slane %v2827, 4
  %v2830 = vshll.u32 %v2777, 16
  %v2832 = vrot.slane %v2830, 5
  %v2833 = vsel %vm220, %v2828, %v2832
  %v2835 = vshrl.u32 %v2778, 16
  %v2837 = vrot.slane %v2835, 4
  %v2838 = vshll.u32 %v2778, 16
  %v2840 = vrot.slane %v2838, 5
  %v2841 = vor.u32 %v2837, %v2840
  %v2842 = vrot.slane %v2841, 4
  %v2844 = vshll.u32 %v2779, 16
  %v2846 = vrot.slane %v2844, 5
  %v2847 = vsel %vm220, %v2842, %v2846
  %v2849 = vshrl.u32 %v2780, 16
  %v2851 = vrot.slane %v2849, 4
  %v2852 = vshll.u32 %v2780, 16
  %v2854 = vrot.slane %v2852, 5
  %v2855 = vor.u32 %v2851, %v2854
  %v2856 = vrot.slane %v2855, 4
  %v2858 = vshll.u32 %v2781, 16
  %v2860 = vrot.slane %v2858, 5
  %v2861 = vsel %vm220, %v2856, %v2860
  %v2863 = vshrl.u32 %v2782, 16
  %v2865 = vrot.slane %v2863, 4
  %v2866 = vshll.u32 %v2782, 16
  %v2868 = vrot.slane %v2866, 5
  %v2869 = vor.u32 %v2865, %v2868
  %v2870 = vrot.slane %v2869, 4
  %v2872 = vshll.u32 %v2783, 16
  %v2874 = vrot.slane %v2872, 5
  %v2875 = vsel %vm220, %v2870, %v2874
  %v2877 = vshrl.u32 %v2784, 16
  %v2879 = vrot.slane %v2877, 4
  %v2880 = vshll.u32 %v2784, 16
  %v2882 = vrot.slane %v2880, 5
  %v2883 = vor.u32 %v2879, %v2882
  %v2884 = vrot.slane %v2883, 4
  %v2886 = vshll.u32 %v2785, 16
  %v2888 = vrot.slane %v2886, 5
  %v2889 = vsel %vm220, %v2884, %v2888
  %v2891 = vshrl.u32 %v2786, 16
  %v2893 = vrot.slane %v2891, 4
  %v2894 = vshll.u32 %v2786, 16
  %v2896 = vrot.slane %v2894, 5
  %v2897 = vor.u32 %v2893, %v2896
  %v2898 = vrot.slane %v2897, 4
  %v2900 = vshll.u32 %v2787, 16
  %v2902 = vrot.slane %v2900, 5
  %v2903 = vsel %vm220, %v2898, %v2902
  %v2905 = vshrl.u32 %v2788, 16
  %v2907 = vrot.slane %v2905, 4
  %v2908 = vshll.u32 %v2788, 16
  %v2910 = vrot.slane %v2908, 5
  %v2911 = vor.u32 %v2907, %v2910
  %v2912 = vrot.slane %v2911, 4
  %v2914 = vshll.u32 %v2789, 16
  %v2916 = vrot.slane %v2914, 5
  %v2917 = vsel %vm220, %v2912, %v2916
  %v2919 = vshrl.u32 %v2790, 16
  %v2921 = vrot.slane %v2919, 4
  %v2922 = vshll.u32 %v2790, 16
  %v2924 = vrot.slane %v2922, 5
  %v2925 = vor.u32 %v2921, %v2924
  %v2926 = vrot.slane %v2925, 4
  %v2928 = vshll.u32 %v2791, 16
  %v2930 = vrot.slane %v2928, 5
  %v2931 = vsel %vm220, %v2926, %v2930
  %v2933 = vshrl.u32 %v2792, 16
  %v2935 = vrot.slane %v2933, 4
  %v2936 = vshll.u32 %v2792, 16
  %v2938 = vrot.slane %v2936, 5
  %v2939 = vor.u32 %v2935, %v2938
  %v2940 = vrot.slane %v2939, 4
  %v2942 = vshll.u32 %v2793, 16
  %v2944 = vrot.slane %v2942, 5
  %v2945 = vsel %vm220, %v2940, %v2944
  %v2947 = vshrl.u32 %v2794, 16
  %v2949 = vrot.slane %v2947, 4
  %v2950 = vshll.u32 %v2794, 16
  %v2952 = vrot.slane %v2950, 5
  %v2953 = vor.u32 %v2949, %v2952
  %v2954 = vrot.slane %v2953, 4
  %v2956 = vshll.u32 %v2795, 16
  %v2958 = vrot.slane %v2956, 5
  %v2959 = vsel %vm220, %v2954, %v2958
  %v2961 = vshrl.u32 %v2796, 16
  %v2963 = vrot.slane %v2961, 4
  %v2964 = vshll.u32 %v2796, 16
  %v2966 = vrot.slane %v2964, 5
  %v2967 = vor.u32 %v2963, %v2966
  %v2968 = vrot.slane %v2967, 4
  %v2970 = vshll.u32 %v2797, 16
  %v2972 = vrot.slane %v2970, 5
  %v2973 = vsel %vm220, %v2968, %v2972
  %v2975 = vshrl.u32 %v2798, 16
  %v2977 = vrot.slane %v2975, 4
  %v2978 = vshll.u32 %v2798, 16
  %v2980 = vrot.slane %v2978, 5
  %v2981 = vor.u32 %v2977, %v2980
  %v2982 = vrot.slane %v2981, 4
  %v2984 = vshll.u32 %v2799, 16
  %v2986 = vrot.slane %v2984, 5
  %v2987 = vsel %vm220, %v2982, %v2986
  %v2989 = vshrl.u32 %v2800, 16
  %v2991 = vrot.slane %v2989, 4
  %v2992 = vshll.u32 %v2800, 16
  %v2994 = vrot.slane %v2992, 5
  %v2995 = vor.u32 %v2991, %v2994
  %v2996 = vrot.slane %v2995, 4
  %v2998 = vshll.u32 %v2801, 16
  %v3000 = vrot.slane %v2998, 5
  %v3001 = vsel %vm220, %v2996, %v3000
  %v3003 = vshrl.u32 %v2802, 16
  %v3005 = vrot.slane %v3003, 4
  %v3006 = vshll.u32 %v2802, 16
  %v3008 = vrot.slane %v3006, 5
  %v3009 = vor.u32 %v3005, %v3008
  %v3010 = vrot.slane %v3009, 4
  %v3012 = vshll.u32 %v2803, 16
  %v3014 = vrot.slane %v3012, 5
  %v3015 = vsel %vm220, %v3010, %v3014
  %v3017 = vshrl.u32 %v2804, 16
  %v3019 = vrot.slane %v3017, 4
  %v3020 = vshll.u32 %v2804, 16
  %v3022 = vrot.slane %v3020, 5
  %v3023 = vor.u32 %v3019, %v3022
  %v3024 = vrot.slane %v3023, 4
  %v3026 = vshll.u32 %v2805, 16
  %v3028 = vrot.slane %v3026, 5
  %v3029 = vsel %vm220, %v3024, %v3028
  %v3030 = vunpack.c.l.b16 %v2819
  %v3031 = vunpack.c.l.b16 %v2833
  %v3032 = vunpack.c.l.b16 %v2847
  %v3033 = vunpack.c.l.b16 %v2861
  %v3034 = vunpack.c.l.b16 %v2875
  %v3035 = vunpack.c.l.b16 %v2889
  %v3036 = vunpack.c.l.b16 %v2903
  %v3037 = vunpack.c.l.b16 %v2917
  %v3038 = vunpack.c.l.b16 %v2931
  %v3039 = vunpack.c.l.b16 %v2945
  %v3040 = vunpack.c.l.b16 %v2959
  %v3041 = vunpack.c.l.b16 %v2973
  %v3042 = vunpack.c.l.b16 %v2987
  %v3043 = vunpack.c.l.b16 %v3001
  %v3044 = vunpack.c.l.b16 %v3015
  %v3045 = vunpack.c.l.b16 %v3029
  %v3046 = vpack.c.b16 %v3031, %v3030
  %v3047 = vpack.c.b16 %v3033, %v3032
  %v3048 = vpack.c.b16 %v3035, %v3034
  %v3049 = vpack.c.b16 %v3037, %v3036
  %v3050 = vpack.c.b16 %v3039, %v3038
  %v3051 = vpack.c.b16 %v3041, %v3040
  %v3052 = vpack.c.b16 %v3043, %v3042
  %v3053 = vpack.c.b16 %v3045, %v3044
  %3062 = vst [vmem:[#allocation4] sm:$0xff] %v3046
  %3063 = vst [vmem:[#allocation4 + $0x20] sm:$0xff] %v3047
  %3064 = vst [vmem:[#allocation4 + $0x40] sm:$0xff] %v3048
  %3065 = vst [vmem:[#allocation4 + $0x60] sm:$0xff] %v3049
  %3066 = vst [vmem:[#allocation4 + $0x80] sm:$0xff] %v3050
  %3067 = vst [vmem:[#allocation4 + $0xa0] sm:$0xff] %v3051
  %3068 = vst [vmem:[#allocation4 + $0xc0] sm:$0xff] %v3052
  %3069 = vst [vmem:[#allocation4 + $0xe0] sm:$0xff] %v3053
  %v3070 = vld [vmem:[#allocation2] sm:$0xe]
  %v3071 = vld [vmem:[#allocation2 + $0x4] sm:$0x1]
  %v3072 = vld [vmem:[#allocation2 + $0x8] sm:$0xe]
  %v3073 = vld [vmem:[#allocation2 + $0xc] sm:$0x1]
  %v3074 = vld [vmem:[#allocation2 + $0x10] sm:$0xe]
  %v3075 = vld [vmem:[#allocation2 + $0x14] sm:$0x1]
  %v3076 = vld [vmem:[#allocation2 + $0x18] sm:$0xe]
  %v3077 = vld [vmem:[#allocation2 + $0x1c] sm:$0x1]
  %v3078 = vld [vmem:[#allocation2 + $0x20] sm:$0xe]
  %v3079 = vld [vmem:[#allocation2 + $0x24] sm:$0x1]
  %v3080 = vld [vmem:[#allocation2 + $0x28] sm:$0xe]
  %v3081 = vld [vmem:[#allocation2 + $0x2c] sm:$0x1]
  %v3082 = vld [vmem:[#allocation2 + $0x30] sm:$0xe]
  %v3083 = vld [vmem:[#allocation2 + $0x34] sm:$0x1]
  %v3084 = vld [vmem:[#allocation2 + $0x38] sm:$0xe]
  %v3085 = vld [vmem:[#allocation2 + $0x3c] sm:$0x1]
  %v3086 = vld [vmem:[#allocation2 + $0x50] sm:$0xe]
  %v3087 = vld [vmem:[#allocation2 + $0x54] sm:$0x1]
  %v3088 = vld [vmem:[#allocation2 + $0x58] sm:$0xe]
  %v3089 = vld [vmem:[#allocation2 + $0x5c] sm:$0x1]
  %v3090 = vld [vmem:[#allocation2 + $0x60] sm:$0xe]
  %v3091 = vld [vmem:[#allocation2 + $0x64] sm:$0x1]
  %v3092 = vld [vmem:[#allocation2 + $0x68] sm:$0xe]
  %v3093 = vld [vmem:[#allocation2 + $0x6c] sm:$0x1]
  %v3094 = vld [vmem:[#allocation2 + $0x70] sm:$0xe]
  %v3095 = vld [vmem:[#allocation2 + $0x74] sm:$0x1]
  %v3096 = vld [vmem:[#allocation2 + $0x78] sm:$0xe]
  %v3097 = vld [vmem:[#allocation2 + $0x7c] sm:$0x1]
  %v3098 = vld [vmem:[#allocation2 + $0x80] sm:$0xe]
  %v3099 = vld [vmem:[#allocation2 + $0x84] sm:$0x1]
  %v3100 = vld [vmem:[#allocation2 + $0x88] sm:$0xe]
  %v3101 = vld [vmem:[#allocation2 + $0x8c] sm:$0x1]
  %vm3134 = vcmask 1042432
  %vm3135 = vcmask 1046532
  %vm3136 = vmor %vm3134, %vm3135
  %v3137 = vrot.slane %v3070, 5
  %v3138 = vrot.slane %v3137, 4
  %v3139 = vrot.slane %v3071, 5
  %v3140 = vsel %vm3136, %v3138, %v3139
  %v3141 = vrot.slane %v3072, 5
  %v3142 = vrot.slane %v3141, 4
  %v3143 = vrot.slane %v3073, 5
  %v3144 = vsel %vm3136, %v3142, %v3143
  %v3145 = vrot.slane %v3074, 5
  %v3146 = vrot.slane %v3145, 4
  %v3147 = vrot.slane %v3075, 5
  %v3148 = vsel %vm3136, %v3146, %v3147
  %v3149 = vrot.slane %v3076, 5
  %v3150 = vrot.slane %v3149, 4
  %v3151 = vrot.slane %v3077, 5
  %v3152 = vsel %vm3136, %v3150, %v3151
  %v3153 = vrot.slane %v3078, 5
  %v3154 = vrot.slane %v3153, 4
  %v3155 = vrot.slane %v3079, 5
  %v3156 = vsel %vm3136, %v3154, %v3155
  %v3157 = vrot.slane %v3080, 5
  %v3158 = vrot.slane %v3157, 4
  %v3159 = vrot.slane %v3081, 5
  %v3160 = vsel %vm3136, %v3158, %v3159
  %v3161 = vrot.slane %v3082, 5
  %v3162 = vrot.slane %v3161, 4
  %v3163 = vrot.slane %v3083, 5
  %v3164 = vsel %vm3136, %v3162, %v3163
  %v3165 = vrot.slane %v3084, 5
  %v3166 = vrot.slane %v3165, 4
  %v3167 = vrot.slane %v3085, 5
  %v3168 = vsel %vm3136, %v3166, %v3167
  %v3169 = vrot.slane %v3086, 5
  %v3170 = vrot.slane %v3169, 4
  %v3171 = vrot.slane %v3087, 5
  %v3172 = vsel %vm3136, %v3170, %v3171
  %v3173 = vrot.slane %v3088, 5
  %v3174 = vrot.slane %v3173, 4
  %v3175 = vrot.slane %v3089, 5
  %v3176 = vsel %vm3136, %v3174, %v3175
  %v3177 = vrot.slane %v3090, 5
  %v3178 = vrot.slane %v3177, 4
  %v3179 = vrot.slane %v3091, 5
  %v3180 = vsel %vm3136, %v3178, %v3179
  %v3181 = vrot.slane %v3092, 5
  %v3182 = vrot.slane %v3181, 4
  %v3183 = vrot.slane %v3093, 5
  %v3184 = vsel %vm3136, %v3182, %v3183
  %v3185 = vrot.slane %v3094, 5
  %v3186 = vrot.slane %v3185, 4
  %v3187 = vrot.slane %v3095, 5
  %v3188 = vsel %vm3136, %v3186, %v3187
  %v3189 = vrot.slane %v3096, 5
  %v3190 = vrot.slane %v3189, 4
  %v3191 = vrot.slane %v3097, 5
  %v3192 = vsel %vm3136, %v3190, %v3191
  %v3193 = vrot.slane %v3098, 5
  %v3194 = vrot.slane %v3193, 4
  %v3195 = vrot.slane %v3099, 5
  %v3196 = vsel %vm3136, %v3194, %v3195
  %v3197 = vrot.slane %v3100, 5
  %v3198 = vrot.slane %v3197, 4
  %v3199 = vrot.slane %v3101, 5
  %v3200 = vsel %vm3136, %v3198, %v3199
  %v3201 = vunpack.c.l.b16 %v3140
  %v3202 = vunpack.c.l.b16 %v3144
  %v3203 = vunpack.c.l.b16 %v3148
  %v3204 = vunpack.c.l.b16 %v3152
  %v3205 = vunpack.c.l.b16 %v3156
  %v3206 = vunpack.c.l.b16 %v3160
  %v3207 = vunpack.c.l.b16 %v3164
  %v3208 = vunpack.c.l.b16 %v3168
  %v3209 = vunpack.c.l.b16 %v3172
  %v3210 = vunpack.c.l.b16 %v3176
  %v3211 = vunpack.c.l.b16 %v3180
  %v3212 = vunpack.c.l.b16 %v3184
  %v3213 = vunpack.c.l.b16 %v3188
  %v3214 = vunpack.c.l.b16 %v3192
  %v3215 = vunpack.c.l.b16 %v3196
  %v3216 = vunpack.c.l.b16 %v3200
  %v3217 = vpack.c.b16 %v3202, %v3201
  %v3218 = vpack.c.b16 %v3204, %v3203
  %v3219 = vpack.c.b16 %v3206, %v3205
  %v3220 = vpack.c.b16 %v3208, %v3207
  %v3221 = vpack.c.b16 %v3210, %v3209
  %v3222 = vpack.c.b16 %v3212, %v3211
  %v3223 = vpack.c.b16 %v3214, %v3213
  %v3224 = vpack.c.b16 %v3216, %v3215
  %3233 = vst [vmem:[#allocation4 + $0x8] sm:$0xff] %v3217
  %3234 = vst [vmem:[#allocation4 + $0x28] sm:$0xff] %v3218
  %3235 = vst [vmem:[#allocation4 + $0x48] sm:$0xff] %v3219
  %3236 = vst [vmem:[#allocation4 + $0x68] sm:$0xff] %v3220
  %3237 = vst [vmem:[#allocation4 + $0x88] sm:$0xff] %v3221
  %3238 = vst [vmem:[#allocation4 + $0xa8] sm:$0xff] %v3222
  %3239 = vst [vmem:[#allocation4 + $0xc8] sm:$0xff] %v3223
  %3240 = vst [vmem:[#allocation4 + $0xe8] sm:$0xff] %v3224
  %v3241 = vld [vmem:[%s1313] sm:$0xf]
  %v3242 = vld [vmem:[%s1313 + $0x4] sm:$0x1]
  %v3243 = vld [vmem:[%s1313 + $0x8] sm:$0xf]
  %v3244 = vld [vmem:[%s1313 + $0xc] sm:$0x1]
  %v3245 = vld [vmem:[%s1313 + $0x10] sm:$0xf]
  %v3246 = vld [vmem:[%s1313 + $0x14] sm:$0x1]
  %v3247 = vld [vmem:[%s1313 + $0x18] sm:$0xf]
  %v3248 = vld [vmem:[%s1313 + $0x1c] sm:$0x1]
  %v3249 = vld [vmem:[%s1313 + $0x20] sm:$0xf]
  %v3250 = vld [vmem:[%s1313 + $0x24] sm:$0x1]
  %v3251 = vld [vmem:[%s1313 + $0x28] sm:$0xf]
  %v3252 = vld [vmem:[%s1313 + $0x2c] sm:$0x1]
  %v3253 = vld [vmem:[%s1313 + $0x30] sm:$0xf]
  %v3254 = vld [vmem:[%s1313 + $0x34] sm:$0x1]
  %v3255 = vld [vmem:[%s1313 + $0x38] sm:$0xf]
  %v3256 = vld [vmem:[%s1313 + $0x3c] sm:$0x1]
  %v3257 = vld [vmem:[%s1313 + $0x50] sm:$0xf]
  %v3258 = vld [vmem:[%s1313 + $0x54] sm:$0x1]
  %v3259 = vld [vmem:[%s1313 + $0x58] sm:$0xf]
  %v3260 = vld [vmem:[%s1313 + $0x5c] sm:$0x1]
  %v3261 = vld [vmem:[%s1313 + $0x60] sm:$0xf]
  %v3262 = vld [vmem:[%s1313 + $0x64] sm:$0x1]
  %v3263 = vld [vmem:[%s1313 + $0x68] sm:$0xf]
  %v3264 = vld [vmem:[%s1313 + $0x6c] sm:$0x1]
  %v3265 = vld [vmem:[%s1313 + $0x70] sm:$0xf]
  %v3266 = vld [vmem:[%s1313 + $0x74] sm:$0x1]
  %v3267 = vld [vmem:[%s1313 + $0x78] sm:$0xf]
  %v3268 = vld [vmem:[%s1313 + $0x7c] sm:$0x1]
  %v3269 = vld [vmem:[%s1313 + $0x80] sm:$0xf]
  %v3270 = vld [vmem:[%s1313 + $0x84] sm:$0x1]
  %v3271 = vld [vmem:[%s1313 + $0x88] sm:$0xf]
  %v3272 = vld [vmem:[%s1313 + $0x8c] sm:$0x1]
  %v3274 = vshrl.u32 %v3241, 16
  %v3276 = vrot.slane %v3274, 4
  %v3277 = vshll.u32 %v3241, 16
  %v3279 = vrot.slane %v3277, 5
  %v3280 = vor.u32 %v3276, %v3279
  %v3281 = vrot.slane %v3280, 4
  %v3283 = vshll.u32 %v3242, 16
  %v3285 = vrot.slane %v3283, 5
  %v3286 = vsel %vm220, %v3281, %v3285
  %v3288 = vshrl.u32 %v3243, 16
  %v3290 = vrot.slane %v3288, 4
  %v3291 = vshll.u32 %v3243, 16
  %v3293 = vrot.slane %v3291, 5
  %v3294 = vor.u32 %v3290, %v3293
  %v3295 = vrot.slane %v3294, 4
  %v3297 = vshll.u32 %v3244, 16
  %v3299 = vrot.slane %v3297, 5
  %v3300 = vsel %vm220, %v3295, %v3299
  %v3302 = vshrl.u32 %v3245, 16
  %v3304 = vrot.slane %v3302, 4
  %v3305 = vshll.u32 %v3245, 16
  %v3307 = vrot.slane %v3305, 5
  %v3308 = vor.u32 %v3304, %v3307
  %v3309 = vrot.slane %v3308, 4
  %v3311 = vshll.u32 %v3246, 16
  %v3313 = vrot.slane %v3311, 5
  %v3314 = vsel %vm220, %v3309, %v3313
  %v3316 = vshrl.u32 %v3247, 16
  %v3318 = vrot.slane %v3316, 4
  %v3319 = vshll.u32 %v3247, 16
  %v3321 = vrot.slane %v3319, 5
  %v3322 = vor.u32 %v3318, %v3321
  %v3323 = vrot.slane %v3322, 4
  %v3325 = vshll.u32 %v3248, 16
  %v3327 = vrot.slane %v3325, 5
  %v3328 = vsel %vm220, %v3323, %v3327
  %v3330 = vshrl.u32 %v3249, 16
  %v3332 = vrot.slane %v3330, 4
  %v3333 = vshll.u32 %v3249, 16
  %v3335 = vrot.slane %v3333, 5
  %v3336 = vor.u32 %v3332, %v3335
  %v3337 = vrot.slane %v3336, 4
  %v3339 = vshll.u32 %v3250, 16
  %v3341 = vrot.slane %v3339, 5
  %v3342 = vsel %vm220, %v3337, %v3341
  %v3344 = vshrl.u32 %v3251, 16
  %v3346 = vrot.slane %v3344, 4
  %v3347 = vshll.u32 %v3251, 16
  %v3349 = vrot.slane %v3347, 5
  %v3350 = vor.u32 %v3346, %v3349
  %v3351 = vrot.slane %v3350, 4
  %v3353 = vshll.u32 %v3252, 16
  %v3355 = vrot.slane %v3353, 5
  %v3356 = vsel %vm220, %v3351, %v3355
  %v3358 = vshrl.u32 %v3253, 16
  %v3360 = vrot.slane %v3358, 4
  %v3361 = vshll.u32 %v3253, 16
  %v3363 = vrot.slane %v3361, 5
  %v3364 = vor.u32 %v3360, %v3363
  %v3365 = vrot.slane %v3364, 4
  %v3367 = vshll.u32 %v3254, 16
  %v3369 = vrot.slane %v3367, 5
  %v3370 = vsel %vm220, %v3365, %v3369
  %v3372 = vshrl.u32 %v3255, 16
  %v3374 = vrot.slane %v3372, 4
  %v3375 = vshll.u32 %v3255, 16
  %v3377 = vrot.slane %v3375, 5
  %v3378 = vor.u32 %v3374, %v3377
  %v3379 = vrot.slane %v3378, 4
  %v3381 = vshll.u32 %v3256, 16
  %v3383 = vrot.slane %v3381, 5
  %v3384 = vsel %vm220, %v3379, %v3383
  %v3386 = vshrl.u32 %v3257, 16
  %v3388 = vrot.slane %v3386, 4
  %v3389 = vshll.u32 %v3257, 16
  %v3391 = vrot.slane %v3389, 5
  %v3392 = vor.u32 %v3388, %v3391
  %v3393 = vrot.slane %v3392, 4
  %v3395 = vshll.u32 %v3258, 16
  %v3397 = vrot.slane %v3395, 5
  %v3398 = vsel %vm220, %v3393, %v3397
  %v3400 = vshrl.u32 %v3259, 16
  %v3402 = vrot.slane %v3400, 4
  %v3403 = vshll.u32 %v3259, 16
  %v3405 = vrot.slane %v3403, 5
  %v3406 = vor.u32 %v3402, %v3405
  %v3407 = vrot.slane %v3406, 4
  %v3409 = vshll.u32 %v3260, 16
  %v3411 = vrot.slane %v3409, 5
  %v3412 = vsel %vm220, %v3407, %v3411
  %v3414 = vshrl.u32 %v3261, 16
  %v3416 = vrot.slane %v3414, 4
  %v3417 = vshll.u32 %v3261, 16
  %v3419 = vrot.slane %v3417, 5
  %v3420 = vor.u32 %v3416, %v3419
  %v3421 = vrot.slane %v3420, 4
  %v3423 = vshll.u32 %v3262, 16
  %v3425 = vrot.slane %v3423, 5
  %v3426 = vsel %vm220, %v3421, %v3425
  %v3428 = vshrl.u32 %v3263, 16
  %v3430 = vrot.slane %v3428, 4
  %v3431 = vshll.u32 %v3263, 16
  %v3433 = vrot.slane %v3431, 5
  %v3434 = vor.u32 %v3430, %v3433
  %v3435 = vrot.slane %v3434, 4
  %v3437 = vshll.u32 %v3264, 16
  %v3439 = vrot.slane %v3437, 5
  %v3440 = vsel %vm220, %v3435, %v3439
  %v3442 = vshrl.u32 %v3265, 16
  %v3444 = vrot.slane %v3442, 4
  %v3445 = vshll.u32 %v3265, 16
  %v3447 = vrot.slane %v3445, 5
  %v3448 = vor.u32 %v3444, %v3447
  %v3449 = vrot.slane %v3448, 4
  %v3451 = vshll.u32 %v3266, 16
  %v3453 = vrot.slane %v3451, 5
  %v3454 = vsel %vm220, %v3449, %v3453
  %v3456 = vshrl.u32 %v3267, 16
  %v3458 = vrot.slane %v3456, 4
  %v3459 = vshll.u32 %v3267, 16
  %v3461 = vrot.slane %v3459, 5
  %v3462 = vor.u32 %v3458, %v3461
  %v3463 = vrot.slane %v3462, 4
  %v3465 = vshll.u32 %v3268, 16
  %v3467 = vrot.slane %v3465, 5
  %v3468 = vsel %vm220, %v3463, %v3467
  %v3470 = vshrl.u32 %v3269, 16
  %v3472 = vrot.slane %v3470, 4
  %v3473 = vshll.u32 %v3269, 16
  %v3475 = vrot.slane %v3473, 5
  %v3476 = vor.u32 %v3472, %v3475
  %v3477 = vrot.slane %v3476, 4
  %v3479 = vshll.u32 %v3270, 16
  %v3481 = vrot.slane %v3479, 5
  %v3482 = vsel %vm220, %v3477, %v3481
  %v3484 = vshrl.u32 %v3271, 16
  %v3486 = vrot.slane %v3484, 4
  %v3487 = vshll.u32 %v3271, 16
  %v3489 = vrot.slane %v3487, 5
  %v3490 = vor.u32 %v3486, %v3489
  %v3491 = vrot.slane %v3490, 4
  %v3493 = vshll.u32 %v3272, 16
  %v3495 = vrot.slane %v3493, 5
  %v3496 = vsel %vm220, %v3491, %v3495
  %v3497 = vunpack.c.l.b16 %v3286
  %v3498 = vunpack.c.l.b16 %v3300
  %v3499 = vunpack.c.l.b16 %v3314
  %v3500 = vunpack.c.l.b16 %v3328
  %v3501 = vunpack.c.l.b16 %v3342
  %v3502 = vunpack.c.l.b16 %v3356
  %v3503 = vunpack.c.l.b16 %v3370
  %v3504 = vunpack.c.l.b16 %v3384
  %v3505 = vunpack.c.l.b16 %v3398
  %v3506 = vunpack.c.l.b16 %v3412
  %v3507 = vunpack.c.l.b16 %v3426
  %v3508 = vunpack.c.l.b16 %v3440
  %v3509 = vunpack.c.l.b16 %v3454
  %v3510 = vunpack.c.l.b16 %v3468
  %v3511 = vunpack.c.l.b16 %v3482
  %v3512 = vunpack.c.l.b16 %v3496
  %v3513 = vpack.c.b16 %v3498, %v3497
  %v3514 = vpack.c.b16 %v3500, %v3499
  %v3515 = vpack.c.b16 %v3502, %v3501
  %v3516 = vpack.c.b16 %v3504, %v3503
  %v3517 = vpack.c.b16 %v3506, %v3505
  %v3518 = vpack.c.b16 %v3508, %v3507
  %v3519 = vpack.c.b16 %v3510, %v3509
  %v3520 = vpack.c.b16 %v3512, %v3511
  %3529 = vst [vmem:[#allocation4 + $0x10] sm:$0xff] %v3513
  %3530 = vst [vmem:[#allocation4 + $0x30] sm:$0xff] %v3514
  %3531 = vst [vmem:[#allocation4 + $0x50] sm:$0xff] %v3515
  %3532 = vst [vmem:[#allocation4 + $0x70] sm:$0xff] %v3516
  %3533 = vst [vmem:[#allocation4 + $0x90] sm:$0xff] %v3517
  %3534 = vst [vmem:[#allocation4 + $0xb0] sm:$0xff] %v3518
  %3535 = vst [vmem:[#allocation4 + $0xd0] sm:$0xff] %v3519
  %3536 = vst [vmem:[#allocation4 + $0xf0] sm:$0xff] %v3520
  %v3537 = vld [vmem:[%s1313] sm:$0xe]
  %v3538 = vld [vmem:[%s1313 + $0x4] sm:$0x1]
  %v3539 = vld [vmem:[%s1313 + $0x8] sm:$0xe]
  %v3540 = vld [vmem:[%s1313 + $0xc] sm:$0x1]
  %v3541 = vld [vmem:[%s1313 + $0x10] sm:$0xe]
  %v3542 = vld [vmem:[%s1313 + $0x14] sm:$0x1]
  %v3543 = vld [vmem:[%s1313 + $0x18] sm:$0xe]
  %v3544 = vld [vmem:[%s1313 + $0x1c] sm:$0x1]
  %v3545 = vld [vmem:[%s1313 + $0x20] sm:$0xe]
  %v3546 = vld [vmem:[%s1313 + $0x24] sm:$0x1]
  %v3547 = vld [vmem:[%s1313 + $0x28] sm:$0xe]
  %v3548 = vld [vmem:[%s1313 + $0x2c] sm:$0x1]
  %v3549 = vld [vmem:[%s1313 + $0x30] sm:$0xe]
  %v3550 = vld [vmem:[%s1313 + $0x34] sm:$0x1]
  %v3551 = vld [vmem:[%s1313 + $0x38] sm:$0xe]
  %v3552 = vld [vmem:[%s1313 + $0x3c] sm:$0x1]
  %v3553 = vld [vmem:[%s1313 + $0x50] sm:$0xe]
  %v3554 = vld [vmem:[%s1313 + $0x54] sm:$0x1]
  %v3555 = vld [vmem:[%s1313 + $0x58] sm:$0xe]
  %v3556 = vld [vmem:[%s1313 + $0x5c] sm:$0x1]
  %v3557 = vld [vmem:[%s1313 + $0x60] sm:$0xe]
  %v3558 = vld [vmem:[%s1313 + $0x64] sm:$0x1]
  %v3559 = vld [vmem:[%s1313 + $0x68] sm:$0xe]
  %v3560 = vld [vmem:[%s1313 + $0x6c] sm:$0x1]
  %v3561 = vld [vmem:[%s1313 + $0x70] sm:$0xe]
  %v3562 = vld [vmem:[%s1313 + $0x74] sm:$0x1]
  %v3563 = vld [vmem:[%s1313 + $0x78] sm:$0xe]
  %v3564 = vld [vmem:[%s1313 + $0x7c] sm:$0x1]
  %v3565 = vld [vmem:[%s1313 + $0x80] sm:$0xe]
  %v3566 = vld [vmem:[%s1313 + $0x84] sm:$0x1]
  %v3567 = vld [vmem:[%s1313 + $0x88] sm:$0xe]
  %v3568 = vld [vmem:[%s1313 + $0x8c] sm:$0x1]
  %v3601 = vrot.slane %v3537, 5
  %v3602 = vrot.slane %v3601, 4
  %v3603 = vrot.slane %v3538, 5
  %v3604 = vsel %vm3136, %v3602, %v3603
  %v3605 = vrot.slane %v3539, 5
  %v3606 = vrot.slane %v3605, 4
  %v3607 = vrot.slane %v3540, 5
  %v3608 = vsel %vm3136, %v3606, %v3607
  %v3609 = vrot.slane %v3541, 5
  %v3610 = vrot.slane %v3609, 4
  %v3611 = vrot.slane %v3542, 5
  %v3612 = vsel %vm3136, %v3610, %v3611
  %v3613 = vrot.slane %v3543, 5
  %v3614 = vrot.slane %v3613, 4
  %v3615 = vrot.slane %v3544, 5
  %v3616 = vsel %vm3136, %v3614, %v3615
  %v3617 = vrot.slane %v3545, 5
  %v3618 = vrot.slane %v3617, 4
  %v3619 = vrot.slane %v3546, 5
  %v3620 = vsel %vm3136, %v3618, %v3619
  %v3621 = vrot.slane %v3547, 5
  %v3622 = vrot.slane %v3621, 4
  %v3623 = vrot.slane %v3548, 5
  %v3624 = vsel %vm3136, %v3622, %v3623
  %v3625 = vrot.slane %v3549, 5
  %v3626 = vrot.slane %v3625, 4
  %v3627 = vrot.slane %v3550, 5
  %v3628 = vsel %vm3136, %v3626, %v3627
  %v3629 = vrot.slane %v3551, 5
  %v3630 = vrot.slane %v3629, 4
  %v3631 = vrot.slane %v3552, 5
  %v3632 = vsel %vm3136, %v3630, %v3631
  %v3633 = vrot.slane %v3553, 5
  %v3634 = vrot.slane %v3633, 4
  %v3635 = vrot.slane %v3554, 5
  %v3636 = vsel %vm3136, %v3634, %v3635
  %v3637 = vrot.slane %v3555, 5
  %v3638 = vrot.slane %v3637, 4
  %v3639 = vrot.slane %v3556, 5
  %v3640 = vsel %vm3136, %v3638, %v3639
  %v3641 = vrot.slane %v3557, 5
  %v3642 = vrot.slane %v3641, 4
  %v3643 = vrot.slane %v3558, 5
  %v3644 = vsel %vm3136, %v3642, %v3643
  %v3645 = vrot.slane %v3559, 5
  %v3646 = vrot.slane %v3645, 4
  %v3647 = vrot.slane %v3560, 5
  %v3648 = vsel %vm3136, %v3646, %v3647
  %v3649 = vrot.slane %v3561, 5
  %v3650 = vrot.slane %v3649, 4
  %v3651 = vrot.slane %v3562, 5
  %v3652 = vsel %vm3136, %v3650, %v3651
  %v3653 = vrot.slane %v3563, 5
  %v3654 = vrot.slane %v3653, 4
  %v3655 = vrot.slane %v3564, 5
  %v3656 = vsel %vm3136, %v3654, %v3655
  %v3657 = vrot.slane %v3565, 5
  %v3658 = vrot.slane %v3657, 4
  %v3659 = vrot.slane %v3566, 5
  %v3660 = vsel %vm3136, %v3658, %v3659
  %v3661 = vrot.slane %v3567, 5
  %v3662 = vrot.slane %v3661, 4
  %v3663 = vrot.slane %v3568, 5
  %v3664 = vsel %vm3136, %v3662, %v3663
  %v3665 = vunpack.c.l.b16 %v3604
  %v3666 = vunpack.c.l.b16 %v3608
  %v3667 = vunpack.c.l.b16 %v3612
  %v3668 = vunpack.c.l.b16 %v3616
  %v3669 = vunpack.c.l.b16 %v3620
  %v3670 = vunpack.c.l.b16 %v3624
  %v3671 = vunpack.c.l.b16 %v3628
  %v3672 = vunpack.c.l.b16 %v3632
  %v3673 = vunpack.c.l.b16 %v3636
  %v3674 = vunpack.c.l.b16 %v3640
  %v3675 = vunpack.c.l.b16 %v3644
  %v3676 = vunpack.c.l.b16 %v3648
  %v3677 = vunpack.c.l.b16 %v3652
  %v3678 = vunpack.c.l.b16 %v3656
  %v3679 = vunpack.c.l.b16 %v3660
  %v3680 = vunpack.c.l.b16 %v3664
  %v3681 = vpack.c.b16 %v3666, %v3665
  %v3682 = vpack.c.b16 %v3668, %v3667
  %v3683 = vpack.c.b16 %v3670, %v3669
  %v3684 = vpack.c.b16 %v3672, %v3671
  %v3685 = vpack.c.b16 %v3674, %v3673
  %v3686 = vpack.c.b16 %v3676, %v3675
  %v3687 = vpack.c.b16 %v3678, %v3677
  %v3688 = vpack.c.b16 %v3680, %v3679
  %3697 = vst [vmem:[#allocation4 + $0x18] sm:$0xff] %v3681
  %3698 = vst [vmem:[#allocation4 + $0x38] sm:$0xff] %v3682
  %3699 = vst [vmem:[#allocation4 + $0x58] sm:$0xff] %v3683
  %3700 = vst [vmem:[#allocation4 + $0x78] sm:$0xff] %v3684
  %3701 = vst [vmem:[#allocation4 + $0x98] sm:$0xff] %v3685
  %3702 = vst [vmem:[#allocation4 + $0xb8] sm:$0xff] %v3686
  %3703 = vst [vmem:[#allocation4 + $0xd8] sm:$0xff] %v3687
  %3704 = vst [vmem:[#allocation4 + $0xf8] sm:$0xff] %v3688
  %v3705 = vld [vmem:[#allocation4] sm:$0xff]
  %v3706 = vld [vmem:[#allocation4 + $0x8] sm:$0xff]
  %v3707 = vld [vmem:[#allocation4 + $0x10] sm:$0xff]
  %v3708 = vld [vmem:[#allocation4 + $0x18] sm:$0xff]
  %v3709 = vld [vmem:[#allocation4 + $0x20] sm:$0xff]
  %v3710 = vld [vmem:[#allocation4 + $0x28] sm:$0xff]
  %v3711 = vld [vmem:[#allocation4 + $0x30] sm:$0xff]
  %v3712 = vld [vmem:[#allocation4 + $0x38] sm:$0xff]
  %v3713 = vld [vmem:[#allocation4 + $0x40] sm:$0xff]
  %v3714 = vld [vmem:[#allocation4 + $0x48] sm:$0xff]
  %v3715 = vld [vmem:[#allocation4 + $0x50] sm:$0xff]
  %v3716 = vld [vmem:[#allocation4 + $0x58] sm:$0xff]
  %v3717 = vld [vmem:[#allocation4 + $0x60] sm:$0xff]
  %v3718 = vld [vmem:[#allocation4 + $0x68] sm:$0xff]
  %v3719 = vld [vmem:[#allocation4 + $0x70] sm:$0xff]
  %v3720 = vld [vmem:[#allocation4 + $0x78] sm:$0xff]
  %v3721 = vld [vmem:[#allocation4 + $0x80] sm:$0xff]
  %v3722 = vld [vmem:[#allocation4 + $0x88] sm:$0xff]
  %v3723 = vld [vmem:[#allocation4 + $0x90] sm:$0xff]
  %v3724 = vld [vmem:[#allocation4 + $0x98] sm:$0xff]
  %v3725 = vld [vmem:[#allocation4 + $0xa0] sm:$0xff]
  %v3726 = vld [vmem:[#allocation4 + $0xa8] sm:$0xff]
  %v3727 = vld [vmem:[#allocation4 + $0xb0] sm:$0xff]
  %v3728 = vld [vmem:[#allocation4 + $0xb8] sm:$0xff]
  %v3729 = vld [vmem:[#allocation4 + $0xc0] sm:$0xff]
  %v3730 = vld [vmem:[#allocation4 + $0xc8] sm:$0xff]
  %v3731 = vld [vmem:[#allocation4 + $0xd0] sm:$0xff]
  %v3732 = vld [vmem:[#allocation4 + $0xd8] sm:$0xff]
  %v3733 = vld [vmem:[#allocation4 + $0xe0] sm:$0xff]
  %v3734 = vld [vmem:[#allocation4 + $0xe8] sm:$0xff]
  %v3735 = vld [vmem:[#allocation4 + $0xf0] sm:$0xff]
  %v3736 = vld [vmem:[#allocation4 + $0xf8] sm:$0xff]
  %s3737 = scalar_lea.vmem %s2, 256
  %v3738 = vld [vmem:[%s3737] sm:$0xf]
  %v3739 = vld [vmem:[%s3737 + $0x4] sm:$0xf]
  %v3740 = vld [vmem:[%s3737 + $0x8] sm:$0xf]
  %v3741 = vld [vmem:[%s3737 + $0xc] sm:$0xf]
  %v3742 = vld [vmem:[%s3737 + $0x10] sm:$0xf]
  %v3743 = vld [vmem:[%s3737 + $0x14] sm:$0xf]
  %v3744 = vld [vmem:[%s3737 + $0x18] sm:$0xf]
  %v3745 = vld [vmem:[%s3737 + $0x1c] sm:$0xf]
  %v3746 = vld [vmem:[%s3737 + $0x20] sm:$0xf]
  %v3747 = vld [vmem:[%s3737 + $0x24] sm:$0xf]
  %v3748 = vld [vmem:[%s3737 + $0x28] sm:$0xf]
  %v3749 = vld [vmem:[%s3737 + $0x2c] sm:$0xf]
  %v3750 = vld [vmem:[%s3737 + $0x30] sm:$0xf]
  %v3751 = vld [vmem:[%s3737 + $0x34] sm:$0xf]
  %v3752 = vld [vmem:[%s3737 + $0x38] sm:$0xf]
  %v3753 = vld [vmem:[%s3737 + $0x3c] sm:$0xf]
  %v3754 = vld [vmem:[%s3737 + $0x40] sm:$0xf]
  %v3755 = vld [vmem:[%s3737 + $0x44] sm:$0xf]
  %v3756 = vld [vmem:[%s3737 + $0x48] sm:$0xf]
  %v3757 = vld [vmem:[%s3737 + $0x4c] sm:$0xf]
  %v3758 = vld [vmem:[%s3737 + $0x50] sm:$0xf]
  %v3759 = vld [vmem:[%s3737 + $0x54] sm:$0xf]
  %v3760 = vld [vmem:[%s3737 + $0x58] sm:$0xf]
  %v3761 = vld [vmem:[%s3737 + $0x5c] sm:$0xf]
  %v3762 = vld [vmem:[%s3737 + $0x60] sm:$0xf]
  %v3763 = vld [vmem:[%s3737 + $0x64] sm:$0xf]
  %v3764 = vld [vmem:[%s3737 + $0x68] sm:$0xf]
  %v3765 = vld [vmem:[%s3737 + $0x6c] sm:$0xf]
  %v3766 = vld [vmem:[%s3737 + $0x70] sm:$0xf]
  %v3767 = vld [vmem:[%s3737 + $0x74] sm:$0xf]
  %v3768 = vld [vmem:[%s3737 + $0x78] sm:$0xf]
  %v3769 = vld [vmem:[%s3737 + $0x7c] sm:$0xf]
  %v3770 = vld [vmem:[%s3737 + $0x80] sm:$0xf]
  %v3771 = vld [vmem:[%s3737 + $0x84] sm:$0xf]
  %v3772 = vld [vmem:[%s3737 + $0x88] sm:$0xf]
  %v3773 = vld [vmem:[%s3737 + $0x8c] sm:$0xf]
  %v3774 = vld [vmem:[%s3737 + $0x90] sm:$0xf]
  %v3775 = vld [vmem:[%s3737 + $0x94] sm:$0xf]
  %v3776 = vld [vmem:[%s3737 + $0x98] sm:$0xf]
  %v3777 = vld [vmem:[%s3737 + $0x9c] sm:$0xf]
  %v3778 = vld [vmem:[%s3737 + $0xa0] sm:$0xf]
  %v3779 = vld [vmem:[%s3737 + $0xa4] sm:$0xf]
  %v3780 = vld [vmem:[%s3737 + $0xa8] sm:$0xf]
  %v3781 = vld [vmem:[%s3737 + $0xac] sm:$0xf]
  %v3782 = vld [vmem:[%s3737 + $0xb0] sm:$0xf]
  %v3783 = vld [vmem:[%s3737 + $0xb4] sm:$0xf]
  %v3784 = vld [vmem:[%s3737 + $0xb8] sm:$0xf]
  %v3785 = vld [vmem:[%s3737 + $0xbc] sm:$0xf]
  %v3786 = vld [vmem:[%s3737 + $0xc0] sm:$0xf]
  %v3787 = vld [vmem:[%s3737 + $0xc4] sm:$0xf]
  %v3788 = vld [vmem:[%s3737 + $0xc8] sm:$0xf]
  %v3789 = vld [vmem:[%s3737 + $0xcc] sm:$0xf]
  %v3790 = vld [vmem:[%s3737 + $0xd0] sm:$0xf]
  %v3791 = vld [vmem:[%s3737 + $0xd4] sm:$0xf]
  %v3792 = vld [vmem:[%s3737 + $0xd8] sm:$0xf]
  %v3793 = vld [vmem:[%s3737 + $0xdc] sm:$0xf]
  %v3794 = vld [vmem:[%s3737 + $0xe0] sm:$0xf]
  %v3795 = vld [vmem:[%s3737 + $0xe4] sm:$0xf]
  %v3796 = vld [vmem:[%s3737 + $0xe8] sm:$0xf]
  %v3797 = vld [vmem:[%s3737 + $0xec] sm:$0xf]
  %v3798 = vld [vmem:[%s3737 + $0xf0] sm:$0xf]
  %v3799 = vld [vmem:[%s3737 + $0xf4] sm:$0xf]
  %v3800 = vld [vmem:[%s3737 + $0xf8] sm:$0xf]
  %v3801 = vld [vmem:[%s3737 + $0xfc] sm:$0xf]
  %v3866 = vunpack.c.l.b16 %v3738
  %v3867 = vunpack.c.l.b16 %v3739
  %v3868 = vunpack.c.l.b16 %v3740
  %v3869 = vunpack.c.l.b16 %v3741
  %v3870 = vunpack.c.l.b16 %v3742
  %v3871 = vunpack.c.l.b16 %v3743
  %v3872 = vunpack.c.l.b16 %v3744
  %v3873 = vunpack.c.l.b16 %v3745
  %v3874 = vunpack.c.l.b16 %v3746
  %v3875 = vunpack.c.l.b16 %v3747
  %v3876 = vunpack.c.l.b16 %v3748
  %v3877 = vunpack.c.l.b16 %v3749
  %v3878 = vunpack.c.l.b16 %v3750
  %v3879 = vunpack.c.l.b16 %v3751
  %v3880 = vunpack.c.l.b16 %v3752
  %v3881 = vunpack.c.l.b16 %v3753
  %v3882 = vunpack.c.l.b16 %v3754
  %v3883 = vunpack.c.l.b16 %v3755
  %v3884 = vunpack.c.l.b16 %v3756
  %v3885 = vunpack.c.l.b16 %v3757
  %v3886 = vunpack.c.l.b16 %v3758
  %v3887 = vunpack.c.l.b16 %v3759
  %v3888 = vunpack.c.l.b16 %v3760
  %v3889 = vunpack.c.l.b16 %v3761
  %v3890 = vunpack.c.l.b16 %v3762
  %v3891 = vunpack.c.l.b16 %v3763
  %v3892 = vunpack.c.l.b16 %v3764
  %v3893 = vunpack.c.l.b16 %v3765
  %v3894 = vunpack.c.l.b16 %v3766
  %v3895 = vunpack.c.l.b16 %v3767
  %v3896 = vunpack.c.l.b16 %v3768
  %v3897 = vunpack.c.l.b16 %v3769
  %v3898 = vunpack.c.l.b16 %v3770
  %v3899 = vunpack.c.l.b16 %v3771
  %v3900 = vunpack.c.l.b16 %v3772
  %v3901 = vunpack.c.l.b16 %v3773
  %v3902 = vunpack.c.l.b16 %v3774
  %v3903 = vunpack.c.l.b16 %v3775
  %v3904 = vunpack.c.l.b16 %v3776
  %v3905 = vunpack.c.l.b16 %v3777
  %v3906 = vunpack.c.l.b16 %v3778
  %v3907 = vunpack.c.l.b16 %v3779
  %v3908 = vunpack.c.l.b16 %v3780
  %v3909 = vunpack.c.l.b16 %v3781
  %v3910 = vunpack.c.l.b16 %v3782
  %v3911 = vunpack.c.l.b16 %v3783
  %v3912 = vunpack.c.l.b16 %v3784
  %v3913 = vunpack.c.l.b16 %v3785
  %v3914 = vunpack.c.l.b16 %v3786
  %v3915 = vunpack.c.l.b16 %v3787
  %v3916 = vunpack.c.l.b16 %v3788
  %v3917 = vunpack.c.l.b16 %v3789
  %v3918 = vunpack.c.l.b16 %v3790
  %v3919 = vunpack.c.l.b16 %v3791
  %v3920 = vunpack.c.l.b16 %v3792
  %v3921 = vunpack.c.l.b16 %v3793
  %v3922 = vunpack.c.l.b16 %v3794
  %v3923 = vunpack.c.l.b16 %v3795
  %v3924 = vunpack.c.l.b16 %v3796
  %v3925 = vunpack.c.l.b16 %v3797
  %v3926 = vunpack.c.l.b16 %v3798
  %v3927 = vunpack.c.l.b16 %v3799
  %v3928 = vunpack.c.l.b16 %v3800
  %v3929 = vunpack.c.l.b16 %v3801
  %v3930 = vpack.c.b16 %v3867, %v3866
  %v3931 = vpack.c.b16 %v3869, %v3868
  %v3932 = vpack.c.b16 %v3871, %v3870
  %v3933 = vpack.c.b16 %v3873, %v3872
  %v3934 = vpack.c.b16 %v3875, %v3874
  %v3935 = vpack.c.b16 %v3877, %v3876
  %v3936 = vpack.c.b16 %v3879, %v3878
  %v3937 = vpack.c.b16 %v3881, %v3880
  %v3938 = vpack.c.b16 %v3883, %v3882
  %v3939 = vpack.c.b16 %v3885, %v3884
  %v3940 = vpack.c.b16 %v3887, %v3886
  %v3941 = vpack.c.b16 %v3889, %v3888
  %v3942 = vpack.c.b16 %v3891, %v3890
  %v3943 = vpack.c.b16 %v3893, %v3892
  %v3944 = vpack.c.b16 %v3895, %v3894
  %v3945 = vpack.c.b16 %v3897, %v3896
  %v3946 = vpack.c.b16 %v3899, %v3898
  %v3947 = vpack.c.b16 %v3901, %v3900
  %v3948 = vpack.c.b16 %v3903, %v3902
  %v3949 = vpack.c.b16 %v3905, %v3904
  %v3950 = vpack.c.b16 %v3907, %v3906
  %v3951 = vpack.c.b16 %v3909, %v3908
  %v3952 = vpack.c.b16 %v3911, %v3910
  %v3953 = vpack.c.b16 %v3913, %v3912
  %v3954 = vpack.c.b16 %v3915, %v3914
  %v3955 = vpack.c.b16 %v3917, %v3916
  %v3956 = vpack.c.b16 %v3919, %v3918
  %v3957 = vpack.c.b16 %v3921, %v3920
  %v3958 = vpack.c.b16 %v3923, %v3922
  %v3959 = vpack.c.b16 %v3925, %v3924
  %v3960 = vpack.c.b16 %v3927, %v3926
  %v3961 = vpack.c.b16 %v3929, %v3928
  %3994 = vmatprep.subr.bf16.mxu0 0
  %3995 = vmatpush1.bf16.msra.mxu0 %v3930
  %3996 = vmatprep.subr.bf16.mxu0 0
  %3997 = vmatpush1.bf16.msra.mxu0 %v3931
  %3998 = vmatprep.subr.bf16.mxu0 0
  %3999 = vmatpush1.bf16.msra.mxu0 %v3932
  %4000 = vmatprep.subr.bf16.mxu0 0
  %4001 = vmatpush1.bf16.msra.mxu0 %v3933
  %4002 = vmatprep.subr.bf16.mxu0 0
  %4003 = vmatpush1.bf16.msra.mxu0 %v3934
  %4004 = vmatprep.subr.bf16.mxu0 0
  %4005 = vmatpush1.bf16.msra.mxu0 %v3935
  %4006 = vmatprep.subr.bf16.mxu0 0
  %4007 = vmatpush1.bf16.msra.mxu0 %v3936
  %4008 = vmatprep.subr.bf16.mxu0 0
  %4009 = vmatpush1.bf16.msra.mxu0 %v3937
  %4010 = vmatprep.subr.bf16.mxu0 0
  %4011 = vmatpush1.bf16.msra.mxu0 %v3938
  %4012 = vmatprep.subr.bf16.mxu0 0
  %4013 = vmatpush1.bf16.msra.mxu0 %v3939
  %4014 = vmatprep.subr.bf16.mxu0 0
  %4015 = vmatpush1.bf16.msra.mxu0 %v3940
  %4016 = vmatprep.subr.bf16.mxu0 0
  %4017 = vmatpush1.bf16.msra.mxu0 %v3941
  %4018 = vmatprep.subr.bf16.mxu0 0
  %4019 = vmatpush1.bf16.msra.mxu0 %v3942
  %4020 = vmatprep.subr.bf16.mxu0 0
  %4021 = vmatpush1.bf16.msra.mxu0 %v3943
  %4022 = vmatprep.subr.bf16.mxu0 0
  %4023 = vmatpush1.bf16.msra.mxu0 %v3944
  %4024 = vmatprep.subr.bf16.mxu0 0
  %4025 = vmatpush1.bf16.msra.mxu0 %v3945
  %4026 = vmatprep.mubr.bf16.mxu0 %v3706
  %4027 = vmatmul.mubr.bf16.gmra.mrb[0].mxu0 %v3705
  %v4028 = vpop.f32.mrb[0].mxu0
  %v4029 = vadd.f32 0.0, %v4028
  %v4030 = vpop.f32.mrb[0].mxu0
  %v4031 = vpop.f32.mrb[0].mxu0
  %v4032 = vadd.f32 0.0, %v4031
  %v4033 = vpop.f32.mrb[0].mxu0
  %4034 = vmatprep.mubr.bf16.mxu0 %v3710
  %4035 = vmatmul.mubr.bf16.gmra.mrb[0].mxu0 %v3709
  %v4036 = vpop.f32.mrb[0].mxu0
  %v4037 = vadd.f32 0.0, %v4036
  %v4038 = vpop.f32.mrb[0].mxu0
  %v4039 = vpop.f32.mrb[0].mxu0
  %v4040 = vadd.f32 0.0, %v4039
  %v4041 = vpop.f32.mrb[0].mxu0
  %4042 = vmatprep.mubr.bf16.mxu0 %v3714
  %4043 = vmatmul.mubr.bf16.gmra.mrb[0].mxu0 %v3713
  %v4044 = vpop.f32.mrb[0].mxu0
  %v4045 = vadd.f32 0.0, %v4044
  %v4046 = vpop.f32.mrb[0].mxu0
  %v4047 = vpop.f32.mrb[0].mxu0
  %v4048 = vadd.f32 0.0, %v4047
  %v4049 = vpop.f32.mrb[0].mxu0
  %4050 = vmatprep.mubr.bf16.mxu0 %v3718
  %4051 = vmatmul.mubr.bf16.gmra.mrb[0].mxu0 %v3717
  %v4052 = vpop.f32.mrb[0].mxu0
  %v4053 = vadd.f32 0.0, %v4052
  %v4054 = vpop.f32.mrb[0].mxu0
  %v4055 = vpop.f32.mrb[0].mxu0
  %v4056 = vadd.f32 0.0, %v4055
  %v4057 = vpop.f32.mrb[0].mxu0
  %4058 = vmatprep.mubr.bf16.mxu0 %v3722
  %4059 = vmatmul.mubr.bf16.gmra.mrb[0].mxu0 %v3721
  %v4060 = vpop.f32.mrb[0].mxu0
  %v4061 = vadd.f32 0.0, %v4060
  %v4062 = vpop.f32.mrb[0].mxu0
  %v4063 = vpop.f32.mrb[0].mxu0
  %v4064 = vadd.f32 0.0, %v4063
  %v4065 = vpop.f32.mrb[0].mxu0
  %4066 = vmatprep.mubr.bf16.mxu0 %v3726
  %4067 = vmatmul.mubr.bf16.gmra.mrb[0].mxu0 %v3725
  %v4068 = vpop.f32.mrb[0].mxu0
  %v4069 = vadd.f32 0.0, %v4068
  %v4070 = vpop.f32.mrb[0].mxu0
  %v4071 = vpop.f32.mrb[0].mxu0
  %v4072 = vadd.f32 0.0, %v4071
  %v4073 = vpop.f32.mrb[0].mxu0
  %4074 = vmatprep.mubr.bf16.mxu0 %v3730
  %4075 = vmatmul.mubr.bf16.gmra.mrb[0].mxu0 %v3729
  %v4076 = vpop.f32.mrb[0].mxu0
  %v4077 = vadd.f32 0.0, %v4076
  %v4078 = vpop.f32.mrb[0].mxu0
  %v4079 = vpop.f32.mrb[0].mxu0
  %v4080 = vadd.f32 0.0, %v4079
  %v4081 = vpop.f32.mrb[0].mxu0
  %4082 = vmatprep.mubr.bf16.mxu0 %v3734
  %4083 = vmatmul.mubr.bf16.gmra.mrb[0].mxu0 %v3733
  %v4084 = vpop.f32.mrb[0].mxu0
  %v4085 = vadd.f32 0.0, %v4084
  %v4086 = vpop.f32.mrb[0].mxu0
  %v4087 = vpop.f32.mrb[0].mxu0
  %v4088 = vadd.f32 0.0, %v4087
  %v4089 = vpop.f32.mrb[0].mxu0
  %4090 = vdwg.mxu0
  %4091 = vmatprep.subr.bf16.mxu0 0
  %4092 = vmatpush1.bf16.msra.mxu0 %v3946
  %4093 = vmatprep.subr.bf16.mxu0 0
  %4094 = vmatpush1.bf16.msra.mxu0 %v3947
  %4095 = vmatprep.subr.bf16.mxu0 0
  %4096 = vmatpush1.bf16.msra.mxu0 %v3948
  %4097 = vmatprep.subr.bf16.mxu0 0
  %4098 = vmatpush1.bf16.msra.mxu0 %v3949
  %4099 = vmatprep.subr.bf16.mxu0 0
  %4100 = vmatpush1.bf16.msra.mxu0 %v3950
  %4101 = vmatprep.subr.bf16.mxu0 0
  %4102 = vmatpush1.bf16.msra.mxu0 %v3951
  %4103 = vmatprep.subr.bf16.mxu0 0
  %4104 = vmatpush1.bf16.msra.mxu0 %v3952
  %4105 = vmatprep.subr.bf16.mxu0 0
  %4106 = vmatpush1.bf16.msra.mxu0 %v3953
  %4107 = vmatprep.subr.bf16.mxu0 0
  %4108 = vmatpush1.bf16.msra.mxu0 %v3954
  %4109 = vmatprep.subr.bf16.mxu0 0
  %4110 = vmatpush1.bf16.msra.mxu0 %v3955
  %4111 = vmatprep.subr.bf16.mxu0 0
  %4112 = vmatpush1.bf16.msra.mxu0 %v3956
  %4113 = vmatprep.subr.bf16.mxu0 0
  %4114 = vmatpush1.bf16.msra.mxu0 %v3957
  %4115 = vmatprep.subr.bf16.mxu0 0
  %4116 = vmatpush1.bf16.msra.mxu0 %v3958
  %4117 = vmatprep.subr.bf16.mxu0 0
  %4118 = vmatpush1.bf16.msra.mxu0 %v3959
  %4119 = vmatprep.subr.bf16.mxu0 0
  %4120 = vmatpush1.bf16.msra.mxu0 %v3960
  %4121 = vmatprep.subr.bf16.mxu0 0
  %4122 = vmatpush1.bf16.msra.mxu0 %v3961
  %4123 = vmatprep.mubr.bf16.mxu0 %v3708
  %4124 = vmatmul.mubr.bf16.gmra.mrb[0].mxu0 %v3707
  %v4125 = vpop.f32.mrb[0].mxu0
  %v4126 = vadd.f32 %v4029, %v4125
  %v4127 = vpop.f32.mrb[0].mxu0
  %v4128 = vpop.f32.mrb[0].mxu0
  %v4129 = vadd.f32 %v4032, %v4128
  %v4130 = vpop.f32.mrb[0].mxu0
  %4131 = vmatprep.mubr.bf16.mxu0 %v3712
  %4132 = vmatmul.mubr.bf16.gmra.mrb[0].mxu0 %v3711
  %v4133 = vpop.f32.mrb[0].mxu0
  %v4134 = vadd.f32 %v4037, %v4133
  %v4135 = vpop.f32.mrb[0].mxu0
  %v4136 = vpop.f32.mrb[0].mxu0
  %v4137 = vadd.f32 %v4040, %v4136
  %v4138 = vpop.f32.mrb[0].mxu0
  %4139 = vmatprep.mubr.bf16.mxu0 %v3716
  %4140 = vmatmul.mubr.bf16.gmra.mrb[0].mxu0 %v3715
  %v4141 = vpop.f32.mrb[0].mxu0
  %v4142 = vadd.f32 %v4045, %v4141
  %v4143 = vpop.f32.mrb[0].mxu0
  %v4144 = vpop.f32.mrb[0].mxu0
  %v4145 = vadd.f32 %v4048, %v4144
  %v4146 = vpop.f32.mrb[0].mxu0
  %4147 = vmatprep.mubr.bf16.mxu0 %v3720
  %4148 = vmatmul.mubr.bf16.gmra.mrb[0].mxu0 %v3719
  %v4149 = vpop.f32.mrb[0].mxu0
  %v4150 = vadd.f32 %v4053, %v4149
  %v4151 = vpop.f32.mrb[0].mxu0
  %v4152 = vpop.f32.mrb[0].mxu0
  %v4153 = vadd.f32 %v4056, %v4152
  %v4154 = vpop.f32.mrb[0].mxu0
  %4155 = vmatprep.mubr.bf16.mxu0 %v3724
  %4156 = vmatmul.mubr.bf16.gmra.mrb[0].mxu0 %v3723
  %v4157 = vpop.f32.mrb[0].mxu0
  %v4158 = vadd.f32 %v4061, %v4157
  %v4159 = vpop.f32.mrb[0].mxu0
  %v4160 = vpop.f32.mrb[0].mxu0
  %v4161 = vadd.f32 %v4064, %v4160
  %v4162 = vpop.f32.mrb[0].mxu0
  %4163 = vmatprep.mubr.bf16.mxu0 %v3728
  %4164 = vmatmul.mubr.bf16.gmra.mrb[0].mxu0 %v3727
  %v4165 = vpop.f32.mrb[0].mxu0
  %v4166 = vadd.f32 %v4069, %v4165
  %v4167 = vpop.f32.mrb[0].mxu0
  %v4168 = vpop.f32.mrb[0].mxu0
  %v4169 = vadd.f32 %v4072, %v4168
  %v4170 = vpop.f32.mrb[0].mxu0
  %4171 = vmatprep.mubr.bf16.mxu0 %v3732
  %4172 = vmatmul.mubr.bf16.gmra.mrb[0].mxu0 %v3731
  %v4173 = vpop.f32.mrb[0].mxu0
  %v4174 = vadd.f32 %v4077, %v4173
  %v4175 = vpop.f32.mrb[0].mxu0
  %v4176 = vpop.f32.mrb[0].mxu0
  %v4177 = vadd.f32 %v4080, %v4176
  %v4178 = vpop.f32.mrb[0].mxu0
  %4179 = vmatprep.mubr.bf16.mxu0 %v3736
  %4180 = vmatmul.mubr.bf16.gmra.mrb[0].mxu0 %v3735
  %v4181 = vpop.f32.mrb[0].mxu0
  %v4182 = vadd.f32 %v4085, %v4181
  %v4183 = vpop.f32.mrb[0].mxu0
  %v4184 = vpop.f32.mrb[0].mxu0
  %v4185 = vadd.f32 %v4088, %v4184
  %v4186 = vpop.f32.mrb[0].mxu0
  %4187 = vdwg.mxu0
  %v4188 = vpack.c.bf16 %v4129, %v4126
  %v4189 = vpack.c.bf16 %v4137, %v4134
  %v4190 = vpack.c.bf16 %v4145, %v4142
  %v4191 = vpack.c.bf16 %v4153, %v4150
  %v4192 = vpack.c.bf16 %v4161, %v4158
  %v4193 = vpack.c.bf16 %v4169, %v4166
  %v4194 = vpack.c.bf16 %v4177, %v4174
  %v4195 = vpack.c.bf16 %v4185, %v4182
  %v4204 = vunpack.c.l.b16 %v4188
  %v4205 = vunpack.c.h.b16 %v4188
  %v4206 = vunpack.c.l.b16 %v4189
  %v4207 = vunpack.c.h.b16 %v4189
  %v4208 = vunpack.c.l.b16 %v4190
  %v4209 = vunpack.c.h.b16 %v4190
  %v4210 = vunpack.c.l.b16 %v4191
  %v4211 = vunpack.c.h.b16 %v4191
  %v4212 = vunpack.c.l.b16 %v4192
  %v4213 = vunpack.c.h.b16 %v4192
  %v4214 = vunpack.c.l.b16 %v4193
  %v4215 = vunpack.c.h.b16 %v4193
  %v4216 = vunpack.c.l.b16 %v4194
  %v4217 = vunpack.c.h.b16 %v4194
  %v4218 = vunpack.c.l.b16 %v4195
  %v4219 = vunpack.c.h.b16 %v4195
  %v4220 = vpack.c.b16 %v4204, %v4204
  %v4221 = vpack.c.b16 %v4205, %v4205
  %v4222 = vpack.c.b16 %v4206, %v4206
  %v4223 = vpack.c.b16 %v4207, %v4207
  %v4224 = vpack.c.b16 %v4208, %v4208
  %v4225 = vpack.c.b16 %v4209, %v4209
  %v4226 = vpack.c.b16 %v4210, %v4210
  %v4227 = vpack.c.b16 %v4211, %v4211
  %v4228 = vpack.c.b16 %v4212, %v4212
  %v4229 = vpack.c.b16 %v4213, %v4213
  %v4230 = vpack.c.b16 %v4214, %v4214
  %v4231 = vpack.c.b16 %v4215, %v4215
  %v4232 = vpack.c.b16 %v4216, %v4216
  %v4233 = vpack.c.b16 %v4217, %v4217
  %v4234 = vpack.c.b16 %v4218, %v4218
  %v4235 = vpack.c.b16 %v4219, %v4219
  %s4252 = scalar_lea.vmem %s3, 32
  %4253 = vst [vmem:[%s4252] sm:$0xf] %v4220
  %4254 = vst [vmem:[%s4252 + $0x4] sm:$0xf] %v4221
  %4255 = vst [vmem:[%s4252 + $0x8] sm:$0xf] %v4222
  %4256 = vst [vmem:[%s4252 + $0xc] sm:$0xf] %v4223
  %4257 = vst [vmem:[%s4252 + $0x10] sm:$0xf] %v4224
  %4258 = vst [vmem:[%s4252 + $0x14] sm:$0xf] %v4225
  %4259 = vst [vmem:[%s4252 + $0x18] sm:$0xf] %v4226
  %4260 = vst [vmem:[%s4252 + $0x1c] sm:$0xf] %v4227
  %4261 = vst [vmem:[%s4252 + $0x80] sm:$0xf] %v4228
  %4262 = vst [vmem:[%s4252 + $0x84] sm:$0xf] %v4229
  %4263 = vst [vmem:[%s4252 + $0x88] sm:$0xf] %v4230
  %4264 = vst [vmem:[%s4252 + $0x8c] sm:$0xf] %v4231
  %4265 = vst [vmem:[%s4252 + $0x90] sm:$0xf] %v4232
  %4266 = vst [vmem:[%s4252 + $0x94] sm:$0xf] %v4233
  %4267 = vst [vmem:[%s4252 + $0x98] sm:$0xf] %v4234
  %4268 = vst [vmem:[%s4252 + $0x9c] sm:$0xf] %v4235
  %v4269 = vadd.f32 %v4126, %v4129
  %v4270 = vadd.f32 %v4269, %v4134
  %v4271 = vadd.f32 %v4270, %v4137
  %v4272 = vadd.f32 %v4271, %v4142
  %v4273 = vadd.f32 %v4272, %v4145
  %v4274 = vadd.f32 %v4273, %v4150
  %v4275 = vadd.f32 %v4274, %v4153
  %v4276 = vadd.f32 %v4275, %v4158
  %v4277 = vadd.f32 %v4276, %v4161
  %v4278 = vadd.f32 %v4277, %v4166
  %v4279 = vadd.f32 %v4278, %v4169
  %v4280 = vadd.f32 %v4279, %v4174
  %v4281 = vadd.f32 %v4280, %v4177
  %v4282 = vadd.f32 %v4281, %v4182
  %v4283 = vadd.f32 %v4282, %v4185
  %v4284 = vrot.slane %v4283, 4
  %v4285 = vadd.f32 %v4283, %v4284
  %v4286 = vrot.slane %v4285, 2
  %v4287 = vadd.f32 %v4285, %v4286
  %v4288 = vrot.slane %v4287, 1
  %v4289 = vadd.f32 %v4287, %v4288
  %v4290 = vadd.f32 %v2735, %v4289
  %v4291 = vmul.f32 %v4126, %v4126
  %v4292 = vmul.f32 %v4129, %v4129
  %v4293 = vmul.f32 %v4134, %v4134
  %v4294 = vmul.f32 %v4137, %v4137
  %v4295 = vmul.f32 %v4142, %v4142
  %v4296 = vmul.f32 %v4145, %v4145
  %v4297 = vmul.f32 %v4150, %v4150
  %v4298 = vmul.f32 %v4153, %v4153
  %v4299 = vmul.f32 %v4158, %v4158
  %v4300 = vmul.f32 %v4161, %v4161
  %v4301 = vmul.f32 %v4166, %v4166
  %v4302 = vmul.f32 %v4169, %v4169
  %v4303 = vmul.f32 %v4174, %v4174
  %v4304 = vmul.f32 %v4177, %v4177
  %v4305 = vmul.f32 %v4182, %v4182
  %v4306 = vmul.f32 %v4185, %v4185
  %v4307 = vadd.f32 %v4291, %v4292
  %v4308 = vadd.f32 %v4307, %v4293
  %v4309 = vadd.f32 %v4308, %v4294
  %v4310 = vadd.f32 %v4309, %v4295
  %v4311 = vadd.f32 %v4310, %v4296
  %v4312 = vadd.f32 %v4311, %v4297
  %v4313 = vadd.f32 %v4312, %v4298
  %v4314 = vadd.f32 %v4313, %v4299
  %v4315 = vadd.f32 %v4314, %v4300
  %v4316 = vadd.f32 %v4315, %v4301
  %v4317 = vadd.f32 %v4316, %v4302
  %v4318 = vadd.f32 %v4317, %v4303
  %v4319 = vadd.f32 %v4318, %v4304
  %v4320 = vadd.f32 %v4319, %v4305
  %v4321 = vadd.f32 %v4320, %v4306
  %v4322 = vrot.slane %v4321, 4
  %v4323 = vadd.f32 %v4321, %v4322
  %v4324 = vrot.slane %v4323, 2
  %v4325 = vadd.f32 %v4323, %v4324
  %v4326 = vrot.slane %v4325, 1
  %v4327 = vadd.f32 %v4325, %v4326
  %v4328 = vadd.f32 %v2773, %v4327
  %v4329 = vld [vmem:[%s1313] sm:$0xf]
  %v4330 = vld [vmem:[%s1313 + $0x8] sm:$0xf]
  %v4331 = vld [vmem:[%s1313 + $0x10] sm:$0xf]
  %v4332 = vld [vmem:[%s1313 + $0x18] sm:$0xf]
  %v4333 = vld [vmem:[%s1313 + $0x20] sm:$0xf]
  %v4334 = vld [vmem:[%s1313 + $0x28] sm:$0xf]
  %v4335 = vld [vmem:[%s1313 + $0x30] sm:$0xf]
  %v4336 = vld [vmem:[%s1313 + $0x38] sm:$0xf]
  %v4337 = vld [vmem:[%s1313 + $0x50] sm:$0xf]
  %v4338 = vld [vmem:[%s1313 + $0x58] sm:$0xf]
  %v4339 = vld [vmem:[%s1313 + $0x60] sm:$0xf]
  %v4340 = vld [vmem:[%s1313 + $0x68] sm:$0xf]
  %v4341 = vld [vmem:[%s1313 + $0x70] sm:$0xf]
  %v4342 = vld [vmem:[%s1313 + $0x78] sm:$0xf]
  %v4343 = vld [vmem:[%s1313 + $0x80] sm:$0xf]
  %v4344 = vld [vmem:[%s1313 + $0x88] sm:$0xf]
  %v4361 = vunpack.c.l.b16 %v4329
  %v4362 = vunpack.c.l.b16 %v4330
  %v4363 = vunpack.c.l.b16 %v4331
  %v4364 = vunpack.c.l.b16 %v4332
  %v4365 = vunpack.c.l.b16 %v4333
  %v4366 = vunpack.c.l.b16 %v4334
  %v4367 = vunpack.c.l.b16 %v4335
  %v4368 = vunpack.c.l.b16 %v4336
  %v4369 = vunpack.c.l.b16 %v4337
  %v4370 = vunpack.c.l.b16 %v4338
  %v4371 = vunpack.c.l.b16 %v4339
  %v4372 = vunpack.c.l.b16 %v4340
  %v4373 = vunpack.c.l.b16 %v4341
  %v4374 = vunpack.c.l.b16 %v4342
  %v4375 = vunpack.c.l.b16 %v4343
  %v4376 = vunpack.c.l.b16 %v4344
  %v4377 = vpack.c.b16 %v4362, %v4361
  %v4378 = vpack.c.b16 %v4364, %v4363
  %v4379 = vpack.c.b16 %v4366, %v4365
  %v4380 = vpack.c.b16 %v4368, %v4367
  %v4381 = vpack.c.b16 %v4370, %v4369
  %v4382 = vpack.c.b16 %v4372, %v4371
  %v4383 = vpack.c.b16 %v4374, %v4373
  %v4384 = vpack.c.b16 %v4376, %v4375
  %4393 = vst [vmem:[#allocation4] sm:$0xff] %v4377
  %4394 = vst [vmem:[#allocation4 + $0x20] sm:$0xff] %v4378
  %4395 = vst [vmem:[#allocation4 + $0x40] sm:$0xff] %v4379
  %4396 = vst [vmem:[#allocation4 + $0x60] sm:$0xff] %v4380
  %4397 = vst [vmem:[#allocation4 + $0x80] sm:$0xff] %v4381
  %4398 = vst [vmem:[#allocation4 + $0xa0] sm:$0xff] %v4382
  %4399 = vst [vmem:[#allocation4 + $0xc0] sm:$0xff] %v4383
  %4400 = vst [vmem:[#allocation4 + $0xe0] sm:$0xff] %v4384
  %v4401 = vld [vmem:[%s1313] sm:$0xf]
  %v4402 = vld [vmem:[%s1313 + $0x4] sm:$0x1]
  %v4403 = vld [vmem:[%s1313 + $0x8] sm:$0xf]
  %v4404 = vld [vmem:[%s1313 + $0xc] sm:$0x1]
  %v4405 = vld [vmem:[%s1313 + $0x10] sm:$0xf]
  %v4406 = vld [vmem:[%s1313 + $0x14] sm:$0x1]
  %v4407 = vld [vmem:[%s1313 + $0x18] sm:$0xf]
  %v4408 = vld [vmem:[%s1313 + $0x1c] sm:$0x1]
  %v4409 = vld [vmem:[%s1313 + $0x20] sm:$0xf]
  %v4410 = vld [vmem:[%s1313 + $0x24] sm:$0x1]
  %v4411 = vld [vmem:[%s1313 + $0x28] sm:$0xf]
  %v4412 = vld [vmem:[%s1313 + $0x2c] sm:$0x1]
  %v4413 = vld [vmem:[%s1313 + $0x30] sm:$0xf]
  %v4414 = vld [vmem:[%s1313 + $0x34] sm:$0x1]
  %v4415 = vld [vmem:[%s1313 + $0x38] sm:$0xf]
  %v4416 = vld [vmem:[%s1313 + $0x3c] sm:$0x1]
  %v4417 = vld [vmem:[%s1313 + $0x50] sm:$0xf]
  %v4418 = vld [vmem:[%s1313 + $0x54] sm:$0x1]
  %v4419 = vld [vmem:[%s1313 + $0x58] sm:$0xf]
  %v4420 = vld [vmem:[%s1313 + $0x5c] sm:$0x1]
  %v4421 = vld [vmem:[%s1313 + $0x60] sm:$0xf]
  %v4422 = vld [vmem:[%s1313 + $0x64] sm:$0x1]
  %v4423 = vld [vmem:[%s1313 + $0x68] sm:$0xf]
  %v4424 = vld [vmem:[%s1313 + $0x6c] sm:$0x1]
  %v4425 = vld [vmem:[%s1313 + $0x70] sm:$0xf]
  %v4426 = vld [vmem:[%s1313 + $0x74] sm:$0x1]
  %v4427 = vld [vmem:[%s1313 + $0x78] sm:$0xf]
  %v4428 = vld [vmem:[%s1313 + $0x7c] sm:$0x1]
  %v4429 = vld [vmem:[%s1313 + $0x80] sm:$0xf]
  %v4430 = vld [vmem:[%s1313 + $0x84] sm:$0x1]
  %v4431 = vld [vmem:[%s1313 + $0x88] sm:$0xf]
  %v4432 = vld [vmem:[%s1313 + $0x8c] sm:$0x1]
  %v4434 = vshrl.u32 %v4401, 16
  %v4436 = vrot.slane %v4434, 4
  %v4437 = vshll.u32 %v4401, 16
  %v4439 = vrot.slane %v4437, 5
  %v4440 = vor.u32 %v4436, %v4439
  %v4441 = vrot.slane %v4440, 4
  %v4443 = vshll.u32 %v4402, 16
  %v4445 = vrot.slane %v4443, 5
  %v4446 = vsel %vm220, %v4441, %v4445
  %v4448 = vshrl.u32 %v4403, 16
  %v4450 = vrot.slane %v4448, 4
  %v4451 = vshll.u32 %v4403, 16
  %v4453 = vrot.slane %v4451, 5
  %v4454 = vor.u32 %v4450, %v4453
  %v4455 = vrot.slane %v4454, 4
  %v4457 = vshll.u32 %v4404, 16
  %v4459 = vrot.slane %v4457, 5
  %v4460 = vsel %vm220, %v4455, %v4459
  %v4462 = vshrl.u32 %v4405, 16
  %v4464 = vrot.slane %v4462, 4
  %v4465 = vshll.u32 %v4405, 16
  %v4467 = vrot.slane %v4465, 5
  %v4468 = vor.u32 %v4464, %v4467
  %v4469 = vrot.slane %v4468, 4
  %v4471 = vshll.u32 %v4406, 16
  %v4473 = vrot.slane %v4471, 5
  %v4474 = vsel %vm220, %v4469, %v4473
  %v4476 = vshrl.u32 %v4407, 16
  %v4478 = vrot.slane %v4476, 4
  %v4479 = vshll.u32 %v4407, 16
  %v4481 = vrot.slane %v4479, 5
  %v4482 = vor.u32 %v4478, %v4481
  %v4483 = vrot.slane %v4482, 4
  %v4485 = vshll.u32 %v4408, 16
  %v4487 = vrot.slane %v4485, 5
  %v4488 = vsel %vm220, %v4483, %v4487
  %v4490 = vshrl.u32 %v4409, 16
  %v4492 = vrot.slane %v4490, 4
  %v4493 = vshll.u32 %v4409, 16
  %v4495 = vrot.slane %v4493, 5
  %v4496 = vor.u32 %v4492, %v4495
  %v4497 = vrot.slane %v4496, 4
  %v4499 = vshll.u32 %v4410, 16
  %v4501 = vrot.slane %v4499, 5
  %v4502 = vsel %vm220, %v4497, %v4501
  %v4504 = vshrl.u32 %v4411, 16
  %v4506 = vrot.slane %v4504, 4
  %v4507 = vshll.u32 %v4411, 16
  %v4509 = vrot.slane %v4507, 5
  %v4510 = vor.u32 %v4506, %v4509
  %v4511 = vrot.slane %v4510, 4
  %v4513 = vshll.u32 %v4412, 16
  %v4515 = vrot.slane %v4513, 5
  %v4516 = vsel %vm220, %v4511, %v4515
  %v4518 = vshrl.u32 %v4413, 16
  %v4520 = vrot.slane %v4518, 4
  %v4521 = vshll.u32 %v4413, 16
  %v4523 = vrot.slane %v4521, 5
  %v4524 = vor.u32 %v4520, %v4523
  %v4525 = vrot.slane %v4524, 4
  %v4527 = vshll.u32 %v4414, 16
  %v4529 = vrot.slane %v4527, 5
  %v4530 = vsel %vm220, %v4525, %v4529
  %v4532 = vshrl.u32 %v4415, 16
  %v4534 = vrot.slane %v4532, 4
  %v4535 = vshll.u32 %v4415, 16
  %v4537 = vrot.slane %v4535, 5
  %v4538 = vor.u32 %v4534, %v4537
  %v4539 = vrot.slane %v4538, 4
  %v4541 = vshll.u32 %v4416, 16
  %v4543 = vrot.slane %v4541, 5
  %v4544 = vsel %vm220, %v4539, %v4543
  %v4546 = vshrl.u32 %v4417, 16
  %v4548 = vrot.slane %v4546, 4
  %v4549 = vshll.u32 %v4417, 16
  %v4551 = vrot.slane %v4549, 5
  %v4552 = vor.u32 %v4548, %v4551
  %v4553 = vrot.slane %v4552, 4
  %v4555 = vshll.u32 %v4418, 16
  %v4557 = vrot.slane %v4555, 5
  %v4558 = vsel %vm220, %v4553, %v4557
  %v4560 = vshrl.u32 %v4419, 16
  %v4562 = vrot.slane %v4560, 4
  %v4563 = vshll.u32 %v4419, 16
  %v4565 = vrot.slane %v4563, 5
  %v4566 = vor.u32 %v4562, %v4565
  %v4567 = vrot.slane %v4566, 4
  %v4569 = vshll.u32 %v4420, 16
  %v4571 = vrot.slane %v4569, 5
  %v4572 = vsel %vm220, %v4567, %v4571
  %v4574 = vshrl.u32 %v4421, 16
  %v4576 = vrot.slane %v4574, 4
  %v4577 = vshll.u32 %v4421, 16
  %v4579 = vrot.slane %v4577, 5
  %v4580 = vor.u32 %v4576, %v4579
  %v4581 = vrot.slane %v4580, 4
  %v4583 = vshll.u32 %v4422, 16
  %v4585 = vrot.slane %v4583, 5
  %v4586 = vsel %vm220, %v4581, %v4585
  %v4588 = vshrl.u32 %v4423, 16
  %v4590 = vrot.slane %v4588, 4
  %v4591 = vshll.u32 %v4423, 16
  %v4593 = vrot.slane %v4591, 5
  %v4594 = vor.u32 %v4590, %v4593
  %v4595 = vrot.slane %v4594, 4
  %v4597 = vshll.u32 %v4424, 16
  %v4599 = vrot.slane %v4597, 5
  %v4600 = vsel %vm220, %v4595, %v4599
  %v4602 = vshrl.u32 %v4425, 16
  %v4604 = vrot.slane %v4602, 4
  %v4605 = vshll.u32 %v4425, 16
  %v4607 = vrot.slane %v4605, 5
  %v4608 = vor.u32 %v4604, %v4607
  %v4609 = vrot.slane %v4608, 4
  %v4611 = vshll.u32 %v4426, 16
  %v4613 = vrot.slane %v4611, 5
  %v4614 = vsel %vm220, %v4609, %v4613
  %v4616 = vshrl.u32 %v4427, 16
  %v4618 = vrot.slane %v4616, 4
  %v4619 = vshll.u32 %v4427, 16
  %v4621 = vrot.slane %v4619, 5
  %v4622 = vor.u32 %v4618, %v4621
  %v4623 = vrot.slane %v4622, 4
  %v4625 = vshll.u32 %v4428, 16
  %v4627 = vrot.slane %v4625, 5
  %v4628 = vsel %vm220, %v4623, %v4627
  %v4630 = vshrl.u32 %v4429, 16
  %v4632 = vrot.slane %v4630, 4
  %v4633 = vshll.u32 %v4429, 16
  %v4635 = vrot.slane %v4633, 5
  %v4636 = vor.u32 %v4632, %v4635
  %v4637 = vrot.slane %v4636, 4
  %v4639 = vshll.u32 %v4430, 16
  %v4641 = vrot.slane %v4639, 5
  %v4642 = vsel %vm220, %v4637, %v4641
  %v4644 = vshrl.u32 %v4431, 16
  %v4646 = vrot.slane %v4644, 4
  %v4647 = vshll.u32 %v4431, 16
  %v4649 = vrot.slane %v4647, 5
  %v4650 = vor.u32 %v4646, %v4649
  %v4651 = vrot.slane %v4650, 4
  %v4653 = vshll.u32 %v4432, 16
  %v4655 = vrot.slane %v4653, 5
  %v4656 = vsel %vm220, %v4651, %v4655
  %v4657 = vunpack.c.l.b16 %v4446
  %v4658 = vunpack.c.l.b16 %v4460
  %v4659 = vunpack.c.l.b16 %v4474
  %v4660 = vunpack.c.l.b16 %v4488
  %v4661 = vunpack.c.l.b16 %v4502
  %v4662 = vunpack.c.l.b16 %v4516
  %v4663 = vunpack.c.l.b16 %v4530
  %v4664 = vunpack.c.l.b16 %v4544
  %v4665 = vunpack.c.l.b16 %v4558
  %v4666 = vunpack.c.l.b16 %v4572
  %v4667 = vunpack.c.l.b16 %v4586
  %v4668 = vunpack.c.l.b16 %v4600
  %v4669 = vunpack.c.l.b16 %v4614
  %v4670 = vunpack.c.l.b16 %v4628
  %v4671 = vunpack.c.l.b16 %v4642
  %v4672 = vunpack.c.l.b16 %v4656
  %v4673 = vpack.c.b16 %v4658, %v4657
  %v4674 = vpack.c.b16 %v4660, %v4659
  %v4675 = vpack.c.b16 %v4662, %v4661
  %v4676 = vpack.c.b16 %v4664, %v4663
  %v4677 = vpack.c.b16 %v4666, %v4665
  %v4678 = vpack.c.b16 %v4668, %v4667
  %v4679 = vpack.c.b16 %v4670, %v4669
  %v4680 = vpack.c.b16 %v4672, %v4671
  %4689 = vst [vmem:[#allocation4 + $0x8] sm:$0xff] %v4673
  %4690 = vst [vmem:[#allocation4 + $0x28] sm:$0xff] %v4674
  %4691 = vst [vmem:[#allocation4 + $0x48] sm:$0xff] %v4675
  %4692 = vst [vmem:[#allocation4 + $0x68] sm:$0xff] %v4676
  %4693 = vst [vmem:[#allocation4 + $0x88] sm:$0xff] %v4677
  %4694 = vst [vmem:[#allocation4 + $0xa8] sm:$0xff] %v4678
  %4695 = vst [vmem:[#allocation4 + $0xc8] sm:$0xff] %v4679
  %4696 = vst [vmem:[#allocation4 + $0xe8] sm:$0xff] %v4680
  %s4697 = scalar_lea.vmem [#allocation2], 16
  %v4698 = vld [vmem:[%s4697] sm:$0xf]
  %v4699 = vld [vmem:[%s4697 + $0x8] sm:$0xf]
  %v4700 = vld [vmem:[%s4697 + $0x10] sm:$0xf]
  %v4701 = vld [vmem:[%s4697 + $0x18] sm:$0xf]
  %v4702 = vld [vmem:[%s4697 + $0x20] sm:$0xf]
  %v4703 = vld [vmem:[%s4697 + $0x28] sm:$0xf]
  %v4704 = vld [vmem:[%s4697 + $0x30] sm:$0xf]
  %v4705 = vld [vmem:[%s4697 + $0x38] sm:$0xf]
  %v4706 = vld [vmem:[%s4697 + $0x50] sm:$0xf]
  %v4707 = vld [vmem:[%s4697 + $0x58] sm:$0xf]
  %v4708 = vld [vmem:[%s4697 + $0x60] sm:$0xf]
  %v4709 = vld [vmem:[%s4697 + $0x68] sm:$0xf]
  %v4710 = vld [vmem:[%s4697 + $0x70] sm:$0xf]
  %v4711 = vld [vmem:[%s4697 + $0x78] sm:$0xf]
  %v4712 = vld [vmem:[%s4697 + $0x80] sm:$0xf]
  %v4713 = vld [vmem:[%s4697 + $0x88] sm:$0xf]
  %v4730 = vunpack.c.l.b16 %v4698
  %v4731 = vunpack.c.l.b16 %v4699
  %v4732 = vunpack.c.l.b16 %v4700
  %v4733 = vunpack.c.l.b16 %v4701
  %v4734 = vunpack.c.l.b16 %v4702
  %v4735 = vunpack.c.l.b16 %v4703
  %v4736 = vunpack.c.l.b16 %v4704
  %v4737 = vunpack.c.l.b16 %v4705
  %v4738 = vunpack.c.l.b16 %v4706
  %v4739 = vunpack.c.l.b16 %v4707
  %v4740 = vunpack.c.l.b16 %v4708
  %v4741 = vunpack.c.l.b16 %v4709
  %v4742 = vunpack.c.l.b16 %v4710
  %v4743 = vunpack.c.l.b16 %v4711
  %v4744 = vunpack.c.l.b16 %v4712
  %v4745 = vunpack.c.l.b16 %v4713
  %v4746 = vpack.c.b16 %v4731, %v4730
  %v4747 = vpack.c.b16 %v4733, %v4732
  %v4748 = vpack.c.b16 %v4735, %v4734
  %v4749 = vpack.c.b16 %v4737, %v4736
  %v4750 = vpack.c.b16 %v4739, %v4738
  %v4751 = vpack.c.b16 %v4741, %v4740
  %v4752 = vpack.c.b16 %v4743, %v4742
  %v4753 = vpack.c.b16 %v4745, %v4744
  %4762 = vst [vmem:[#allocation4 + $0x10] sm:$0xff] %v4746
  %4763 = vst [vmem:[#allocation4 + $0x30] sm:$0xff] %v4747
  %4764 = vst [vmem:[#allocation4 + $0x50] sm:$0xff] %v4748
  %4765 = vst [vmem:[#allocation4 + $0x70] sm:$0xff] %v4749
  %4766 = vst [vmem:[#allocation4 + $0x90] sm:$0xff] %v4750
  %4767 = vst [vmem:[#allocation4 + $0xb0] sm:$0xff] %v4751
  %4768 = vst [vmem:[#allocation4 + $0xd0] sm:$0xff] %v4752
  %4769 = vst [vmem:[#allocation4 + $0xf0] sm:$0xff] %v4753
  %v4770 = vld [vmem:[%s4697] sm:$0xf]
  %v4771 = vld [vmem:[%s4697 + $0x4] sm:$0x1]
  %v4772 = vld [vmem:[%s4697 + $0x8] sm:$0xf]
  %v4773 = vld [vmem:[%s4697 + $0xc] sm:$0x1]
  %v4774 = vld [vmem:[%s4697 + $0x10] sm:$0xf]
  %v4775 = vld [vmem:[%s4697 + $0x14] sm:$0x1]
  %v4776 = vld [vmem:[%s4697 + $0x18] sm:$0xf]
  %v4777 = vld [vmem:[%s4697 + $0x1c] sm:$0x1]
  %v4778 = vld [vmem:[%s4697 + $0x20] sm:$0xf]
  %v4779 = vld [vmem:[%s4697 + $0x24] sm:$0x1]
  %v4780 = vld [vmem:[%s4697 + $0x28] sm:$0xf]
  %v4781 = vld [vmem:[%s4697 + $0x2c] sm:$0x1]
  %v4782 = vld [vmem:[%s4697 + $0x30] sm:$0xf]
  %v4783 = vld [vmem:[%s4697 + $0x34] sm:$0x1]
  %v4784 = vld [vmem:[%s4697 + $0x38] sm:$0xf]
  %v4785 = vld [vmem:[%s4697 + $0x3c] sm:$0x1]
  %v4786 = vld [vmem:[%s4697 + $0x50] sm:$0xf]
  %v4787 = vld [vmem:[%s4697 + $0x54] sm:$0x1]
  %v4788 = vld [vmem:[%s4697 + $0x58] sm:$0xf]
  %v4789 = vld [vmem:[%s4697 + $0x5c] sm:$0x1]
  %v4790 = vld [vmem:[%s4697 + $0x60] sm:$0xf]
  %v4791 = vld [vmem:[%s4697 + $0x64] sm:$0x1]
  %v4792 = vld [vmem:[%s4697 + $0x68] sm:$0xf]
  %v4793 = vld [vmem:[%s4697 + $0x6c] sm:$0x1]
  %v4794 = vld [vmem:[%s4697 + $0x70] sm:$0xf]
  %v4795 = vld [vmem:[%s4697 + $0x74] sm:$0x1]
  %v4796 = vld [vmem:[%s4697 + $0x78] sm:$0xf]
  %v4797 = vld [vmem:[%s4697 + $0x7c] sm:$0x1]
  %v4798 = vld [vmem:[%s4697 + $0x80] sm:$0xf]
  %v4799 = vld [vmem:[%s4697 + $0x84] sm:$0x1]
  %v4800 = vld [vmem:[%s4697 + $0x88] sm:$0xf]
  %v4801 = vld [vmem:[%s4697 + $0x8c] sm:$0x1]
  %v4803 = vshrl.u32 %v4770, 16
  %v4805 = vrot.slane %v4803, 4
  %v4806 = vshll.u32 %v4770, 16
  %v4808 = vrot.slane %v4806, 5
  %v4809 = vor.u32 %v4805, %v4808
  %v4810 = vrot.slane %v4809, 4
  %v4812 = vshll.u32 %v4771, 16
  %v4814 = vrot.slane %v4812, 5
  %v4815 = vsel %vm220, %v4810, %v4814
  %v4817 = vshrl.u32 %v4772, 16
  %v4819 = vrot.slane %v4817, 4
  %v4820 = vshll.u32 %v4772, 16
  %v4822 = vrot.slane %v4820, 5
  %v4823 = vor.u32 %v4819, %v4822
  %v4824 = vrot.slane %v4823, 4
  %v4826 = vshll.u32 %v4773, 16
  %v4828 = vrot.slane %v4826, 5
  %v4829 = vsel %vm220, %v4824, %v4828
  %v4831 = vshrl.u32 %v4774, 16
  %v4833 = vrot.slane %v4831, 4
  %v4834 = vshll.u32 %v4774, 16
  %v4836 = vrot.slane %v4834, 5
  %v4837 = vor.u32 %v4833, %v4836
  %v4838 = vrot.slane %v4837, 4
  %v4840 = vshll.u32 %v4775, 16
  %v4842 = vrot.slane %v4840, 5
  %v4843 = vsel %vm220, %v4838, %v4842
  %v4845 = vshrl.u32 %v4776, 16
  %v4847 = vrot.slane %v4845, 4
  %v4848 = vshll.u32 %v4776, 16
  %v4850 = vrot.slane %v4848, 5
  %v4851 = vor.u32 %v4847, %v4850
  %v4852 = vrot.slane %v4851, 4
  %v4854 = vshll.u32 %v4777, 16
  %v4856 = vrot.slane %v4854, 5
  %v4857 = vsel %vm220, %v4852, %v4856
  %v4859 = vshrl.u32 %v4778, 16
  %v4861 = vrot.slane %v4859, 4
  %v4862 = vshll.u32 %v4778, 16
  %v4864 = vrot.slane %v4862, 5
  %v4865 = vor.u32 %v4861, %v4864
  %v4866 = vrot.slane %v4865, 4
  %v4868 = vshll.u32 %v4779, 16
  %v4870 = vrot.slane %v4868, 5
  %v4871 = vsel %vm220, %v4866, %v4870
  %v4873 = vshrl.u32 %v4780, 16
  %v4875 = vrot.slane %v4873, 4
  %v4876 = vshll.u32 %v4780, 16
  %v4878 = vrot.slane %v4876, 5
  %v4879 = vor.u32 %v4875, %v4878
  %v4880 = vrot.slane %v4879, 4
  %v4882 = vshll.u32 %v4781, 16
  %v4884 = vrot.slane %v4882, 5
  %v4885 = vsel %vm220, %v4880, %v4884
  %v4887 = vshrl.u32 %v4782, 16
  %v4889 = vrot.slane %v4887, 4
  %v4890 = vshll.u32 %v4782, 16
  %v4892 = vrot.slane %v4890, 5
  %v4893 = vor.u32 %v4889, %v4892
  %v4894 = vrot.slane %v4893, 4
  %v4896 = vshll.u32 %v4783, 16
  %v4898 = vrot.slane %v4896, 5
  %v4899 = vsel %vm220, %v4894, %v4898
  %v4901 = vshrl.u32 %v4784, 16
  %v4903 = vrot.slane %v4901, 4
  %v4904 = vshll.u32 %v4784, 16
  %v4906 = vrot.slane %v4904, 5
  %v4907 = vor.u32 %v4903, %v4906
  %v4908 = vrot.slane %v4907, 4
  %v4910 = vshll.u32 %v4785, 16
  %v4912 = vrot.slane %v4910, 5
  %v4913 = vsel %vm220, %v4908, %v4912
  %v4915 = vshrl.u32 %v4786, 16
  %v4917 = vrot.slane %v4915, 4
  %v4918 = vshll.u32 %v4786, 16
  %v4920 = vrot.slane %v4918, 5
  %v4921 = vor.u32 %v4917, %v4920
  %v4922 = vrot.slane %v4921, 4
  %v4924 = vshll.u32 %v4787, 16
  %v4926 = vrot.slane %v4924, 5
  %v4927 = vsel %vm220, %v4922, %v4926
  %v4929 = vshrl.u32 %v4788, 16
  %v4931 = vrot.slane %v4929, 4
  %v4932 = vshll.u32 %v4788, 16
  %v4934 = vrot.slane %v4932, 5
  %v4935 = vor.u32 %v4931, %v4934
  %v4936 = vrot.slane %v4935, 4
  %v4938 = vshll.u32 %v4789, 16
  %v4940 = vrot.slane %v4938, 5
  %v4941 = vsel %vm220, %v4936, %v4940
  %v4943 = vshrl.u32 %v4790, 16
  %v4945 = vrot.slane %v4943, 4
  %v4946 = vshll.u32 %v4790, 16
  %v4948 = vrot.slane %v4946, 5
  %v4949 = vor.u32 %v4945, %v4948
  %v4950 = vrot.slane %v4949, 4
  %v4952 = vshll.u32 %v4791, 16
  %v4954 = vrot.slane %v4952, 5
  %v4955 = vsel %vm220, %v4950, %v4954
  %v4957 = vshrl.u32 %v4792, 16
  %v4959 = vrot.slane %v4957, 4
  %v4960 = vshll.u32 %v4792, 16
  %v4962 = vrot.slane %v4960, 5
  %v4963 = vor.u32 %v4959, %v4962
  %v4964 = vrot.slane %v4963, 4
  %v4966 = vshll.u32 %v4793, 16
  %v4968 = vrot.slane %v4966, 5
  %v4969 = vsel %vm220, %v4964, %v4968
  %v4971 = vshrl.u32 %v4794, 16
  %v4973 = vrot.slane %v4971, 4
  %v4974 = vshll.u32 %v4794, 16
  %v4976 = vrot.slane %v4974, 5
  %v4977 = vor.u32 %v4973, %v4976
  %v4978 = vrot.slane %v4977, 4
  %v4980 = vshll.u32 %v4795, 16
  %v4982 = vrot.slane %v4980, 5
  %v4983 = vsel %vm220, %v4978, %v4982
  %v4985 = vshrl.u32 %v4796, 16
  %v4987 = vrot.slane %v4985, 4
  %v4988 = vshll.u32 %v4796, 16
  %v4990 = vrot.slane %v4988, 5
  %v4991 = vor.u32 %v4987, %v4990
  %v4992 = vrot.slane %v4991, 4
  %v4994 = vshll.u32 %v4797, 16
  %v4996 = vrot.slane %v4994, 5
  %v4997 = vsel %vm220, %v4992, %v4996
  %v4999 = vshrl.u32 %v4798, 16
  %v5001 = vrot.slane %v4999, 4
  %v5002 = vshll.u32 %v4798, 16
  %v5004 = vrot.slane %v5002, 5
  %v5005 = vor.u32 %v5001, %v5004
  %v5006 = vrot.slane %v5005, 4
  %v5008 = vshll.u32 %v4799, 16
  %v5010 = vrot.slane %v5008, 5
  %v5011 = vsel %vm220, %v5006, %v5010
  %v5013 = vshrl.u32 %v4800, 16
  %v5015 = vrot.slane %v5013, 4
  %v5016 = vshll.u32 %v4800, 16
  %v5018 = vrot.slane %v5016, 5
  %v5019 = vor.u32 %v5015, %v5018
  %v5020 = vrot.slane %v5019, 4
  %v5022 = vshll.u32 %v4801, 16
  %v5024 = vrot.slane %v5022, 5
  %v5025 = vsel %vm220, %v5020, %v5024
  %v5026 = vunpack.c.l.b16 %v4815
  %v5027 = vunpack.c.l.b16 %v4829
  %v5028 = vunpack.c.l.b16 %v4843
  %v5029 = vunpack.c.l.b16 %v4857
  %v5030 = vunpack.c.l.b16 %v4871
  %v5031 = vunpack.c.l.b16 %v4885
  %v5032 = vunpack.c.l.b16 %v4899
  %v5033 = vunpack.c.l.b16 %v4913
  %v5034 = vunpack.c.l.b16 %v4927
  %v5035 = vunpack.c.l.b16 %v4941
  %v5036 = vunpack.c.l.b16 %v4955
  %v5037 = vunpack.c.l.b16 %v4969
  %v5038 = vunpack.c.l.b16 %v4983
  %v5039 = vunpack.c.l.b16 %v4997
  %v5040 = vunpack.c.l.b16 %v5011
  %v5041 = vunpack.c.l.b16 %v5025
  %v5042 = vpack.c.b16 %v5027, %v5026
  %v5043 = vpack.c.b16 %v5029, %v5028
  %v5044 = vpack.c.b16 %v5031, %v5030
  %v5045 = vpack.c.b16 %v5033, %v5032
  %v5046 = vpack.c.b16 %v5035, %v5034
  %v5047 = vpack.c.b16 %v5037, %v5036
  %v5048 = vpack.c.b16 %v5039, %v5038
  %v5049 = vpack.c.b16 %v5041, %v5040
  %5058 = vst [vmem:[#allocation4 + $0x18] sm:$0xff] %v5042
  %5059 = vst [vmem:[#allocation4 + $0x38] sm:$0xff] %v5043
  %5060 = vst [vmem:[#allocation4 + $0x58] sm:$0xff] %v5044
  %5061 = vst [vmem:[#allocation4 + $0x78] sm:$0xff] %v5045
  %5062 = vst [vmem:[#allocation4 + $0x98] sm:$0xff] %v5046
  %5063 = vst [vmem:[#allocation4 + $0xb8] sm:$0xff] %v5047
  %5064 = vst [vmem:[#allocation4 + $0xd8] sm:$0xff] %v5048
  %5065 = vst [vmem:[#allocation4 + $0xf8] sm:$0xff] %v5049
  %v5066 = vld [vmem:[#allocation4] sm:$0xff]
  %v5067 = vld [vmem:[#allocation4 + $0x8] sm:$0xff]
  %v5068 = vld [vmem:[#allocation4 + $0x10] sm:$0xff]
  %v5069 = vld [vmem:[#allocation4 + $0x18] sm:$0xff]
  %v5070 = vld [vmem:[#allocation4 + $0x20] sm:$0xff]
  %v5071 = vld [vmem:[#allocation4 + $0x28] sm:$0xff]
  %v5072 = vld [vmem:[#allocation4 + $0x30] sm:$0xff]
  %v5073 = vld [vmem:[#allocation4 + $0x38] sm:$0xff]
  %v5074 = vld [vmem:[#allocation4 + $0x40] sm:$0xff]
  %v5075 = vld [vmem:[#allocation4 + $0x48] sm:$0xff]
  %v5076 = vld [vmem:[#allocation4 + $0x50] sm:$0xff]
  %v5077 = vld [vmem:[#allocation4 + $0x58] sm:$0xff]
  %v5078 = vld [vmem:[#allocation4 + $0x60] sm:$0xff]
  %v5079 = vld [vmem:[#allocation4 + $0x68] sm:$0xff]
  %v5080 = vld [vmem:[#allocation4 + $0x70] sm:$0xff]
  %v5081 = vld [vmem:[#allocation4 + $0x78] sm:$0xff]
  %v5082 = vld [vmem:[#allocation4 + $0x80] sm:$0xff]
  %v5083 = vld [vmem:[#allocation4 + $0x88] sm:$0xff]
  %v5084 = vld [vmem:[#allocation4 + $0x90] sm:$0xff]
  %v5085 = vld [vmem:[#allocation4 + $0x98] sm:$0xff]
  %v5086 = vld [vmem:[#allocation4 + $0xa0] sm:$0xff]
  %v5087 = vld [vmem:[#allocation4 + $0xa8] sm:$0xff]
  %v5088 = vld [vmem:[#allocation4 + $0xb0] sm:$0xff]
  %v5089 = vld [vmem:[#allocation4 + $0xb8] sm:$0xff]
  %v5090 = vld [vmem:[#allocation4 + $0xc0] sm:$0xff]
  %v5091 = vld [vmem:[#allocation4 + $0xc8] sm:$0xff]
  %v5092 = vld [vmem:[#allocation4 + $0xd0] sm:$0xff]
  %v5093 = vld [vmem:[#allocation4 + $0xd8] sm:$0xff]
  %v5094 = vld [vmem:[#allocation4 + $0xe0] sm:$0xff]
  %v5095 = vld [vmem:[#allocation4 + $0xe8] sm:$0xff]
  %v5096 = vld [vmem:[#allocation4 + $0xf0] sm:$0xff]
  %v5097 = vld [vmem:[#allocation4 + $0xf8] sm:$0xff]
  %s5098 = scalar_lea.vmem %s2, 512
  %v5099 = vld [vmem:[%s5098] sm:$0xf]
  %v5100 = vld [vmem:[%s5098 + $0x4] sm:$0xf]
  %v5101 = vld [vmem:[%s5098 + $0x8] sm:$0xf]
  %v5102 = vld [vmem:[%s5098 + $0xc] sm:$0xf]
  %v5103 = vld [vmem:[%s5098 + $0x10] sm:$0xf]
  %v5104 = vld [vmem:[%s5098 + $0x14] sm:$0xf]
  %v5105 = vld [vmem:[%s5098 + $0x18] sm:$0xf]
  %v5106 = vld [vmem:[%s5098 + $0x1c] sm:$0xf]
  %v5107 = vld [vmem:[%s5098 + $0x20] sm:$0xf]
  %v5108 = vld [vmem:[%s5098 + $0x24] sm:$0xf]
  %v5109 = vld [vmem:[%s5098 + $0x28] sm:$0xf]
  %v5110 = vld [vmem:[%s5098 + $0x2c] sm:$0xf]
  %v5111 = vld [vmem:[%s5098 + $0x30] sm:$0xf]
  %v5112 = vld [vmem:[%s5098 + $0x34] sm:$0xf]
  %v5113 = vld [vmem:[%s5098 + $0x38] sm:$0xf]
  %v5114 = vld [vmem:[%s5098 + $0x3c] sm:$0xf]
  %v5115 = vld [vmem:[%s5098 + $0x40] sm:$0xf]
  %v5116 = vld [vmem:[%s5098 + $0x44] sm:$0xf]
  %v5117 = vld [vmem:[%s5098 + $0x48] sm:$0xf]
  %v5118 = vld [vmem:[%s5098 + $0x4c] sm:$0xf]
  %v5119 = vld [vmem:[%s5098 + $0x50] sm:$0xf]
  %v5120 = vld [vmem:[%s5098 + $0x54] sm:$0xf]
  %v5121 = vld [vmem:[%s5098 + $0x58] sm:$0xf]
  %v5122 = vld [vmem:[%s5098 + $0x5c] sm:$0xf]
  %v5123 = vld [vmem:[%s5098 + $0x60] sm:$0xf]
  %v5124 = vld [vmem:[%s5098 + $0x64] sm:$0xf]
  %v5125 = vld [vmem:[%s5098 + $0x68] sm:$0xf]
  %v5126 = vld [vmem:[%s5098 + $0x6c] sm:$0xf]
  %v5127 = vld [vmem:[%s5098 + $0x70] sm:$0xf]
  %v5128 = vld [vmem:[%s5098 + $0x74] sm:$0xf]
  %v5129 = vld [vmem:[%s5098 + $0x78] sm:$0xf]
  %v5130 = vld [vmem:[%s5098 + $0x7c] sm:$0xf]
  %v5131 = vld [vmem:[%s5098 + $0x80] sm:$0xf]
  %v5132 = vld [vmem:[%s5098 + $0x84] sm:$0xf]
  %v5133 = vld [vmem:[%s5098 + $0x88] sm:$0xf]
  %v5134 = vld [vmem:[%s5098 + $0x8c] sm:$0xf]
  %v5135 = vld [vmem:[%s5098 + $0x90] sm:$0xf]
  %v5136 = vld [vmem:[%s5098 + $0x94] sm:$0xf]
  %v5137 = vld [vmem:[%s5098 + $0x98] sm:$0xf]
  %v5138 = vld [vmem:[%s5098 + $0x9c] sm:$0xf]
  %v5139 = vld [vmem:[%s5098 + $0xa0] sm:$0xf]
  %v5140 = vld [vmem:[%s5098 + $0xa4] sm:$0xf]
  %v5141 = vld [vmem:[%s5098 + $0xa8] sm:$0xf]
  %v5142 = vld [vmem:[%s5098 + $0xac] sm:$0xf]
  %v5143 = vld [vmem:[%s5098 + $0xb0] sm:$0xf]
  %v5144 = vld [vmem:[%s5098 + $0xb4] sm:$0xf]
  %v5145 = vld [vmem:[%s5098 + $0xb8] sm:$0xf]
  %v5146 = vld [vmem:[%s5098 + $0xbc] sm:$0xf]
  %v5147 = vld [vmem:[%s5098 + $0xc0] sm:$0xf]
  %v5148 = vld [vmem:[%s5098 + $0xc4] sm:$0xf]
  %v5149 = vld [vmem:[%s5098 + $0xc8] sm:$0xf]
  %v5150 = vld [vmem:[%s5098 + $0xcc] sm:$0xf]
  %v5151 = vld [vmem:[%s5098 + $0xd0] sm:$0xf]
  %v5152 = vld [vmem:[%s5098 + $0xd4] sm:$0xf]
  %v5153 = vld [vmem:[%s5098 + $0xd8] sm:$0xf]
  %v5154 = vld [vmem:[%s5098 + $0xdc] sm:$0xf]
  %v5155 = vld [vmem:[%s5098 + $0xe0] sm:$0xf]
  %v5156 = vld [vmem:[%s5098 + $0xe4] sm:$0xf]
  %v5157 = vld [vmem:[%s5098 + $0xe8] sm:$0xf]
  %v5158 = vld [vmem:[%s5098 + $0xec] sm:$0xf]
  %v5159 = vld [vmem:[%s5098 + $0xf0] sm:$0xf]
  %v5160 = vld [vmem:[%s5098 + $0xf4] sm:$0xf]
  %v5161 = vld [vmem:[%s5098 + $0xf8] sm:$0xf]
  %v5162 = vld [vmem:[%s5098 + $0xfc] sm:$0xf]
  %v5227 = vunpack.c.l.b16 %v5099
  %v5228 = vunpack.c.l.b16 %v5100
  %v5229 = vunpack.c.l.b16 %v5101
  %v5230 = vunpack.c.l.b16 %v5102
  %v5231 = vunpack.c.l.b16 %v5103
  %v5232 = vunpack.c.l.b16 %v5104
  %v5233 = vunpack.c.l.b16 %v5105
  %v5234 = vunpack.c.l.b16 %v5106
  %v5235 = vunpack.c.l.b16 %v5107
  %v5236 = vunpack.c.l.b16 %v5108
  %v5237 = vunpack.c.l.b16 %v5109
  %v5238 = vunpack.c.l.b16 %v5110
  %v5239 = vunpack.c.l.b16 %v5111
  %v5240 = vunpack.c.l.b16 %v5112
  %v5241 = vunpack.c.l.b16 %v5113
  %v5242 = vunpack.c.l.b16 %v5114
  %v5243 = vunpack.c.l.b16 %v5115
  %v5244 = vunpack.c.l.b16 %v5116
  %v5245 = vunpack.c.l.b16 %v5117
  %v5246 = vunpack.c.l.b16 %v5118
  %v5247 = vunpack.c.l.b16 %v5119
  %v5248 = vunpack.c.l.b16 %v5120
  %v5249 = vunpack.c.l.b16 %v5121
  %v5250 = vunpack.c.l.b16 %v5122
  %v5251 = vunpack.c.l.b16 %v5123
  %v5252 = vunpack.c.l.b16 %v5124
  %v5253 = vunpack.c.l.b16 %v5125
  %v5254 = vunpack.c.l.b16 %v5126
  %v5255 = vunpack.c.l.b16 %v5127
  %v5256 = vunpack.c.l.b16 %v5128
  %v5257 = vunpack.c.l.b16 %v5129
  %v5258 = vunpack.c.l.b16 %v5130
  %v5259 = vunpack.c.l.b16 %v5131
  %v5260 = vunpack.c.l.b16 %v5132
  %v5261 = vunpack.c.l.b16 %v5133
  %v5262 = vunpack.c.l.b16 %v5134
  %v5263 = vunpack.c.l.b16 %v5135
  %v5264 = vunpack.c.l.b16 %v5136
  %v5265 = vunpack.c.l.b16 %v5137
  %v5266 = vunpack.c.l.b16 %v5138
  %v5267 = vunpack.c.l.b16 %v5139
  %v5268 = vunpack.c.l.b16 %v5140
  %v5269 = vunpack.c.l.b16 %v5141
  %v5270 = vunpack.c.l.b16 %v5142
  %v5271 = vunpack.c.l.b16 %v5143
  %v5272 = vunpack.c.l.b16 %v5144
  %v5273 = vunpack.c.l.b16 %v5145
  %v5274 = vunpack.c.l.b16 %v5146
  %v5275 = vunpack.c.l.b16 %v5147
  %v5276 = vunpack.c.l.b16 %v5148
  %v5277 = vunpack.c.l.b16 %v5149
  %v5278 = vunpack.c.l.b16 %v5150
  %v5279 = vunpack.c.l.b16 %v5151
  %v5280 = vunpack.c.l.b16 %v5152
  %v5281 = vunpack.c.l.b16 %v5153
  %v5282 = vunpack.c.l.b16 %v5154
  %v5283 = vunpack.c.l.b16 %v5155
  %v5284 = vunpack.c.l.b16 %v5156
  %v5285 = vunpack.c.l.b16 %v5157
  %v5286 = vunpack.c.l.b16 %v5158
  %v5287 = vunpack.c.l.b16 %v5159
  %v5288 = vunpack.c.l.b16 %v5160
  %v5289 = vunpack.c.l.b16 %v5161
  %v5290 = vunpack.c.l.b16 %v5162
  %v5291 = vpack.c.b16 %v5228, %v5227
  %v5292 = vpack.c.b16 %v5230, %v5229
  %v5293 = vpack.c.b16 %v5232, %v5231
  %v5294 = vpack.c.b16 %v5234, %v5233
  %v5295 = vpack.c.b16 %v5236, %v5235
  %v5296 = vpack.c.b16 %v5238, %v5237
  %v5297 = vpack.c.b16 %v5240, %v5239
  %v5298 = vpack.c.b16 %v5242, %v5241
  %v5299 = vpack.c.b16 %v5244, %v5243
  %v5300 = vpack.c.b16 %v5246, %v5245
  %v5301 = vpack.c.b16 %v5248, %v5247
  %v5302 = vpack.c.b16 %v5250, %v5249
  %v5303 = vpack.c.b16 %v5252, %v5251
  %v5304 = vpack.c.b16 %v5254, %v5253
  %v5305 = vpack.c.b16 %v5256, %v5255
  %v5306 = vpack.c.b16 %v5258, %v5257
  %v5307 = vpack.c.b16 %v5260, %v5259
  %v5308 = vpack.c.b16 %v5262, %v5261
  %v5309 = vpack.c.b16 %v5264, %v5263
  %v5310 = vpack.c.b16 %v5266, %v5265
  %v5311 = vpack.c.b16 %v5268, %v5267
  %v5312 = vpack.c.b16 %v5270, %v5269
  %v5313 = vpack.c.b16 %v5272, %v5271
  %v5314 = vpack.c.b16 %v5274, %v5273
  %v5315 = vpack.c.b16 %v5276, %v5275
  %v5316 = vpack.c.b16 %v5278, %v5277
  %v5317 = vpack.c.b16 %v5280, %v5279
  %v5318 = vpack.c.b16 %v5282, %v5281
  %v5319 = vpack.c.b16 %v5284, %v5283
  %v5320 = vpack.c.b16 %v5286, %v5285
  %v5321 = vpack.c.b16 %v5288, %v5287
  %v5322 = vpack.c.b16 %v5290, %v5289
  %5355 = vmatprep.subr.bf16.mxu0 0
  %5356 = vmatpush1.bf16.msra.mxu0 %v5291
  %5357 = vmatprep.subr.bf16.mxu0 0
  %5358 = vmatpush1.bf16.msra.mxu0 %v5292
  %5359 = vmatprep.subr.bf16.mxu0 0
  %5360 = vmatpush1.bf16.msra.mxu0 %v5293
  %5361 = vmatprep.subr.bf16.mxu0 0
  %5362 = vmatpush1.bf16.msra.mxu0 %v5294
  %5363 = vmatprep.subr.bf16.mxu0 0
  %5364 = vmatpush1.bf16.msra.mxu0 %v5295
  %5365 = vmatprep.subr.bf16.mxu0 0
  %5366 = vmatpush1.bf16.msra.mxu0 %v5296
  %5367 = vmatprep.subr.bf16.mxu0 0
  %5368 = vmatpush1.bf16.msra.mxu0 %v5297
  %5369 = vmatprep.subr.bf16.mxu0 0
  %5370 = vmatpush1.bf16.msra.mxu0 %v5298
  %5371 = vmatprep.subr.bf16.mxu0 0
  %5372 = vmatpush1.bf16.msra.mxu0 %v5299
  %5373 = vmatprep.subr.bf16.mxu0 0
  %5374 = vmatpush1.bf16.msra.mxu0 %v5300
  %5375 = vmatprep.subr.bf16.mxu0 0
  %5376 = vmatpush1.bf16.msra.mxu0 %v5301
  %5377 = vmatprep.subr.bf16.mxu0 0
  %5378 = vmatpush1.bf16.msra.mxu0 %v5302
  %5379 = vmatprep.subr.bf16.mxu0 0
  %5380 = vmatpush1.bf16.msra.mxu0 %v5303
  %5381 = vmatprep.subr.bf16.mxu0 0
  %5382 = vmatpush1.bf16.msra.mxu0 %v5304
  %5383 = vmatprep.subr.bf16.mxu0 0
  %5384 = vmatpush1.bf16.msra.mxu0 %v5305
  %5385 = vmatprep.subr.bf16.mxu0 0
  %5386 = vmatpush1.bf16.msra.mxu0 %v5306
  %5387 = vmatprep.mubr.bf16.mxu0 %v5067
  %5388 = vmatmul.mubr.bf16.gmra.mrb[0].mxu0 %v5066
  %v5389 = vpop.f32.mrb[0].mxu0
  %v5390 = vadd.f32 0.0, %v5389
  %v5391 = vpop.f32.mrb[0].mxu0
  %v5392 = vpop.f32.mrb[0].mxu0
  %v5393 = vadd.f32 0.0, %v5392
  %v5394 = vpop.f32.mrb[0].mxu0
  %5395 = vmatprep.mubr.bf16.mxu0 %v5071
  %5396 = vmatmul.mubr.bf16.gmra.mrb[0].mxu0 %v5070
  %v5397 = vpop.f32.mrb[0].mxu0
  %v5398 = vadd.f32 0.0, %v5397
  %v5399 = vpop.f32.mrb[0].mxu0
  %v5400 = vpop.f32.mrb[0].mxu0
  %v5401 = vadd.f32 0.0, %v5400
  %v5402 = vpop.f32.mrb[0].mxu0
  %5403 = vmatprep.mubr.bf16.mxu0 %v5075
  %5404 = vmatmul.mubr.bf16.gmra.mrb[0].mxu0 %v5074
  %v5405 = vpop.f32.mrb[0].mxu0
  %v5406 = vadd.f32 0.0, %v5405
  %v5407 = vpop.f32.mrb[0].mxu0
  %v5408 = vpop.f32.mrb[0].mxu0
  %v5409 = vadd.f32 0.0, %v5408
  %v5410 = vpop.f32.mrb[0].mxu0
  %5411 = vmatprep.mubr.bf16.mxu0 %v5079
  %5412 = vmatmul.mubr.bf16.gmra.mrb[0].mxu0 %v5078
  %v5413 = vpop.f32.mrb[0].mxu0
  %v5414 = vadd.f32 0.0, %v5413
  %v5415 = vpop.f32.mrb[0].mxu0
  %v5416 = vpop.f32.mrb[0].mxu0
  %v5417 = vadd.f32 0.0, %v5416
  %v5418 = vpop.f32.mrb[0].mxu0
  %5419 = vmatprep.mubr.bf16.mxu0 %v5083
  %5420 = vmatmul.mubr.bf16.gmra.mrb[0].mxu0 %v5082
  %v5421 = vpop.f32.mrb[0].mxu0
  %v5422 = vadd.f32 0.0, %v5421
  %v5423 = vpop.f32.mrb[0].mxu0
  %v5424 = vpop.f32.mrb[0].mxu0
  %v5425 = vadd.f32 0.0, %v5424
  %v5426 = vpop.f32.mrb[0].mxu0
  %5427 = vmatprep.mubr.bf16.mxu0 %v5087
  %5428 = vmatmul.mubr.bf16.gmra.mrb[0].mxu0 %v5086
  %v5429 = vpop.f32.mrb[0].mxu0
  %v5430 = vadd.f32 0.0, %v5429
  %v5431 = vpop.f32.mrb[0].mxu0
  %v5432 = vpop.f32.mrb[0].mxu0
  %v5433 = vadd.f32 0.0, %v5432
  %v5434 = vpop.f32.mrb[0].mxu0
  %5435 = vmatprep.mubr.bf16.mxu0 %v5091
  %5436 = vmatmul.mubr.bf16.gmra.mrb[0].mxu0 %v5090
  %v5437 = vpop.f32.mrb[0].mxu0
  %v5438 = vadd.f32 0.0, %v5437
  %v5439 = vpop.f32.mrb[0].mxu0
  %v5440 = vpop.f32.mrb[0].mxu0
  %v5441 = vadd.f32 0.0, %v5440
  %v5442 = vpop.f32.mrb[0].mxu0
  %5443 = vmatprep.mubr.bf16.mxu0 %v5095
  %5444 = vmatmul.mubr.bf16.gmra.mrb[0].mxu0 %v5094
  %v5445 = vpop.f32.mrb[0].mxu0
  %v5446 = vadd.f32 0.0, %v5445
  %v5447 = vpop.f32.mrb[0].mxu0
  %v5448 = vpop.f32.mrb[0].mxu0
  %v5449 = vadd.f32 0.0, %v5448
  %v5450 = vpop.f32.mrb[0].mxu0
  %5451 = vdwg.mxu0
  %5452 = vmatprep.subr.bf16.mxu0 0
  %5453 = vmatpush1.bf16.msra.mxu0 %v5307
  %5454 = vmatprep.subr.bf16.mxu0 0
  %5455 = vmatpush1.bf16.msra.mxu0 %v5308
  %5456 = vmatprep.subr.bf16.mxu0 0
  %5457 = vmatpush1.bf16.msra.mxu0 %v5309
  %5458 = vmatprep.subr.bf16.mxu0 0
  %5459 = vmatpush1.bf16.msra.mxu0 %v5310
  %5460 = vmatprep.subr.bf16.mxu0 0
  %5461 = vmatpush1.bf16.msra.mxu0 %v5311
  %5462 = vmatprep.subr.bf16.mxu0 0
  %5463 = vmatpush1.bf16.msra.mxu0 %v5312
  %5464 = vmatprep.subr.bf16.mxu0 0
  %5465 = vmatpush1.bf16.msra.mxu0 %v5313
  %5466 = vmatprep.subr.bf16.mxu0 0
  %5467 = vmatpush1.bf16.msra.mxu0 %v5314
  %5468 = vmatprep.subr.bf16.mxu0 0
  %5469 = vmatpush1.bf16.msra.mxu0 %v5315
  %5470 = vmatprep.subr.bf16.mxu0 0
  %5471 = vmatpush1.bf16.msra.mxu0 %v5316
  %5472 = vmatprep.subr.bf16.mxu0 0
  %5473 = vmatpush1.bf16.msra.mxu0 %v5317
  %5474 = vmatprep.subr.bf16.mxu0 0
  %5475 = vmatpush1.bf16.msra.mxu0 %v5318
  %5476 = vmatprep.subr.bf16.mxu0 0
  %5477 = vmatpush1.bf16.msra.mxu0 %v5319
  %5478 = vmatprep.subr.bf16.mxu0 0
  %5479 = vmatpush1.bf16.msra.mxu0 %v5320
  %5480 = vmatprep.subr.bf16.mxu0 0
  %5481 = vmatpush1.bf16.msra.mxu0 %v5321
  %5482 = vmatprep.subr.bf16.mxu0 0
  %5483 = vmatpush1.bf16.msra.mxu0 %v5322
  %5484 = vmatprep.mubr.bf16.mxu0 %v5069
  %5485 = vmatmul.mubr.bf16.gmra.mrb[0].mxu0 %v5068
  %v5486 = vpop.f32.mrb[0].mxu0
  %v5487 = vadd.f32 %v5390, %v5486
  %v5488 = vpop.f32.mrb[0].mxu0
  %v5489 = vpop.f32.mrb[0].mxu0
  %v5490 = vadd.f32 %v5393, %v5489
  %v5491 = vpop.f32.mrb[0].mxu0
  %5492 = vmatprep.mubr.bf16.mxu0 %v5073
  %5493 = vmatmul.mubr.bf16.gmra.mrb[0].mxu0 %v5072
  %v5494 = vpop.f32.mrb[0].mxu0
  %v5495 = vadd.f32 %v5398, %v5494
  %v5496 = vpop.f32.mrb[0].mxu0
  %v5497 = vpop.f32.mrb[0].mxu0
  %v5498 = vadd.f32 %v5401, %v5497
  %v5499 = vpop.f32.mrb[0].mxu0
  %5500 = vmatprep.mubr.bf16.mxu0 %v5077
  %5501 = vmatmul.mubr.bf16.gmra.mrb[0].mxu0 %v5076
  %v5502 = vpop.f32.mrb[0].mxu0
  %v5503 = vadd.f32 %v5406, %v5502
  %v5504 = vpop.f32.mrb[0].mxu0
  %v5505 = vpop.f32.mrb[0].mxu0
  %v5506 = vadd.f32 %v5409, %v5505
  %v5507 = vpop.f32.mrb[0].mxu0
  %5508 = vmatprep.mubr.bf16.mxu0 %v5081
  %5509 = vmatmul.mubr.bf16.gmra.mrb[0].mxu0 %v5080
  %v5510 = vpop.f32.mrb[0].mxu0
  %v5511 = vadd.f32 %v5414, %v5510
  %v5512 = vpop.f32.mrb[0].mxu0
  %v5513 = vpop.f32.mrb[0].mxu0
  %v5514 = vadd.f32 %v5417, %v5513
  %v5515 = vpop.f32.mrb[0].mxu0
  %5516 = vmatprep.mubr.bf16.mxu0 %v5085
  %5517 = vmatmul.mubr.bf16.gmra.mrb[0].mxu0 %v5084
  %v5518 = vpop.f32.mrb[0].mxu0
  %v5519 = vadd.f32 %v5422, %v5518
  %v5520 = vpop.f32.mrb[0].mxu0
  %v5521 = vpop.f32.mrb[0].mxu0
  %v5522 = vadd.f32 %v5425, %v5521
  %v5523 = vpop.f32.mrb[0].mxu0
  %5524 = vmatprep.mubr.bf16.mxu0 %v5089
  %5525 = vmatmul.mubr.bf16.gmra.mrb[0].mxu0 %v5088
  %v5526 = vpop.f32.mrb[0].mxu0
  %v5527 = vadd.f32 %v5430, %v5526
  %v5528 = vpop.f32.mrb[0].mxu0
  %v5529 = vpop.f32.mrb[0].mxu0
  %v5530 = vadd.f32 %v5433, %v5529
  %v5531 = vpop.f32.mrb[0].mxu0
  %5532 = vmatprep.mubr.bf16.mxu0 %v5093
  %5533 = vmatmul.mubr.bf16.gmra.mrb[0].mxu0 %v5092
  %v5534 = vpop.f32.mrb[0].mxu0
  %v5535 = vadd.f32 %v5438, %v5534
  %v5536 = vpop.f32.mrb[0].mxu0
  %v5537 = vpop.f32.mrb[0].mxu0
  %v5538 = vadd.f32 %v5441, %v5537
  %v5539 = vpop.f32.mrb[0].mxu0
  %5540 = vmatprep.mubr.bf16.mxu0 %v5097
  %5541 = vmatmul.mubr.bf16.gmra.mrb[0].mxu0 %v5096
  %v5542 = vpop.f32.mrb[0].mxu0
  %v5543 = vadd.f32 %v5446, %v5542
  %v5544 = vpop.f32.mrb[0].mxu0
  %v5545 = vpop.f32.mrb[0].mxu0
  %v5546 = vadd.f32 %v5449, %v5545
  %v5547 = vpop.f32.mrb[0].mxu0
  %5548 = vdwg.mxu0
  %v5549 = vpack.c.bf16 %v5490, %v5487
  %v5550 = vpack.c.bf16 %v5498, %v5495
  %v5551 = vpack.c.bf16 %v5506, %v5503
  %v5552 = vpack.c.bf16 %v5514, %v5511
  %v5553 = vpack.c.bf16 %v5522, %v5519
  %v5554 = vpack.c.bf16 %v5530, %v5527
  %v5555 = vpack.c.bf16 %v5538, %v5535
  %v5556 = vpack.c.bf16 %v5546, %v5543
  %v5565 = vunpack.c.l.b16 %v5549
  %v5566 = vunpack.c.h.b16 %v5549
  %v5567 = vunpack.c.l.b16 %v5550
  %v5568 = vunpack.c.h.b16 %v5550
  %v5569 = vunpack.c.l.b16 %v5551
  %v5570 = vunpack.c.h.b16 %v5551
  %v5571 = vunpack.c.l.b16 %v5552
  %v5572 = vunpack.c.h.b16 %v5552
  %v5573 = vunpack.c.l.b16 %v5553
  %v5574 = vunpack.c.h.b16 %v5553
  %v5575 = vunpack.c.l.b16 %v5554
  %v5576 = vunpack.c.h.b16 %v5554
  %v5577 = vunpack.c.l.b16 %v5555
  %v5578 = vunpack.c.h.b16 %v5555
  %v5579 = vunpack.c.l.b16 %v5556
  %v5580 = vunpack.c.h.b16 %v5556
  %v5581 = vpack.c.b16 %v5565, %v5565
  %v5582 = vpack.c.b16 %v5566, %v5566
  %v5583 = vpack.c.b16 %v5567, %v5567
  %v5584 = vpack.c.b16 %v5568, %v5568
  %v5585 = vpack.c.b16 %v5569, %v5569
  %v5586 = vpack.c.b16 %v5570, %v5570
  %v5587 = vpack.c.b16 %v5571, %v5571
  %v5588 = vpack.c.b16 %v5572, %v5572
  %v5589 = vpack.c.b16 %v5573, %v5573
  %v5590 = vpack.c.b16 %v5574, %v5574
  %v5591 = vpack.c.b16 %v5575, %v5575
  %v5592 = vpack.c.b16 %v5576, %v5576
  %v5593 = vpack.c.b16 %v5577, %v5577
  %v5594 = vpack.c.b16 %v5578, %v5578
  %v5595 = vpack.c.b16 %v5579, %v5579
  %v5596 = vpack.c.b16 %v5580, %v5580
  %s5613 = scalar_lea.vmem %s3, 64
  %5614 = vst [vmem:[%s5613] sm:$0xf] %v5581
  %5615 = vst [vmem:[%s5613 + $0x4] sm:$0xf] %v5582
  %5616 = vst [vmem:[%s5613 + $0x8] sm:$0xf] %v5583
  %5617 = vst [vmem:[%s5613 + $0xc] sm:$0xf] %v5584
  %5618 = vst [vmem:[%s5613 + $0x10] sm:$0xf] %v5585
  %5619 = vst [vmem:[%s5613 + $0x14] sm:$0xf] %v5586
  %5620 = vst [vmem:[%s5613 + $0x18] sm:$0xf] %v5587
  %5621 = vst [vmem:[%s5613 + $0x1c] sm:$0xf] %v5588
  %5622 = vst [vmem:[%s5613 + $0x80] sm:$0xf] %v5589
  %5623 = vst [vmem:[%s5613 + $0x84] sm:$0xf] %v5590
  %5624 = vst [vmem:[%s5613 + $0x88] sm:$0xf] %v5591
  %5625 = vst [vmem:[%s5613 + $0x8c] sm:$0xf] %v5592
  %5626 = vst [vmem:[%s5613 + $0x90] sm:$0xf] %v5593
  %5627 = vst [vmem:[%s5613 + $0x94] sm:$0xf] %v5594
  %5628 = vst [vmem:[%s5613 + $0x98] sm:$0xf] %v5595
  %5629 = vst [vmem:[%s5613 + $0x9c] sm:$0xf] %v5596
  %v5630 = vadd.f32 %v5487, %v5490
  %v5631 = vadd.f32 %v5630, %v5495
  %v5632 = vadd.f32 %v5631, %v5498
  %v5633 = vadd.f32 %v5632, %v5503
  %v5634 = vadd.f32 %v5633, %v5506
  %v5635 = vadd.f32 %v5634, %v5511
  %v5636 = vadd.f32 %v5635, %v5514
  %v5637 = vadd.f32 %v5636, %v5519
  %v5638 = vadd.f32 %v5637, %v5522
  %v5639 = vadd.f32 %v5638, %v5527
  %v5640 = vadd.f32 %v5639, %v5530
  %v5641 = vadd.f32 %v5640, %v5535
  %v5642 = vadd.f32 %v5641, %v5538
  %v5643 = vadd.f32 %v5642, %v5543
  %v5644 = vadd.f32 %v5643, %v5546
  %v5645 = vrot.slane %v5644, 4
  %v5646 = vadd.f32 %v5644, %v5645
  %v5647 = vrot.slane %v5646, 2
  %v5648 = vadd.f32 %v5646, %v5647
  %v5649 = vrot.slane %v5648, 1
  %v5650 = vadd.f32 %v5648, %v5649
  %v5651 = vadd.f32 %v4290, %v5650
  %v5652 = vmul.f32 %v5487, %v5487
  %v5653 = vmul.f32 %v5490, %v5490
  %v5654 = vmul.f32 %v5495, %v5495
  %v5655 = vmul.f32 %v5498, %v5498
  %v5656 = vmul.f32 %v5503, %v5503
  %v5657 = vmul.f32 %v5506, %v5506
  %v5658 = vmul.f32 %v5511, %v5511
  %v5659 = vmul.f32 %v5514, %v5514
  %v5660 = vmul.f32 %v5519, %v5519
  %v5661 = vmul.f32 %v5522, %v5522
  %v5662 = vmul.f32 %v5527, %v5527
  %v5663 = vmul.f32 %v5530, %v5530
  %v5664 = vmul.f32 %v5535, %v5535
  %v5665 = vmul.f32 %v5538, %v5538
  %v5666 = vmul.f32 %v5543, %v5543
  %v5667 = vmul.f32 %v5546, %v5546
  %v5668 = vadd.f32 %v5652, %v5653
  %v5669 = vadd.f32 %v5668, %v5654
  %v5670 = vadd.f32 %v5669, %v5655
  %v5671 = vadd.f32 %v5670, %v5656
  %v5672 = vadd.f32 %v5671, %v5657
  %v5673 = vadd.f32 %v5672, %v5658
  %v5674 = vadd.f32 %v5673, %v5659
  %v5675 = vadd.f32 %v5674, %v5660
  %v5676 = vadd.f32 %v5675, %v5661
  %v5677 = vadd.f32 %v5676, %v5662
  %v5678 = vadd.f32 %v5677, %v5663
  %v5679 = vadd.f32 %v5678, %v5664
  %v5680 = vadd.f32 %v5679, %v5665
  %v5681 = vadd.f32 %v5680, %v5666
  %v5682 = vadd.f32 %v5681, %v5667
  %v5683 = vrot.slane %v5682, 4
  %v5684 = vadd.f32 %v5682, %v5683
  %v5685 = vrot.slane %v5684, 2
  %v5686 = vadd.f32 %v5684, %v5685
  %v5687 = vrot.slane %v5686, 1
  %v5688 = vadd.f32 %v5686, %v5687
  %v5689 = vadd.f32 %v4328, %v5688
  %v5690 = vld [vmem:[%s1313] sm:$0xf]
  %v5691 = vld [vmem:[%s1313 + $0x4] sm:$0x1]
  %v5692 = vld [vmem:[%s1313 + $0x8] sm:$0xf]
  %v5693 = vld [vmem:[%s1313 + $0xc] sm:$0x1]
  %v5694 = vld [vmem:[%s1313 + $0x10] sm:$0xf]
  %v5695 = vld [vmem:[%s1313 + $0x14] sm:$0x1]
  %v5696 = vld [vmem:[%s1313 + $0x18] sm:$0xf]
  %v5697 = vld [vmem:[%s1313 + $0x1c] sm:$0x1]
  %v5698 = vld [vmem:[%s1313 + $0x20] sm:$0xf]
  %v5699 = vld [vmem:[%s1313 + $0x24] sm:$0x1]
  %v5700 = vld [vmem:[%s1313 + $0x28] sm:$0xf]
  %v5701 = vld [vmem:[%s1313 + $0x2c] sm:$0x1]
  %v5702 = vld [vmem:[%s1313 + $0x30] sm:$0xf]
  %v5703 = vld [vmem:[%s1313 + $0x34] sm:$0x1]
  %v5704 = vld [vmem:[%s1313 + $0x38] sm:$0xf]
  %v5705 = vld [vmem:[%s1313 + $0x3c] sm:$0x1]
  %v5706 = vld [vmem:[%s1313 + $0x50] sm:$0xf]
  %v5707 = vld [vmem:[%s1313 + $0x54] sm:$0x1]
  %v5708 = vld [vmem:[%s1313 + $0x58] sm:$0xf]
  %v5709 = vld [vmem:[%s1313 + $0x5c] sm:$0x1]
  %v5710 = vld [vmem:[%s1313 + $0x60] sm:$0xf]
  %v5711 = vld [vmem:[%s1313 + $0x64] sm:$0x1]
  %v5712 = vld [vmem:[%s1313 + $0x68] sm:$0xf]
  %v5713 = vld [vmem:[%s1313 + $0x6c] sm:$0x1]
  %v5714 = vld [vmem:[%s1313 + $0x70] sm:$0xf]
  %v5715 = vld [vmem:[%s1313 + $0x74] sm:$0x1]
  %v5716 = vld [vmem:[%s1313 + $0x78] sm:$0xf]
  %v5717 = vld [vmem:[%s1313 + $0x7c] sm:$0x1]
  %v5718 = vld [vmem:[%s1313 + $0x80] sm:$0xf]
  %v5719 = vld [vmem:[%s1313 + $0x84] sm:$0x1]
  %v5720 = vld [vmem:[%s1313 + $0x88] sm:$0xf]
  %v5721 = vld [vmem:[%s1313 + $0x8c] sm:$0x1]
  %v5723 = vshrl.u32 %v5690, 16
  %v5725 = vrot.slane %v5723, 4
  %v5726 = vshll.u32 %v5690, 16
  %v5728 = vrot.slane %v5726, 5
  %v5729 = vor.u32 %v5725, %v5728
  %v5730 = vrot.slane %v5729, 4
  %v5732 = vshll.u32 %v5691, 16
  %v5734 = vrot.slane %v5732, 5
  %v5735 = vsel %vm220, %v5730, %v5734
  %v5737 = vshrl.u32 %v5692, 16
  %v5739 = vrot.slane %v5737, 4
  %v5740 = vshll.u32 %v5692, 16
  %v5742 = vrot.slane %v5740, 5
  %v5743 = vor.u32 %v5739, %v5742
  %v5744 = vrot.slane %v5743, 4
  %v5746 = vshll.u32 %v5693, 16
  %v5748 = vrot.slane %v5746, 5
  %v5749 = vsel %vm220, %v5744, %v5748
  %v5751 = vshrl.u32 %v5694, 16
  %v5753 = vrot.slane %v5751, 4
  %v5754 = vshll.u32 %v5694, 16
  %v5756 = vrot.slane %v5754, 5
  %v5757 = vor.u32 %v5753, %v5756
  %v5758 = vrot.slane %v5757, 4
  %v5760 = vshll.u32 %v5695, 16
  %v5762 = vrot.slane %v5760, 5
  %v5763 = vsel %vm220, %v5758, %v5762
  %v5765 = vshrl.u32 %v5696, 16
  %v5767 = vrot.slane %v5765, 4
  %v5768 = vshll.u32 %v5696, 16
  %v5770 = vrot.slane %v5768, 5
  %v5771 = vor.u32 %v5767, %v5770
  %v5772 = vrot.slane %v5771, 4
  %v5774 = vshll.u32 %v5697, 16
  %v5776 = vrot.slane %v5774, 5
  %v5777 = vsel %vm220, %v5772, %v5776
  %v5779 = vshrl.u32 %v5698, 16
  %v5781 = vrot.slane %v5779, 4
  %v5782 = vshll.u32 %v5698, 16
  %v5784 = vrot.slane %v5782, 5
  %v5785 = vor.u32 %v5781, %v5784
  %v5786 = vrot.slane %v5785, 4
  %v5788 = vshll.u32 %v5699, 16
  %v5790 = vrot.slane %v5788, 5
  %v5791 = vsel %vm220, %v5786, %v5790
  %v5793 = vshrl.u32 %v5700, 16
  %v5795 = vrot.slane %v5793, 4
  %v5796 = vshll.u32 %v5700, 16
  %v5798 = vrot.slane %v5796, 5
  %v5799 = vor.u32 %v5795, %v5798
  %v5800 = vrot.slane %v5799, 4
  %v5802 = vshll.u32 %v5701, 16
  %v5804 = vrot.slane %v5802, 5
  %v5805 = vsel %vm220, %v5800, %v5804
  %v5807 = vshrl.u32 %v5702, 16
  %v5809 = vrot.slane %v5807, 4
  %v5810 = vshll.u32 %v5702, 16
  %v5812 = vrot.slane %v5810, 5
  %v5813 = vor.u32 %v5809, %v5812
  %v5814 = vrot.slane %v5813, 4
  %v5816 = vshll.u32 %v5703, 16
  %v5818 = vrot.slane %v5816, 5
  %v5819 = vsel %vm220, %v5814, %v5818
  %v5821 = vshrl.u32 %v5704, 16
  %v5823 = vrot.slane %v5821, 4
  %v5824 = vshll.u32 %v5704, 16
  %v5826 = vrot.slane %v5824, 5
  %v5827 = vor.u32 %v5823, %v5826
  %v5828 = vrot.slane %v5827, 4
  %v5830 = vshll.u32 %v5705, 16
  %v5832 = vrot.slane %v5830, 5
  %v5833 = vsel %vm220, %v5828, %v5832
  %v5835 = vshrl.u32 %v5706, 16
  %v5837 = vrot.slane %v5835, 4
  %v5838 = vshll.u32 %v5706, 16
  %v5840 = vrot.slane %v5838, 5
  %v5841 = vor.u32 %v5837, %v5840
  %v5842 = vrot.slane %v5841, 4
  %v5844 = vshll.u32 %v5707, 16
  %v5846 = vrot.slane %v5844, 5
  %v5847 = vsel %vm220, %v5842, %v5846
  %v5849 = vshrl.u32 %v5708, 16
  %v5851 = vrot.slane %v5849, 4
  %v5852 = vshll.u32 %v5708, 16
  %v5854 = vrot.slane %v5852, 5
  %v5855 = vor.u32 %v5851, %v5854
  %v5856 = vrot.slane %v5855, 4
  %v5858 = vshll.u32 %v5709, 16
  %v5860 = vrot.slane %v5858, 5
  %v5861 = vsel %vm220, %v5856, %v5860
  %v5863 = vshrl.u32 %v5710, 16
  %v5865 = vrot.slane %v5863, 4
  %v5866 = vshll.u32 %v5710, 16
  %v5868 = vrot.slane %v5866, 5
  %v5869 = vor.u32 %v5865, %v5868
  %v5870 = vrot.slane %v5869, 4
  %v5872 = vshll.u32 %v5711, 16
  %v5874 = vrot.slane %v5872, 5
  %v5875 = vsel %vm220, %v5870, %v5874
  %v5877 = vshrl.u32 %v5712, 16
  %v5879 = vrot.slane %v5877, 4
  %v5880 = vshll.u32 %v5712, 16
  %v5882 = vrot.slane %v5880, 5
  %v5883 = vor.u32 %v5879, %v5882
  %v5884 = vrot.slane %v5883, 4
  %v5886 = vshll.u32 %v5713, 16
  %v5888 = vrot.slane %v5886, 5
  %v5889 = vsel %vm220, %v5884, %v5888
  %v5891 = vshrl.u32 %v5714, 16
  %v5893 = vrot.slane %v5891, 4
  %v5894 = vshll.u32 %v5714, 16
  %v5896 = vrot.slane %v5894, 5
  %v5897 = vor.u32 %v5893, %v5896
  %v5898 = vrot.slane %v5897, 4
  %v5900 = vshll.u32 %v5715, 16
  %v5902 = vrot.slane %v5900, 5
  %v5903 = vsel %vm220, %v5898, %v5902
  %v5905 = vshrl.u32 %v5716, 16
  %v5907 = vrot.slane %v5905, 4
  %v5908 = vshll.u32 %v5716, 16
  %v5910 = vrot.slane %v5908, 5
  %v5911 = vor.u32 %v5907, %v5910
  %v5912 = vrot.slane %v5911, 4
  %v5914 = vshll.u32 %v5717, 16
  %v5916 = vrot.slane %v5914, 5
  %v5917 = vsel %vm220, %v5912, %v5916
  %v5919 = vshrl.u32 %v5718, 16
  %v5921 = vrot.slane %v5919, 4
  %v5922 = vshll.u32 %v5718, 16
  %v5924 = vrot.slane %v5922, 5
  %v5925 = vor.u32 %v5921, %v5924
  %v5926 = vrot.slane %v5925, 4
  %v5928 = vshll.u32 %v5719, 16
  %v5930 = vrot.slane %v5928, 5
  %v5931 = vsel %vm220, %v5926, %v5930
  %v5933 = vshrl.u32 %v5720, 16
  %v5935 = vrot.slane %v5933, 4
  %v5936 = vshll.u32 %v5720, 16
  %v5938 = vrot.slane %v5936, 5
  %v5939 = vor.u32 %v5935, %v5938
  %v5940 = vrot.slane %v5939, 4
  %v5942 = vshll.u32 %v5721, 16
  %v5944 = vrot.slane %v5942, 5
  %v5945 = vsel %vm220, %v5940, %v5944
  %v5946 = vunpack.c.l.b16 %v5735
  %v5947 = vunpack.c.l.b16 %v5749
  %v5948 = vunpack.c.l.b16 %v5763
  %v5949 = vunpack.c.l.b16 %v5777
  %v5950 = vunpack.c.l.b16 %v5791
  %v5951 = vunpack.c.l.b16 %v5805
  %v5952 = vunpack.c.l.b16 %v5819
  %v5953 = vunpack.c.l.b16 %v5833
  %v5954 = vunpack.c.l.b16 %v5847
  %v5955 = vunpack.c.l.b16 %v5861
  %v5956 = vunpack.c.l.b16 %v5875
  %v5957 = vunpack.c.l.b16 %v5889
  %v5958 = vunpack.c.l.b16 %v5903
  %v5959 = vunpack.c.l.b16 %v5917
  %v5960 = vunpack.c.l.b16 %v5931
  %v5961 = vunpack.c.l.b16 %v5945
  %v5962 = vpack.c.b16 %v5947, %v5946
  %v5963 = vpack.c.b16 %v5949, %v5948
  %v5964 = vpack.c.b16 %v5951, %v5950
  %v5965 = vpack.c.b16 %v5953, %v5952
  %v5966 = vpack.c.b16 %v5955, %v5954
  %v5967 = vpack.c.b16 %v5957, %v5956
  %v5968 = vpack.c.b16 %v5959, %v5958
  %v5969 = vpack.c.b16 %v5961, %v5960
  %5978 = vst [vmem:[#allocation4] sm:$0xff] %v5962
  %5979 = vst [vmem:[#allocation4 + $0x20] sm:$0xff] %v5963
  %5980 = vst [vmem:[#allocation4 + $0x40] sm:$0xff] %v5964
  %5981 = vst [vmem:[#allocation4 + $0x60] sm:$0xff] %v5965
  %5982 = vst [vmem:[#allocation4 + $0x80] sm:$0xff] %v5966
  %5983 = vst [vmem:[#allocation4 + $0xa0] sm:$0xff] %v5967
  %5984 = vst [vmem:[#allocation4 + $0xc0] sm:$0xff] %v5968
  %5985 = vst [vmem:[#allocation4 + $0xe0] sm:$0xff] %v5969
  %v5986 = vld [vmem:[%s1313] sm:$0xe]
  %v5987 = vld [vmem:[%s1313 + $0x4] sm:$0x1]
  %v5988 = vld [vmem:[%s1313 + $0x8] sm:$0xe]
  %v5989 = vld [vmem:[%s1313 + $0xc] sm:$0x1]
  %v5990 = vld [vmem:[%s1313 + $0x10] sm:$0xe]
  %v5991 = vld [vmem:[%s1313 + $0x14] sm:$0x1]
  %v5992 = vld [vmem:[%s1313 + $0x18] sm:$0xe]
  %v5993 = vld [vmem:[%s1313 + $0x1c] sm:$0x1]
  %v5994 = vld [vmem:[%s1313 + $0x20] sm:$0xe]
  %v5995 = vld [vmem:[%s1313 + $0x24] sm:$0x1]
  %v5996 = vld [vmem:[%s1313 + $0x28] sm:$0xe]
  %v5997 = vld [vmem:[%s1313 + $0x2c] sm:$0x1]
  %v5998 = vld [vmem:[%s1313 + $0x30] sm:$0xe]
  %v5999 = vld [vmem:[%s1313 + $0x34] sm:$0x1]
  %v6000 = vld [vmem:[%s1313 + $0x38] sm:$0xe]
  %v6001 = vld [vmem:[%s1313 + $0x3c] sm:$0x1]
  %v6002 = vld [vmem:[%s1313 + $0x50] sm:$0xe]
  %v6003 = vld [vmem:[%s1313 + $0x54] sm:$0x1]
  %v6004 = vld [vmem:[%s1313 + $0x58] sm:$0xe]
  %v6005 = vld [vmem:[%s1313 + $0x5c] sm:$0x1]
  %v6006 = vld [vmem:[%s1313 + $0x60] sm:$0xe]
  %v6007 = vld [vmem:[%s1313 + $0x64] sm:$0x1]
  %v6008 = vld [vmem:[%s1313 + $0x68] sm:$0xe]
  %v6009 = vld [vmem:[%s1313 + $0x6c] sm:$0x1]
  %v6010 = vld [vmem:[%s1313 + $0x70] sm:$0xe]
  %v6011 = vld [vmem:[%s1313 + $0x74] sm:$0x1]
  %v6012 = vld [vmem:[%s1313 + $0x78] sm:$0xe]
  %v6013 = vld [vmem:[%s1313 + $0x7c] sm:$0x1]
  %v6014 = vld [vmem:[%s1313 + $0x80] sm:$0xe]
  %v6015 = vld [vmem:[%s1313 + $0x84] sm:$0x1]
  %v6016 = vld [vmem:[%s1313 + $0x88] sm:$0xe]
  %v6017 = vld [vmem:[%s1313 + $0x8c] sm:$0x1]
  %v6050 = vrot.slane %v5986, 5
  %v6051 = vrot.slane %v6050, 4
  %v6052 = vrot.slane %v5987, 5
  %v6053 = vsel %vm3136, %v6051, %v6052
  %v6054 = vrot.slane %v5988, 5
  %v6055 = vrot.slane %v6054, 4
  %v6056 = vrot.slane %v5989, 5
  %v6057 = vsel %vm3136, %v6055, %v6056
  %v6058 = vrot.slane %v5990, 5
  %v6059 = vrot.slane %v6058, 4
  %v6060 = vrot.slane %v5991, 5
  %v6061 = vsel %vm3136, %v6059, %v6060
  %v6062 = vrot.slane %v5992, 5
  %v6063 = vrot.slane %v6062, 4
  %v6064 = vrot.slane %v5993, 5
  %v6065 = vsel %vm3136, %v6063, %v6064
  %v6066 = vrot.slane %v5994, 5
  %v6067 = vrot.slane %v6066, 4
  %v6068 = vrot.slane %v5995, 5
  %v6069 = vsel %vm3136, %v6067, %v6068
  %v6070 = vrot.slane %v5996, 5
  %v6071 = vrot.slane %v6070, 4
  %v6072 = vrot.slane %v5997, 5
  %v6073 = vsel %vm3136, %v6071, %v6072
  %v6074 = vrot.slane %v5998, 5
  %v6075 = vrot.slane %v6074, 4
  %v6076 = vrot.slane %v5999, 5
  %v6077 = vsel %vm3136, %v6075, %v6076
  %v6078 = vrot.slane %v6000, 5
  %v6079 = vrot.slane %v6078, 4
  %v6080 = vrot.slane %v6001, 5
  %v6081 = vsel %vm3136, %v6079, %v6080
  %v6082 = vrot.slane %v6002, 5
  %v6083 = vrot.slane %v6082, 4
  %v6084 = vrot.slane %v6003, 5
  %v6085 = vsel %vm3136, %v6083, %v6084
  %v6086 = vrot.slane %v6004, 5
  %v6087 = vrot.slane %v6086, 4
  %v6088 = vrot.slane %v6005, 5
  %v6089 = vsel %vm3136, %v6087, %v6088
  %v6090 = vrot.slane %v6006, 5
  %v6091 = vrot.slane %v6090, 4
  %v6092 = vrot.slane %v6007, 5
  %v6093 = vsel %vm3136, %v6091, %v6092
  %v6094 = vrot.slane %v6008, 5
  %v6095 = vrot.slane %v6094, 4
  %v6096 = vrot.slane %v6009, 5
  %v6097 = vsel %vm3136, %v6095, %v6096
  %v6098 = vrot.slane %v6010, 5
  %v6099 = vrot.slane %v6098, 4
  %v6100 = vrot.slane %v6011, 5
  %v6101 = vsel %vm3136, %v6099, %v6100
  %v6102 = vrot.slane %v6012, 5
  %v6103 = vrot.slane %v6102, 4
  %v6104 = vrot.slane %v6013, 5
  %v6105 = vsel %vm3136, %v6103, %v6104
  %v6106 = vrot.slane %v6014, 5
  %v6107 = vrot.slane %v6106, 4
  %v6108 = vrot.slane %v6015, 5
  %v6109 = vsel %vm3136, %v6107, %v6108
  %v6110 = vrot.slane %v6016, 5
  %v6111 = vrot.slane %v6110, 4
  %v6112 = vrot.slane %v6017, 5
  %v6113 = vsel %vm3136, %v6111, %v6112
  %v6114 = vunpack.c.l.b16 %v6053
  %v6115 = vunpack.c.l.b16 %v6057
  %v6116 = vunpack.c.l.b16 %v6061
  %v6117 = vunpack.c.l.b16 %v6065
  %v6118 = vunpack.c.l.b16 %v6069
  %v6119 = vunpack.c.l.b16 %v6073
  %v6120 = vunpack.c.l.b16 %v6077
  %v6121 = vunpack.c.l.b16 %v6081
  %v6122 = vunpack.c.l.b16 %v6085
  %v6123 = vunpack.c.l.b16 %v6089
  %v6124 = vunpack.c.l.b16 %v6093
  %v6125 = vunpack.c.l.b16 %v6097
  %v6126 = vunpack.c.l.b16 %v6101
  %v6127 = vunpack.c.l.b16 %v6105
  %v6128 = vunpack.c.l.b16 %v6109
  %v6129 = vunpack.c.l.b16 %v6113
  %v6130 = vpack.c.b16 %v6115, %v6114
  %v6131 = vpack.c.b16 %v6117, %v6116
  %v6132 = vpack.c.b16 %v6119, %v6118
  %v6133 = vpack.c.b16 %v6121, %v6120
  %v6134 = vpack.c.b16 %v6123, %v6122
  %v6135 = vpack.c.b16 %v6125, %v6124
  %v6136 = vpack.c.b16 %v6127, %v6126
  %v6137 = vpack.c.b16 %v6129, %v6128
  %6146 = vst [vmem:[#allocation4 + $0x8] sm:$0xff] %v6130
  %6147 = vst [vmem:[#allocation4 + $0x28] sm:$0xff] %v6131
  %6148 = vst [vmem:[#allocation4 + $0x48] sm:$0xff] %v6132
  %6149 = vst [vmem:[#allocation4 + $0x68] sm:$0xff] %v6133
  %6150 = vst [vmem:[#allocation4 + $0x88] sm:$0xff] %v6134
  %6151 = vst [vmem:[#allocation4 + $0xa8] sm:$0xff] %v6135
  %6152 = vst [vmem:[#allocation4 + $0xc8] sm:$0xff] %v6136
  %6153 = vst [vmem:[#allocation4 + $0xe8] sm:$0xff] %v6137
  %v6154 = vld [vmem:[%s4697] sm:$0xf]
  %v6155 = vld [vmem:[%s4697 + $0x4] sm:$0x1]
  %v6156 = vld [vmem:[%s4697 + $0x8] sm:$0xf]
  %v6157 = vld [vmem:[%s4697 + $0xc] sm:$0x1]
  %v6158 = vld [vmem:[%s4697 + $0x10] sm:$0xf]
  %v6159 = vld [vmem:[%s4697 + $0x14] sm:$0x1]
  %v6160 = vld [vmem:[%s4697 + $0x18] sm:$0xf]
  %v6161 = vld [vmem:[%s4697 + $0x1c] sm:$0x1]
  %v6162 = vld [vmem:[%s4697 + $0x20] sm:$0xf]
  %v6163 = vld [vmem:[%s4697 + $0x24] sm:$0x1]
  %v6164 = vld [vmem:[%s4697 + $0x28] sm:$0xf]
  %v6165 = vld [vmem:[%s4697 + $0x2c] sm:$0x1]
  %v6166 = vld [vmem:[%s4697 + $0x30] sm:$0xf]
  %v6167 = vld [vmem:[%s4697 + $0x34] sm:$0x1]
  %v6168 = vld [vmem:[%s4697 + $0x38] sm:$0xf]
  %v6169 = vld [vmem:[%s4697 + $0x3c] sm:$0x1]
  %v6170 = vld [vmem:[%s4697 + $0x50] sm:$0xf]
  %v6171 = vld [vmem:[%s4697 + $0x54] sm:$0x1]
  %v6172 = vld [vmem:[%s4697 + $0x58] sm:$0xf]
  %v6173 = vld [vmem:[%s4697 + $0x5c] sm:$0x1]
  %v6174 = vld [vmem:[%s4697 + $0x60] sm:$0xf]
  %v6175 = vld [vmem:[%s4697 + $0x64] sm:$0x1]
  %v6176 = vld [vmem:[%s4697 + $0x68] sm:$0xf]
  %v6177 = vld [vmem:[%s4697 + $0x6c] sm:$0x1]
  %v6178 = vld [vmem:[%s4697 + $0x70] sm:$0xf]
  %v6179 = vld [vmem:[%s4697 + $0x74] sm:$0x1]
  %v6180 = vld [vmem:[%s4697 + $0x78] sm:$0xf]
  %v6181 = vld [vmem:[%s4697 + $0x7c] sm:$0x1]
  %v6182 = vld [vmem:[%s4697 + $0x80] sm:$0xf]
  %v6183 = vld [vmem:[%s4697 + $0x84] sm:$0x1]
  %v6184 = vld [vmem:[%s4697 + $0x88] sm:$0xf]
  %v6185 = vld [vmem:[%s4697 + $0x8c] sm:$0x1]
  %v6187 = vshrl.u32 %v6154, 16
  %v6189 = vrot.slane %v6187, 4
  %v6190 = vshll.u32 %v6154, 16
  %v6192 = vrot.slane %v6190, 5
  %v6193 = vor.u32 %v6189, %v6192
  %v6194 = vrot.slane %v6193, 4
  %v6196 = vshll.u32 %v6155, 16
  %v6198 = vrot.slane %v6196, 5
  %v6199 = vsel %vm220, %v6194, %v6198
  %v6201 = vshrl.u32 %v6156, 16
  %v6203 = vrot.slane %v6201, 4
  %v6204 = vshll.u32 %v6156, 16
  %v6206 = vrot.slane %v6204, 5
  %v6207 = vor.u32 %v6203, %v6206
  %v6208 = vrot.slane %v6207, 4
  %v6210 = vshll.u32 %v6157, 16
  %v6212 = vrot.slane %v6210, 5
  %v6213 = vsel %vm220, %v6208, %v6212
  %v6215 = vshrl.u32 %v6158, 16
  %v6217 = vrot.slane %v6215, 4
  %v6218 = vshll.u32 %v6158, 16
  %v6220 = vrot.slane %v6218, 5
  %v6221 = vor.u32 %v6217, %v6220
  %v6222 = vrot.slane %v6221, 4
  %v6224 = vshll.u32 %v6159, 16
  %v6226 = vrot.slane %v6224, 5
  %v6227 = vsel %vm220, %v6222, %v6226
  %v6229 = vshrl.u32 %v6160, 16
  %v6231 = vrot.slane %v6229, 4
  %v6232 = vshll.u32 %v6160, 16
  %v6234 = vrot.slane %v6232, 5
  %v6235 = vor.u32 %v6231, %v6234
  %v6236 = vrot.slane %v6235, 4
  %v6238 = vshll.u32 %v6161, 16
  %v6240 = vrot.slane %v6238, 5
  %v6241 = vsel %vm220, %v6236, %v6240
  %v6243 = vshrl.u32 %v6162, 16
  %v6245 = vrot.slane %v6243, 4
  %v6246 = vshll.u32 %v6162, 16
  %v6248 = vrot.slane %v6246, 5
  %v6249 = vor.u32 %v6245, %v6248
  %v6250 = vrot.slane %v6249, 4
  %v6252 = vshll.u32 %v6163, 16
  %v6254 = vrot.slane %v6252, 5
  %v6255 = vsel %vm220, %v6250, %v6254
  %v6257 = vshrl.u32 %v6164, 16
  %v6259 = vrot.slane %v6257, 4
  %v6260 = vshll.u32 %v6164, 16
  %v6262 = vrot.slane %v6260, 5
  %v6263 = vor.u32 %v6259, %v6262
  %v6264 = vrot.slane %v6263, 4
  %v6266 = vshll.u32 %v6165, 16
  %v6268 = vrot.slane %v6266, 5
  %v6269 = vsel %vm220, %v6264, %v6268
  %v6271 = vshrl.u32 %v6166, 16
  %v6273 = vrot.slane %v6271, 4
  %v6274 = vshll.u32 %v6166, 16
  %v6276 = vrot.slane %v6274, 5
  %v6277 = vor.u32 %v6273, %v6276
  %v6278 = vrot.slane %v6277, 4
  %v6280 = vshll.u32 %v6167, 16
  %v6282 = vrot.slane %v6280, 5
  %v6283 = vsel %vm220, %v6278, %v6282
  %v6285 = vshrl.u32 %v6168, 16
  %v6287 = vrot.slane %v6285, 4
  %v6288 = vshll.u32 %v6168, 16
  %v6290 = vrot.slane %v6288, 5
  %v6291 = vor.u32 %v6287, %v6290
  %v6292 = vrot.slane %v6291, 4
  %v6294 = vshll.u32 %v6169, 16
  %v6296 = vrot.slane %v6294, 5
  %v6297 = vsel %vm220, %v6292, %v6296
  %v6299 = vshrl.u32 %v6170, 16
  %v6301 = vrot.slane %v6299, 4
  %v6302 = vshll.u32 %v6170, 16
  %v6304 = vrot.slane %v6302, 5
  %v6305 = vor.u32 %v6301, %v6304
  %v6306 = vrot.slane %v6305, 4
  %v6308 = vshll.u32 %v6171, 16
  %v6310 = vrot.slane %v6308, 5
  %v6311 = vsel %vm220, %v6306, %v6310
  %v6313 = vshrl.u32 %v6172, 16
  %v6315 = vrot.slane %v6313, 4
  %v6316 = vshll.u32 %v6172, 16
  %v6318 = vrot.slane %v6316, 5
  %v6319 = vor.u32 %v6315, %v6318
  %v6320 = vrot.slane %v6319, 4
  %v6322 = vshll.u32 %v6173, 16
  %v6324 = vrot.slane %v6322, 5
  %v6325 = vsel %vm220, %v6320, %v6324
  %v6327 = vshrl.u32 %v6174, 16
  %v6329 = vrot.slane %v6327, 4
  %v6330 = vshll.u32 %v6174, 16
  %v6332 = vrot.slane %v6330, 5
  %v6333 = vor.u32 %v6329, %v6332
  %v6334 = vrot.slane %v6333, 4
  %v6336 = vshll.u32 %v6175, 16
  %v6338 = vrot.slane %v6336, 5
  %v6339 = vsel %vm220, %v6334, %v6338
  %v6341 = vshrl.u32 %v6176, 16
  %v6343 = vrot.slane %v6341, 4
  %v6344 = vshll.u32 %v6176, 16
  %v6346 = vrot.slane %v6344, 5
  %v6347 = vor.u32 %v6343, %v6346
  %v6348 = vrot.slane %v6347, 4
  %v6350 = vshll.u32 %v6177, 16
  %v6352 = vrot.slane %v6350, 5
  %v6353 = vsel %vm220, %v6348, %v6352
  %v6355 = vshrl.u32 %v6178, 16
  %v6357 = vrot.slane %v6355, 4
  %v6358 = vshll.u32 %v6178, 16
  %v6360 = vrot.slane %v6358, 5
  %v6361 = vor.u32 %v6357, %v6360
  %v6362 = vrot.slane %v6361, 4
  %v6364 = vshll.u32 %v6179, 16
  %v6366 = vrot.slane %v6364, 5
  %v6367 = vsel %vm220, %v6362, %v6366
  %v6369 = vshrl.u32 %v6180, 16
  %v6371 = vrot.slane %v6369, 4
  %v6372 = vshll.u32 %v6180, 16
  %v6374 = vrot.slane %v6372, 5
  %v6375 = vor.u32 %v6371, %v6374
  %v6376 = vrot.slane %v6375, 4
  %v6378 = vshll.u32 %v6181, 16
  %v6380 = vrot.slane %v6378, 5
  %v6381 = vsel %vm220, %v6376, %v6380
  %v6383 = vshrl.u32 %v6182, 16
  %v6385 = vrot.slane %v6383, 4
  %v6386 = vshll.u32 %v6182, 16
  %v6388 = vrot.slane %v6386, 5
  %v6389 = vor.u32 %v6385, %v6388
  %v6390 = vrot.slane %v6389, 4
  %v6392 = vshll.u32 %v6183, 16
  %v6394 = vrot.slane %v6392, 5
  %v6395 = vsel %vm220, %v6390, %v6394
  %v6397 = vshrl.u32 %v6184, 16
  %v6399 = vrot.slane %v6397, 4
  %v6400 = vshll.u32 %v6184, 16
  %v6402 = vrot.slane %v6400, 5
  %v6403 = vor.u32 %v6399, %v6402
  %v6404 = vrot.slane %v6403, 4
  %v6406 = vshll.u32 %v6185, 16
  %v6408 = vrot.slane %v6406, 5
  %v6409 = vsel %vm220, %v6404, %v6408
  %v6410 = vunpack.c.l.b16 %v6199
  %v6411 = vunpack.c.l.b16 %v6213
  %v6412 = vunpack.c.l.b16 %v6227
  %v6413 = vunpack.c.l.b16 %v6241
  %v6414 = vunpack.c.l.b16 %v6255
  %v6415 = vunpack.c.l.b16 %v6269
  %v6416 = vunpack.c.l.b16 %v6283
  %v6417 = vunpack.c.l.b16 %v6297
  %v6418 = vunpack.c.l.b16 %v6311
  %v6419 = vunpack.c.l.b16 %v6325
  %v6420 = vunpack.c.l.b16 %v6339
  %v6421 = vunpack.c.l.b16 %v6353
  %v6422 = vunpack.c.l.b16 %v6367
  %v6423 = vunpack.c.l.b16 %v6381
  %v6424 = vunpack.c.l.b16 %v6395
  %v6425 = vunpack.c.l.b16 %v6409
  %v6426 = vpack.c.b16 %v6411, %v6410
  %v6427 = vpack.c.b16 %v6413, %v6412
  %v6428 = vpack.c.b16 %v6415, %v6414
  %v6429 = vpack.c.b16 %v6417, %v6416
  %v6430 = vpack.c.b16 %v6419, %v6418
  %v6431 = vpack.c.b16 %v6421, %v6420
  %v6432 = vpack.c.b16 %v6423, %v6422
  %v6433 = vpack.c.b16 %v6425, %v6424
  %6442 = vst [vmem:[#allocation4 + $0x10] sm:$0xff] %v6426
  %6443 = vst [vmem:[#allocation4 + $0x30] sm:$0xff] %v6427
  %6444 = vst [vmem:[#allocation4 + $0x50] sm:$0xff] %v6428
  %6445 = vst [vmem:[#allocation4 + $0x70] sm:$0xff] %v6429
  %6446 = vst [vmem:[#allocation4 + $0x90] sm:$0xff] %v6430
  %6447 = vst [vmem:[#allocation4 + $0xb0] sm:$0xff] %v6431
  %6448 = vst [vmem:[#allocation4 + $0xd0] sm:$0xff] %v6432
  %6449 = vst [vmem:[#allocation4 + $0xf0] sm:$0xff] %v6433
  %v6450 = vld [vmem:[%s4697] sm:$0xe]
  %v6451 = vld [vmem:[%s4697 + $0x4] sm:$0x1]
  %v6452 = vld [vmem:[%s4697 + $0x8] sm:$0xe]
  %v6453 = vld [vmem:[%s4697 + $0xc] sm:$0x1]
  %v6454 = vld [vmem:[%s4697 + $0x10] sm:$0xe]
  %v6455 = vld [vmem:[%s4697 + $0x14] sm:$0x1]
  %v6456 = vld [vmem:[%s4697 + $0x18] sm:$0xe]
  %v6457 = vld [vmem:[%s4697 + $0x1c] sm:$0x1]
  %v6458 = vld [vmem:[%s4697 + $0x20] sm:$0xe]
  %v6459 = vld [vmem:[%s4697 + $0x24] sm:$0x1]
  %v6460 = vld [vmem:[%s4697 + $0x28] sm:$0xe]
  %v6461 = vld [vmem:[%s4697 + $0x2c] sm:$0x1]
  %v6462 = vld [vmem:[%s4697 + $0x30] sm:$0xe]
  %v6463 = vld [vmem:[%s4697 + $0x34] sm:$0x1]
  %v6464 = vld [vmem:[%s4697 + $0x38] sm:$0xe]
  %v6465 = vld [vmem:[%s4697 + $0x3c] sm:$0x1]
  %v6466 = vld [vmem:[%s4697 + $0x50] sm:$0xe]
  %v6467 = vld [vmem:[%s4697 + $0x54] sm:$0x1]
  %v6468 = vld [vmem:[%s4697 + $0x58] sm:$0xe]
  %v6469 = vld [vmem:[%s4697 + $0x5c] sm:$0x1]
  %v6470 = vld [vmem:[%s4697 + $0x60] sm:$0xe]
  %v6471 = vld [vmem:[%s4697 + $0x64] sm:$0x1]
  %v6472 = vld [vmem:[%s4697 + $0x68] sm:$0xe]
  %v6473 = vld [vmem:[%s4697 + $0x6c] sm:$0x1]
  %v6474 = vld [vmem:[%s4697 + $0x70] sm:$0xe]
  %v6475 = vld [vmem:[%s4697 + $0x74] sm:$0x1]
  %v6476 = vld [vmem:[%s4697 + $0x78] sm:$0xe]
  %v6477 = vld [vmem:[%s4697 + $0x7c] sm:$0x1]
  %v6478 = vld [vmem:[%s4697 + $0x80] sm:$0xe]
  %v6479 = vld [vmem:[%s4697 + $0x84] sm:$0x1]
  %v6480 = vld [vmem:[%s4697 + $0x88] sm:$0xe]
  %v6481 = vld [vmem:[%s4697 + $0x8c] sm:$0x1]
  %v6514 = vrot.slane %v6450, 5
  %v6515 = vrot.slane %v6514, 4
  %v6516 = vrot.slane %v6451, 5
  %v6517 = vsel %vm3136, %v6515, %v6516
  %v6518 = vrot.slane %v6452, 5
  %v6519 = vrot.slane %v6518, 4
  %v6520 = vrot.slane %v6453, 5
  %v6521 = vsel %vm3136, %v6519, %v6520
  %v6522 = vrot.slane %v6454, 5
  %v6523 = vrot.slane %v6522, 4
  %v6524 = vrot.slane %v6455, 5
  %v6525 = vsel %vm3136, %v6523, %v6524
  %v6526 = vrot.slane %v6456, 5
  %v6527 = vrot.slane %v6526, 4
  %v6528 = vrot.slane %v6457, 5
  %v6529 = vsel %vm3136, %v6527, %v6528
  %v6530 = vrot.slane %v6458, 5
  %v6531 = vrot.slane %v6530, 4
  %v6532 = vrot.slane %v6459, 5
  %v6533 = vsel %vm3136, %v6531, %v6532
  %v6534 = vrot.slane %v6460, 5
  %v6535 = vrot.slane %v6534, 4
  %v6536 = vrot.slane %v6461, 5
  %v6537 = vsel %vm3136, %v6535, %v6536
  %v6538 = vrot.slane %v6462, 5
  %v6539 = vrot.slane %v6538, 4
  %v6540 = vrot.slane %v6463, 5
  %v6541 = vsel %vm3136, %v6539, %v6540
  %v6542 = vrot.slane %v6464, 5
  %v6543 = vrot.slane %v6542, 4
  %v6544 = vrot.slane %v6465, 5
  %v6545 = vsel %vm3136, %v6543, %v6544
  %v6546 = vrot.slane %v6466, 5
  %v6547 = vrot.slane %v6546, 4
  %v6548 = vrot.slane %v6467, 5
  %v6549 = vsel %vm3136, %v6547, %v6548
  %v6550 = vrot.slane %v6468, 5
  %v6551 = vrot.slane %v6550, 4
  %v6552 = vrot.slane %v6469, 5
  %v6553 = vsel %vm3136, %v6551, %v6552
  %v6554 = vrot.slane %v6470, 5
  %v6555 = vrot.slane %v6554, 4
  %v6556 = vrot.slane %v6471, 5
  %v6557 = vsel %vm3136, %v6555, %v6556
  %v6558 = vrot.slane %v6472, 5
  %v6559 = vrot.slane %v6558, 4
  %v6560 = vrot.slane %v6473, 5
  %v6561 = vsel %vm3136, %v6559, %v6560
  %v6562 = vrot.slane %v6474, 5
  %v6563 = vrot.slane %v6562, 4
  %v6564 = vrot.slane %v6475, 5
  %v6565 = vsel %vm3136, %v6563, %v6564
  %v6566 = vrot.slane %v6476, 5
  %v6567 = vrot.slane %v6566, 4
  %v6568 = vrot.slane %v6477, 5
  %v6569 = vsel %vm3136, %v6567, %v6568
  %v6570 = vrot.slane %v6478, 5
  %v6571 = vrot.slane %v6570, 4
  %v6572 = vrot.slane %v6479, 5
  %v6573 = vsel %vm3136, %v6571, %v6572
  %v6574 = vrot.slane %v6480, 5
  %v6575 = vrot.slane %v6574, 4
  %v6576 = vrot.slane %v6481, 5
  %v6577 = vsel %vm3136, %v6575, %v6576
  %v6578 = vunpack.c.l.b16 %v6517
  %v6579 = vunpack.c.l.b16 %v6521
  %v6580 = vunpack.c.l.b16 %v6525
  %v6581 = vunpack.c.l.b16 %v6529
  %v6582 = vunpack.c.l.b16 %v6533
  %v6583 = vunpack.c.l.b16 %v6537
  %v6584 = vunpack.c.l.b16 %v6541
  %v6585 = vunpack.c.l.b16 %v6545
  %v6586 = vunpack.c.l.b16 %v6549
  %v6587 = vunpack.c.l.b16 %v6553
  %v6588 = vunpack.c.l.b16 %v6557
  %v6589 = vunpack.c.l.b16 %v6561
  %v6590 = vunpack.c.l.b16 %v6565
  %v6591 = vunpack.c.l.b16 %v6569
  %v6592 = vunpack.c.l.b16 %v6573
  %v6593 = vunpack.c.l.b16 %v6577
  %v6594 = vpack.c.b16 %v6579, %v6578
  %v6595 = vpack.c.b16 %v6581, %v6580
  %v6596 = vpack.c.b16 %v6583, %v6582
  %v6597 = vpack.c.b16 %v6585, %v6584
  %v6598 = vpack.c.b16 %v6587, %v6586
  %v6599 = vpack.c.b16 %v6589, %v6588
  %v6600 = vpack.c.b16 %v6591, %v6590
  %v6601 = vpack.c.b16 %v6593, %v6592
  %6610 = vst [vmem:[#allocation4 + $0x18] sm:$0xff] %v6594
  %6611 = vst [vmem:[#allocation4 + $0x38] sm:$0xff] %v6595
  %6612 = vst [vmem:[#allocation4 + $0x58] sm:$0xff] %v6596
  %6613 = vst [vmem:[#allocation4 + $0x78] sm:$0xff] %v6597
  %6614 = vst [vmem:[#allocation4 + $0x98] sm:$0xff] %v6598
  %6615 = vst [vmem:[#allocation4 + $0xb8] sm:$0xff] %v6599
  %6616 = vst [vmem:[#allocation4 + $0xd8] sm:$0xff] %v6600
  %6617 = vst [vmem:[#allocation4 + $0xf8] sm:$0xff] %v6601
  %v6618 = vld [vmem:[#allocation4] sm:$0xff]
  %v6619 = vld [vmem:[#allocation4 + $0x8] sm:$0xff]
  %v6620 = vld [vmem:[#allocation4 + $0x10] sm:$0xff]
  %v6621 = vld [vmem:[#allocation4 + $0x18] sm:$0xff]
  %v6622 = vld [vmem:[#allocation4 + $0x20] sm:$0xff]
  %v6623 = vld [vmem:[#allocation4 + $0x28] sm:$0xff]
  %v6624 = vld [vmem:[#allocation4 + $0x30] sm:$0xff]
  %v6625 = vld [vmem:[#allocation4 + $0x38] sm:$0xff]
  %v6626 = vld [vmem:[#allocation4 + $0x40] sm:$0xff]
  %v6627 = vld [vmem:[#allocation4 + $0x48] sm:$0xff]
  %v6628 = vld [vmem:[#allocation4 + $0x50] sm:$0xff]
  %v6629 = vld [vmem:[#allocation4 + $0x58] sm:$0xff]
  %v6630 = vld [vmem:[#allocation4 + $0x60] sm:$0xff]
  %v6631 = vld [vmem:[#allocation4 + $0x68] sm:$0xff]
  %v6632 = vld [vmem:[#allocation4 + $0x70] sm:$0xff]
  %v6633 = vld [vmem:[#allocation4 + $0x78] sm:$0xff]
  %v6634 = vld [vmem:[#allocation4 + $0x80] sm:$0xff]
  %v6635 = vld [vmem:[#allocation4 + $0x88] sm:$0xff]
  %v6636 = vld [vmem:[#allocation4 + $0x90] sm:$0xff]
  %v6637 = vld [vmem:[#allocation4 + $0x98] sm:$0xff]
  %v6638 = vld [vmem:[#allocation4 + $0xa0] sm:$0xff]
  %v6639 = vld [vmem:[#allocation4 + $0xa8] sm:$0xff]
  %v6640 = vld [vmem:[#allocation4 + $0xb0] sm:$0xff]
  %v6641 = vld [vmem:[#allocation4 + $0xb8] sm:$0xff]
  %v6642 = vld [vmem:[#allocation4 + $0xc0] sm:$0xff]
  %v6643 = vld [vmem:[#allocation4 + $0xc8] sm:$0xff]
  %v6644 = vld [vmem:[#allocation4 + $0xd0] sm:$0xff]
  %v6645 = vld [vmem:[#allocation4 + $0xd8] sm:$0xff]
  %v6646 = vld [vmem:[#allocation4 + $0xe0] sm:$0xff]
  %v6647 = vld [vmem:[#allocation4 + $0xe8] sm:$0xff]
  %v6648 = vld [vmem:[#allocation4 + $0xf0] sm:$0xff]
  %v6649 = vld [vmem:[#allocation4 + $0xf8] sm:$0xff]
  %s6650 = scalar_lea.vmem %s2, 768
  %v6651 = vld [vmem:[%s6650] sm:$0xf]
  %v6652 = vld [vmem:[%s6650 + $0x4] sm:$0xf]
  %v6653 = vld [vmem:[%s6650 + $0x8] sm:$0xf]
  %v6654 = vld [vmem:[%s6650 + $0xc] sm:$0xf]
  %v6655 = vld [vmem:[%s6650 + $0x10] sm:$0xf]
  %v6656 = vld [vmem:[%s6650 + $0x14] sm:$0xf]
  %v6657 = vld [vmem:[%s6650 + $0x18] sm:$0xf]
  %v6658 = vld [vmem:[%s6650 + $0x1c] sm:$0xf]
  %v6659 = vld [vmem:[%s6650 + $0x20] sm:$0xf]
  %v6660 = vld [vmem:[%s6650 + $0x24] sm:$0xf]
  %v6661 = vld [vmem:[%s6650 + $0x28] sm:$0xf]
  %v6662 = vld [vmem:[%s6650 + $0x2c] sm:$0xf]
  %v6663 = vld [vmem:[%s6650 + $0x30] sm:$0xf]
  %v6664 = vld [vmem:[%s6650 + $0x34] sm:$0xf]
  %v6665 = vld [vmem:[%s6650 + $0x38] sm:$0xf]
  %v6666 = vld [vmem:[%s6650 + $0x3c] sm:$0xf]
  %v6667 = vld [vmem:[%s6650 + $0x40] sm:$0xf]
  %v6668 = vld [vmem:[%s6650 + $0x44] sm:$0xf]
  %v6669 = vld [vmem:[%s6650 + $0x48] sm:$0xf]
  %v6670 = vld [vmem:[%s6650 + $0x4c] sm:$0xf]
  %v6671 = vld [vmem:[%s6650 + $0x50] sm:$0xf]
  %v6672 = vld [vmem:[%s6650 + $0x54] sm:$0xf]
  %v6673 = vld [vmem:[%s6650 + $0x58] sm:$0xf]
  %v6674 = vld [vmem:[%s6650 + $0x5c] sm:$0xf]
  %v6675 = vld [vmem:[%s6650 + $0x60] sm:$0xf]
  %v6676 = vld [vmem:[%s6650 + $0x64] sm:$0xf]
  %v6677 = vld [vmem:[%s6650 + $0x68] sm:$0xf]
  %v6678 = vld [vmem:[%s6650 + $0x6c] sm:$0xf]
  %v6679 = vld [vmem:[%s6650 + $0x70] sm:$0xf]
  %v6680 = vld [vmem:[%s6650 + $0x74] sm:$0xf]
  %v6681 = vld [vmem:[%s6650 + $0x78] sm:$0xf]
  %v6682 = vld [vmem:[%s6650 + $0x7c] sm:$0xf]
  %v6683 = vld [vmem:[%s6650 + $0x80] sm:$0xf]
  %v6684 = vld [vmem:[%s6650 + $0x84] sm:$0xf]
  %v6685 = vld [vmem:[%s6650 + $0x88] sm:$0xf]
  %v6686 = vld [vmem:[%s6650 + $0x8c] sm:$0xf]
  %v6687 = vld [vmem:[%s6650 + $0x90] sm:$0xf]
  %v6688 = vld [vmem:[%s6650 + $0x94] sm:$0xf]
  %v6689 = vld [vmem:[%s6650 + $0x98] sm:$0xf]
  %v6690 = vld [vmem:[%s6650 + $0x9c] sm:$0xf]
  %v6691 = vld [vmem:[%s6650 + $0xa0] sm:$0xf]
  %v6692 = vld [vmem:[%s6650 + $0xa4] sm:$0xf]
  %v6693 = vld [vmem:[%s6650 + $0xa8] sm:$0xf]
  %v6694 = vld [vmem:[%s6650 + $0xac] sm:$0xf]
  %v6695 = vld [vmem:[%s6650 + $0xb0] sm:$0xf]
  %v6696 = vld [vmem:[%s6650 + $0xb4] sm:$0xf]
  %v6697 = vld [vmem:[%s6650 + $0xb8] sm:$0xf]
  %v6698 = vld [vmem:[%s6650 + $0xbc] sm:$0xf]
  %v6699 = vld [vmem:[%s6650 + $0xc0] sm:$0xf]
  %v6700 = vld [vmem:[%s6650 + $0xc4] sm:$0xf]
  %v6701 = vld [vmem:[%s6650 + $0xc8] sm:$0xf]
  %v6702 = vld [vmem:[%s6650 + $0xcc] sm:$0xf]
  %v6703 = vld [vmem:[%s6650 + $0xd0] sm:$0xf]
  %v6704 = vld [vmem:[%s6650 + $0xd4] sm:$0xf]
  %v6705 = vld [vmem:[%s6650 + $0xd8] sm:$0xf]
  %v6706 = vld [vmem:[%s6650 + $0xdc] sm:$0xf]
  %v6707 = vld [vmem:[%s6650 + $0xe0] sm:$0xf]
  %v6708 = vld [vmem:[%s6650 + $0xe4] sm:$0xf]
  %v6709 = vld [vmem:[%s6650 + $0xe8] sm:$0xf]
  %v6710 = vld [vmem:[%s6650 + $0xec] sm:$0xf]
  %v6711 = vld [vmem:[%s6650 + $0xf0] sm:$0xf]
  %v6712 = vld [vmem:[%s6650 + $0xf4] sm:$0xf]
  %v6713 = vld [vmem:[%s6650 + $0xf8] sm:$0xf]
  %v6714 = vld [vmem:[%s6650 + $0xfc] sm:$0xf]
  %v6779 = vunpack.c.l.b16 %v6651
  %v6780 = vunpack.c.l.b16 %v6652
  %v6781 = vunpack.c.l.b16 %v6653
  %v6782 = vunpack.c.l.b16 %v6654
  %v6783 = vunpack.c.l.b16 %v6655
  %v6784 = vunpack.c.l.b16 %v6656
  %v6785 = vunpack.c.l.b16 %v6657
  %v6786 = vunpack.c.l.b16 %v6658
  %v6787 = vunpack.c.l.b16 %v6659
  %v6788 = vunpack.c.l.b16 %v6660
  %v6789 = vunpack.c.l.b16 %v6661
  %v6790 = vunpack.c.l.b16 %v6662
  %v6791 = vunpack.c.l.b16 %v6663
  %v6792 = vunpack.c.l.b16 %v6664
  %v6793 = vunpack.c.l.b16 %v6665
  %v6794 = vunpack.c.l.b16 %v6666
  %v6795 = vunpack.c.l.b16 %v6667
  %v6796 = vunpack.c.l.b16 %v6668
  %v6797 = vunpack.c.l.b16 %v6669
  %v6798 = vunpack.c.l.b16 %v6670
  %v6799 = vunpack.c.l.b16 %v6671
  %v6800 = vunpack.c.l.b16 %v6672
  %v6801 = vunpack.c.l.b16 %v6673
  %v6802 = vunpack.c.l.b16 %v6674
  %v6803 = vunpack.c.l.b16 %v6675
  %v6804 = vunpack.c.l.b16 %v6676
  %v6805 = vunpack.c.l.b16 %v6677
  %v6806 = vunpack.c.l.b16 %v6678
  %v6807 = vunpack.c.l.b16 %v6679
  %v6808 = vunpack.c.l.b16 %v6680
  %v6809 = vunpack.c.l.b16 %v6681
  %v6810 = vunpack.c.l.b16 %v6682
  %v6811 = vunpack.c.l.b16 %v6683
  %v6812 = vunpack.c.l.b16 %v6684
  %v6813 = vunpack.c.l.b16 %v6685
  %v6814 = vunpack.c.l.b16 %v6686
  %v6815 = vunpack.c.l.b16 %v6687
  %v6816 = vunpack.c.l.b16 %v6688
  %v6817 = vunpack.c.l.b16 %v6689
  %v6818 = vunpack.c.l.b16 %v6690
  %v6819 = vunpack.c.l.b16 %v6691
  %v6820 = vunpack.c.l.b16 %v6692
  %v6821 = vunpack.c.l.b16 %v6693
  %v6822 = vunpack.c.l.b16 %v6694
  %v6823 = vunpack.c.l.b16 %v6695
  %v6824 = vunpack.c.l.b16 %v6696
  %v6825 = vunpack.c.l.b16 %v6697
  %v6826 = vunpack.c.l.b16 %v6698
  %v6827 = vunpack.c.l.b16 %v6699
  %v6828 = vunpack.c.l.b16 %v6700
  %v6829 = vunpack.c.l.b16 %v6701
  %v6830 = vunpack.c.l.b16 %v6702
  %v6831 = vunpack.c.l.b16 %v6703
  %v6832 = vunpack.c.l.b16 %v6704
  %v6833 = vunpack.c.l.b16 %v6705
  %v6834 = vunpack.c.l.b16 %v6706
  %v6835 = vunpack.c.l.b16 %v6707
  %v6836 = vunpack.c.l.b16 %v6708
  %v6837 = vunpack.c.l.b16 %v6709
  %v6838 = vunpack.c.l.b16 %v6710
  %v6839 = vunpack.c.l.b16 %v6711
  %v6840 = vunpack.c.l.b16 %v6712
  %v6841 = vunpack.c.l.b16 %v6713
  %v6842 = vunpack.c.l.b16 %v6714
  %v6843 = vpack.c.b16 %v6780, %v6779
  %v6844 = vpack.c.b16 %v6782, %v6781
  %v6845 = vpack.c.b16 %v6784, %v6783
  %v6846 = vpack.c.b16 %v6786, %v6785
  %v6847 = vpack.c.b16 %v6788, %v6787
  %v6848 = vpack.c.b16 %v6790, %v6789
  %v6849 = vpack.c.b16 %v6792, %v6791
  %v6850 = vpack.c.b16 %v6794, %v6793
  %v6851 = vpack.c.b16 %v6796, %v6795
  %v6852 = vpack.c.b16 %v6798, %v6797
  %v6853 = vpack.c.b16 %v6800, %v6799
  %v6854 = vpack.c.b16 %v6802, %v6801
  %v6855 = vpack.c.b16 %v6804, %v6803
  %v6856 = vpack.c.b16 %v6806, %v6805
  %v6857 = vpack.c.b16 %v6808, %v6807
  %v6858 = vpack.c.b16 %v6810, %v6809
  %v6859 = vpack.c.b16 %v6812, %v6811
  %v6860 = vpack.c.b16 %v6814, %v6813
  %v6861 = vpack.c.b16 %v6816, %v6815
  %v6862 = vpack.c.b16 %v6818, %v6817
  %v6863 = vpack.c.b16 %v6820, %v6819
  %v6864 = vpack.c.b16 %v6822, %v6821
  %v6865 = vpack.c.b16 %v6824, %v6823
  %v6866 = vpack.c.b16 %v6826, %v6825
  %v6867 = vpack.c.b16 %v6828, %v6827
  %v6868 = vpack.c.b16 %v6830, %v6829
  %v6869 = vpack.c.b16 %v6832, %v6831
  %v6870 = vpack.c.b16 %v6834, %v6833
  %v6871 = vpack.c.b16 %v6836, %v6835
  %v6872 = vpack.c.b16 %v6838, %v6837
  %v6873 = vpack.c.b16 %v6840, %v6839
  %v6874 = vpack.c.b16 %v6842, %v6841
  %6907 = vmatprep.subr.bf16.mxu0 0
  %6908 = vmatpush1.bf16.msra.mxu0 %v6843
  %6909 = vmatprep.subr.bf16.mxu0 0
  %6910 = vmatpush1.bf16.msra.mxu0 %v6844
  %6911 = vmatprep.subr.bf16.mxu0 0
  %6912 = vmatpush1.bf16.msra.mxu0 %v6845
  %6913 = vmatprep.subr.bf16.mxu0 0
  %6914 = vmatpush1.bf16.msra.mxu0 %v6846
  %6915 = vmatprep.subr.bf16.mxu0 0
  %6916 = vmatpush1.bf16.msra.mxu0 %v6847
  %6917 = vmatprep.subr.bf16.mxu0 0
  %6918 = vmatpush1.bf16.msra.mxu0 %v6848
  %6919 = vmatprep.subr.bf16.mxu0 0
  %6920 = vmatpush1.bf16.msra.mxu0 %v6849
  %6921 = vmatprep.subr.bf16.mxu0 0
  %6922 = vmatpush1.bf16.msra.mxu0 %v6850
  %6923 = vmatprep.subr.bf16.mxu0 0
  %6924 = vmatpush1.bf16.msra.mxu0 %v6851
  %6925 = vmatprep.subr.bf16.mxu0 0
  %6926 = vmatpush1.bf16.msra.mxu0 %v6852
  %6927 = vmatprep.subr.bf16.mxu0 0
  %6928 = vmatpush1.bf16.msra.mxu0 %v6853
  %6929 = vmatprep.subr.bf16.mxu0 0
  %6930 = vmatpush1.bf16.msra.mxu0 %v6854
  %6931 = vmatprep.subr.bf16.mxu0 0
  %6932 = vmatpush1.bf16.msra.mxu0 %v6855
  %6933 = vmatprep.subr.bf16.mxu0 0
  %6934 = vmatpush1.bf16.msra.mxu0 %v6856
  %6935 = vmatprep.subr.bf16.mxu0 0
  %6936 = vmatpush1.bf16.msra.mxu0 %v6857
  %6937 = vmatprep.subr.bf16.mxu0 0
  %6938 = vmatpush1.bf16.msra.mxu0 %v6858
  %6939 = vmatprep.mubr.bf16.mxu0 %v6619
  %6940 = vmatmul.mubr.bf16.gmra.mrb[0].mxu0 %v6618
  %v6941 = vpop.f32.mrb[0].mxu0
  %v6942 = vadd.f32 0.0, %v6941
  %v6943 = vpop.f32.mrb[0].mxu0
  %v6944 = vpop.f32.mrb[0].mxu0
  %v6945 = vadd.f32 0.0, %v6944
  %v6946 = vpop.f32.mrb[0].mxu0
  %6947 = vmatprep.mubr.bf16.mxu0 %v6623
  %6948 = vmatmul.mubr.bf16.gmra.mrb[0].mxu0 %v6622
  %v6949 = vpop.f32.mrb[0].mxu0
  %v6950 = vadd.f32 0.0, %v6949
  %v6951 = vpop.f32.mrb[0].mxu0
  %v6952 = vpop.f32.mrb[0].mxu0
  %v6953 = vadd.f32 0.0, %v6952
  %v6954 = vpop.f32.mrb[0].mxu0
  %6955 = vmatprep.mubr.bf16.mxu0 %v6627
  %6956 = vmatmul.mubr.bf16.gmra.mrb[0].mxu0 %v6626
  %v6957 = vpop.f32.mrb[0].mxu0
  %v6958 = vadd.f32 0.0, %v6957
  %v6959 = vpop.f32.mrb[0].mxu0
  %v6960 = vpop.f32.mrb[0].mxu0
  %v6961 = vadd.f32 0.0, %v6960
  %v6962 = vpop.f32.mrb[0].mxu0
  %6963 = vmatprep.mubr.bf16.mxu0 %v6631
  %6964 = vmatmul.mubr.bf16.gmra.mrb[0].mxu0 %v6630
  %v6965 = vpop.f32.mrb[0].mxu0
  %v6966 = vadd.f32 0.0, %v6965
  %v6967 = vpop.f32.mrb[0].mxu0
  %v6968 = vpop.f32.mrb[0].mxu0
  %v6969 = vadd.f32 0.0, %v6968
  %v6970 = vpop.f32.mrb[0].mxu0
  %6971 = vmatprep.mubr.bf16.mxu0 %v6635
  %6972 = vmatmul.mubr.bf16.gmra.mrb[0].mxu0 %v6634
  %v6973 = vpop.f32.mrb[0].mxu0
  %v6974 = vadd.f32 0.0, %v6973
  %v6975 = vpop.f32.mrb[0].mxu0
  %v6976 = vpop.f32.mrb[0].mxu0
  %v6977 = vadd.f32 0.0, %v6976
  %v6978 = vpop.f32.mrb[0].mxu0
  %6979 = vmatprep.mubr.bf16.mxu0 %v6639
  %6980 = vmatmul.mubr.bf16.gmra.mrb[0].mxu0 %v6638
  %v6981 = vpop.f32.mrb[0].mxu0
  %v6982 = vadd.f32 0.0, %v6981
  %v6983 = vpop.f32.mrb[0].mxu0
  %v6984 = vpop.f32.mrb[0].mxu0
  %v6985 = vadd.f32 0.0, %v6984
  %v6986 = vpop.f32.mrb[0].mxu0
  %6987 = vmatprep.mubr.bf16.mxu0 %v6643
  %6988 = vmatmul.mubr.bf16.gmra.mrb[0].mxu0 %v6642
  %v6989 = vpop.f32.mrb[0].mxu0
  %v6990 = vadd.f32 0.0, %v6989
  %v6991 = vpop.f32.mrb[0].mxu0
  %v6992 = vpop.f32.mrb[0].mxu0
  %v6993 = vadd.f32 0.0, %v6992
  %v6994 = vpop.f32.mrb[0].mxu0
  %6995 = vmatprep.mubr.bf16.mxu0 %v6647
  %6996 = vmatmul.mubr.bf16.gmra.mrb[0].mxu0 %v6646
  %v6997 = vpop.f32.mrb[0].mxu0
  %v6998 = vadd.f32 0.0, %v6997
  %v6999 = vpop.f32.mrb[0].mxu0
  %v7000 = vpop.f32.mrb[0].mxu0
  %v7001 = vadd.f32 0.0, %v7000
  %v7002 = vpop.f32.mrb[0].mxu0
  %7003 = vdwg.mxu0
  %7004 = vmatprep.subr.bf16.mxu0 0
  %7005 = vmatpush1.bf16.msra.mxu0 %v6859
  %7006 = vmatprep.subr.bf16.mxu0 0
  %7007 = vmatpush1.bf16.msra.mxu0 %v6860
  %7008 = vmatprep.subr.bf16.mxu0 0
  %7009 = vmatpush1.bf16.msra.mxu0 %v6861
  %7010 = vmatprep.subr.bf16.mxu0 0
  %7011 = vmatpush1.bf16.msra.mxu0 %v6862
  %7012 = vmatprep.subr.bf16.mxu0 0
  %7013 = vmatpush1.bf16.msra.mxu0 %v6863
  %7014 = vmatprep.subr.bf16.mxu0 0
  %7015 = vmatpush1.bf16.msra.mxu0 %v6864
  %7016 = vmatprep.subr.bf16.mxu0 0
  %7017 = vmatpush1.bf16.msra.mxu0 %v6865
  %7018 = vmatprep.subr.bf16.mxu0 0
  %7019 = vmatpush1.bf16.msra.mxu0 %v6866
  %7020 = vmatprep.subr.bf16.mxu0 0
  %7021 = vmatpush1.bf16.msra.mxu0 %v6867
  %7022 = vmatprep.subr.bf16.mxu0 0
  %7023 = vmatpush1.bf16.msra.mxu0 %v6868
  %7024 = vmatprep.subr.bf16.mxu0 0
  %7025 = vmatpush1.bf16.msra.mxu0 %v6869
  %7026 = vmatprep.subr.bf16.mxu0 0
  %7027 = vmatpush1.bf16.msra.mxu0 %v6870
  %7028 = vmatprep.subr.bf16.mxu0 0
  %7029 = vmatpush1.bf16.msra.mxu0 %v6871
  %7030 = vmatprep.subr.bf16.mxu0 0
  %7031 = vmatpush1.bf16.msra.mxu0 %v6872
  %7032 = vmatprep.subr.bf16.mxu0 0
  %7033 = vmatpush1.bf16.msra.mxu0 %v6873
  %7034 = vmatprep.subr.bf16.mxu0 0
  %7035 = vmatpush1.bf16.msra.mxu0 %v6874
  %7036 = vmatprep.mubr.bf16.mxu0 %v6621
  %7037 = vmatmul.mubr.bf16.gmra.mrb[0].mxu0 %v6620
  %v7038 = vpop.f32.mrb[0].mxu0
  %v7039 = vadd.f32 %v6942, %v7038
  %v7040 = vpop.f32.mrb[0].mxu0
  %v7041 = vpop.f32.mrb[0].mxu0
  %v7042 = vadd.f32 %v6945, %v7041
  %v7043 = vpop.f32.mrb[0].mxu0
  %7044 = vmatprep.mubr.bf16.mxu0 %v6625
  %7045 = vmatmul.mubr.bf16.gmra.mrb[0].mxu0 %v6624
  %v7046 = vpop.f32.mrb[0].mxu0
  %v7047 = vadd.f32 %v6950, %v7046
  %v7048 = vpop.f32.mrb[0].mxu0
  %v7049 = vpop.f32.mrb[0].mxu0
  %v7050 = vadd.f32 %v6953, %v7049
  %v7051 = vpop.f32.mrb[0].mxu0
  %7052 = vmatprep.mubr.bf16.mxu0 %v6629
  %7053 = vmatmul.mubr.bf16.gmra.mrb[0].mxu0 %v6628
  %v7054 = vpop.f32.mrb[0].mxu0
  %v7055 = vadd.f32 %v6958, %v7054
  %v7056 = vpop.f32.mrb[0].mxu0
  %v7057 = vpop.f32.mrb[0].mxu0
  %v7058 = vadd.f32 %v6961, %v7057
  %v7059 = vpop.f32.mrb[0].mxu0
  %7060 = vmatprep.mubr.bf16.mxu0 %v6633
  %7061 = vmatmul.mubr.bf16.gmra.mrb[0].mxu0 %v6632
  %v7062 = vpop.f32.mrb[0].mxu0
  %v7063 = vadd.f32 %v6966, %v7062
  %v7064 = vpop.f32.mrb[0].mxu0
  %v7065 = vpop.f32.mrb[0].mxu0
  %v7066 = vadd.f32 %v6969, %v7065
  %v7067 = vpop.f32.mrb[0].mxu0
  %7068 = vmatprep.mubr.bf16.mxu0 %v6637
  %7069 = vmatmul.mubr.bf16.gmra.mrb[0].mxu0 %v6636
  %v7070 = vpop.f32.mrb[0].mxu0
  %v7071 = vadd.f32 %v6974, %v7070
  %v7072 = vpop.f32.mrb[0].mxu0
  %v7073 = vpop.f32.mrb[0].mxu0
  %v7074 = vadd.f32 %v6977, %v7073
  %v7075 = vpop.f32.mrb[0].mxu0
  %7076 = vmatprep.mubr.bf16.mxu0 %v6641
  %7077 = vmatmul.mubr.bf16.gmra.mrb[0].mxu0 %v6640
  %v7078 = vpop.f32.mrb[0].mxu0
  %v7079 = vadd.f32 %v6982, %v7078
  %v7080 = vpop.f32.mrb[0].mxu0
  %v7081 = vpop.f32.mrb[0].mxu0
  %v7082 = vadd.f32 %v6985, %v7081
  %v7083 = vpop.f32.mrb[0].mxu0
  %7084 = vmatprep.mubr.bf16.mxu0 %v6645
  %7085 = vmatmul.mubr.bf16.gmra.mrb[0].mxu0 %v6644
  %v7086 = vpop.f32.mrb[0].mxu0
  %v7087 = vadd.f32 %v6990, %v7086
  %v7088 = vpop.f32.mrb[0].mxu0
  %v7089 = vpop.f32.mrb[0].mxu0
  %v7090 = vadd.f32 %v6993, %v7089
  %v7091 = vpop.f32.mrb[0].mxu0
  %7092 = vmatprep.mubr.bf16.mxu0 %v6649
  %7093 = vmatmul.mubr.bf16.gmra.mrb[0].mxu0 %v6648
  %v7094 = vpop.f32.mrb[0].mxu0
  %v7095 = vadd.f32 %v6998, %v7094
  %v7096 = vpop.f32.mrb[0].mxu0
  %v7097 = vpop.f32.mrb[0].mxu0
  %v7098 = vadd.f32 %v7001, %v7097
  %v7099 = vpop.f32.mrb[0].mxu0
  %7100 = vdwg.mxu0
  %v7101 = vpack.c.bf16 %v7042, %v7039
  %v7102 = vpack.c.bf16 %v7050, %v7047
  %v7103 = vpack.c.bf16 %v7058, %v7055
  %v7104 = vpack.c.bf16 %v7066, %v7063
  %v7105 = vpack.c.bf16 %v7074, %v7071
  %v7106 = vpack.c.bf16 %v7082, %v7079
  %v7107 = vpack.c.bf16 %v7090, %v7087
  %v7108 = vpack.c.bf16 %v7098, %v7095
  %v7117 = vunpack.c.l.b16 %v7101
  %v7118 = vunpack.c.h.b16 %v7101
  %v7119 = vunpack.c.l.b16 %v7102
  %v7120 = vunpack.c.h.b16 %v7102
  %v7121 = vunpack.c.l.b16 %v7103
  %v7122 = vunpack.c.h.b16 %v7103
  %v7123 = vunpack.c.l.b16 %v7104
  %v7124 = vunpack.c.h.b16 %v7104
  %v7125 = vunpack.c.l.b16 %v7105
  %v7126 = vunpack.c.h.b16 %v7105
  %v7127 = vunpack.c.l.b16 %v7106
  %v7128 = vunpack.c.h.b16 %v7106
  %v7129 = vunpack.c.l.b16 %v7107
  %v7130 = vunpack.c.h.b16 %v7107
  %v7131 = vunpack.c.l.b16 %v7108
  %v7132 = vunpack.c.h.b16 %v7108
  %v7133 = vpack.c.b16 %v7117, %v7117
  %v7134 = vpack.c.b16 %v7118, %v7118
  %v7135 = vpack.c.b16 %v7119, %v7119
  %v7136 = vpack.c.b16 %v7120, %v7120
  %v7137 = vpack.c.b16 %v7121, %v7121
  %v7138 = vpack.c.b16 %v7122, %v7122
  %v7139 = vpack.c.b16 %v7123, %v7123
  %v7140 = vpack.c.b16 %v7124, %v7124
  %v7141 = vpack.c.b16 %v7125, %v7125
  %v7142 = vpack.c.b16 %v7126, %v7126
  %v7143 = vpack.c.b16 %v7127, %v7127
  %v7144 = vpack.c.b16 %v7128, %v7128
  %v7145 = vpack.c.b16 %v7129, %v7129
  %v7146 = vpack.c.b16 %v7130, %v7130
  %v7147 = vpack.c.b16 %v7131, %v7131
  %v7148 = vpack.c.b16 %v7132, %v7132
  %s7165 = scalar_lea.vmem %s3, 96
  %7166 = vst [vmem:[%s7165] sm:$0xf] %v7133
  %7167 = vst [vmem:[%s7165 + $0x4] sm:$0xf] %v7134
  %7168 = vst [vmem:[%s7165 + $0x8] sm:$0xf] %v7135
  %7169 = vst [vmem:[%s7165 + $0xc] sm:$0xf] %v7136
  %7170 = vst [vmem:[%s7165 + $0x10] sm:$0xf] %v7137
  %7171 = vst [vmem:[%s7165 + $0x14] sm:$0xf] %v7138
  %7172 = vst [vmem:[%s7165 + $0x18] sm:$0xf] %v7139
  %7173 = vst [vmem:[%s7165 + $0x1c] sm:$0xf] %v7140
  %7174 = vst [vmem:[%s7165 + $0x80] sm:$0xf] %v7141
  %7175 = vst [vmem:[%s7165 + $0x84] sm:$0xf] %v7142
  %7176 = vst [vmem:[%s7165 + $0x88] sm:$0xf] %v7143
  %7177 = vst [vmem:[%s7165 + $0x8c] sm:$0xf] %v7144
  %7178 = vst [vmem:[%s7165 + $0x90] sm:$0xf] %v7145
  %7179 = vst [vmem:[%s7165 + $0x94] sm:$0xf] %v7146
  %7180 = vst [vmem:[%s7165 + $0x98] sm:$0xf] %v7147
  %7181 = vst [vmem:[%s7165 + $0x9c] sm:$0xf] %v7148
  %v7182 = vadd.f32 %v7039, %v7042
  %v7183 = vadd.f32 %v7182, %v7047
  %v7184 = vadd.f32 %v7183, %v7050
  %v7185 = vadd.f32 %v7184, %v7055
  %v7186 = vadd.f32 %v7185, %v7058
  %v7187 = vadd.f32 %v7186, %v7063
  %v7188 = vadd.f32 %v7187, %v7066
  %v7189 = vadd.f32 %v7188, %v7071
  %v7190 = vadd.f32 %v7189, %v7074
  %v7191 = vadd.f32 %v7190, %v7079
  %v7192 = vadd.f32 %v7191, %v7082
  %v7193 = vadd.f32 %v7192, %v7087
  %v7194 = vadd.f32 %v7193, %v7090
  %v7195 = vadd.f32 %v7194, %v7095
  %v7196 = vadd.f32 %v7195, %v7098
  %v7197 = vrot.slane %v7196, 4
  %v7198 = vadd.f32 %v7196, %v7197
  %v7199 = vrot.slane %v7198, 2
  %v7200 = vadd.f32 %v7198, %v7199
  %v7201 = vrot.slane %v7200, 1
  %v7202 = vadd.f32 %v7200, %v7201
  %v7203 = vadd.f32 %v5651, %v7202
  %v7204 = vmul.f32 %v7039, %v7039
  %v7205 = vmul.f32 %v7042, %v7042
  %v7206 = vmul.f32 %v7047, %v7047
  %v7207 = vmul.f32 %v7050, %v7050
  %v7208 = vmul.f32 %v7055, %v7055
  %v7209 = vmul.f32 %v7058, %v7058
  %v7210 = vmul.f32 %v7063, %v7063
  %v7211 = vmul.f32 %v7066, %v7066
  %v7212 = vmul.f32 %v7071, %v7071
  %v7213 = vmul.f32 %v7074, %v7074
  %v7214 = vmul.f32 %v7079, %v7079
  %v7215 = vmul.f32 %v7082, %v7082
  %v7216 = vmul.f32 %v7087, %v7087
  %v7217 = vmul.f32 %v7090, %v7090
  %v7218 = vmul.f32 %v7095, %v7095
  %v7219 = vmul.f32 %v7098, %v7098
  %v7220 = vadd.f32 %v7204, %v7205
  %v7221 = vadd.f32 %v7220, %v7206
  %v7222 = vadd.f32 %v7221, %v7207
  %v7223 = vadd.f32 %v7222, %v7208
  %v7224 = vadd.f32 %v7223, %v7209
  %v7225 = vadd.f32 %v7224, %v7210
  %v7226 = vadd.f32 %v7225, %v7211
  %v7227 = vadd.f32 %v7226, %v7212
  %v7228 = vadd.f32 %v7227, %v7213
  %v7229 = vadd.f32 %v7228, %v7214
  %v7230 = vadd.f32 %v7229, %v7215
  %v7231 = vadd.f32 %v7230, %v7216
  %v7232 = vadd.f32 %v7231, %v7217
  %v7233 = vadd.f32 %v7232, %v7218
  %v7234 = vadd.f32 %v7233, %v7219
  %v7235 = vrot.slane %v7234, 4
  %v7236 = vadd.f32 %v7234, %v7235
  %v7237 = vrot.slane %v7236, 2
  %v7238 = vadd.f32 %v7236, %v7237
  %v7239 = vrot.slane %v7238, 1
  %v7240 = vadd.f32 %v7238, %v7239
  %v7241 = vadd.f32 %v5689, %v7240
  %vm7242 = vcmask 1040384
  %v7243 = vsel %vm7242, %v7203, %v7241
  %7244 = vst [vmem:[%s4] sm:$0x3] %v7243
  // Predicated region
  $region14: #{unet_innermost_block.2} parent=0 // pred_check
    _
  $region15: #{unet_innermost_block.2} parent=0 // pred_check_branch
    %7246 = sbr.rel (0) target = $region17
  $region16: #{unet_innermost_block.2} parent=0 // pred_region
    _
  $region17: #{unet_innermost_block.2} parent=0 // pred_fallthru
    _
  // Predicated region
  $region18: #{unet_innermost_block.2} parent=0 // pred_check
    _
  $region19: #{unet_innermost_block.2} parent=0 // pred_check_branch
    %7248 = sbr.rel (0) target = $region21
  $region20: #{unet_innermost_block.2} parent=0 // pred_region
    _
  $region21: #{unet_innermost_block.2} parent=0 // pred_fallthru
    _
  // Predicated region
  $region22: #{unet_innermost_block.2} parent=0 // pred_check
    _
  $region23: #{unet_innermost_block.2} parent=0 // pred_check_branch
    %7250 = sbr.rel (0) target = $region25
  $region24: #{unet_innermost_block.2} parent=0 // pred_region
    _
  $region25: #{unet_innermost_block.2} parent=0 // pred_fallthru
    _
  // Predicated region
  $region26: #{unet_innermost_block.2} parent=0 // pred_check
    _
  $region27: #{unet_innermost_block.2} parent=0 // pred_check_branch
    %7252 = sbr.rel (0) target = $region29
  $region28: #{unet_innermost_block.2} parent=0 // pred_region
    _
  $region29: #{unet_innermost_block.2} parent=0 // pred_fallthru
    _

</llo_original>
